<compile_context>
chip_gen: v6e
topology: v6e:2x2x1
jax: 0.10.0
libtpu: 0.0.40
codegen_flags: <defaults>
</compile_context>

<pallas_src>
import functools

import jax
import jax.numpy as jnp
import numpy as np
from jax import lax
from jax.experimental import pallas as pl
from jax.experimental.pallas import tpu as pltpu


def _pool_out(n):
    """Output size of a k=3, stride=3, pad=1 pool (PyTorch floor mode)."""
    return (n - 1) // 3 + 1


# ------------------------------ fused kernel -------------------------------

def _flower_kernel(H1, C1, C2, C3,
                   x_ref, w1_ref, b1_ref, w2_ref, b2_ref, w3_ref, b3_ref,
                   out_ref,
                   c1_ref, a2_ref, c2_ref, a3_ref, c3_ref):
    """One batch sample per grid step.  Activation layout: (channels, flat),
    flat index = row * (W+2) + col over the padded (H+2, W+2) grid, with the
    flat spatial axis on lanes."""
    f32 = jnp.float32
    NEG = -jnp.inf                      # max-pool padding value

    H2, H3 = _pool_out(H1), _pool_out(_pool_out(H1))
    H4 = _pool_out(H3)
    Wp1, Wp2, Wp3 = H1 + 2, H2 + 2, H3 + 2

    def conv3x3(load_tap, w_ref, b_ref, H, cout, pad_val):
        """3x3 'same' conv over a zero-padded flat slab.

        load_tap(off, L) returns the (cin, L) lane-slice of the padded
        activation starting at flat offset `off`.  Result: (cout, H*(H+2)),
        with the row wrap-around "garbage" columns forced to `pad_val`
        (the padding value of the pooling stage that consumes it)."""
        Wp = H + 2
        L = H * Wp
        acc = jnp.zeros((cout, L), f32)
        for k in range(9):
            dy, dx = divmod(k, 3)
            acc = acc + jnp.dot(w_ref[k], load_tap(dy * Wp + dx, L),
                                preferred_element_type=f32)
        acc = acc + b_ref[...]                              # (cout,1) bcast
        col = lax.broadcasted_iota(jnp.int32, (1, L), 1) % Wp
        return jnp.where(col < H, acc, pad_val)

    def pool3x3(c_ref, H, reduce_fn, sel_scale, emit_row):
        """k=3 / stride-3 / pad-1 pool over the padded conv slab in c_ref,
        fused with ReLU.  emit_row(ho, y) consumes each (cout, Ho) row."""
        Wp = H + 2
        Ho = _pool_out(H)
        # Stride-3 column selection as a one-hot (H, Ho) matmul.
        r_i = lax.broadcasted_iota(jnp.int32, (H, Ho), 0)
        c_i = lax.broadcasted_iota(jnp.int32, (H, Ho), 1)
        sel = jnp.where(r_i == 3 * c_i, sel_scale, 0.0).astype(f32)
        for ho in range(Ho):
            r0 = c_ref[:, pl.ds((3 * ho + 0) * Wp, Wp)]
            r1 = c_ref[:, pl.ds((3 * ho + 1) * Wp, Wp)]
            r2 = c_ref[:, pl.ds((3 * ho + 2) * Wp, Wp)]
            rr = reduce_fn(reduce_fn(r0, r1), r2)                     # (cout, Wp)
            mm = reduce_fn(reduce_fn(rr[:, 0:H], rr[:, 1:H + 1]), rr[:, 2:H + 2])
            pooled = jnp.dot(mm, sel, preferred_element_type=f32)    # (cout, Ho)
            emit_row(ho, jnp.maximum(pooled, 0.0))                   # fused ReLU

    # ---- stage 1: conv(3->16) -> avgpool(count_include_pad) -> relu --------
    c1_ref[...] = jnp.zeros(c1_ref.shape, f32)        # avg-pool pad value: 0
    a2_ref[...] = jnp.zeros(a2_ref.shape, f32)        # conv2 zero padding

    conv1 = conv3x3(lambda off, L: x_ref[0, :, pl.ds(off, L)],
                    w1_ref, b1_ref, H1, C1, 0.0)
    c1_ref[:, pl.ds(Wp1 + 1, H1 * Wp1)] = conv1

    def emit1(ho, y):                                  # y: (C1, H2)
        a2_ref[:, pl.ds((ho + 1) * Wp2 + 1, H2)] = y
    pool3x3(c1_ref, H1, jnp.add, 1.0 / 9.0, emit1)

    # ---- stage 2: conv(16->32) -> maxpool -> relu ---------------------------
    c2_ref[...] = jnp.full(c2_ref.shape, NEG, f32)
    a3_ref[...] = jnp.zeros(a3_ref.shape, f32)         # conv3 zero padding

    conv2 = conv3x3(lambda off, L: a2_ref[:, pl.ds(off, L)],
                    w2_ref, b2_ref, H2, C2, NEG)
    c2_ref[:, pl.ds(Wp2 + 1, H2 * Wp2)] = conv2

    def emit2(ho, y):                                  # y: (C2, H3)
        a3_ref[:, pl.ds((ho + 1) * Wp3 + 1, H3)] = y
    pool3x3(c2_ref, H2, jnp.maximum, 1.0, emit2)

    # ---- stage 3: conv(32->8) -> maxpool -> relu ----------------------------
    c3_ref[...] = jnp.full(c3_ref.shape, NEG, f32)

    conv3 = conv3x3(lambda off, L: a3_ref[:, pl.ds(off, L)],
                    w3_ref, b3_ref, H3, C3, NEG)
    c3_ref[:, pl.ds(Wp3 + 1, H3 * Wp3)] = conv3

    def emit3(ho, y):                                  # y: (C3, H4)
        out_ref[0, :, pl.ds(ho * H4, H4)] = y
    pool3x3(c3_ref, H3, jnp.maximum, 1.0, emit3)


# --------------------------------- wrapper ----------------------------------

def init_params(key):
    def conv_init(k, cin, cout):
        kw, kb = jax.random.split(k)
        bound = 1.0 / np.sqrt(cin * 9)
        w = jax.random.uniform(kw, (cout, cin, 3, 3), jnp.float32, -bound, bound)
        b = jax.random.uniform(kb, (cout,), jnp.float32, -bound, bound)
        return w, b

    k1, k2, k3 = jax.random.split(key, 3)
    return {"conv1": conv_init(k1, 3, 16),
            "conv2": conv_init(k2, 16, 32),
            "conv3": conv_init(k3, 32, 8)}


def flower_net_2_forward(params, x_nchw):
    x = x_nchw.astype(jnp.float32)
    N, cin, H1, W1 = x.shape
    if H1 != W1:
        raise ValueError("kernel assumes square spatial input")
    (w1, b1), (w2, b2), (w3, b3) = (params["conv1"], params["conv2"],
                                    params["conv3"])
    C1, C2, C3 = w1.shape[0], w2.shape[0], w3.shape[0]
    assert C1 % 8 == 0 and C2 % 8 == 0 and C3 % 8 == 0

    H2, H3 = _pool_out(H1), _pool_out(_pool_out(H1))
    H4 = _pool_out(H3)
    Wp1, Wp2, Wp3 = H1 + 2, H2 + 2, H3 + 2
    cin_k = ((cin + 7) // 8) * 8          # pad conv1 input channels to sublane multiple

    # Input prep (tiny, one-time): zero-pad spatially by 1, flatten to a
    # lane-dense (cin, flat) slab, +2 slack so in-kernel tap slices stay in bounds.
    lp_in = (H1 + 2) * Wp1 + 2
    xp = jnp.pad(x, ((0, 0), (0, 0), (1, 1), (1, 1)))
    x_flat = xp.reshape(N, cin, (H1 + 2) * Wp1)
    x_flat = jnp.pad(x_flat, ((0, 0), (0, cin_k - cin),
                              (0, lp_in - (H1 + 2) * Wp1)))

    def prep_w(w, cin_to=None):           # (cout,cin,3,3) -> (9, cout, cin)
        wk = jnp.transpose(w, (2, 3, 0, 1)).reshape(9, w.shape[0], w.shape[1])
        if cin_to is not None and cin_to != w.shape[1]:
            wk = jnp.pad(wk, ((0, 0), (0, 0), (0, cin_to - w.shape[1])))
        return wk.astype(jnp.float32)

    w1k = prep_w(w1, cin_k)
    w2k = prep_w(w2)
    w3k = prep_w(w3)
    b1c = b1.reshape(-1, 1).astype(jnp.float32)
    b2c = b2.reshape(-1, 1).astype(jnp.float32)
    b3c = b3.reshape(-1, 1).astype(jnp.float32)

    kernel = functools.partial(_flower_kernel, H1, C1, C2, C3)

    def full_spec(shape):
        return pl.BlockSpec(shape, lambda n: (0,) * len(shape))

    grid_spec = pltpu.PrefetchScalarGridSpec(
        num_scalar_prefetch=0,
        grid=(N,),
        in_specs=[
            pl.BlockSpec((1, cin_k, lp_in), lambda n: (n, 0, 0)),
            full_spec(w1k.shape), full_spec(b1c.shape),
            full_spec(w2k.shape), full_spec(b2c.shape),
            full_spec(w3k.shape), full_spec(b3c.shape),
        ],
        out_specs=pl.BlockSpec((1, C3, H4 * H4), lambda n: (n, 0, 0)),
        scratch_shapes=[
            pltpu.VMEM((C1, (H1 + 2) * Wp1), jnp.float32),      # conv1 out (padded grid)
            pltpu.VMEM((C1, (H2 + 2) * Wp2 + 2), jnp.float32),  # stage-2 input (padded)
            pltpu.VMEM((C2, (H2 + 2) * Wp2), jnp.float32),      # conv2 out (padded grid)
            pltpu.VMEM((C2, (H3 + 2) * Wp3 + 2), jnp.float32),  # stage-3 input (padded)
            pltpu.VMEM((C3, (H3 + 2) * Wp3), jnp.float32),      # conv3 out (padded grid)
        ],
    )

    flops = 2 * N * 9 * (H1 * H1 * C1 * cin + H2 * H2 * C2 * C1
                         + H3 * H3 * C3 * C2)
    bytes_accessed = 4 * (x_flat.size + w1k.size + w2k.size + w3k.size
                          + b1c.size + b2c.size + b3c.size + N * C3 * H4 * H4)

    out = pl.pallas_call(
        kernel,
        grid_spec=grid_spec,
        out_shape=jax.ShapeDtypeStruct((N, C3, H4 * H4), jnp.float32),
        compiler_params=pltpu.CompilerParams(
            dimension_semantics=("parallel",)),
        cost_estimate=pl.CostEstimate(flops=int(flops), transcendentals=0,
                                      bytes_accessed=int(bytes_accessed)),
    )(x_flat, w1k, b1c, w2k, b2c, w3k, b3c)

    # nn.Flatten on NCHW -> (N, C*H*W) in (c, h, w) order.
    return out.reshape(N, C3 * H4 * H4)


# ------------------------- pure-JAX reference (check) -----------------------

def _reference_forward(params, x):
    (w1, b1), (w2, b2), (w3, b3) = (params["conv1"], params["conv2"],
                                    params["conv3"])

    def conv(x, w, b):
        y = lax.conv_general_dilated(
            x, w, window_strides=(1, 1), padding=((1, 1), (1, 1)),
            dimension_numbers=("NCHW", "OIHW", "NCHW"),
            precision=lax.Precision.HIGHEST)
        return y + b.reshape(1, -1, 1, 1)

    def avgpool(x):  # count_include_pad=True -> sum (zeros for pads) / 9
        s = lax.reduce_window(x, 0.0, lax.add, (1, 1, 3, 3), (1, 1, 3, 3),
                              ((0, 0), (0, 0), (1, 1), (1, 1)))
        return s / 9.0

    def maxpool(x):
        return lax.reduce_window(x, -jnp.inf, lax.max, (1, 1, 3, 3),
                                 (1, 1, 3, 3),
                                 ((0, 0), (0, 0), (1, 1), (1, 1)))

    x = jax.nn.relu(avgpool(conv(x, w1, b1)))
    x = jax.nn.relu(maxpool(conv(x, w2, b2)))
    x = jax.nn.relu(maxpool(conv(x, w3, b3)))
    return x.reshape(x.shape[0], -1)


if __name__ == "__main__":
    key = jax.random.PRNGKey(0)
    pkey, xkey = jax.random.split(key)
    params = init_params(pkey)
    # 3 input channels, 27x27 spatial: 27 -> 9 -> 3 -> 1 through the pools.
    x = jax.random.normal(xkey, (2, 3, 27, 27), jnp.float32)

    out = jax.jit(flower_net_2_forward)(params, x)
    out = jax.block_until_ready(out)
    assert out.shape == (2, 8), out.shape
    assert bool(jnp.all(jnp.isfinite(out)))

    ref = jax.block_until_ready(jax.jit(_reference_forward)(params, x))
    np.testing.assert_allclose(np.asarray(out), np.asarray(ref),
                               rtol=2e-2, atol=1e-2)

    print("KERNEL_OK")
</pallas_src>

<mosaic_0001>
module attributes {stable_mosaic.version = 11 : i64} {
  func.func @_flower_kernel(%arg0: i32, %arg1: memref<1x8x843xf32, #tpu.memory_space<vmem>>, %arg2: memref<9x16x8xf32, #tpu.memory_space<vmem>>, %arg3: memref<16x1xf32, #tpu.memory_space<vmem>>, %arg4: memref<9x32x16xf32, #tpu.memory_space<vmem>>, %arg5: memref<32x1xf32, #tpu.memory_space<vmem>>, %arg6: memref<9x8x32xf32, #tpu.memory_space<vmem>>, %arg7: memref<8x1xf32, #tpu.memory_space<vmem>>, %arg8: memref<1x8x1xf32, #tpu.memory_space<vmem>>, %arg9: memref<16x841xf32, #tpu.memory_space<vmem>>, %arg10: memref<16x123xf32, #tpu.memory_space<vmem>>, %arg11: memref<32x121xf32, #tpu.memory_space<vmem>>, %arg12: memref<32x27xf32, #tpu.memory_space<vmem>>, %arg13: memref<8x25xf32, #tpu.memory_space<vmem>>) attributes {dimension_semantics = [#tpu.dimension_semantics<parallel>], iteration_bounds = array<i64: 2>, scalar_prefetch = 0 : i64, scratch_operands = 5 : i64, tpu.core_type = #tpu.core_type<tc>, window_params = [{transform_indices = @transform_0, window_bounds = array<i64: 1, 8, 843>}, {pipeline_mode = #tpu.pipeline_mode<synchronous>, transform_indices = @transform_1, window_bounds = array<i64: 9, 16, 8>}, {pipeline_mode = #tpu.pipeline_mode<synchronous>, transform_indices = @transform_2, window_bounds = array<i64: 16, 1>}, {pipeline_mode = #tpu.pipeline_mode<synchronous>, transform_indices = @transform_3, window_bounds = array<i64: 9, 32, 16>}, {pipeline_mode = #tpu.pipeline_mode<synchronous>, transform_indices = @transform_4, window_bounds = array<i64: 32, 1>}, {pipeline_mode = #tpu.pipeline_mode<synchronous>, transform_indices = @transform_5, window_bounds = array<i64: 9, 8, 32>}, {pipeline_mode = #tpu.pipeline_mode<synchronous>, transform_indices = @transform_6, window_bounds = array<i64: 8, 1>}, {transform_indices = @transform_7, window_bounds = array<i64: 1, 8, 1>}]} {
    %cst = arith.constant 0.000000e+00 : f32
    %0 = vector.broadcast %cst : f32 to vector<16x841xf32>
    %c0 = arith.constant 0 : index
    %c0_0 = arith.constant 0 : index
    %1 = vector.load %arg9[%c0, %c0_0] : memref<16x841xf32, #tpu.memory_space<vmem>>, vector<16x841xf32>
    tpu.vector_store %arg9[%c0, %c0_0], %0 {strides = array<i32>} : memref<16x841xf32, #tpu.memory_space<vmem>>, vector<16x841xf32>,
    %cst_1 = arith.constant 0.000000e+00 : f32
    %2 = vector.broadcast %cst_1 : f32 to vector<16x123xf32>
    %c0_2 = arith.constant 0 : index
    %c0_3 = arith.constant 0 : index
    %3 = vector.load %arg10[%c0_2, %c0_3] : memref<16x123xf32, #tpu.memory_space<vmem>>, vector<16x123xf32>
    tpu.vector_store %arg10[%c0_2, %c0_3], %2 {strides = array<i32>} : memref<16x123xf32, #tpu.memory_space<vmem>>, vector<16x123xf32>,
    %cst_4 = arith.constant 0.000000e+00 : f32
    %4 = vector.broadcast %cst_4 : f32 to vector<16x783xf32>
    %c0_5 = arith.constant 0 : index
    %c0_6 = arith.constant 0 : index
    %c0_7 = arith.constant 0 : index
    %5 = vector.load %arg2[%c0_5, %c0_6, %c0_7] : memref<9x16x8xf32, #tpu.memory_space<vmem>>, vector<1x16x8xf32>
    %6 = vector.shape_cast %5 : vector<1x16x8xf32> to vector<16x8xf32>
    %c0_8 = arith.constant 0 : index
    %c0_9 = arith.constant 0 : index
    %c0_10 = arith.constant 0 : index
    %7 = vector.load %arg1[%c0_8, %c0_9, %c0_10] : memref<1x8x843xf32, #tpu.memory_space<vmem>>, vector<1x8x783xf32>
    %8 = vector.shape_cast %7 : vector<1x8x783xf32> to vector<8x783xf32>
    %cst_11 = arith.constant dense<0.000000e+00> : vector<16x783xf32>
    %9 = tpu.matmul %6, %8, %cst_11 {dimension_numbers = #tpu.dot_dimension_numbers<[1], [0], [0], [1], [0, 0, 1, 1], [], []>} : vector<16x8xf32>, vector<8x783xf32>, vector<16x783xf32> -> vector<16x783xf32>
    %10 = arith.addf %4, %9 : vector<16x783xf32>
    %c1 = arith.constant 1 : index
    %c0_12 = arith.constant 0 : index
    %c0_13 = arith.constant 0 : index
    %11 = vector.load %arg2[%c1, %c0_12, %c0_13] : memref<9x16x8xf32, #tpu.memory_space<vmem>>, vector<1x16x8xf32>
    %12 = vector.shape_cast %11 : vector<1x16x8xf32> to vector<16x8xf32>
    %c0_14 = arith.constant 0 : index
    %c0_15 = arith.constant 0 : index
    %c1_16 = arith.constant 1 : index
    %13 = vector.load %arg1[%c0_14, %c0_15, %c1_16] : memref<1x8x843xf32, #tpu.memory_space<vmem>>, vector<1x8x783xf32>
    %14 = vector.shape_cast %13 : vector<1x8x783xf32> to vector<8x783xf32>
    %cst_17 = arith.constant dense<0.000000e+00> : vector<16x783xf32>
    %15 = tpu.matmul %12, %14, %cst_17 {dimension_numbers = #tpu.dot_dimension_numbers<[1], [0], [0], [1], [0, 0, 1, 1], [], []>} : vector<16x8xf32>, vector<8x783xf32>, vector<16x783xf32> -> vector<16x783xf32>
    %16 = arith.addf %10, %15 : vector<16x783xf32>
    %c2 = arith.constant 2 : index
    %c0_18 = arith.constant 0 : index
    %c0_19 = arith.constant 0 : index
    %17 = vector.load %arg2[%c2, %c0_18, %c0_19] : memref<9x16x8xf32, #tpu.memory_space<vmem>>, vector<1x16x8xf32>
    %18 = vector.shape_cast %17 : vector<1x16x8xf32> to vector<16x8xf32>
    %c0_20 = arith.constant 0 : index
    %c0_21 = arith.constant 0 : index
    %c2_22 = arith.constant 2 : index
    %19 = vector.load %arg1[%c0_20, %c0_21, %c2_22] : memref<1x8x843xf32, #tpu.memory_space<vmem>>, vector<1x8x783xf32>
    %20 = vector.shape_cast %19 : vector<1x8x783xf32> to vector<8x783xf32>
    %cst_23 = arith.constant dense<0.000000e+00> : vector<16x783xf32>
    %21 = tpu.matmul %18, %20, %cst_23 {dimension_numbers = #tpu.dot_dimension_numbers<[1], [0], [0], [1], [0, 0, 1, 1], [], []>} : vector<16x8xf32>, vector<8x783xf32>, vector<16x783xf32> -> vector<16x783xf32>
    %22 = arith.addf %16, %21 : vector<16x783xf32>
    %c3 = arith.constant 3 : index
    %c0_24 = arith.constant 0 : index
    %c0_25 = arith.constant 0 : index
    %23 = vector.load %arg2[%c3, %c0_24, %c0_25] : memref<9x16x8xf32, #tpu.memory_space<vmem>>, vector<1x16x8xf32>
    %24 = vector.shape_cast %23 : vector<1x16x8xf32> to vector<16x8xf32>
    %c0_26 = arith.constant 0 : index
    %c0_27 = arith.constant 0 : index
    %c29 = arith.constant 29 : index
    %25 = vector.load %arg1[%c0_26, %c0_27, %c29] : memref<1x8x843xf32, #tpu.memory_space<vmem>>, vector<1x8x783xf32>
    %26 = vector.shape_cast %25 : vector<1x8x783xf32> to vector<8x783xf32>
    %cst_28 = arith.constant dense<0.000000e+00> : vector<16x783xf32>
    %27 = tpu.matmul %24, %26, %cst_28 {dimension_numbers = #tpu.dot_dimension_numbers<[1], [0], [0], [1], [0, 0, 1, 1], [], []>} : vector<16x8xf32>, vector<8x783xf32>, vector<16x783xf32> -> vector<16x783xf32>
    %28 = arith.addf %22, %27 : vector<16x783xf32>
    %c4 = arith.constant 4 : index
    %c0_29 = arith.constant 0 : index
    %c0_30 = arith.constant 0 : index
    %29 = vector.load %arg2[%c4, %c0_29, %c0_30] : memref<9x16x8xf32, #tpu.memory_space<vmem>>, vector<1x16x8xf32>
    %30 = vector.shape_cast %29 : vector<1x16x8xf32> to vector<16x8xf32>
    %c0_31 = arith.constant 0 : index
    %c0_32 = arith.constant 0 : index
    %c30 = arith.constant 30 : index
    %31 = vector.load %arg1[%c0_31, %c0_32, %c30] : memref<1x8x843xf32, #tpu.memory_space<vmem>>, vector<1x8x783xf32>
    %32 = vector.shape_cast %31 : vector<1x8x783xf32> to vector<8x783xf32>
    %cst_33 = arith.constant dense<0.000000e+00> : vector<16x783xf32>
    %33 = tpu.matmul %30, %32, %cst_33 {dimension_numbers = #tpu.dot_dimension_numbers<[1], [0], [0], [1], [0, 0, 1, 1], [], []>} : vector<16x8xf32>, vector<8x783xf32>, vector<16x783xf32> -> vector<16x783xf32>
    %34 = arith.addf %28, %33 : vector<16x783xf32>
    %c5 = arith.constant 5 : index
    %c0_34 = arith.constant 0 : index
    %c0_35 = arith.constant 0 : index
    %35 = vector.load %arg2[%c5, %c0_34, %c0_35] : memref<9x16x8xf32, #tpu.memory_space<vmem>>, vector<1x16x8xf32>
    %36 = vector.shape_cast %35 : vector<1x16x8xf32> to vector<16x8xf32>
    %c0_36 = arith.constant 0 : index
    %c0_37 = arith.constant 0 : index
    %c31 = arith.constant 31 : index
    %37 = vector.load %arg1[%c0_36, %c0_37, %c31] : memref<1x8x843xf32, #tpu.memory_space<vmem>>, vector<1x8x783xf32>
    %38 = vector.shape_cast %37 : vector<1x8x783xf32> to vector<8x783xf32>
    %cst_38 = arith.constant dense<0.000000e+00> : vector<16x783xf32>
    %39 = tpu.matmul %36, %38, %cst_38 {dimension_numbers = #tpu.dot_dimension_numbers<[1], [0], [0], [1], [0, 0, 1, 1], [], []>} : vector<16x8xf32>, vector<8x783xf32>, vector<16x783xf32> -> vector<16x783xf32>
    %40 = arith.addf %34, %39 : vector<16x783xf32>
    %c6 = arith.constant 6 : index
    %c0_39 = arith.constant 0 : index
    %c0_40 = arith.constant 0 : index
    %41 = vector.load %arg2[%c6, %c0_39, %c0_40] : memref<9x16x8xf32, #tpu.memory_space<vmem>>, vector<1x16x8xf32>
    %42 = vector.shape_cast %41 : vector<1x16x8xf32> to vector<16x8xf32>
    %c0_41 = arith.constant 0 : index
    %c0_42 = arith.constant 0 : index
    %c58 = arith.constant 58 : index
    %43 = vector.load %arg1[%c0_41, %c0_42, %c58] : memref<1x8x843xf32, #tpu.memory_space<vmem>>, vector<1x8x783xf32>
    %44 = vector.shape_cast %43 : vector<1x8x783xf32> to vector<8x783xf32>
    %cst_43 = arith.constant dense<0.000000e+00> : vector<16x783xf32>
    %45 = tpu.matmul %42, %44, %cst_43 {dimension_numbers = #tpu.dot_dimension_numbers<[1], [0], [0], [1], [0, 0, 1, 1], [], []>} : vector<16x8xf32>, vector<8x783xf32>, vector<16x783xf32> -> vector<16x783xf32>
    %46 = arith.addf %40, %45 : vector<16x783xf32>
    %c7 = arith.constant 7 : index
    %c0_44 = arith.constant 0 : index
    %c0_45 = arith.constant 0 : index
    %47 = vector.load %arg2[%c7, %c0_44, %c0_45] : memref<9x16x8xf32, #tpu.memory_space<vmem>>, vector<1x16x8xf32>
    %48 = vector.shape_cast %47 : vector<1x16x8xf32> to vector<16x8xf32>
    %c0_46 = arith.constant 0 : index
    %c0_47 = arith.constant 0 : index
    %c59 = arith.constant 59 : index
    %49 = vector.load %arg1[%c0_46, %c0_47, %c59] : memref<1x8x843xf32, #tpu.memory_space<vmem>>, vector<1x8x783xf32>
    %50 = vector.shape_cast %49 : vector<1x8x783xf32> to vector<8x783xf32>
    %cst_48 = arith.constant dense<0.000000e+00> : vector<16x783xf32>
    %51 = tpu.matmul %48, %50, %cst_48 {dimension_numbers = #tpu.dot_dimension_numbers<[1], [0], [0], [1], [0, 0, 1, 1], [], []>} : vector<16x8xf32>, vector<8x783xf32>, vector<16x783xf32> -> vector<16x783xf32>
    %52 = arith.addf %46, %51 : vector<16x783xf32>
    %c8 = arith.constant 8 : index
    %c0_49 = arith.constant 0 : index
    %c0_50 = arith.constant 0 : index
    %53 = vector.load %arg2[%c8, %c0_49, %c0_50] : memref<9x16x8xf32, #tpu.memory_space<vmem>>, vector<1x16x8xf32>
    %54 = vector.shape_cast %53 : vector<1x16x8xf32> to vector<16x8xf32>
    %c0_51 = arith.constant 0 : index
    %c0_52 = arith.constant 0 : index
    %c60 = arith.constant 60 : index
    %55 = vector.load %arg1[%c0_51, %c0_52, %c60] : memref<1x8x843xf32, #tpu.memory_space<vmem>>, vector<1x8x783xf32>
    %56 = vector.shape_cast %55 : vector<1x8x783xf32> to vector<8x783xf32>
    %cst_53 = arith.constant dense<0.000000e+00> : vector<16x783xf32>
    %57 = tpu.matmul %54, %56, %cst_53 {dimension_numbers = #tpu.dot_dimension_numbers<[1], [0], [0], [1], [0, 0, 1, 1], [], []>} : vector<16x8xf32>, vector<8x783xf32>, vector<16x783xf32> -> vector<16x783xf32>
    %58 = arith.addf %52, %57 : vector<16x783xf32>
    %c0_54 = arith.constant 0 : index
    %c0_55 = arith.constant 0 : index
    %59 = vector.load %arg3[%c0_54, %c0_55] : memref<16x1xf32, #tpu.memory_space<vmem>>, vector<16x1xf32>
    %60 = vector.broadcast %59 : vector<16x1xf32> to vector<16x783xf32>
    %61 = arith.addf %58, %60 : vector<16x783xf32>
    %62 = tpu.iota {dimensions = array<i32: 1>} : vector<1x783xi32>
    %c29_i32 = arith.constant 29 : i32
    %c0_i32 = arith.constant 0 : i32
    %63 = arith.cmpi eq, %c29_i32, %c0_i32 : i32
    %c1_i32 = arith.constant 1 : i32
    %64 = arith.select %63, %c1_i32, %c29_i32 : i32
    %65 = vector.broadcast %64 : i32 to vector<1x783xi32>
    %66 = arith.remsi %62, %65 : vector<1x783xi32>
    %c0_i32_56 = arith.constant 0 : i32
    %67 = vector.broadcast %c0_i32_56 : i32 to vector<1x783xi32>
    %68 = arith.cmpi ne, %66, %67 : vector<1x783xi32>
    %c0_i32_57 = arith.constant 0 : i32
    %69 = vector.broadcast %c0_i32_57 : i32 to vector<1x783xi32>
    %70 = arith.cmpi slt, %66, %69 : vector<1x783xi32>
    %c0_i32_58 = arith.constant 0 : i32
    %71 = arith.cmpi slt, %64, %c0_i32_58 : i32
    %72 = vector.broadcast %71 : i1 to vector<1x783xi1>
    %73 = vector.broadcast %72 : vector<1x783xi1> to vector<1x783xi1>
    %74 = arith.xori %70, %73 : vector<1x783xi1>
    %75 = arith.andi %74, %68 : vector<1x783xi1>
    %76 = vector.broadcast %64 : i32 to vector<1x783xi32>
    %77 = arith.addi %66, %76 : vector<1x783xi32>
    %78 = arith.select %75, %77, %66 : vector<1x783xi1>, vector<1x783xi32>
    %c27_i32 = arith.constant 27 : i32
    %79 = vector.broadcast %c27_i32 : i32 to vector<1x783xi32>
    %80 = arith.cmpi slt, %78, %79 : vector<1x783xi32>
    %cst_59 = arith.constant 0.000000e+00 : f32
    %81 = vector.shape_cast %80 : vector<1x783xi1> to vector<1x783xi1>
    %82 = vector.broadcast %81 : vector<1x783xi1> to vector<16x783xi1>
    %83 = vector.broadcast %cst_59 : f32 to vector<16x783xf32>
    %84 = arith.select %82, %61, %83 : vector<16x783xi1>, vector<16x783xf32>
    %c0_60 = arith.constant 0 : index
    %c30_61 = arith.constant 30 : index
    %85 = vector.load %arg9[%c0_60, %c30_61] : memref<16x841xf32, #tpu.memory_space<vmem>>, vector<16x783xf32>
    tpu.vector_store %arg9[%c0_60, %c30_61], %84 {strides = array<i32>} : memref<16x841xf32, #tpu.memory_space<vmem>>, vector<16x783xf32>,
    %86 = tpu.iota {dimensions = array<i32: 0>} : vector<27x9xi32>
    %87 = tpu.iota {dimensions = array<i32: 1>} : vector<27x9xi32>
    %c3_i32 = arith.constant 3 : i32
    %88 = vector.broadcast %c3_i32 : i32 to vector<27x9xi32>
    %89 = arith.muli %88, %87 : vector<27x9xi32>
    %90 = arith.cmpi eq, %86, %89 : vector<27x9xi32>
    %cst_62 = arith.constant 0.111111112 : f32
    %cst_63 = arith.constant 0.000000e+00 : f32
    %91 = vector.broadcast %cst_62 : f32 to vector<27x9xf32>
    %92 = vector.broadcast %cst_63 : f32 to vector<27x9xf32>
    %93 = arith.select %90, %91, %92 : vector<27x9xi1>, vector<27x9xf32>
    %c0_64 = arith.constant 0 : index
    %c0_65 = arith.constant 0 : index
    %94 = vector.load %arg9[%c0_64, %c0_65] : memref<16x841xf32, #tpu.memory_space<vmem>>, vector<16x29xf32>
    %c0_66 = arith.constant 0 : index
    %c29_67 = arith.constant 29 : index
    %95 = vector.load %arg9[%c0_66, %c29_67] : memref<16x841xf32, #tpu.memory_space<vmem>>, vector<16x29xf32>
    %c0_68 = arith.constant 0 : index
    %c58_69 = arith.constant 58 : index
    %96 = vector.load %arg9[%c0_68, %c58_69] : memref<16x841xf32, #tpu.memory_space<vmem>>, vector<16x29xf32>
    %97 = arith.addf %94, %95 : vector<16x29xf32>
    %98 = arith.addf %97, %96 : vector<16x29xf32>
    %99 = vector.extract_strided_slice %98 {offsets = [0, 0], sizes = [16, 27], strides = [1, 1]} : vector<16x29xf32> to vector<16x27xf32>
    %100 = vector.extract_strided_slice %98 {offsets = [0, 1], sizes = [16, 27], strides = [1, 1]} : vector<16x29xf32> to vector<16x27xf32>
    %101 = arith.addf %99, %100 : vector<16x27xf32>
    %102 = vector.extract_strided_slice %98 {offsets = [0, 2], sizes = [16, 27], strides = [1, 1]} : vector<16x29xf32> to vector<16x27xf32>
    %103 = arith.addf %101, %102 : vector<16x27xf32>
    %cst_70 = arith.constant dense<0.000000e+00> : vector<16x9xf32>
    %104 = tpu.matmul %103, %93, %cst_70 {dimension_numbers = #tpu.dot_dimension_numbers<[1], [0], [0], [1], [0, 0, 1, 1], [], []>} : vector<16x27xf32>, vector<27x9xf32>, vector<16x9xf32> -> vector<16x9xf32>
    %cst_71 = arith.constant 0.000000e+00 : f32
    %105 = vector.broadcast %cst_71 : f32 to vector<16x9xf32>
    %106 = arith.maximumf %104, %105 : vector<16x9xf32>
    %c0_72 = arith.constant 0 : index
    %c12 = arith.constant 12 : index
    %107 = vector.load %arg10[%c0_72, %c12] : memref<16x123xf32, #tpu.memory_space<vmem>>, vector<16x9xf32>
    tpu.vector_store %arg10[%c0_72, %c12], %106 {strides = array<i32>} : memref<16x123xf32, #tpu.memory_space<vmem>>, vector<16x9xf32>,
    %c0_73 = arith.constant 0 : index
    %c87 = arith.constant 87 : index
    %108 = vector.load %arg9[%c0_73, %c87] : memref<16x841xf32, #tpu.memory_space<vmem>>, vector<16x29xf32>
    %c0_74 = arith.constant 0 : index
    %c116 = arith.constant 116 : index
    %109 = vector.load %arg9[%c0_74, %c116] : memref<16x841xf32, #tpu.memory_space<vmem>>, vector<16x29xf32>
    %c0_75 = arith.constant 0 : index
    %c145 = arith.constant 145 : index
    %110 = vector.load %arg9[%c0_75, %c145] : memref<16x841xf32, #tpu.memory_space<vmem>>, vector<16x29xf32>
    %111 = arith.addf %108, %109 : vector<16x29xf32>
    %112 = arith.addf %111, %110 : vector<16x29xf32>
    %113 = vector.extract_strided_slice %112 {offsets = [0, 0], sizes = [16, 27], strides = [1, 1]} : vector<16x29xf32> to vector<16x27xf32>
    %114 = vector.extract_strided_slice %112 {offsets = [0, 1], sizes = [16, 27], strides = [1, 1]} : vector<16x29xf32> to vector<16x27xf32>
    %115 = arith.addf %113, %114 : vector<16x27xf32>
    %116 = vector.extract_strided_slice %112 {offsets = [0, 2], sizes = [16, 27], strides = [1, 1]} : vector<16x29xf32> to vector<16x27xf32>
    %117 = arith.addf %115, %116 : vector<16x27xf32>
    %cst_76 = arith.constant dense<0.000000e+00> : vector<16x9xf32>
    %118 = tpu.matmul %117, %93, %cst_76 {dimension_numbers = #tpu.dot_dimension_numbers<[1], [0], [0], [1], [0, 0, 1, 1], [], []>} : vector<16x27xf32>, vector<27x9xf32>, vector<16x9xf32> -> vector<16x9xf32>
    %cst_77 = arith.constant 0.000000e+00 : f32
    %119 = vector.broadcast %cst_77 : f32 to vector<16x9xf32>
    %120 = arith.maximumf %118, %119 : vector<16x9xf32>
    %c0_78 = arith.constant 0 : index
    %c23 = arith.constant 23 : index
    %121 = vector.load %arg10[%c0_78, %c23] : memref<16x123xf32, #tpu.memory_space<vmem>>, vector<16x9xf32>
    tpu.vector_store %arg10[%c0_78, %c23], %120 {strides = array<i32>} : memref<16x123xf32, #tpu.memory_space<vmem>>, vector<16x9xf32>,
    %c0_79 = arith.constant 0 : index
    %c174 = arith.constant 174 : index
    %122 = vector.load %arg9[%c0_79, %c174] : memref<16x841xf32, #tpu.memory_space<vmem>>, vector<16x29xf32>
    %c0_80 = arith.constant 0 : index
    %c203 = arith.constant 203 : index
    %123 = vector.load %arg9[%c0_80, %c203] : memref<16x841xf32, #tpu.memory_space<vmem>>, vector<16x29xf32>
    %c0_81 = arith.constant 0 : index
    %c232 = arith.constant 232 : index
    %124 = vector.load %arg9[%c0_81, %c232] : memref<16x841xf32, #tpu.memory_space<vmem>>, vector<16x29xf32>
    %125 = arith.addf %122, %123 : vector<16x29xf32>
    %126 = arith.addf %125, %124 : vector<16x29xf32>
    %127 = vector.extract_strided_slice %126 {offsets = [0, 0], sizes = [16, 27], strides = [1, 1]} : vector<16x29xf32> to vector<16x27xf32>
    %128 = vector.extract_strided_slice %126 {offsets = [0, 1], sizes = [16, 27], strides = [1, 1]} : vector<16x29xf32> to vector<16x27xf32>
    %129 = arith.addf %127, %128 : vector<16x27xf32>
    %130 = vector.extract_strided_slice %126 {offsets = [0, 2], sizes = [16, 27], strides = [1, 1]} : vector<16x29xf32> to vector<16x27xf32>
    %131 = arith.addf %129, %130 : vector<16x27xf32>
    %cst_82 = arith.constant dense<0.000000e+00> : vector<16x9xf32>
    %132 = tpu.matmul %131, %93, %cst_82 {dimension_numbers = #tpu.dot_dimension_numbers<[1], [0], [0], [1], [0, 0, 1, 1], [], []>} : vector<16x27xf32>, vector<27x9xf32>, vector<16x9xf32> -> vector<16x9xf32>
    %cst_83 = arith.constant 0.000000e+00 : f32
    %133 = vector.broadcast %cst_83 : f32 to vector<16x9xf32>
    %134 = arith.maximumf %132, %133 : vector<16x9xf32>
    %c0_84 = arith.constant 0 : index
    %c34 = arith.constant 34 : index
    %135 = vector.load %arg10[%c0_84, %c34] : memref<16x123xf32, #tpu.memory_space<vmem>>, vector<16x9xf32>
    tpu.vector_store %arg10[%c0_84, %c34], %134 {strides = array<i32>} : memref<16x123xf32, #tpu.memory_space<vmem>>, vector<16x9xf32>,
    %c0_85 = arith.constant 0 : index
    %c261 = arith.constant 261 : index
    %136 = vector.load %arg9[%c0_85, %c261] : memref<16x841xf32, #tpu.memory_space<vmem>>, vector<16x29xf32>
    %c0_86 = arith.constant 0 : index
    %c290 = arith.constant 290 : index
    %137 = vector.load %arg9[%c0_86, %c290] : memref<16x841xf32, #tpu.memory_space<vmem>>, vector<16x29xf32>
    %c0_87 = arith.constant 0 : index
    %c319 = arith.constant 319 : index
    %138 = vector.load %arg9[%c0_87, %c319] : memref<16x841xf32, #tpu.memory_space<vmem>>, vector<16x29xf32>
    %139 = arith.addf %136, %137 : vector<16x29xf32>
    %140 = arith.addf %139, %138 : vector<16x29xf32>
    %141 = vector.extract_strided_slice %140 {offsets = [0, 0], sizes = [16, 27], strides = [1, 1]} : vector<16x29xf32> to vector<16x27xf32>
    %142 = vector.extract_strided_slice %140 {offsets = [0, 1], sizes = [16, 27], strides = [1, 1]} : vector<16x29xf32> to vector<16x27xf32>
    %143 = arith.addf %141, %142 : vector<16x27xf32>
    %144 = vector.extract_strided_slice %140 {offsets = [0, 2], sizes = [16, 27], strides = [1, 1]} : vector<16x29xf32> to vector<16x27xf32>
    %145 = arith.addf %143, %144 : vector<16x27xf32>
    %cst_88 = arith.constant dense<0.000000e+00> : vector<16x9xf32>
    %146 = tpu.matmul %145, %93, %cst_88 {dimension_numbers = #tpu.dot_dimension_numbers<[1], [0], [0], [1], [0, 0, 1, 1], [], []>} : vector<16x27xf32>, vector<27x9xf32>, vector<16x9xf32> -> vector<16x9xf32>
    %cst_89 = arith.constant 0.000000e+00 : f32
    %147 = vector.broadcast %cst_89 : f32 to vector<16x9xf32>
    %148 = arith.maximumf %146, %147 : vector<16x9xf32>
    %c0_90 = arith.constant 0 : index
    %c45 = arith.constant 45 : index
    %149 = vector.load %arg10[%c0_90, %c45] : memref<16x123xf32, #tpu.memory_space<vmem>>, vector<16x9xf32>
    tpu.vector_store %arg10[%c0_90, %c45], %148 {strides = array<i32>} : memref<16x123xf32, #tpu.memory_space<vmem>>, vector<16x9xf32>,
    %c0_91 = arith.constant 0 : index
    %c348 = arith.constant 348 : index
    %150 = vector.load %arg9[%c0_91, %c348] : memref<16x841xf32, #tpu.memory_space<vmem>>, vector<16x29xf32>
    %c0_92 = arith.constant 0 : index
    %c377 = arith.constant 377 : index
    %151 = vector.load %arg9[%c0_92, %c377] : memref<16x841xf32, #tpu.memory_space<vmem>>, vector<16x29xf32>
    %c0_93 = arith.constant 0 : index
    %c406 = arith.constant 406 : index
    %152 = vector.load %arg9[%c0_93, %c406] : memref<16x841xf32, #tpu.memory_space<vmem>>, vector<16x29xf32>
    %153 = arith.addf %150, %151 : vector<16x29xf32>
    %154 = arith.addf %153, %152 : vector<16x29xf32>
    %155 = vector.extract_strided_slice %154 {offsets = [0, 0], sizes = [16, 27], strides = [1, 1]} : vector<16x29xf32> to vector<16x27xf32>
    %156 = vector.extract_strided_slice %154 {offsets = [0, 1], sizes = [16, 27], strides = [1, 1]} : vector<16x29xf32> to vector<16x27xf32>
    %157 = arith.addf %155, %156 : vector<16x27xf32>
    %158 = vector.extract_strided_slice %154 {offsets = [0, 2], sizes = [16, 27], strides = [1, 1]} : vector<16x29xf32> to vector<16x27xf32>
    %159 = arith.addf %157, %158 : vector<16x27xf32>
    %cst_94 = arith.constant dense<0.000000e+00> : vector<16x9xf32>
    %160 = tpu.matmul %159, %93, %cst_94 {dimension_numbers = #tpu.dot_dimension_numbers<[1], [0], [0], [1], [0, 0, 1, 1], [], []>} : vector<16x27xf32>, vector<27x9xf32>, vector<16x9xf32> -> vector<16x9xf32>
    %cst_95 = arith.constant 0.000000e+00 : f32
    %161 = vector.broadcast %cst_95 : f32 to vector<16x9xf32>
    %162 = arith.maximumf %160, %161 : vector<16x9xf32>
    %c0_96 = arith.constant 0 : index
    %c56 = arith.constant 56 : index
    %163 = vector.load %arg10[%c0_96, %c56] : memref<16x123xf32, #tpu.memory_space<vmem>>, vector<16x9xf32>
    tpu.vector_store %arg10[%c0_96, %c56], %162 {strides = array<i32>} : memref<16x123xf32, #tpu.memory_space<vmem>>, vector<16x9xf32>,
    %c0_97 = arith.constant 0 : index
    %c435 = arith.constant 435 : index
    %164 = vector.load %arg9[%c0_97, %c435] : memref<16x841xf32, #tpu.memory_space<vmem>>, vector<16x29xf32>
    %c0_98 = arith.constant 0 : index
    %c464 = arith.constant 464 : index
    %165 = vector.load %arg9[%c0_98, %c464] : memref<16x841xf32, #tpu.memory_space<vmem>>, vector<16x29xf32>
    %c0_99 = arith.constant 0 : index
    %c493 = arith.constant 493 : index
    %166 = vector.load %arg9[%c0_99, %c493] : memref<16x841xf32, #tpu.memory_space<vmem>>, vector<16x29xf32>
    %167 = arith.addf %164, %165 : vector<16x29xf32>
    %168 = arith.addf %167, %166 : vector<16x29xf32>
    %169 = vector.extract_strided_slice %168 {offsets = [0, 0], sizes = [16, 27], strides = [1, 1]} : vector<16x29xf32> to vector<16x27xf32>
    %170 = vector.extract_strided_slice %168 {offsets = [0, 1], sizes = [16, 27], strides = [1, 1]} : vector<16x29xf32> to vector<16x27xf32>
    %171 = arith.addf %169, %170 : vector<16x27xf32>
    %172 = vector.extract_strided_slice %168 {offsets = [0, 2], sizes = [16, 27], strides = [1, 1]} : vector<16x29xf32> to vector<16x27xf32>
    %173 = arith.addf %171, %172 : vector<16x27xf32>
    %cst_100 = arith.constant dense<0.000000e+00> : vector<16x9xf32>
    %174 = tpu.matmul %173, %93, %cst_100 {dimension_numbers = #tpu.dot_dimension_numbers<[1], [0], [0], [1], [0, 0, 1, 1], [], []>} : vector<16x27xf32>, vector<27x9xf32>, vector<16x9xf32> -> vector<16x9xf32>
    %cst_101 = arith.constant 0.000000e+00 : f32
    %175 = vector.broadcast %cst_101 : f32 to vector<16x9xf32>
    %176 = arith.maximumf %174, %175 : vector<16x9xf32>
    %c0_102 = arith.constant 0 : index
    %c67 = arith.constant 67 : index
    %177 = vector.load %arg10[%c0_102, %c67] : memref<16x123xf32, #tpu.memory_space<vmem>>, vector<16x9xf32>
    tpu.vector_store %arg10[%c0_102, %c67], %176 {strides = array<i32>} : memref<16x123xf32, #tpu.memory_space<vmem>>, vector<16x9xf32>,
    %c0_103 = arith.constant 0 : index
    %c522 = arith.constant 522 : index
    %178 = vector.load %arg9[%c0_103, %c522] : memref<16x841xf32, #tpu.memory_space<vmem>>, vector<16x29xf32>
    %c0_104 = arith.constant 0 : index
    %c551 = arith.constant 551 : index
    %179 = vector.load %arg9[%c0_104, %c551] : memref<16x841xf32, #tpu.memory_space<vmem>>, vector<16x29xf32>
    %c0_105 = arith.constant 0 : index
    %c580 = arith.constant 580 : index
    %180 = vector.load %arg9[%c0_105, %c580] : memref<16x841xf32, #tpu.memory_space<vmem>>, vector<16x29xf32>
    %181 = arith.addf %178, %179 : vector<16x29xf32>
    %182 = arith.addf %181, %180 : vector<16x29xf32>
    %183 = vector.extract_strided_slice %182 {offsets = [0, 0], sizes = [16, 27], strides = [1, 1]} : vector<16x29xf32> to vector<16x27xf32>
    %184 = vector.extract_strided_slice %182 {offsets = [0, 1], sizes = [16, 27], strides = [1, 1]} : vector<16x29xf32> to vector<16x27xf32>
    %185 = arith.addf %183, %184 : vector<16x27xf32>
    %186 = vector.extract_strided_slice %182 {offsets = [0, 2], sizes = [16, 27], strides = [1, 1]} : vector<16x29xf32> to vector<16x27xf32>
    %187 = arith.addf %185, %186 : vector<16x27xf32>
    %cst_106 = arith.constant dense<0.000000e+00> : vector<16x9xf32>
    %188 = tpu.matmul %187, %93, %cst_106 {dimension_numbers = #tpu.dot_dimension_numbers<[1], [0], [0], [1], [0, 0, 1, 1], [], []>} : vector<16x27xf32>, vector<27x9xf32>, vector<16x9xf32> -> vector<16x9xf32>
    %cst_107 = arith.constant 0.000000e+00 : f32
    %189 = vector.broadcast %cst_107 : f32 to vector<16x9xf32>
    %190 = arith.maximumf %188, %189 : vector<16x9xf32>
    %c0_108 = arith.constant 0 : index
    %c78 = arith.constant 78 : index
    %191 = vector.load %arg10[%c0_108, %c78] : memref<16x123xf32, #tpu.memory_space<vmem>>, vector<16x9xf32>
    tpu.vector_store %arg10[%c0_108, %c78], %190 {strides = array<i32>} : memref<16x123xf32, #tpu.memory_space<vmem>>, vector<16x9xf32>,
    %c0_109 = arith.constant 0 : index
    %c609 = arith.constant 609 : index
    %192 = vector.load %arg9[%c0_109, %c609] : memref<16x841xf32, #tpu.memory_space<vmem>>, vector<16x29xf32>
    %c0_110 = arith.constant 0 : index
    %c638 = arith.constant 638 : index
    %193 = vector.load %arg9[%c0_110, %c638] : memref<16x841xf32, #tpu.memory_space<vmem>>, vector<16x29xf32>
    %c0_111 = arith.constant 0 : index
    %c667 = arith.constant 667 : index
    %194 = vector.load %arg9[%c0_111, %c667] : memref<16x841xf32, #tpu.memory_space<vmem>>, vector<16x29xf32>
    %195 = arith.addf %192, %193 : vector<16x29xf32>
    %196 = arith.addf %195, %194 : vector<16x29xf32>
    %197 = vector.extract_strided_slice %196 {offsets = [0, 0], sizes = [16, 27], strides = [1, 1]} : vector<16x29xf32> to vector<16x27xf32>
    %198 = vector.extract_strided_slice %196 {offsets = [0, 1], sizes = [16, 27], strides = [1, 1]} : vector<16x29xf32> to vector<16x27xf32>
    %199 = arith.addf %197, %198 : vector<16x27xf32>
    %200 = vector.extract_strided_slice %196 {offsets = [0, 2], sizes = [16, 27], strides = [1, 1]} : vector<16x29xf32> to vector<16x27xf32>
    %201 = arith.addf %199, %200 : vector<16x27xf32>
    %cst_112 = arith.constant dense<0.000000e+00> : vector<16x9xf32>
    %202 = tpu.matmul %201, %93, %cst_112 {dimension_numbers = #tpu.dot_dimension_numbers<[1], [0], [0], [1], [0, 0, 1, 1], [], []>} : vector<16x27xf32>, vector<27x9xf32>, vector<16x9xf32> -> vector<16x9xf32>
    %cst_113 = arith.constant 0.000000e+00 : f32
    %203 = vector.broadcast %cst_113 : f32 to vector<16x9xf32>
    %204 = arith.maximumf %202, %203 : vector<16x9xf32>
    %c0_114 = arith.constant 0 : index
    %c89 = arith.constant 89 : index
    %205 = vector.load %arg10[%c0_114, %c89] : memref<16x123xf32, #tpu.memory_space<vmem>>, vector<16x9xf32>
    tpu.vector_store %arg10[%c0_114, %c89], %204 {strides = array<i32>} : memref<16x123xf32, #tpu.memory_space<vmem>>, vector<16x9xf32>,
    %c0_115 = arith.constant 0 : index
    %c696 = arith.constant 696 : index
    %206 = vector.load %arg9[%c0_115, %c696] : memref<16x841xf32, #tpu.memory_space<vmem>>, vector<16x29xf32>
    %c0_116 = arith.constant 0 : index
    %c725 = arith.constant 725 : index
    %207 = vector.load %arg9[%c0_116, %c725] : memref<16x841xf32, #tpu.memory_space<vmem>>, vector<16x29xf32>
    %c0_117 = arith.constant 0 : index
    %c754 = arith.constant 754 : index
    %208 = vector.load %arg9[%c0_117, %c754] : memref<16x841xf32, #tpu.memory_space<vmem>>, vector<16x29xf32>
    %209 = arith.addf %206, %207 : vector<16x29xf32>
    %210 = arith.addf %209, %208 : vector<16x29xf32>
    %211 = vector.extract_strided_slice %210 {offsets = [0, 0], sizes = [16, 27], strides = [1, 1]} : vector<16x29xf32> to vector<16x27xf32>
    %212 = vector.extract_strided_slice %210 {offsets = [0, 1], sizes = [16, 27], strides = [1, 1]} : vector<16x29xf32> to vector<16x27xf32>
    %213 = arith.addf %211, %212 : vector<16x27xf32>
    %214 = vector.extract_strided_slice %210 {offsets = [0, 2], sizes = [16, 27], strides = [1, 1]} : vector<16x29xf32> to vector<16x27xf32>
    %215 = arith.addf %213, %214 : vector<16x27xf32>
    %cst_118 = arith.constant dense<0.000000e+00> : vector<16x9xf32>
    %216 = tpu.matmul %215, %93, %cst_118 {dimension_numbers = #tpu.dot_dimension_numbers<[1], [0], [0], [1], [0, 0, 1, 1], [], []>} : vector<16x27xf32>, vector<27x9xf32>, vector<16x9xf32> -> vector<16x9xf32>
    %cst_119 = arith.constant 0.000000e+00 : f32
    %217 = vector.broadcast %cst_119 : f32 to vector<16x9xf32>
    %218 = arith.maximumf %216, %217 : vector<16x9xf32>
    %c0_120 = arith.constant 0 : index
    %c100 = arith.constant 100 : index
    %219 = vector.load %arg10[%c0_120, %c100] : memref<16x123xf32, #tpu.memory_space<vmem>>, vector<16x9xf32>
    tpu.vector_store %arg10[%c0_120, %c100], %218 {strides = array<i32>} : memref<16x123xf32, #tpu.memory_space<vmem>>, vector<16x9xf32>,
    %cst_121 = arith.constant 0xFF800000 : f32
    %220 = vector.broadcast %cst_121 : f32 to vector<32x121xf32>
    %c0_122 = arith.constant 0 : index
    %c0_123 = arith.constant 0 : index
    %221 = vector.load %arg11[%c0_122, %c0_123] : memref<32x121xf32, #tpu.memory_space<vmem>>, vector<32x121xf32>
    tpu.vector_store %arg11[%c0_122, %c0_123], %220 {strides = array<i32>} : memref<32x121xf32, #tpu.memory_space<vmem>>, vector<32x121xf32>,
    %cst_124 = arith.constant 0.000000e+00 : f32
    %222 = vector.broadcast %cst_124 : f32 to vector<32x27xf32>
    %c0_125 = arith.constant 0 : index
    %c0_126 = arith.constant 0 : index
    %223 = vector.load %arg12[%c0_125, %c0_126] : memref<32x27xf32, #tpu.memory_space<vmem>>, vector<32x27xf32>
    tpu.vector_store %arg12[%c0_125, %c0_126], %222 {strides = array<i32>} : memref<32x27xf32, #tpu.memory_space<vmem>>, vector<32x27xf32>,
    %cst_127 = arith.constant 0.000000e+00 : f32
    %224 = vector.broadcast %cst_127 : f32 to vector<32x99xf32>
    %c0_128 = arith.constant 0 : index
    %c0_129 = arith.constant 0 : index
    %c0_130 = arith.constant 0 : index
    %225 = vector.load %arg4[%c0_128, %c0_129, %c0_130] : memref<9x32x16xf32, #tpu.memory_space<vmem>>, vector<1x32x16xf32>
    %226 = vector.shape_cast %225 : vector<1x32x16xf32> to vector<32x16xf32>
    %c0_131 = arith.constant 0 : index
    %c0_132 = arith.constant 0 : index
    %227 = vector.load %arg10[%c0_131, %c0_132] : memref<16x123xf32, #tpu.memory_space<vmem>>, vector<16x99xf32>
    %cst_133 = arith.constant dense<0.000000e+00> : vector<32x99xf32>
    %228 = tpu.matmul %226, %227, %cst_133 {dimension_numbers = #tpu.dot_dimension_numbers<[1], [0], [0], [1], [0, 0, 1, 1], [], []>} : vector<32x16xf32>, vector<16x99xf32>, vector<32x99xf32> -> vector<32x99xf32>
    %229 = arith.addf %224, %228 : vector<32x99xf32>
    %c1_134 = arith.constant 1 : index
    %c0_135 = arith.constant 0 : index
    %c0_136 = arith.constant 0 : index
    %230 = vector.load %arg4[%c1_134, %c0_135, %c0_136] : memref<9x32x16xf32, #tpu.memory_space<vmem>>, vector<1x32x16xf32>
    %231 = vector.shape_cast %230 : vector<1x32x16xf32> to vector<32x16xf32>
    %c0_137 = arith.constant 0 : index
    %c1_138 = arith.constant 1 : index
    %232 = vector.load %arg10[%c0_137, %c1_138] : memref<16x123xf32, #tpu.memory_space<vmem>>, vector<16x99xf32>
    %cst_139 = arith.constant dense<0.000000e+00> : vector<32x99xf32>
    %233 = tpu.matmul %231, %232, %cst_139 {dimension_numbers = #tpu.dot_dimension_numbers<[1], [0], [0], [1], [0, 0, 1, 1], [], []>} : vector<32x16xf32>, vector<16x99xf32>, vector<32x99xf32> -> vector<32x99xf32>
    %234 = arith.addf %229, %233 : vector<32x99xf32>
    %c2_140 = arith.constant 2 : index
    %c0_141 = arith.constant 0 : index
    %c0_142 = arith.constant 0 : index
    %235 = vector.load %arg4[%c2_140, %c0_141, %c0_142] : memref<9x32x16xf32, #tpu.memory_space<vmem>>, vector<1x32x16xf32>
    %236 = vector.shape_cast %235 : vector<1x32x16xf32> to vector<32x16xf32>
    %c0_143 = arith.constant 0 : index
    %c2_144 = arith.constant 2 : index
    %237 = vector.load %arg10[%c0_143, %c2_144] : memref<16x123xf32, #tpu.memory_space<vmem>>, vector<16x99xf32>
    %cst_145 = arith.constant dense<0.000000e+00> : vector<32x99xf32>
    %238 = tpu.matmul %236, %237, %cst_145 {dimension_numbers = #tpu.dot_dimension_numbers<[1], [0], [0], [1], [0, 0, 1, 1], [], []>} : vector<32x16xf32>, vector<16x99xf32>, vector<32x99xf32> -> vector<32x99xf32>
    %239 = arith.addf %234, %238 : vector<32x99xf32>
    %c3_146 = arith.constant 3 : index
    %c0_147 = arith.constant 0 : index
    %c0_148 = arith.constant 0 : index
    %240 = vector.load %arg4[%c3_146, %c0_147, %c0_148] : memref<9x32x16xf32, #tpu.memory_space<vmem>>, vector<1x32x16xf32>
    %241 = vector.shape_cast %240 : vector<1x32x16xf32> to vector<32x16xf32>
    %c0_149 = arith.constant 0 : index
    %c11 = arith.constant 11 : index
    %242 = vector.load %arg10[%c0_149, %c11] : memref<16x123xf32, #tpu.memory_space<vmem>>, vector<16x99xf32>
    %cst_150 = arith.constant dense<0.000000e+00> : vector<32x99xf32>
    %243 = tpu.matmul %241, %242, %cst_150 {dimension_numbers = #tpu.dot_dimension_numbers<[1], [0], [0], [1], [0, 0, 1, 1], [], []>} : vector<32x16xf32>, vector<16x99xf32>, vector<32x99xf32> -> vector<32x99xf32>
    %244 = arith.addf %239, %243 : vector<32x99xf32>
    %c4_151 = arith.constant 4 : index
    %c0_152 = arith.constant 0 : index
    %c0_153 = arith.constant 0 : index
    %245 = vector.load %arg4[%c4_151, %c0_152, %c0_153] : memref<9x32x16xf32, #tpu.memory_space<vmem>>, vector<1x32x16xf32>
    %246 = vector.shape_cast %245 : vector<1x32x16xf32> to vector<32x16xf32>
    %c0_154 = arith.constant 0 : index
    %c12_155 = arith.constant 12 : index
    %247 = vector.load %arg10[%c0_154, %c12_155] : memref<16x123xf32, #tpu.memory_space<vmem>>, vector<16x99xf32>
    %cst_156 = arith.constant dense<0.000000e+00> : vector<32x99xf32>
    %248 = tpu.matmul %246, %247, %cst_156 {dimension_numbers = #tpu.dot_dimension_numbers<[1], [0], [0], [1], [0, 0, 1, 1], [], []>} : vector<32x16xf32>, vector<16x99xf32>, vector<32x99xf32> -> vector<32x99xf32>
    %249 = arith.addf %244, %248 : vector<32x99xf32>
    %c5_157 = arith.constant 5 : index
    %c0_158 = arith.constant 0 : index
    %c0_159 = arith.constant 0 : index
    %250 = vector.load %arg4[%c5_157, %c0_158, %c0_159] : memref<9x32x16xf32, #tpu.memory_space<vmem>>, vector<1x32x16xf32>
    %251 = vector.shape_cast %250 : vector<1x32x16xf32> to vector<32x16xf32>
    %c0_160 = arith.constant 0 : index
    %c13 = arith.constant 13 : index
    %252 = vector.load %arg10[%c0_160, %c13] : memref<16x123xf32, #tpu.memory_space<vmem>>, vector<16x99xf32>
    %cst_161 = arith.constant dense<0.000000e+00> : vector<32x99xf32>
    %253 = tpu.matmul %251, %252, %cst_161 {dimension_numbers = #tpu.dot_dimension_numbers<[1], [0], [0], [1], [0, 0, 1, 1], [], []>} : vector<32x16xf32>, vector<16x99xf32>, vector<32x99xf32> -> vector<32x99xf32>
    %254 = arith.addf %249, %253 : vector<32x99xf32>
    %c6_162 = arith.constant 6 : index
    %c0_163 = arith.constant 0 : index
    %c0_164 = arith.constant 0 : index
    %255 = vector.load %arg4[%c6_162, %c0_163, %c0_164] : memref<9x32x16xf32, #tpu.memory_space<vmem>>, vector<1x32x16xf32>
    %256 = vector.shape_cast %255 : vector<1x32x16xf32> to vector<32x16xf32>
    %c0_165 = arith.constant 0 : index
    %c22 = arith.constant 22 : index
    %257 = vector.load %arg10[%c0_165, %c22] : memref<16x123xf32, #tpu.memory_space<vmem>>, vector<16x99xf32>
    %cst_166 = arith.constant dense<0.000000e+00> : vector<32x99xf32>
    %258 = tpu.matmul %256, %257, %cst_166 {dimension_numbers = #tpu.dot_dimension_numbers<[1], [0], [0], [1], [0, 0, 1, 1], [], []>} : vector<32x16xf32>, vector<16x99xf32>, vector<32x99xf32> -> vector<32x99xf32>
    %259 = arith.addf %254, %258 : vector<32x99xf32>
    %c7_167 = arith.constant 7 : index
    %c0_168 = arith.constant 0 : index
    %c0_169 = arith.constant 0 : index
    %260 = vector.load %arg4[%c7_167, %c0_168, %c0_169] : memref<9x32x16xf32, #tpu.memory_space<vmem>>, vector<1x32x16xf32>
    %261 = vector.shape_cast %260 : vector<1x32x16xf32> to vector<32x16xf32>
    %c0_170 = arith.constant 0 : index
    %c23_171 = arith.constant 23 : index
    %262 = vector.load %arg10[%c0_170, %c23_171] : memref<16x123xf32, #tpu.memory_space<vmem>>, vector<16x99xf32>
    %cst_172 = arith.constant dense<0.000000e+00> : vector<32x99xf32>
    %263 = tpu.matmul %261, %262, %cst_172 {dimension_numbers = #tpu.dot_dimension_numbers<[1], [0], [0], [1], [0, 0, 1, 1], [], []>} : vector<32x16xf32>, vector<16x99xf32>, vector<32x99xf32> -> vector<32x99xf32>
    %264 = arith.addf %259, %263 : vector<32x99xf32>
    %c8_173 = arith.constant 8 : index
    %c0_174 = arith.constant 0 : index
    %c0_175 = arith.constant 0 : index
    %265 = vector.load %arg4[%c8_173, %c0_174, %c0_175] : memref<9x32x16xf32, #tpu.memory_space<vmem>>, vector<1x32x16xf32>
    %266 = vector.shape_cast %265 : vector<1x32x16xf32> to vector<32x16xf32>
    %c0_176 = arith.constant 0 : index
    %c24 = arith.constant 24 : index
    %267 = vector.load %arg10[%c0_176, %c24] : memref<16x123xf32, #tpu.memory_space<vmem>>, vector<16x99xf32>
    %cst_177 = arith.constant dense<0.000000e+00> : vector<32x99xf32>
    %268 = tpu.matmul %266, %267, %cst_177 {dimension_numbers = #tpu.dot_dimension_numbers<[1], [0], [0], [1], [0, 0, 1, 1], [], []>} : vector<32x16xf32>, vector<16x99xf32>, vector<32x99xf32> -> vector<32x99xf32>
    %269 = arith.addf %264, %268 : vector<32x99xf32>
    %c0_178 = arith.constant 0 : index
    %c0_179 = arith.constant 0 : index
    %270 = vector.load %arg5[%c0_178, %c0_179] : memref<32x1xf32, #tpu.memory_space<vmem>>, vector<32x1xf32>
    %271 = vector.broadcast %270 : vector<32x1xf32> to vector<32x99xf32>
    %272 = arith.addf %269, %271 : vector<32x99xf32>
    %273 = tpu.iota {dimensions = array<i32: 1>} : vector<1x99xi32>
    %c11_i32 = arith.constant 11 : i32
    %c0_i32_180 = arith.constant 0 : i32
    %274 = arith.cmpi eq, %c11_i32, %c0_i32_180 : i32
    %c1_i32_181 = arith.constant 1 : i32
    %275 = arith.select %274, %c1_i32_181, %c11_i32 : i32
    %276 = vector.broadcast %275 : i32 to vector<1x99xi32>
    %277 = arith.remsi %273, %276 : vector<1x99xi32>
    %c0_i32_182 = arith.constant 0 : i32
    %278 = vector.broadcast %c0_i32_182 : i32 to vector<1x99xi32>
    %279 = arith.cmpi ne, %277, %278 : vector<1x99xi32>
    %c0_i32_183 = arith.constant 0 : i32
    %280 = vector.broadcast %c0_i32_183 : i32 to vector<1x99xi32>
    %281 = arith.cmpi slt, %277, %280 : vector<1x99xi32>
    %c0_i32_184 = arith.constant 0 : i32
    %282 = arith.cmpi slt, %275, %c0_i32_184 : i32
    %283 = vector.broadcast %282 : i1 to vector<1x99xi1>
    %284 = vector.broadcast %283 : vector<1x99xi1> to vector<1x99xi1>
    %285 = arith.xori %281, %284 : vector<1x99xi1>
    %286 = arith.andi %285, %279 : vector<1x99xi1>
    %287 = vector.broadcast %275 : i32 to vector<1x99xi32>
    %288 = arith.addi %277, %287 : vector<1x99xi32>
    %289 = arith.select %286, %288, %277 : vector<1x99xi1>, vector<1x99xi32>
    %c9_i32 = arith.constant 9 : i32
    %290 = vector.broadcast %c9_i32 : i32 to vector<1x99xi32>
    %291 = arith.cmpi slt, %289, %290 : vector<1x99xi32>
    %cst_185 = arith.constant 0xFF800000 : f32
    %292 = vector.shape_cast %291 : vector<1x99xi1> to vector<1x99xi1>
    %293 = vector.broadcast %292 : vector<1x99xi1> to vector<32x99xi1>
    %294 = vector.broadcast %cst_185 : f32 to vector<32x99xf32>
    %295 = arith.select %293, %272, %294 : vector<32x99xi1>, vector<32x99xf32>
    %c0_186 = arith.constant 0 : index
    %c12_187 = arith.constant 12 : index
    %296 = vector.load %arg11[%c0_186, %c12_187] : memref<32x121xf32, #tpu.memory_space<vmem>>, vector<32x99xf32>
    tpu.vector_store %arg11[%c0_186, %c12_187], %295 {strides = array<i32>} : memref<32x121xf32, #tpu.memory_space<vmem>>, vector<32x99xf32>,
    %297 = tpu.iota {dimensions = array<i32: 0>} : vector<9x3xi32>
    %298 = tpu.iota {dimensions = array<i32: 1>} : vector<9x3xi32>
    %c3_i32_188 = arith.constant 3 : i32
    %299 = vector.broadcast %c3_i32_188 : i32 to vector<9x3xi32>
    %300 = arith.muli %299, %298 : vector<9x3xi32>
    %301 = arith.cmpi eq, %297, %300 : vector<9x3xi32>
    %cst_189 = arith.constant 1.000000e+00 : f32
    %cst_190 = arith.constant 0.000000e+00 : f32
    %302 = vector.broadcast %cst_189 : f32 to vector<9x3xf32>
    %303 = vector.broadcast %cst_190 : f32 to vector<9x3xf32>
    %304 = arith.select %301, %302, %303 : vector<9x3xi1>, vector<9x3xf32>
    %c0_191 = arith.constant 0 : index
    %c0_192 = arith.constant 0 : index
    %305 = vector.load %arg11[%c0_191, %c0_192] : memref<32x121xf32, #tpu.memory_space<vmem>>, vector<32x11xf32>
    %c0_193 = arith.constant 0 : index
    %c11_194 = arith.constant 11 : index
    %306 = vector.load %arg11[%c0_193, %c11_194] : memref<32x121xf32, #tpu.memory_space<vmem>>, vector<32x11xf32>
    %c0_195 = arith.constant 0 : index
    %c22_196 = arith.constant 22 : index
    %307 = vector.load %arg11[%c0_195, %c22_196] : memref<32x121xf32, #tpu.memory_space<vmem>>, vector<32x11xf32>
    %308 = arith.maximumf %305, %306 : vector<32x11xf32>
    %309 = arith.maximumf %308, %307 : vector<32x11xf32>
    %310 = vector.extract_strided_slice %309 {offsets = [0, 0], sizes = [32, 9], strides = [1, 1]} : vector<32x11xf32> to vector<32x9xf32>
    %311 = vector.extract_strided_slice %309 {offsets = [0, 1], sizes = [32, 9], strides = [1, 1]} : vector<32x11xf32> to vector<32x9xf32>
    %312 = arith.maximumf %310, %311 : vector<32x9xf32>
    %313 = vector.extract_strided_slice %309 {offsets = [0, 2], sizes = [32, 9], strides = [1, 1]} : vector<32x11xf32> to vector<32x9xf32>
    %314 = arith.maximumf %312, %313 : vector<32x9xf32>
    %cst_197 = arith.constant dense<0.000000e+00> : vector<32x3xf32>
    %315 = tpu.matmul %314, %304, %cst_197 {dimension_numbers = #tpu.dot_dimension_numbers<[1], [0], [0], [1], [0, 0, 1, 1], [], []>} : vector<32x9xf32>, vector<9x3xf32>, vector<32x3xf32> -> vector<32x3xf32>
    %cst_198 = arith.constant 0.000000e+00 : f32
    %316 = vector.broadcast %cst_198 : f32 to vector<32x3xf32>
    %317 = arith.maximumf %315, %316 : vector<32x3xf32>
    %c0_199 = arith.constant 0 : index
    %c6_200 = arith.constant 6 : index
    %318 = vector.load %arg12[%c0_199, %c6_200] : memref<32x27xf32, #tpu.memory_space<vmem>>, vector<32x3xf32>
    tpu.vector_store %arg12[%c0_199, %c6_200], %317 {strides = array<i32>} : memref<32x27xf32, #tpu.memory_space<vmem>>, vector<32x3xf32>,
    %c0_201 = arith.constant 0 : index
    %c33 = arith.constant 33 : index
    %319 = vector.load %arg11[%c0_201, %c33] : memref<32x121xf32, #tpu.memory_space<vmem>>, vector<32x11xf32>
    %c0_202 = arith.constant 0 : index
    %c44 = arith.constant 44 : index
    %320 = vector.load %arg11[%c0_202, %c44] : memref<32x121xf32, #tpu.memory_space<vmem>>, vector<32x11xf32>
    %c0_203 = arith.constant 0 : index
    %c55 = arith.constant 55 : index
    %321 = vector.load %arg11[%c0_203, %c55] : memref<32x121xf32, #tpu.memory_space<vmem>>, vector<32x11xf32>
    %322 = arith.maximumf %319, %320 : vector<32x11xf32>
    %323 = arith.maximumf %322, %321 : vector<32x11xf32>
    %324 = vector.extract_strided_slice %323 {offsets = [0, 0], sizes = [32, 9], strides = [1, 1]} : vector<32x11xf32> to vector<32x9xf32>
    %325 = vector.extract_strided_slice %323 {offsets = [0, 1], sizes = [32, 9], strides = [1, 1]} : vector<32x11xf32> to vector<32x9xf32>
    %326 = arith.maximumf %324, %325 : vector<32x9xf32>
    %327 = vector.extract_strided_slice %323 {offsets = [0, 2], sizes = [32, 9], strides = [1, 1]} : vector<32x11xf32> to vector<32x9xf32>
    %328 = arith.maximumf %326, %327 : vector<32x9xf32>
    %cst_204 = arith.constant dense<0.000000e+00> : vector<32x3xf32>
    %329 = tpu.matmul %328, %304, %cst_204 {dimension_numbers = #tpu.dot_dimension_numbers<[1], [0], [0], [1], [0, 0, 1, 1], [], []>} : vector<32x9xf32>, vector<9x3xf32>, vector<32x3xf32> -> vector<32x3xf32>
    %cst_205 = arith.constant 0.000000e+00 : f32
    %330 = vector.broadcast %cst_205 : f32 to vector<32x3xf32>
    %331 = arith.maximumf %329, %330 : vector<32x3xf32>
    %c0_206 = arith.constant 0 : index
    %c11_207 = arith.constant 11 : index
    %332 = vector.load %arg12[%c0_206, %c11_207] : memref<32x27xf32, #tpu.memory_space<vmem>>, vector<32x3xf32>
    tpu.vector_store %arg12[%c0_206, %c11_207], %331 {strides = array<i32>} : memref<32x27xf32, #tpu.memory_space<vmem>>, vector<32x3xf32>,
    %c0_208 = arith.constant 0 : index
    %c66 = arith.constant 66 : index
    %333 = vector.load %arg11[%c0_208, %c66] : memref<32x121xf32, #tpu.memory_space<vmem>>, vector<32x11xf32>
    %c0_209 = arith.constant 0 : index
    %c77 = arith.constant 77 : index
    %334 = vector.load %arg11[%c0_209, %c77] : memref<32x121xf32, #tpu.memory_space<vmem>>, vector<32x11xf32>
    %c0_210 = arith.constant 0 : index
    %c88 = arith.constant 88 : index
    %335 = vector.load %arg11[%c0_210, %c88] : memref<32x121xf32, #tpu.memory_space<vmem>>, vector<32x11xf32>
    %336 = arith.maximumf %333, %334 : vector<32x11xf32>
    %337 = arith.maximumf %336, %335 : vector<32x11xf32>
    %338 = vector.extract_strided_slice %337 {offsets = [0, 0], sizes = [32, 9], strides = [1, 1]} : vector<32x11xf32> to vector<32x9xf32>
    %339 = vector.extract_strided_slice %337 {offsets = [0, 1], sizes = [32, 9], strides = [1, 1]} : vector<32x11xf32> to vector<32x9xf32>
    %340 = arith.maximumf %338, %339 : vector<32x9xf32>
    %341 = vector.extract_strided_slice %337 {offsets = [0, 2], sizes = [32, 9], strides = [1, 1]} : vector<32x11xf32> to vector<32x9xf32>
    %342 = arith.maximumf %340, %341 : vector<32x9xf32>
    %cst_211 = arith.constant dense<0.000000e+00> : vector<32x3xf32>
    %343 = tpu.matmul %342, %304, %cst_211 {dimension_numbers = #tpu.dot_dimension_numbers<[1], [0], [0], [1], [0, 0, 1, 1], [], []>} : vector<32x9xf32>, vector<9x3xf32>, vector<32x3xf32> -> vector<32x3xf32>
    %cst_212 = arith.constant 0.000000e+00 : f32
    %344 = vector.broadcast %cst_212 : f32 to vector<32x3xf32>
    %345 = arith.maximumf %343, %344 : vector<32x3xf32>
    %c0_213 = arith.constant 0 : index
    %c16 = arith.constant 16 : index
    %346 = vector.load %arg12[%c0_213, %c16] : memref<32x27xf32, #tpu.memory_space<vmem>>, vector<32x3xf32>
    tpu.vector_store %arg12[%c0_213, %c16], %345 {strides = array<i32>} : memref<32x27xf32, #tpu.memory_space<vmem>>, vector<32x3xf32>,
    %cst_214 = arith.constant 0xFF800000 : f32
    %347 = vector.broadcast %cst_214 : f32 to vector<8x25xf32>
    %c0_215 = arith.constant 0 : index
    %c0_216 = arith.constant 0 : index
    %348 = vector.load %arg13[%c0_215, %c0_216] : memref<8x25xf32, #tpu.memory_space<vmem>>, vector<8x25xf32>
    tpu.vector_store %arg13[%c0_215, %c0_216], %347 {strides = array<i32>} : memref<8x25xf32, #tpu.memory_space<vmem>>, vector<8x25xf32>,
    %cst_217 = arith.constant 0.000000e+00 : f32
    %349 = vector.broadcast %cst_217 : f32 to vector<8x15xf32>
    %c0_218 = arith.constant 0 : index
    %c0_219 = arith.constant 0 : index
    %c0_220 = arith.constant 0 : index
    %350 = vector.load %arg6[%c0_218, %c0_219, %c0_220] : memref<9x8x32xf32, #tpu.memory_space<vmem>>, vector<1x8x32xf32>
    %351 = vector.shape_cast %350 : vector<1x8x32xf32> to vector<8x32xf32>
    %c0_221 = arith.constant 0 : index
    %c0_222 = arith.constant 0 : index
    %352 = vector.load %arg12[%c0_221, %c0_222] : memref<32x27xf32, #tpu.memory_space<vmem>>, vector<32x15xf32>
    %cst_223 = arith.constant dense<0.000000e+00> : vector<8x15xf32>
    %353 = tpu.matmul %351, %352, %cst_223 {dimension_numbers = #tpu.dot_dimension_numbers<[1], [0], [0], [1], [0, 0, 1, 1], [], []>} : vector<8x32xf32>, vector<32x15xf32>, vector<8x15xf32> -> vector<8x15xf32>
    %354 = arith.addf %349, %353 : vector<8x15xf32>
    %c1_224 = arith.constant 1 : index
    %c0_225 = arith.constant 0 : index
    %c0_226 = arith.constant 0 : index
    %355 = vector.load %arg6[%c1_224, %c0_225, %c0_226] : memref<9x8x32xf32, #tpu.memory_space<vmem>>, vector<1x8x32xf32>
    %356 = vector.shape_cast %355 : vector<1x8x32xf32> to vector<8x32xf32>
    %c0_227 = arith.constant 0 : index
    %c1_228 = arith.constant 1 : index
    %357 = vector.load %arg12[%c0_227, %c1_228] : memref<32x27xf32, #tpu.memory_space<vmem>>, vector<32x15xf32>
    %cst_229 = arith.constant dense<0.000000e+00> : vector<8x15xf32>
    %358 = tpu.matmul %356, %357, %cst_229 {dimension_numbers = #tpu.dot_dimension_numbers<[1], [0], [0], [1], [0, 0, 1, 1], [], []>} : vector<8x32xf32>, vector<32x15xf32>, vector<8x15xf32> -> vector<8x15xf32>
    %359 = arith.addf %354, %358 : vector<8x15xf32>
    %c2_230 = arith.constant 2 : index
    %c0_231 = arith.constant 0 : index
    %c0_232 = arith.constant 0 : index
    %360 = vector.load %arg6[%c2_230, %c0_231, %c0_232] : memref<9x8x32xf32, #tpu.memory_space<vmem>>, vector<1x8x32xf32>
    %361 = vector.shape_cast %360 : vector<1x8x32xf32> to vector<8x32xf32>
    %c0_233 = arith.constant 0 : index
    %c2_234 = arith.constant 2 : index
    %362 = vector.load %arg12[%c0_233, %c2_234] : memref<32x27xf32, #tpu.memory_space<vmem>>, vector<32x15xf32>
    %cst_235 = arith.constant dense<0.000000e+00> : vector<8x15xf32>
    %363 = tpu.matmul %361, %362, %cst_235 {dimension_numbers = #tpu.dot_dimension_numbers<[1], [0], [0], [1], [0, 0, 1, 1], [], []>} : vector<8x32xf32>, vector<32x15xf32>, vector<8x15xf32> -> vector<8x15xf32>
    %364 = arith.addf %359, %363 : vector<8x15xf32>
    %c3_236 = arith.constant 3 : index
    %c0_237 = arith.constant 0 : index
    %c0_238 = arith.constant 0 : index
    %365 = vector.load %arg6[%c3_236, %c0_237, %c0_238] : memref<9x8x32xf32, #tpu.memory_space<vmem>>, vector<1x8x32xf32>
    %366 = vector.shape_cast %365 : vector<1x8x32xf32> to vector<8x32xf32>
    %c0_239 = arith.constant 0 : index
    %c5_240 = arith.constant 5 : index
    %367 = vector.load %arg12[%c0_239, %c5_240] : memref<32x27xf32, #tpu.memory_space<vmem>>, vector<32x15xf32>
    %cst_241 = arith.constant dense<0.000000e+00> : vector<8x15xf32>
    %368 = tpu.matmul %366, %367, %cst_241 {dimension_numbers = #tpu.dot_dimension_numbers<[1], [0], [0], [1], [0, 0, 1, 1], [], []>} : vector<8x32xf32>, vector<32x15xf32>, vector<8x15xf32> -> vector<8x15xf32>
    %369 = arith.addf %364, %368 : vector<8x15xf32>
    %c4_242 = arith.constant 4 : index
    %c0_243 = arith.constant 0 : index
    %c0_244 = arith.constant 0 : index
    %370 = vector.load %arg6[%c4_242, %c0_243, %c0_244] : memref<9x8x32xf32, #tpu.memory_space<vmem>>, vector<1x8x32xf32>
    %371 = vector.shape_cast %370 : vector<1x8x32xf32> to vector<8x32xf32>
    %c0_245 = arith.constant 0 : index
    %c6_246 = arith.constant 6 : index
    %372 = vector.load %arg12[%c0_245, %c6_246] : memref<32x27xf32, #tpu.memory_space<vmem>>, vector<32x15xf32>
    %cst_247 = arith.constant dense<0.000000e+00> : vector<8x15xf32>
    %373 = tpu.matmul %371, %372, %cst_247 {dimension_numbers = #tpu.dot_dimension_numbers<[1], [0], [0], [1], [0, 0, 1, 1], [], []>} : vector<8x32xf32>, vector<32x15xf32>, vector<8x15xf32> -> vector<8x15xf32>
    %374 = arith.addf %369, %373 : vector<8x15xf32>
    %c5_248 = arith.constant 5 : index
    %c0_249 = arith.constant 0 : index
    %c0_250 = arith.constant 0 : index
    %375 = vector.load %arg6[%c5_248, %c0_249, %c0_250] : memref<9x8x32xf32, #tpu.memory_space<vmem>>, vector<1x8x32xf32>
    %376 = vector.shape_cast %375 : vector<1x8x32xf32> to vector<8x32xf32>
    %c0_251 = arith.constant 0 : index
    %c7_252 = arith.constant 7 : index
    %377 = vector.load %arg12[%c0_251, %c7_252] : memref<32x27xf32, #tpu.memory_space<vmem>>, vector<32x15xf32>
    %cst_253 = arith.constant dense<0.000000e+00> : vector<8x15xf32>
    %378 = tpu.matmul %376, %377, %cst_253 {dimension_numbers = #tpu.dot_dimension_numbers<[1], [0], [0], [1], [0, 0, 1, 1], [], []>} : vector<8x32xf32>, vector<32x15xf32>, vector<8x15xf32> -> vector<8x15xf32>
    %379 = arith.addf %374, %378 : vector<8x15xf32>
    %c6_254 = arith.constant 6 : index
    %c0_255 = arith.constant 0 : index
    %c0_256 = arith.constant 0 : index
    %380 = vector.load %arg6[%c6_254, %c0_255, %c0_256] : memref<9x8x32xf32, #tpu.memory_space<vmem>>, vector<1x8x32xf32>
    %381 = vector.shape_cast %380 : vector<1x8x32xf32> to vector<8x32xf32>
    %c0_257 = arith.constant 0 : index
    %c10 = arith.constant 10 : index
    %382 = vector.load %arg12[%c0_257, %c10] : memref<32x27xf32, #tpu.memory_space<vmem>>, vector<32x15xf32>
    %cst_258 = arith.constant dense<0.000000e+00> : vector<8x15xf32>
    %383 = tpu.matmul %381, %382, %cst_258 {dimension_numbers = #tpu.dot_dimension_numbers<[1], [0], [0], [1], [0, 0, 1, 1], [], []>} : vector<8x32xf32>, vector<32x15xf32>, vector<8x15xf32> -> vector<8x15xf32>
    %384 = arith.addf %379, %383 : vector<8x15xf32>
    %c7_259 = arith.constant 7 : index
    %c0_260 = arith.constant 0 : index
    %c0_261 = arith.constant 0 : index
    %385 = vector.load %arg6[%c7_259, %c0_260, %c0_261] : memref<9x8x32xf32, #tpu.memory_space<vmem>>, vector<1x8x32xf32>
    %386 = vector.shape_cast %385 : vector<1x8x32xf32> to vector<8x32xf32>
    %c0_262 = arith.constant 0 : index
    %c11_263 = arith.constant 11 : index
    %387 = vector.load %arg12[%c0_262, %c11_263] : memref<32x27xf32, #tpu.memory_space<vmem>>, vector<32x15xf32>
    %cst_264 = arith.constant dense<0.000000e+00> : vector<8x15xf32>
    %388 = tpu.matmul %386, %387, %cst_264 {dimension_numbers = #tpu.dot_dimension_numbers<[1], [0], [0], [1], [0, 0, 1, 1], [], []>} : vector<8x32xf32>, vector<32x15xf32>, vector<8x15xf32> -> vector<8x15xf32>
    %389 = arith.addf %384, %388 : vector<8x15xf32>
    %c8_265 = arith.constant 8 : index
    %c0_266 = arith.constant 0 : index
    %c0_267 = arith.constant 0 : index
    %390 = vector.load %arg6[%c8_265, %c0_266, %c0_267] : memref<9x8x32xf32, #tpu.memory_space<vmem>>, vector<1x8x32xf32>
    %391 = vector.shape_cast %390 : vector<1x8x32xf32> to vector<8x32xf32>
    %c0_268 = arith.constant 0 : index
    %c12_269 = arith.constant 12 : index
    %392 = vector.load %arg12[%c0_268, %c12_269] : memref<32x27xf32, #tpu.memory_space<vmem>>, vector<32x15xf32>
    %cst_270 = arith.constant dense<0.000000e+00> : vector<8x15xf32>
    %393 = tpu.matmul %391, %392, %cst_270 {dimension_numbers = #tpu.dot_dimension_numbers<[1], [0], [0], [1], [0, 0, 1, 1], [], []>} : vector<8x32xf32>, vector<32x15xf32>, vector<8x15xf32> -> vector<8x15xf32>
    %394 = arith.addf %389, %393 : vector<8x15xf32>
    %c0_271 = arith.constant 0 : index
    %c0_272 = arith.constant 0 : index
    %395 = vector.load %arg7[%c0_271, %c0_272] : memref<8x1xf32, #tpu.memory_space<vmem>>, vector<8x1xf32>
    %396 = vector.broadcast %395 : vector<8x1xf32> to vector<8x15xf32>
    %397 = arith.addf %394, %396 : vector<8x15xf32>
    %398 = tpu.iota {dimensions = array<i32: 1>} : vector<1x15xi32>
    %c5_i32 = arith.constant 5 : i32
    %c0_i32_273 = arith.constant 0 : i32
    %399 = arith.cmpi eq, %c5_i32, %c0_i32_273 : i32
    %c1_i32_274 = arith.constant 1 : i32
    %400 = arith.select %399, %c1_i32_274, %c5_i32 : i32
    %401 = vector.broadcast %400 : i32 to vector<1x15xi32>
    %402 = arith.remsi %398, %401 : vector<1x15xi32>
    %c0_i32_275 = arith.constant 0 : i32
    %403 = vector.broadcast %c0_i32_275 : i32 to vector<1x15xi32>
    %404 = arith.cmpi ne, %402, %403 : vector<1x15xi32>
    %c0_i32_276 = arith.constant 0 : i32
    %405 = vector.broadcast %c0_i32_276 : i32 to vector<1x15xi32>
    %406 = arith.cmpi slt, %402, %405 : vector<1x15xi32>
    %c0_i32_277 = arith.constant 0 : i32
    %407 = arith.cmpi slt, %400, %c0_i32_277 : i32
    %408 = vector.broadcast %407 : i1 to vector<1x15xi1>
    %409 = vector.broadcast %408 : vector<1x15xi1> to vector<1x15xi1>
    %410 = arith.xori %406, %409 : vector<1x15xi1>
    %411 = arith.andi %410, %404 : vector<1x15xi1>
    %412 = vector.broadcast %400 : i32 to vector<1x15xi32>
    %413 = arith.addi %402, %412 : vector<1x15xi32>
    %414 = arith.select %411, %413, %402 : vector<1x15xi1>, vector<1x15xi32>
    %c3_i32_278 = arith.constant 3 : i32
    %415 = vector.broadcast %c3_i32_278 : i32 to vector<1x15xi32>
    %416 = arith.cmpi slt, %414, %415 : vector<1x15xi32>
    %cst_279 = arith.constant 0xFF800000 : f32
    %417 = vector.shape_cast %416 : vector<1x15xi1> to vector<1x15xi1>
    %418 = vector.broadcast %417 : vector<1x15xi1> to vector<8x15xi1>
    %419 = vector.broadcast %cst_279 : f32 to vector<8x15xf32>
    %420 = arith.select %418, %397, %419 : vector<8x15xi1>, vector<8x15xf32>
    %c0_280 = arith.constant 0 : index
    %c6_281 = arith.constant 6 : index
    %421 = vector.load %arg13[%c0_280, %c6_281] : memref<8x25xf32, #tpu.memory_space<vmem>>, vector<8x15xf32>
    tpu.vector_store %arg13[%c0_280, %c6_281], %420 {strides = array<i32>} : memref<8x25xf32, #tpu.memory_space<vmem>>, vector<8x15xf32>,
    %422 = tpu.iota {dimensions = array<i32: 0>} : vector<3x1xi32>
    %423 = tpu.iota {dimensions = array<i32: 1>} : vector<3x1xi32>
    %c3_i32_282 = arith.constant 3 : i32
    %424 = vector.broadcast %c3_i32_282 : i32 to vector<3x1xi32>
    %425 = arith.muli %424, %423 : vector<3x1xi32>
    %426 = arith.cmpi eq, %422, %425 : vector<3x1xi32>
    %cst_283 = arith.constant 1.000000e+00 : f32
    %cst_284 = arith.constant 0.000000e+00 : f32
    %427 = vector.broadcast %cst_283 : f32 to vector<3x1xf32>
    %428 = vector.broadcast %cst_284 : f32 to vector<3x1xf32>
    %429 = arith.select %426, %427, %428 : vector<3x1xi1>, vector<3x1xf32>
    %c0_285 = arith.constant 0 : index
    %c0_286 = arith.constant 0 : index
    %430 = vector.load %arg13[%c0_285, %c0_286] : memref<8x25xf32, #tpu.memory_space<vmem>>, vector<8x5xf32>
    %c0_287 = arith.constant 0 : index
    %c5_288 = arith.constant 5 : index
    %431 = vector.load %arg13[%c0_287, %c5_288] : memref<8x25xf32, #tpu.memory_space<vmem>>, vector<8x5xf32>
    %c0_289 = arith.constant 0 : index
    %c10_290 = arith.constant 10 : index
    %432 = vector.load %arg13[%c0_289, %c10_290] : memref<8x25xf32, #tpu.memory_space<vmem>>, vector<8x5xf32>
    %433 = arith.maximumf %430, %431 : vector<8x5xf32>
    %434 = arith.maximumf %433, %432 : vector<8x5xf32>
    %435 = vector.extract_strided_slice %434 {offsets = [0, 0], sizes = [8, 3], strides = [1, 1]} : vector<8x5xf32> to vector<8x3xf32>
    %436 = vector.extract_strided_slice %434 {offsets = [0, 1], sizes = [8, 3], strides = [1, 1]} : vector<8x5xf32> to vector<8x3xf32>
    %437 = arith.maximumf %435, %436 : vector<8x3xf32>
    %438 = vector.extract_strided_slice %434 {offsets = [0, 2], sizes = [8, 3], strides = [1, 1]} : vector<8x5xf32> to vector<8x3xf32>
    %439 = arith.maximumf %437, %438 : vector<8x3xf32>
    %cst_291 = arith.constant dense<0.000000e+00> : vector<8x1xf32>
    %440 = tpu.matmul %439, %429, %cst_291 {dimension_numbers = #tpu.dot_dimension_numbers<[1], [0], [0], [1], [0, 0, 1, 1], [], []>} : vector<8x3xf32>, vector<3x1xf32>, vector<8x1xf32> -> vector<8x1xf32>
    %cst_292 = arith.constant 0.000000e+00 : f32
    %441 = vector.broadcast %cst_292 : f32 to vector<8x1xf32>
    %442 = arith.maximumf %440, %441 : vector<8x1xf32>
    %c0_293 = arith.constant 0 : index
    %c0_294 = arith.constant 0 : index
    %c0_295 = arith.constant 0 : index
    %443 = vector.load %arg8[%c0_293, %c0_294, %c0_295] : memref<1x8x1xf32, #tpu.memory_space<vmem>>, vector<1x8x1xf32>
    %444 = vector.shape_cast %443 : vector<1x8x1xf32> to vector<8x1xf32>
    %445 = vector.shape_cast %442 : vector<8x1xf32> to vector<1x8x1xf32>
    tpu.vector_store %arg8[%c0_293, %c0_294, %c0_295], %445 {strides = array<i32>} : memref<1x8x1xf32, #tpu.memory_space<vmem>>, vector<1x8x1xf32>,
    return
  }
  func.func @transform_0(%arg0: i32) -> (i32, i32, i32) {
    %c0_i32 = arith.constant 0 : i32
    %c0_i32_0 = arith.constant 0 : i32
    %c0_i32_1 = arith.constant 0 : i32
    return %arg0, %c0_i32, %c0_i32_0 : i32, i32, i32
  }
  func.func @transform_1(%arg0: i32) -> (i32, i32, i32) {
    %c0_i32 = arith.constant 0 : i32
    %c0_i32_0 = arith.constant 0 : i32
    %c0_i32_1 = arith.constant 0 : i32
    %c0_i32_2 = arith.constant 0 : i32
    return %c0_i32, %c0_i32_0, %c0_i32_1 : i32, i32, i32
  }
  func.func @transform_2(%arg0: i32) -> (i32, i32) {
    %c0_i32 = arith.constant 0 : i32
    %c0_i32_0 = arith.constant 0 : i32
    %c0_i32_1 = arith.constant 0 : i32
    return %c0_i32, %c0_i32_0 : i32, i32
  }
  func.func @transform_3(%arg0: i32) -> (i32, i32, i32) {
    %c0_i32 = arith.constant 0 : i32
    %c0_i32_0 = arith.constant 0 : i32
    %c0_i32_1 = arith.constant 0 : i32
    %c0_i32_2 = arith.constant 0 : i32
    return %c0_i32, %c0_i32_0, %c0_i32_1 : i32, i32, i32
  }
  func.func @transform_4(%arg0: i32) -> (i32, i32) {
    %c0_i32 = arith.constant 0 : i32
    %c0_i32_0 = arith.constant 0 : i32
    %c0_i32_1 = arith.constant 0 : i32
    return %c0_i32, %c0_i32_0 : i32, i32
  }
  func.func @transform_5(%arg0: i32) -> (i32, i32, i32) {
    %c0_i32 = arith.constant 0 : i32
    %c0_i32_0 = arith.constant 0 : i32
    %c0_i32_1 = arith.constant 0 : i32
    %c0_i32_2 = arith.constant 0 : i32
    return %c0_i32, %c0_i32_0, %c0_i32_1 : i32, i32, i32
  }
  func.func @transform_6(%arg0: i32) -> (i32, i32) {
    %c0_i32 = arith.constant 0 : i32
    %c0_i32_0 = arith.constant 0 : i32
    %c0_i32_1 = arith.constant 0 : i32
    return %c0_i32, %c0_i32_0 : i32, i32
  }
  func.func @transform_7(%arg0: i32) -> (i32, i32, i32) {
    %c0_i32 = arith.constant 0 : i32
    %c0_i32_0 = arith.constant 0 : i32
    %c0_i32_1 = arith.constant 0 : i32
    return %arg0, %c0_i32, %c0_i32_0 : i32, i32, i32
  }
}

</mosaic_0001>

<llo_original>
// kernel: flower_net_2_forward.1
$region0: #{flower_net_2_forward.1}
  #allocation0 [shape = 'u32[]', space=smem, size = 0x4, offset = 0x4, fixed_abs, tag = 'smem constant byte address 0x4 - core index']
  #allocation1 [shape = 'u32[144,128]{1,0:T(1,128)}', space=vmem, size = 0x12000, scoped, tag = 'internal scratch']
  #allocation2 [shape = 'f32[16,841]{1,0:T(8,128)}', space=vmem, size = 0xe000, scoped, tag = 'scratch operand']
  #allocation3 [shape = 'f32[16,123]{1,0:T(8,128)}', space=vmem, size = 0x2000, scoped, tag = 'scratch operand']
  #allocation4 [shape = 'f32[32,121]{1,0:T(8,128)}', space=vmem, size = 0x4000, scoped, tag = 'scratch operand']
  #allocation5 [shape = 'f32[32,27]{1,0:T(8,128)}', space=vmem, size = 0x4000, scoped, tag = 'scratch operand']
  #allocation6 [shape = 'f32[8,25]{1,0:T(8,128)}', space=vmem, size = 0x1000, scoped, tag = 'scratch operand']
  %s0 = inlined_call_operand.vmem [shape: f32[2,8,843], index: 0, kind: input, shape index: {}]
  %s1 = inlined_call_operand.vmem [shape: f32[9,16,8], index: 1, kind: input, shape index: {}]
  %s2 = inlined_call_operand.vmem [shape: f32[16,1], index: 2, kind: input, shape index: {}]
  %s3 = inlined_call_operand.vmem [shape: f32[9,32,16], index: 3, kind: input, shape index: {}]
  %s4 = inlined_call_operand.vmem [shape: f32[32,1], index: 4, kind: input, shape index: {}]
  %s5 = inlined_call_operand.vmem [shape: f32[9,8,32], index: 5, kind: input, shape index: {}]
  %s6 = inlined_call_operand.vmem [shape: f32[8,1], index: 6, kind: input, shape index: {}]
  %s7 = inlined_call_operand.vmem [shape: f32[2,8,1], index: 7, kind: output, shape index: {}]
  %s8 = sld [smem:[#allocation0]]
  $region61: #{flower_net_2_forward.1} parent=0
    _
  %s10 = ssub.s32 1, %s8
  %s11 = scalar_select 0, %s10, %s8
  loop: start=0, step=1, limit=4
  $region2: #{flower_net_2_forward.1} parent=0 // loop_pre_header
    _
  $region3: #{flower_net_2_forward.1} parent=0 // loop_header
    %s13 = sphi 0, %s17
    %p14 = scmp.ge.s32.totalorder %s13, 4
    %s23 = sphi 0, %s25
    %s26 = sphi 0, %s23
    %s27 = sphi 0, %s26
    %s43 = sphi 0, %s27
    %s47 = sphi 0, %s47
    %s49 = sphi 0, %s47
    %s50 = sphi 0, %s49
    %s64 = sphi 0, %s50
    %s68 = sphi 0, %s68
    %s70 = sphi 0, %s68
    %s71 = sphi 0, %s70
    %s85 = sphi 0, %s71
    %s89 = sphi 0, %s89
    %s91 = sphi 0, %s89
    %s92 = sphi 0, %s91
    %s106 = sphi 0, %s92
    %s110 = sphi 0, %s110
    %s112 = sphi 0, %s110
    %s113 = sphi 0, %s112
    %s127 = sphi 0, %s113
    %s131 = sphi 0, %s131
    %s133 = sphi 0, %s131
    %s134 = sphi 0, %s133
    %s148 = sphi 0, %s134
    %s152 = sphi 0, %s152
    %s154 = sphi 0, %s152
    %s155 = sphi 0, %s154
    %s169 = sphi 0, %s155
    %s175 = sphi 0, %s177
    %s178 = sphi 0, %s175
    %s179 = sphi 0, %s178
    %s195 = sphi 0, %s179
  $region4: #{flower_net_2_forward.1} parent=0 // loop_header_branch
    %16 = sbr.rel (%p14) target = $region8
  $region5: #{flower_net_2_forward.1} parent=0 // loop_body
    %s18 = ssub.s32 %s13, 1
    %s19 = ssub.s32 %s13, 2
    %s20 = sadd.s32 %s13, 1
    %s21 = ssub.s32 %s13, %s20
    %p22 = scmp.eq.s32.totalorder %s21, 0
    %s24 = sadd.s32 %s23, 1
    %s25 = scalar_select %p22, %s23, %s24
    %p28 = pneg %p22
    %p29 = scmp.eq.s32.totalorder %s13, 1
    %p30 = por %p28, %p29
    %p31 = scmp.ne.s32.totalorder %s23, %s26
    %p32 = scmp.eq.s32.totalorder %s13, 0
    %p33 = por %p31, %p32
    %p34 = scmp.ne.s32.totalorder %s23, %s26
    %p35 = scmp.eq.s32.totalorder %s18, 1
    %p36 = por %p34, %p35
    %p37 = scmp.ne.s32.totalorder %s26, %s27
    %p38 = scmp.eq.s32.totalorder %s18, 0
    %p39 = por %p37, %p38
    %p40 = scmp.ne.s32.totalorder %s26, %s27
    %p41 = scmp.eq.s32.totalorder %s19, 1
    %p42 = por %p40, %p41
    %p44 = scmp.ne.s32.totalorder %s27, %s43
    %p45 = scmp.eq.s32.totalorder %s19, 0
    %p46 = por %p44, %p45
    %s48 = sadd.s32 %s47, 1
    %p51 = scmp.eq.s32.totalorder %s13, 1
    %p52 = scmp.ne.s32.totalorder %s47, %s49
    %p53 = scmp.eq.s32.totalorder %s13, 0
    %p54 = por %p52, %p53
    %p55 = scmp.ne.s32.totalorder %s47, %s49
    %p56 = scmp.eq.s32.totalorder %s18, 1
    %p57 = por %p55, %p56
    %p58 = scmp.ne.s32.totalorder %s49, %s50
    %p59 = scmp.eq.s32.totalorder %s18, 0
    %p60 = por %p58, %p59
    %p61 = scmp.ne.s32.totalorder %s49, %s50
    %p62 = scmp.eq.s32.totalorder %s19, 1
    %p63 = por %p61, %p62
    %p65 = scmp.ne.s32.totalorder %s50, %s64
    %p66 = scmp.eq.s32.totalorder %s19, 0
    %p67 = por %p65, %p66
    %s69 = sadd.s32 %s68, 1
    %p72 = scmp.eq.s32.totalorder %s13, 1
    %p73 = scmp.ne.s32.totalorder %s68, %s70
    %p74 = scmp.eq.s32.totalorder %s13, 0
    %p75 = por %p73, %p74
    %p76 = scmp.ne.s32.totalorder %s68, %s70
    %p77 = scmp.eq.s32.totalorder %s18, 1
    %p78 = por %p76, %p77
    %p79 = scmp.ne.s32.totalorder %s70, %s71
    %p80 = scmp.eq.s32.totalorder %s18, 0
    %p81 = por %p79, %p80
    %p82 = scmp.ne.s32.totalorder %s70, %s71
    %p83 = scmp.eq.s32.totalorder %s19, 1
    %p84 = por %p82, %p83
    %p86 = scmp.ne.s32.totalorder %s71, %s85
    %p87 = scmp.eq.s32.totalorder %s19, 0
    %p88 = por %p86, %p87
    %s90 = sadd.s32 %s89, 1
    %p93 = scmp.eq.s32.totalorder %s13, 1
    %p94 = scmp.ne.s32.totalorder %s89, %s91
    %p95 = scmp.eq.s32.totalorder %s13, 0
    %p96 = por %p94, %p95
    %p97 = scmp.ne.s32.totalorder %s89, %s91
    %p98 = scmp.eq.s32.totalorder %s18, 1
    %p99 = por %p97, %p98
    %p100 = scmp.ne.s32.totalorder %s91, %s92
    %p101 = scmp.eq.s32.totalorder %s18, 0
    %p102 = por %p100, %p101
    %p103 = scmp.ne.s32.totalorder %s91, %s92
    %p104 = scmp.eq.s32.totalorder %s19, 1
    %p105 = por %p103, %p104
    %p107 = scmp.ne.s32.totalorder %s92, %s106
    %p108 = scmp.eq.s32.totalorder %s19, 0
    %p109 = por %p107, %p108
    %s111 = sadd.s32 %s110, 1
    %p114 = scmp.eq.s32.totalorder %s13, 1
    %p115 = scmp.ne.s32.totalorder %s110, %s112
    %p116 = scmp.eq.s32.totalorder %s13, 0
    %p117 = por %p115, %p116
    %p118 = scmp.ne.s32.totalorder %s110, %s112
    %p119 = scmp.eq.s32.totalorder %s18, 1
    %p120 = por %p118, %p119
    %p121 = scmp.ne.s32.totalorder %s112, %s113
    %p122 = scmp.eq.s32.totalorder %s18, 0
    %p123 = por %p121, %p122
    %p124 = scmp.ne.s32.totalorder %s112, %s113
    %p125 = scmp.eq.s32.totalorder %s19, 1
    %p126 = por %p124, %p125
    %p128 = scmp.ne.s32.totalorder %s113, %s127
    %p129 = scmp.eq.s32.totalorder %s19, 0
    %p130 = por %p128, %p129
    %s132 = sadd.s32 %s131, 1
    %p135 = scmp.eq.s32.totalorder %s13, 1
    %p136 = scmp.ne.s32.totalorder %s131, %s133
    %p137 = scmp.eq.s32.totalorder %s13, 0
    %p138 = por %p136, %p137
    %p139 = scmp.ne.s32.totalorder %s131, %s133
    %p140 = scmp.eq.s32.totalorder %s18, 1
    %p141 = por %p139, %p140
    %p142 = scmp.ne.s32.totalorder %s133, %s134
    %p143 = scmp.eq.s32.totalorder %s18, 0
    %p144 = por %p142, %p143
    %p145 = scmp.ne.s32.totalorder %s133, %s134
    %p146 = scmp.eq.s32.totalorder %s19, 1
    %p147 = por %p145, %p146
    %p149 = scmp.ne.s32.totalorder %s134, %s148
    %p150 = scmp.eq.s32.totalorder %s19, 0
    %p151 = por %p149, %p150
    %s153 = sadd.s32 %s152, 1
    %p156 = scmp.eq.s32.totalorder %s13, 1
    %p157 = scmp.ne.s32.totalorder %s152, %s154
    %p158 = scmp.eq.s32.totalorder %s13, 0
    %p159 = por %p157, %p158
    %p160 = scmp.ne.s32.totalorder %s152, %s154
    %p161 = scmp.eq.s32.totalorder %s18, 1
    %p162 = por %p160, %p161
    %p163 = scmp.ne.s32.totalorder %s154, %s155
    %p164 = scmp.eq.s32.totalorder %s18, 0
    %p165 = por %p163, %p164
    %p166 = scmp.ne.s32.totalorder %s154, %s155
    %p167 = scmp.eq.s32.totalorder %s19, 1
    %p168 = por %p166, %p167
    %p170 = scmp.ne.s32.totalorder %s155, %s169
    %p171 = scmp.eq.s32.totalorder %s19, 0
    %p172 = por %p170, %p171
    %s173 = ssub.s32 %s13, %s20
    %p174 = scmp.eq.s32.totalorder %s173, 0
    %s176 = sadd.s32 %s175, 1
    %s177 = scalar_select %p174, %s175, %s176
    %p180 = pneg %p174
    %p181 = scmp.eq.s32.totalorder %s13, 1
    %p182 = por %p180, %p181
    %p183 = scmp.ne.s32.totalorder %s175, %s178
    %p184 = scmp.eq.s32.totalorder %s13, 0
    %p185 = por %p183, %p184
    %p186 = scmp.ne.s32.totalorder %s175, %s178
    %p187 = scmp.eq.s32.totalorder %s18, 1
    %p188 = por %p186, %p187
    %p189 = scmp.ne.s32.totalorder %s178, %s179
    %p190 = scmp.eq.s32.totalorder %s18, 0
    %p191 = por %p189, %p190
    %p192 = scmp.ne.s32.totalorder %s178, %s179
    %p193 = scmp.eq.s32.totalorder %s19, 1
    %p194 = por %p192, %p193
    %p196 = scmp.ne.s32.totalorder %s179, %s195
    %p197 = scmp.eq.s32.totalorder %s19, 0
    %p198 = por %p196, %p197
    %p199 = scmp.le.s32.totalorder 1, %s13
    %p200 = scmp.lt.s32.totalorder %s13, 3
    %p201 = pnand %p199, %p200
    %p202 = pneg %p201
    // Predicated region
    $region9: #{flower_net_2_forward.1} parent=5 // pred_check
      _
    $region10: #{flower_net_2_forward.1} parent=5 // pred_check_branch
      %204 = sbr.rel (%p201) target = $region12
    $region11: #{flower_net_2_forward.1} parent=5 // pred_region
      %s205 = ssub.s32 %s13, 1
      // Predicated region
      $region13: #{flower_net_2_forward.1} parent=11 // pred_check
        %p206 = pneg %p60
      $region14: #{flower_net_2_forward.1} parent=11 // pred_check_branch
        %208 = sbr.rel (%p206) target = $region16
      $region15: #{flower_net_2_forward.1} parent=11 // pred_region
        _
      $region16: #{flower_net_2_forward.1} parent=11 // pred_fallthru
        _
      // Predicated region
      $region17: #{flower_net_2_forward.1} parent=11 // pred_check
        %p209 = pneg %p81
      $region18: #{flower_net_2_forward.1} parent=11 // pred_check_branch
        %211 = sbr.rel (%p209) target = $region20
      $region19: #{flower_net_2_forward.1} parent=11 // pred_region
        _
      $region20: #{flower_net_2_forward.1} parent=11 // pred_fallthru
        _
      // Predicated region
      $region21: #{flower_net_2_forward.1} parent=11 // pred_check
        %p212 = pneg %p102
      $region22: #{flower_net_2_forward.1} parent=11 // pred_check_branch
        %214 = sbr.rel (%p212) target = $region24
      $region23: #{flower_net_2_forward.1} parent=11 // pred_region
        _
      $region24: #{flower_net_2_forward.1} parent=11 // pred_fallthru
        _
      // Predicated region
      $region25: #{flower_net_2_forward.1} parent=11 // pred_check
        %p215 = pneg %p123
      $region26: #{flower_net_2_forward.1} parent=11 // pred_check_branch
        %217 = sbr.rel (%p215) target = $region28
      $region27: #{flower_net_2_forward.1} parent=11 // pred_region
        _
      $region28: #{flower_net_2_forward.1} parent=11 // pred_fallthru
        _
      // Predicated region
      $region29: #{flower_net_2_forward.1} parent=11 // pred_check
        %p218 = pneg %p144
      $region30: #{flower_net_2_forward.1} parent=11 // pred_check_branch
        %220 = sbr.rel (%p218) target = $region32
      $region31: #{flower_net_2_forward.1} parent=11 // pred_region
        _
      $region32: #{flower_net_2_forward.1} parent=11 // pred_fallthru
        _
      // Predicated region
      $region33: #{flower_net_2_forward.1} parent=11 // pred_check
        %p221 = pneg %p165
      $region34: #{flower_net_2_forward.1} parent=11 // pred_check_branch
        %223 = sbr.rel (%p221) target = $region36
      $region35: #{flower_net_2_forward.1} parent=11 // pred_region
        _
      $region36: #{flower_net_2_forward.1} parent=11 // pred_fallthru
        _
    $region12: #{flower_net_2_forward.1} parent=5 // pred_fallthru
      _
    %p224 = scmp.lt.s32.totalorder %s13, 2
    // Predicated region
    $region37: #{flower_net_2_forward.1} parent=5 // pred_check
      %p225 = pneg %p224
    $region38: #{flower_net_2_forward.1} parent=5 // pred_check_branch
      %227 = sbr.rel (%p225) target = $region40
    $region39: #{flower_net_2_forward.1} parent=5 // pred_region
      // Predicated region
      $region41: #{flower_net_2_forward.1} parent=39 // pred_check
        %p228 = pneg %p33
      $region42: #{flower_net_2_forward.1} parent=39 // pred_check_branch
        %230 = sbr.rel (%p228) target = $region44
      $region43: #{flower_net_2_forward.1} parent=39 // pred_region
        %p231 = scmp.lt.s32.totalorder %s13, 1
        %s232 = scalar_select %p231, %s13, 1
        %s233 = smul.addr %s232, 7
        %s234 = smul.addr %s233, 8
        %s235 = scalar_lea.vmem %s0, %s234
      $region44: #{flower_net_2_forward.1} parent=39 // pred_fallthru
        _
    $region40: #{flower_net_2_forward.1} parent=5 // pred_fallthru
      _
    %p236 = scmp.le.s32.totalorder 1, %s13
    %p237 = scmp.lt.s32.totalorder %s13, 3
    %p238 = pnand %p236, %p237
    %p239 = pneg %p238
    // Predicated region
    $region45: #{flower_net_2_forward.1} parent=5 // pred_check
      _
    $region46: #{flower_net_2_forward.1} parent=5 // pred_check_branch
      %241 = sbr.rel (%p238) target = $region48
    $region47: #{flower_net_2_forward.1} parent=5 // pred_region
      %s242 = ssub.s32 %s13, 1
      %p243 = scmp.lt.s32.totalorder %s18, 1
      %s244 = scalar_select %p243, %s18, 1
      %s245 = smul.addr %s244, 7
      %s246 = smul.addr %s245, 8
      %s247 = scalar_lea.vmem %s0, %s246
      %p248 = pneg %p39
      %p249 = pneg %p36
      %p250 = pneg %p60
      %p251 = pneg %p57
      %p252 = pneg %p81
      %p253 = pneg %p78
      %p254 = pneg %p102
      %p255 = pneg %p99
      %p256 = pneg %p123
      %p257 = pneg %p120
      %p258 = pneg %p144
      %p259 = pneg %p141
      %p260 = pneg %p165
      %p261 = pneg %p162
      %p262 = pneg %p191
      %p263 = pneg %p188
      %p264 = scmp.lt.s32.totalorder %s18, 1
      %s265 = scalar_select %p264, %s18, 1
      %s266 = smul.addr %s265, 8
      %s267 = scalar_lea.vmem %s7, %s266
      %p268 = scmp.lt.s32.totalorder %s18, 1
      %s269 = scalar_select %p268, %s18, 1
      %s270 = smul.addr %s269, 7
      %s271 = smul.addr %s270, 8
      %s272 = scalar_lea.vmem %s0, %s271
      %p273 = scmp.lt.s32.totalorder %s18, 1
      %s274 = scalar_select %p273, %s18, 1
      %s275 = smul.addr %s274, 8
      %s276 = scalar_lea.vmem %s7, %s275
      %277 = vst [vmem:[#allocation2] sm:$0xff] 0.0
      %278 = vst [vmem:[#allocation2 + $0x8] sm:$0xff] 0.0
      %279 = vst [vmem:[#allocation2 + $0x10] sm:$0xff] 0.0
      %280 = vst [vmem:[#allocation2 + $0x18] sm:$0xff] 0.0
      %281 = vst [vmem:[#allocation2 + $0x20] sm:$0xff] 0.0
      %282 = vst [vmem:[#allocation2 + $0x28] sm:$0xff] 0.0
      %vm283 = vcmask 596992
      %284 = vst.msk [vmem:[#allocation2 + $0x30] sm:$0xff] %vm283, 0.0
      %285 = vst [vmem:[#allocation2 + $0x38] sm:$0xff] 0.0
      %286 = vst [vmem:[#allocation2 + $0x40] sm:$0xff] 0.0
      %287 = vst [vmem:[#allocation2 + $0x48] sm:$0xff] 0.0
      %288 = vst [vmem:[#allocation2 + $0x50] sm:$0xff] 0.0
      %289 = vst [vmem:[#allocation2 + $0x58] sm:$0xff] 0.0
      %290 = vst [vmem:[#allocation2 + $0x60] sm:$0xff] 0.0
      %291 = vst.msk [vmem:[#allocation2 + $0x68] sm:$0xff] %vm283, 0.0
      %vm292 = vcmask 1006592
      %293 = vst.msk [vmem:[#allocation3] sm:$0xff] %vm292, 0.0
      %294 = vst.msk [vmem:[#allocation3 + $0x8] sm:$0xff] %vm292, 0.0
      %v295 = vld [vmem:[%s1] sm:$0xff]
      %v296 = vld [vmem:[%s1 + $0x8] sm:$0xff]
      %v297 = vld [vmem:[%s272] sm:$0xff]
      %v298 = vld [vmem:[%s272 + $0x8] sm:$0xff]
      %v299 = vld [vmem:[%s272 + $0x10] sm:$0xff]
      %v300 = vld [vmem:[%s272 + $0x18] sm:$0xff]
      %v301 = vld [vmem:[%s272 + $0x20] sm:$0xff]
      %v302 = vld [vmem:[%s272 + $0x28] sm:$0xff]
      %v303 = vld [vmem:[%s272 + $0x30] sm:$0xff]
      %s304 = scalar_lea.vmem %s1, 16
      %v305 = vld [vmem:[%s304] sm:$0xff]
      %v306 = vld [vmem:[%s304 + $0x8] sm:$0xff]
      %314 = vrot.lane.b32.xlu0 %v297, 127
      %v315 = vpop.permute.xlu0 %314
      %316 = vrot.lane.b32.xlu0 %v298, 127
      %v317 = vpop.permute.xlu0 %316
      %318 = vrot.lane.b32.xlu0 %v299, 127
      %v319 = vpop.permute.xlu0 %318
      %320 = vrot.lane.b32.xlu0 %v300, 127
      %v321 = vpop.permute.xlu0 %320
      %322 = vrot.lane.b32.xlu0 %v301, 127
      %v323 = vpop.permute.xlu0 %322
      %324 = vrot.lane.b32.xlu0 %v302, 127
      %v325 = vpop.permute.xlu0 %324
      %326 = vrot.lane.b32.xlu0 %v303, 127
      %v327 = vpop.permute.xlu0 %326
      %vm328 = vcmask 1039360
      %v329 = vsel %vm328, %v315, %v317
      %v330 = vsel %vm328, %v317, %v319
      %v331 = vsel %vm328, %v319, %v321
      %v332 = vsel %vm328, %v321, %v323
      %v333 = vsel %vm328, %v323, %v325
      %v334 = vsel %vm328, %v325, %v327
      %vm342 = vcmask 64512
      %v344 = vsel %vm342, %v305, 0
      %v347 = vsel %vm342, %v306, 0
      %349 = vmatprep.subr.mxu0 0.0
      %350 = vmatpush1.msra.mxu0 0.0
      %351 = vmatprep.subr.mxu0 0.0
      %352 = vmatpush1.msra.mxu0 0.0
      %353 = vmatprep.subr.mxu0 0.0
      %354 = vmatpush1.msra.mxu0 0.0
      %355 = vmatprep.subr.mxu0 0.0
      %356 = vmatpush1.msra.mxu0 0.0
      %357 = vmatprep.subr.mxu0 0.0
      %358 = vmatpush1.msra.mxu0 0.0
      %359 = vmatprep.subr.mxu0 0.0
      %360 = vmatpush1.msra.mxu0 0.0
      %361 = vmatprep.subr.mxu0 0.0
      %362 = vmatpush1.msra.mxu0 0.0
      %363 = vmatprep.subr.mxu0 0.0
      %364 = vmatpush1.msra.mxu0 0.0
      %365 = vmatprep.subr.mxu0 0.0
      %366 = vmatpush1.msra.mxu0 0.0
      %367 = vmatprep.subr.mxu0 0.0
      %368 = vmatpush1.msra.mxu0 0.0
      %369 = vmatprep.subr.mxu0 0.0
      %370 = vmatpush1.msra.mxu0 0.0
      %371 = vmatprep.subr.mxu0 0.0
      %372 = vmatpush1.msra.mxu0 0.0
      %373 = vmatprep.subr.mxu0 0.0
      %374 = vmatpush1.msra.mxu0 0.0
      %375 = vmatprep.subr.mxu0 0.0
      %376 = vmatpush1.msra.mxu0 0.0
      %377 = vmatprep.subr.mxu0 0.0
      %378 = vmatpush1.msra.mxu0 0.0
      %379 = vmatprep.subr.mxu0 %v330
      %380 = vmatpush1.msra.mxu0 %v329
      %381 = vmatprep.subr.mxu0 0.0
      %382 = vmatpush2.msra.mxu0 0.0
      %383 = vmatprep.subr.mxu0 0.0
      %384 = vmatpush2.msra.mxu0 0.0
      %385 = vmatprep.subr.mxu0 0.0
      %386 = vmatpush2.msra.mxu0 0.0
      %387 = vmatprep.subr.mxu0 0.0
      %388 = vmatpush2.msra.mxu0 0.0
      %389 = vmatprep.subr.mxu0 0.0
      %390 = vmatpush2.msra.mxu0 0.0
      %391 = vmatprep.subr.mxu0 0.0
      %392 = vmatpush2.msra.mxu0 0.0
      %393 = vmatprep.subr.mxu0 0.0
      %394 = vmatpush2.msra.mxu0 0.0
      %395 = vmatprep.subr.mxu0 0.0
      %396 = vmatpush2.msra.mxu0 0.0
      %397 = vmatprep.subr.mxu0 0.0
      %398 = vmatpush2.msra.mxu0 0.0
      %399 = vmatprep.subr.mxu0 0.0
      %400 = vmatpush2.msra.mxu0 0.0
      %401 = vmatprep.subr.mxu0 0.0
      %402 = vmatpush2.msra.mxu0 0.0
      %403 = vmatprep.subr.mxu0 0.0
      %404 = vmatpush2.msra.mxu0 0.0
      %405 = vmatprep.subr.mxu0 0.0
      %406 = vmatpush2.msra.mxu0 0.0
      %407 = vmatprep.subr.mxu0 0.0
      %408 = vmatpush2.msra.mxu0 0.0
      %409 = vmatprep.subr.mxu0 0.0
      %410 = vmatpush2.msra.mxu0 0.0
      %411 = vmatprep.subr.mxu0 0.0
      %412 = vmatpush2.msra.mxu0 0.0
      %413 = vmatprep.mubr.f32.mxu0 0.0
      %414 = vmatmul.mubr.f32.gmra.mxu0 %v344
      %v415 = vpop.f32.mrf.mxu0
      %v416 = vadd.f32 0.0, %v415
      %v417 = vpop.f32.mrf.mxu0
      %v418 = vadd.f32 0.0, %v417
      %419 = vmatprep.mubr.f32.mxu0 0.0
      %420 = vmatmul.mubr.f32.gmra.mxu0 %v347
      %v421 = vpop.f32.mrf.mxu0
      %v422 = vadd.f32 0.0, %v421
      %v423 = vpop.f32.mrf.mxu0
      %v424 = vadd.f32 0.0, %v423
      %425 = vdwg.mxu0
      %426 = vmatprep.subr.mxu0 0.0
      %427 = vmatpush1.msra.mxu0 0.0
      %428 = vmatprep.subr.mxu0 0.0
      %429 = vmatpush1.msra.mxu0 0.0
      %430 = vmatprep.subr.mxu0 0.0
      %431 = vmatpush1.msra.mxu0 0.0
      %432 = vmatprep.subr.mxu0 0.0
      %433 = vmatpush1.msra.mxu0 0.0
      %434 = vmatprep.subr.mxu0 0.0
      %435 = vmatpush1.msra.mxu0 0.0
      %436 = vmatprep.subr.mxu0 0.0
      %437 = vmatpush1.msra.mxu0 0.0
      %438 = vmatprep.subr.mxu0 0.0
      %439 = vmatpush1.msra.mxu0 0.0
      %440 = vmatprep.subr.mxu0 0.0
      %441 = vmatpush1.msra.mxu0 0.0
      %442 = vmatprep.subr.mxu0 0.0
      %443 = vmatpush1.msra.mxu0 0.0
      %444 = vmatprep.subr.mxu0 0.0
      %445 = vmatpush1.msra.mxu0 0.0
      %446 = vmatprep.subr.mxu0 0.0
      %447 = vmatpush1.msra.mxu0 0.0
      %448 = vmatprep.subr.mxu0 0.0
      %449 = vmatpush1.msra.mxu0 0.0
      %450 = vmatprep.subr.mxu0 0.0
      %451 = vmatpush1.msra.mxu0 0.0
      %452 = vmatprep.subr.mxu0 0.0
      %453 = vmatpush1.msra.mxu0 0.0
      %454 = vmatprep.subr.mxu0 0.0
      %455 = vmatpush1.msra.mxu0 0.0
      %456 = vmatprep.subr.mxu0 %v332
      %457 = vmatpush1.msra.mxu0 %v331
      %458 = vmatprep.subr.mxu0 0.0
      %459 = vmatpush2.msra.mxu0 0.0
      %460 = vmatprep.subr.mxu0 0.0
      %461 = vmatpush2.msra.mxu0 0.0
      %462 = vmatprep.subr.mxu0 0.0
      %463 = vmatpush2.msra.mxu0 0.0
      %464 = vmatprep.subr.mxu0 0.0
      %465 = vmatpush2.msra.mxu0 0.0
      %466 = vmatprep.subr.mxu0 0.0
      %467 = vmatpush2.msra.mxu0 0.0
      %468 = vmatprep.subr.mxu0 0.0
      %469 = vmatpush2.msra.mxu0 0.0
      %470 = vmatprep.subr.mxu0 0.0
      %471 = vmatpush2.msra.mxu0 0.0
      %472 = vmatprep.subr.mxu0 0.0
      %473 = vmatpush2.msra.mxu0 0.0
      %474 = vmatprep.subr.mxu0 0.0
      %475 = vmatpush2.msra.mxu0 0.0
      %476 = vmatprep.subr.mxu0 0.0
      %477 = vmatpush2.msra.mxu0 0.0
      %478 = vmatprep.subr.mxu0 0.0
      %479 = vmatpush2.msra.mxu0 0.0
      %480 = vmatprep.subr.mxu0 0.0
      %481 = vmatpush2.msra.mxu0 0.0
      %482 = vmatprep.subr.mxu0 0.0
      %483 = vmatpush2.msra.mxu0 0.0
      %484 = vmatprep.subr.mxu0 0.0
      %485 = vmatpush2.msra.mxu0 0.0
      %486 = vmatprep.subr.mxu0 0.0
      %487 = vmatpush2.msra.mxu0 0.0
      %488 = vmatprep.subr.mxu0 0.0
      %489 = vmatpush2.msra.mxu0 0.0
      %490 = vmatprep.mubr.f32.mxu0 0.0
      %491 = vmatmul.mubr.f32.gmra.mxu0 %v344
      %v492 = vpop.f32.mrf.mxu0
      %v493 = vadd.f32 0.0, %v492
      %v494 = vpop.f32.mrf.mxu0
      %v495 = vadd.f32 0.0, %v494
      %496 = vmatprep.mubr.f32.mxu0 0.0
      %497 = vmatmul.mubr.f32.gmra.mxu0 %v347
      %v498 = vpop.f32.mrf.mxu0
      %v499 = vadd.f32 0.0, %v498
      %v500 = vpop.f32.mrf.mxu0
      %v501 = vadd.f32 0.0, %v500
      %502 = vdwg.mxu0
      %503 = vmatprep.subr.mxu0 0.0
      %504 = vmatpush1.msra.mxu0 0.0
      %505 = vmatprep.subr.mxu0 0.0
      %506 = vmatpush1.msra.mxu0 0.0
      %507 = vmatprep.subr.mxu0 0.0
      %508 = vmatpush1.msra.mxu0 0.0
      %509 = vmatprep.subr.mxu0 0.0
      %510 = vmatpush1.msra.mxu0 0.0
      %511 = vmatprep.subr.mxu0 0.0
      %512 = vmatpush1.msra.mxu0 0.0
      %513 = vmatprep.subr.mxu0 0.0
      %514 = vmatpush1.msra.mxu0 0.0
      %515 = vmatprep.subr.mxu0 0.0
      %516 = vmatpush1.msra.mxu0 0.0
      %517 = vmatprep.subr.mxu0 0.0
      %518 = vmatpush1.msra.mxu0 0.0
      %519 = vmatprep.subr.mxu0 0.0
      %520 = vmatpush1.msra.mxu0 0.0
      %521 = vmatprep.subr.mxu0 0.0
      %522 = vmatpush1.msra.mxu0 0.0
      %523 = vmatprep.subr.mxu0 0.0
      %524 = vmatpush1.msra.mxu0 0.0
      %525 = vmatprep.subr.mxu0 0.0
      %526 = vmatpush1.msra.mxu0 0.0
      %527 = vmatprep.subr.mxu0 0.0
      %528 = vmatpush1.msra.mxu0 0.0
      %529 = vmatprep.subr.mxu0 0.0
      %530 = vmatpush1.msra.mxu0 0.0
      %531 = vmatprep.subr.mxu0 0.0
      %532 = vmatpush1.msra.mxu0 0.0
      %533 = vmatprep.subr.mxu0 %v334
      %534 = vmatpush1.msra.mxu0 %v333
      %535 = vmatprep.subr.mxu0 0.0
      %536 = vmatpush2.msra.mxu0 0.0
      %537 = vmatprep.subr.mxu0 0.0
      %538 = vmatpush2.msra.mxu0 0.0
      %539 = vmatprep.subr.mxu0 0.0
      %540 = vmatpush2.msra.mxu0 0.0
      %541 = vmatprep.subr.mxu0 0.0
      %542 = vmatpush2.msra.mxu0 0.0
      %543 = vmatprep.subr.mxu0 0.0
      %544 = vmatpush2.msra.mxu0 0.0
      %545 = vmatprep.subr.mxu0 0.0
      %546 = vmatpush2.msra.mxu0 0.0
      %547 = vmatprep.subr.mxu0 0.0
      %548 = vmatpush2.msra.mxu0 0.0
      %549 = vmatprep.subr.mxu0 0.0
      %550 = vmatpush2.msra.mxu0 0.0
      %551 = vmatprep.subr.mxu0 0.0
      %552 = vmatpush2.msra.mxu0 0.0
      %553 = vmatprep.subr.mxu0 0.0
      %554 = vmatpush2.msra.mxu0 0.0
      %555 = vmatprep.subr.mxu0 0.0
      %556 = vmatpush2.msra.mxu0 0.0
      %557 = vmatprep.subr.mxu0 0.0
      %558 = vmatpush2.msra.mxu0 0.0
      %559 = vmatprep.subr.mxu0 0.0
      %560 = vmatpush2.msra.mxu0 0.0
      %561 = vmatprep.subr.mxu0 0.0
      %562 = vmatpush2.msra.mxu0 0.0
      %563 = vmatprep.subr.mxu0 0.0
      %564 = vmatpush2.msra.mxu0 0.0
      %565 = vmatprep.subr.mxu0 0.0
      %566 = vmatpush2.msra.mxu0 0.0
      %567 = vmatprep.mubr.f32.mxu0 0.0
      %568 = vmatmul.mubr.f32.gmra.mxu0 %v344
      %v569 = vpop.f32.mrf.mxu0
      %v570 = vadd.f32 0.0, %v569
      %v571 = vpop.f32.mrf.mxu0
      %v572 = vadd.f32 0.0, %v571
      %573 = vmatprep.mubr.f32.mxu0 0.0
      %574 = vmatmul.mubr.f32.gmra.mxu0 %v347
      %v575 = vpop.f32.mrf.mxu0
      %v576 = vadd.f32 0.0, %v575
      %v577 = vpop.f32.mrf.mxu0
      %v578 = vadd.f32 0.0, %v577
      %579 = vdwg.mxu0
      %580 = vmatprep.subr.mxu0 0.0
      %581 = vmatpush1.msra.mxu0 0.0
      %582 = vmatprep.subr.mxu0 0.0
      %583 = vmatpush1.msra.mxu0 0.0
      %584 = vmatprep.subr.mxu0 0.0
      %585 = vmatpush1.msra.mxu0 0.0
      %586 = vmatprep.subr.mxu0 0.0
      %587 = vmatpush1.msra.mxu0 0.0
      %588 = vmatprep.subr.mxu0 0.0
      %589 = vmatpush1.msra.mxu0 0.0
      %590 = vmatprep.subr.mxu0 0.0
      %591 = vmatpush1.msra.mxu0 0.0
      %592 = vmatprep.subr.mxu0 0.0
      %593 = vmatpush1.msra.mxu0 0.0
      %594 = vmatprep.subr.mxu0 0.0
      %595 = vmatpush1.msra.mxu0 0.0
      %596 = vmatprep.subr.mxu0 0.0
      %597 = vmatpush1.msra.mxu0 0.0
      %598 = vmatprep.subr.mxu0 0.0
      %599 = vmatpush1.msra.mxu0 0.0
      %600 = vmatprep.subr.mxu0 0.0
      %601 = vmatpush1.msra.mxu0 0.0
      %602 = vmatprep.subr.mxu0 0.0
      %603 = vmatpush1.msra.mxu0 0.0
      %604 = vmatprep.subr.mxu0 0.0
      %605 = vmatpush1.msra.mxu0 0.0
      %606 = vmatprep.subr.mxu0 0.0
      %607 = vmatpush1.msra.mxu0 0.0
      %608 = vmatprep.subr.mxu0 0.0
      %609 = vmatpush1.msra.mxu0 0.0
      %610 = vmatprep.subr.mxu0 0.0
      %611 = vmatpush1.msra.mxu0 %v327
      %612 = vmatprep.subr.mxu0 0.0
      %613 = vmatpush2.msra.mxu0 0.0
      %614 = vmatprep.subr.mxu0 0.0
      %615 = vmatpush2.msra.mxu0 0.0
      %616 = vmatprep.subr.mxu0 0.0
      %617 = vmatpush2.msra.mxu0 0.0
      %618 = vmatprep.subr.mxu0 0.0
      %619 = vmatpush2.msra.mxu0 0.0
      %620 = vmatprep.subr.mxu0 0.0
      %621 = vmatpush2.msra.mxu0 0.0
      %622 = vmatprep.subr.mxu0 0.0
      %623 = vmatpush2.msra.mxu0 0.0
      %624 = vmatprep.subr.mxu0 0.0
      %625 = vmatpush2.msra.mxu0 0.0
      %626 = vmatprep.subr.mxu0 0.0
      %627 = vmatpush2.msra.mxu0 0.0
      %628 = vmatprep.subr.mxu0 0.0
      %629 = vmatpush2.msra.mxu0 0.0
      %630 = vmatprep.subr.mxu0 0.0
      %631 = vmatpush2.msra.mxu0 0.0
      %632 = vmatprep.subr.mxu0 0.0
      %633 = vmatpush2.msra.mxu0 0.0
      %634 = vmatprep.subr.mxu0 0.0
      %635 = vmatpush2.msra.mxu0 0.0
      %636 = vmatprep.subr.mxu0 0.0
      %637 = vmatpush2.msra.mxu0 0.0
      %638 = vmatprep.subr.mxu0 0.0
      %639 = vmatpush2.msra.mxu0 0.0
      %640 = vmatprep.subr.mxu0 0.0
      %641 = vmatpush2.msra.mxu0 0.0
      %642 = vmatprep.subr.mxu0 0.0
      %643 = vmatpush2.msra.mxu0 0.0
      %644 = vmatprep.mubr.f32.mxu0 0.0
      %645 = vmatmul.mubr.f32.gmra.mxu0 %v344
      %v646 = vpop.f32.mrf.mxu0
      %v647 = vadd.f32 0.0, %v646
      %v648 = vpop.f32.mrf.mxu0
      %649 = vmatprep.mubr.f32.mxu0 0.0
      %650 = vmatmul.mubr.f32.gmra.mxu0 %v347
      %v651 = vpop.f32.mrf.mxu0
      %v652 = vadd.f32 0.0, %v651
      %v653 = vpop.f32.mrf.mxu0
      %654 = vdwg.mxu0
      %v656 = vsel %vm342, %v295, 0
      %v659 = vsel %vm342, %v296, 0
      %661 = vmatprep.subr.mxu0 0.0
      %662 = vmatpush1.msra.mxu0 0.0
      %663 = vmatprep.subr.mxu0 0.0
      %664 = vmatpush1.msra.mxu0 0.0
      %665 = vmatprep.subr.mxu0 0.0
      %666 = vmatpush1.msra.mxu0 0.0
      %667 = vmatprep.subr.mxu0 0.0
      %668 = vmatpush1.msra.mxu0 0.0
      %669 = vmatprep.subr.mxu0 0.0
      %670 = vmatpush1.msra.mxu0 0.0
      %671 = vmatprep.subr.mxu0 0.0
      %672 = vmatpush1.msra.mxu0 0.0
      %673 = vmatprep.subr.mxu0 0.0
      %674 = vmatpush1.msra.mxu0 0.0
      %675 = vmatprep.subr.mxu0 0.0
      %676 = vmatpush1.msra.mxu0 0.0
      %677 = vmatprep.subr.mxu0 0.0
      %678 = vmatpush1.msra.mxu0 0.0
      %679 = vmatprep.subr.mxu0 0.0
      %680 = vmatpush1.msra.mxu0 0.0
      %681 = vmatprep.subr.mxu0 0.0
      %682 = vmatpush1.msra.mxu0 0.0
      %683 = vmatprep.subr.mxu0 0.0
      %684 = vmatpush1.msra.mxu0 0.0
      %685 = vmatprep.subr.mxu0 0.0
      %686 = vmatpush1.msra.mxu0 0.0
      %687 = vmatprep.subr.mxu0 0.0
      %688 = vmatpush1.msra.mxu0 0.0
      %689 = vmatprep.subr.mxu0 0.0
      %690 = vmatpush1.msra.mxu0 0.0
      %691 = vmatprep.subr.mxu0 %v298
      %692 = vmatpush1.msra.mxu0 %v297
      %693 = vmatprep.subr.mxu0 0.0
      %694 = vmatpush2.msra.mxu0 0.0
      %695 = vmatprep.subr.mxu0 0.0
      %696 = vmatpush2.msra.mxu0 0.0
      %697 = vmatprep.subr.mxu0 0.0
      %698 = vmatpush2.msra.mxu0 0.0
      %699 = vmatprep.subr.mxu0 0.0
      %700 = vmatpush2.msra.mxu0 0.0
      %701 = vmatprep.subr.mxu0 0.0
      %702 = vmatpush2.msra.mxu0 0.0
      %703 = vmatprep.subr.mxu0 0.0
      %704 = vmatpush2.msra.mxu0 0.0
      %705 = vmatprep.subr.mxu0 0.0
      %706 = vmatpush2.msra.mxu0 0.0
      %707 = vmatprep.subr.mxu0 0.0
      %708 = vmatpush2.msra.mxu0 0.0
      %709 = vmatprep.subr.mxu0 0.0
      %710 = vmatpush2.msra.mxu0 0.0
      %711 = vmatprep.subr.mxu0 0.0
      %712 = vmatpush2.msra.mxu0 0.0
      %713 = vmatprep.subr.mxu0 0.0
      %714 = vmatpush2.msra.mxu0 0.0
      %715 = vmatprep.subr.mxu0 0.0
      %716 = vmatpush2.msra.mxu0 0.0
      %717 = vmatprep.subr.mxu0 0.0
      %718 = vmatpush2.msra.mxu0 0.0
      %719 = vmatprep.subr.mxu0 0.0
      %720 = vmatpush2.msra.mxu0 0.0
      %721 = vmatprep.subr.mxu0 0.0
      %722 = vmatpush2.msra.mxu0 0.0
      %723 = vmatprep.subr.mxu0 0.0
      %724 = vmatpush2.msra.mxu0 0.0
      %725 = vmatprep.mubr.f32.mxu0 0.0
      %726 = vmatmul.mubr.f32.gmra.mxu0 %v656
      %v727 = vpop.f32.mrf.mxu0
      %v728 = vadd.f32 %v416, %v727
      %v729 = vpop.f32.mrf.mxu0
      %v730 = vadd.f32 %v418, %v729
      %731 = vmatprep.mubr.f32.mxu0 0.0
      %732 = vmatmul.mubr.f32.gmra.mxu0 %v659
      %v733 = vpop.f32.mrf.mxu0
      %v734 = vadd.f32 %v422, %v733
      %v735 = vpop.f32.mrf.mxu0
      %v736 = vadd.f32 %v424, %v735
      %737 = vdwg.mxu0
      %738 = vmatprep.subr.mxu0 0.0
      %739 = vmatpush1.msra.mxu0 0.0
      %740 = vmatprep.subr.mxu0 0.0
      %741 = vmatpush1.msra.mxu0 0.0
      %742 = vmatprep.subr.mxu0 0.0
      %743 = vmatpush1.msra.mxu0 0.0
      %744 = vmatprep.subr.mxu0 0.0
      %745 = vmatpush1.msra.mxu0 0.0
      %746 = vmatprep.subr.mxu0 0.0
      %747 = vmatpush1.msra.mxu0 0.0
      %748 = vmatprep.subr.mxu0 0.0
      %749 = vmatpush1.msra.mxu0 0.0
      %750 = vmatprep.subr.mxu0 0.0
      %751 = vmatpush1.msra.mxu0 0.0
      %752 = vmatprep.subr.mxu0 0.0
      %753 = vmatpush1.msra.mxu0 0.0
      %754 = vmatprep.subr.mxu0 0.0
      %755 = vmatpush1.msra.mxu0 0.0
      %756 = vmatprep.subr.mxu0 0.0
      %757 = vmatpush1.msra.mxu0 0.0
      %758 = vmatprep.subr.mxu0 0.0
      %759 = vmatpush1.msra.mxu0 0.0
      %760 = vmatprep.subr.mxu0 0.0
      %761 = vmatpush1.msra.mxu0 0.0
      %762 = vmatprep.subr.mxu0 0.0
      %763 = vmatpush1.msra.mxu0 0.0
      %764 = vmatprep.subr.mxu0 0.0
      %765 = vmatpush1.msra.mxu0 0.0
      %766 = vmatprep.subr.mxu0 0.0
      %767 = vmatpush1.msra.mxu0 0.0
      %768 = vmatprep.subr.mxu0 %v300
      %769 = vmatpush1.msra.mxu0 %v299
      %770 = vmatprep.subr.mxu0 0.0
      %771 = vmatpush2.msra.mxu0 0.0
      %772 = vmatprep.subr.mxu0 0.0
      %773 = vmatpush2.msra.mxu0 0.0
      %774 = vmatprep.subr.mxu0 0.0
      %775 = vmatpush2.msra.mxu0 0.0
      %776 = vmatprep.subr.mxu0 0.0
      %777 = vmatpush2.msra.mxu0 0.0
      %778 = vmatprep.subr.mxu0 0.0
      %779 = vmatpush2.msra.mxu0 0.0
      %780 = vmatprep.subr.mxu0 0.0
      %781 = vmatpush2.msra.mxu0 0.0
      %782 = vmatprep.subr.mxu0 0.0
      %783 = vmatpush2.msra.mxu0 0.0
      %784 = vmatprep.subr.mxu0 0.0
      %785 = vmatpush2.msra.mxu0 0.0
      %786 = vmatprep.subr.mxu0 0.0
      %787 = vmatpush2.msra.mxu0 0.0
      %788 = vmatprep.subr.mxu0 0.0
      %789 = vmatpush2.msra.mxu0 0.0
      %790 = vmatprep.subr.mxu0 0.0
      %791 = vmatpush2.msra.mxu0 0.0
      %792 = vmatprep.subr.mxu0 0.0
      %793 = vmatpush2.msra.mxu0 0.0
      %794 = vmatprep.subr.mxu0 0.0
      %795 = vmatpush2.msra.mxu0 0.0
      %796 = vmatprep.subr.mxu0 0.0
      %797 = vmatpush2.msra.mxu0 0.0
      %798 = vmatprep.subr.mxu0 0.0
      %799 = vmatpush2.msra.mxu0 0.0
      %800 = vmatprep.subr.mxu0 0.0
      %801 = vmatpush2.msra.mxu0 0.0
      %802 = vmatprep.mubr.f32.mxu0 0.0
      %803 = vmatmul.mubr.f32.gmra.mxu0 %v656
      %v804 = vpop.f32.mrf.mxu0
      %v805 = vadd.f32 %v493, %v804
      %v806 = vpop.f32.mrf.mxu0
      %v807 = vadd.f32 %v495, %v806
      %808 = vmatprep.mubr.f32.mxu0 0.0
      %809 = vmatmul.mubr.f32.gmra.mxu0 %v659
      %v810 = vpop.f32.mrf.mxu0
      %v811 = vadd.f32 %v499, %v810
      %v812 = vpop.f32.mrf.mxu0
      %v813 = vadd.f32 %v501, %v812
      %814 = vdwg.mxu0
      %815 = vmatprep.subr.mxu0 0.0
      %816 = vmatpush1.msra.mxu0 0.0
      %817 = vmatprep.subr.mxu0 0.0
      %818 = vmatpush1.msra.mxu0 0.0
      %819 = vmatprep.subr.mxu0 0.0
      %820 = vmatpush1.msra.mxu0 0.0
      %821 = vmatprep.subr.mxu0 0.0
      %822 = vmatpush1.msra.mxu0 0.0
      %823 = vmatprep.subr.mxu0 0.0
      %824 = vmatpush1.msra.mxu0 0.0
      %825 = vmatprep.subr.mxu0 0.0
      %826 = vmatpush1.msra.mxu0 0.0
      %827 = vmatprep.subr.mxu0 0.0
      %828 = vmatpush1.msra.mxu0 0.0
      %829 = vmatprep.subr.mxu0 0.0
      %830 = vmatpush1.msra.mxu0 0.0
      %831 = vmatprep.subr.mxu0 0.0
      %832 = vmatpush1.msra.mxu0 0.0
      %833 = vmatprep.subr.mxu0 0.0
      %834 = vmatpush1.msra.mxu0 0.0
      %835 = vmatprep.subr.mxu0 0.0
      %836 = vmatpush1.msra.mxu0 0.0
      %837 = vmatprep.subr.mxu0 0.0
      %838 = vmatpush1.msra.mxu0 0.0
      %839 = vmatprep.subr.mxu0 0.0
      %840 = vmatpush1.msra.mxu0 0.0
      %841 = vmatprep.subr.mxu0 0.0
      %842 = vmatpush1.msra.mxu0 0.0
      %843 = vmatprep.subr.mxu0 0.0
      %844 = vmatpush1.msra.mxu0 0.0
      %845 = vmatprep.subr.mxu0 %v302
      %846 = vmatpush1.msra.mxu0 %v301
      %847 = vmatprep.subr.mxu0 0.0
      %848 = vmatpush2.msra.mxu0 0.0
      %849 = vmatprep.subr.mxu0 0.0
      %850 = vmatpush2.msra.mxu0 0.0
      %851 = vmatprep.subr.mxu0 0.0
      %852 = vmatpush2.msra.mxu0 0.0
      %853 = vmatprep.subr.mxu0 0.0
      %854 = vmatpush2.msra.mxu0 0.0
      %855 = vmatprep.subr.mxu0 0.0
      %856 = vmatpush2.msra.mxu0 0.0
      %857 = vmatprep.subr.mxu0 0.0
      %858 = vmatpush2.msra.mxu0 0.0
      %859 = vmatprep.subr.mxu0 0.0
      %860 = vmatpush2.msra.mxu0 0.0
      %861 = vmatprep.subr.mxu0 0.0
      %862 = vmatpush2.msra.mxu0 0.0
      %863 = vmatprep.subr.mxu0 0.0
      %864 = vmatpush2.msra.mxu0 0.0
      %865 = vmatprep.subr.mxu0 0.0
      %866 = vmatpush2.msra.mxu0 0.0
      %867 = vmatprep.subr.mxu0 0.0
      %868 = vmatpush2.msra.mxu0 0.0
      %869 = vmatprep.subr.mxu0 0.0
      %870 = vmatpush2.msra.mxu0 0.0
      %871 = vmatprep.subr.mxu0 0.0
      %872 = vmatpush2.msra.mxu0 0.0
      %873 = vmatprep.subr.mxu0 0.0
      %874 = vmatpush2.msra.mxu0 0.0
      %875 = vmatprep.subr.mxu0 0.0
      %876 = vmatpush2.msra.mxu0 0.0
      %877 = vmatprep.subr.mxu0 0.0
      %878 = vmatpush2.msra.mxu0 0.0
      %879 = vmatprep.mubr.f32.mxu0 0.0
      %880 = vmatmul.mubr.f32.gmra.mxu0 %v656
      %v881 = vpop.f32.mrf.mxu0
      %v882 = vadd.f32 %v570, %v881
      %v883 = vpop.f32.mrf.mxu0
      %v884 = vadd.f32 %v572, %v883
      %885 = vmatprep.mubr.f32.mxu0 0.0
      %886 = vmatmul.mubr.f32.gmra.mxu0 %v659
      %v887 = vpop.f32.mrf.mxu0
      %v888 = vadd.f32 %v576, %v887
      %v889 = vpop.f32.mrf.mxu0
      %v890 = vadd.f32 %v578, %v889
      %891 = vdwg.mxu0
      %892 = vmatprep.subr.mxu0 0.0
      %893 = vmatpush1.msra.mxu0 0.0
      %894 = vmatprep.subr.mxu0 0.0
      %895 = vmatpush1.msra.mxu0 0.0
      %896 = vmatprep.subr.mxu0 0.0
      %897 = vmatpush1.msra.mxu0 0.0
      %898 = vmatprep.subr.mxu0 0.0
      %899 = vmatpush1.msra.mxu0 0.0
      %900 = vmatprep.subr.mxu0 0.0
      %901 = vmatpush1.msra.mxu0 0.0
      %902 = vmatprep.subr.mxu0 0.0
      %903 = vmatpush1.msra.mxu0 0.0
      %904 = vmatprep.subr.mxu0 0.0
      %905 = vmatpush1.msra.mxu0 0.0
      %906 = vmatprep.subr.mxu0 0.0
      %907 = vmatpush1.msra.mxu0 0.0
      %908 = vmatprep.subr.mxu0 0.0
      %909 = vmatpush1.msra.mxu0 0.0
      %910 = vmatprep.subr.mxu0 0.0
      %911 = vmatpush1.msra.mxu0 0.0
      %912 = vmatprep.subr.mxu0 0.0
      %913 = vmatpush1.msra.mxu0 0.0
      %914 = vmatprep.subr.mxu0 0.0
      %915 = vmatpush1.msra.mxu0 0.0
      %916 = vmatprep.subr.mxu0 0.0
      %917 = vmatpush1.msra.mxu0 0.0
      %918 = vmatprep.subr.mxu0 0.0
      %919 = vmatpush1.msra.mxu0 0.0
      %920 = vmatprep.subr.mxu0 0.0
      %921 = vmatpush1.msra.mxu0 0.0
      %922 = vmatprep.subr.mxu0 0.0
      %923 = vmatpush1.msra.mxu0 %v303
      %924 = vmatprep.subr.mxu0 0.0
      %925 = vmatpush2.msra.mxu0 0.0
      %926 = vmatprep.subr.mxu0 0.0
      %927 = vmatpush2.msra.mxu0 0.0
      %928 = vmatprep.subr.mxu0 0.0
      %929 = vmatpush2.msra.mxu0 0.0
      %930 = vmatprep.subr.mxu0 0.0
      %931 = vmatpush2.msra.mxu0 0.0
      %932 = vmatprep.subr.mxu0 0.0
      %933 = vmatpush2.msra.mxu0 0.0
      %934 = vmatprep.subr.mxu0 0.0
      %935 = vmatpush2.msra.mxu0 0.0
      %936 = vmatprep.subr.mxu0 0.0
      %937 = vmatpush2.msra.mxu0 0.0
      %938 = vmatprep.subr.mxu0 0.0
      %939 = vmatpush2.msra.mxu0 0.0
      %940 = vmatprep.subr.mxu0 0.0
      %941 = vmatpush2.msra.mxu0 0.0
      %942 = vmatprep.subr.mxu0 0.0
      %943 = vmatpush2.msra.mxu0 0.0
      %944 = vmatprep.subr.mxu0 0.0
      %945 = vmatpush2.msra.mxu0 0.0
      %946 = vmatprep.subr.mxu0 0.0
      %947 = vmatpush2.msra.mxu0 0.0
      %948 = vmatprep.subr.mxu0 0.0
      %949 = vmatpush2.msra.mxu0 0.0
      %950 = vmatprep.subr.mxu0 0.0
      %951 = vmatpush2.msra.mxu0 0.0
      %952 = vmatprep.subr.mxu0 0.0
      %953 = vmatpush2.msra.mxu0 0.0
      %954 = vmatprep.subr.mxu0 0.0
      %955 = vmatpush2.msra.mxu0 0.0
      %956 = vmatprep.mubr.f32.mxu0 0.0
      %957 = vmatmul.mubr.f32.gmra.mxu0 %v656
      %v958 = vpop.f32.mrf.mxu0
      %v959 = vadd.f32 %v647, %v958
      %v960 = vpop.f32.mrf.mxu0
      %961 = vmatprep.mubr.f32.mxu0 0.0
      %962 = vmatmul.mubr.f32.gmra.mxu0 %v659
      %v963 = vpop.f32.mrf.mxu0
      %v964 = vadd.f32 %v652, %v963
      %v965 = vpop.f32.mrf.mxu0
      %966 = vdwg.mxu0
      %s967 = scalar_lea.vmem %s1, 32
      %v968 = vld [vmem:[%s967] sm:$0xff]
      %v969 = vld [vmem:[%s967 + $0x8] sm:$0xff]
      %970 = vrot.lane.b32.xlu0 %v297, 126
      %v971 = vpop.permute.xlu0 %970
      %972 = vrot.lane.b32.xlu0 %v298, 126
      %v973 = vpop.permute.xlu0 %972
      %974 = vrot.lane.b32.xlu0 %v299, 126
      %v975 = vpop.permute.xlu0 %974
      %976 = vrot.lane.b32.xlu0 %v300, 126
      %v977 = vpop.permute.xlu0 %976
      %978 = vrot.lane.b32.xlu0 %v301, 126
      %v979 = vpop.permute.xlu0 %978
      %980 = vrot.lane.b32.xlu0 %v302, 126
      %v981 = vpop.permute.xlu0 %980
      %982 = vrot.lane.b32.xlu0 %v303, 126
      %v983 = vpop.permute.xlu0 %982
      %vm984 = vcmask 1031168
      %v985 = vsel %vm984, %v971, %v973
      %v986 = vsel %vm984, %v973, %v975
      %v987 = vsel %vm984, %v975, %v977
      %v988 = vsel %vm984, %v977, %v979
      %v989 = vsel %vm984, %v979, %v981
      %v990 = vsel %vm984, %v981, %v983
      %v999 = vsel %vm342, %v968, 0
      %v1002 = vsel %vm342, %v969, 0
      %1004 = vmatprep.subr.mxu0 0.0
      %1005 = vmatpush1.msra.mxu0 0.0
      %1006 = vmatprep.subr.mxu0 0.0
      %1007 = vmatpush1.msra.mxu0 0.0
      %1008 = vmatprep.subr.mxu0 0.0
      %1009 = vmatpush1.msra.mxu0 0.0
      %1010 = vmatprep.subr.mxu0 0.0
      %1011 = vmatpush1.msra.mxu0 0.0
      %1012 = vmatprep.subr.mxu0 0.0
      %1013 = vmatpush1.msra.mxu0 0.0
      %1014 = vmatprep.subr.mxu0 0.0
      %1015 = vmatpush1.msra.mxu0 0.0
      %1016 = vmatprep.subr.mxu0 0.0
      %1017 = vmatpush1.msra.mxu0 0.0
      %1018 = vmatprep.subr.mxu0 0.0
      %1019 = vmatpush1.msra.mxu0 0.0
      %1020 = vmatprep.subr.mxu0 0.0
      %1021 = vmatpush1.msra.mxu0 0.0
      %1022 = vmatprep.subr.mxu0 0.0
      %1023 = vmatpush1.msra.mxu0 0.0
      %1024 = vmatprep.subr.mxu0 0.0
      %1025 = vmatpush1.msra.mxu0 0.0
      %1026 = vmatprep.subr.mxu0 0.0
      %1027 = vmatpush1.msra.mxu0 0.0
      %1028 = vmatprep.subr.mxu0 0.0
      %1029 = vmatpush1.msra.mxu0 0.0
      %1030 = vmatprep.subr.mxu0 0.0
      %1031 = vmatpush1.msra.mxu0 0.0
      %1032 = vmatprep.subr.mxu0 0.0
      %1033 = vmatpush1.msra.mxu0 0.0
      %1034 = vmatprep.subr.mxu0 %v986
      %1035 = vmatpush1.msra.mxu0 %v985
      %1036 = vmatprep.subr.mxu0 0.0
      %1037 = vmatpush2.msra.mxu0 0.0
      %1038 = vmatprep.subr.mxu0 0.0
      %1039 = vmatpush2.msra.mxu0 0.0
      %1040 = vmatprep.subr.mxu0 0.0
      %1041 = vmatpush2.msra.mxu0 0.0
      %1042 = vmatprep.subr.mxu0 0.0
      %1043 = vmatpush2.msra.mxu0 0.0
      %1044 = vmatprep.subr.mxu0 0.0
      %1045 = vmatpush2.msra.mxu0 0.0
      %1046 = vmatprep.subr.mxu0 0.0
      %1047 = vmatpush2.msra.mxu0 0.0
      %1048 = vmatprep.subr.mxu0 0.0
      %1049 = vmatpush2.msra.mxu0 0.0
      %1050 = vmatprep.subr.mxu0 0.0
      %1051 = vmatpush2.msra.mxu0 0.0
      %1052 = vmatprep.subr.mxu0 0.0
      %1053 = vmatpush2.msra.mxu0 0.0
      %1054 = vmatprep.subr.mxu0 0.0
      %1055 = vmatpush2.msra.mxu0 0.0
      %1056 = vmatprep.subr.mxu0 0.0
      %1057 = vmatpush2.msra.mxu0 0.0
      %1058 = vmatprep.subr.mxu0 0.0
      %1059 = vmatpush2.msra.mxu0 0.0
      %1060 = vmatprep.subr.mxu0 0.0
      %1061 = vmatpush2.msra.mxu0 0.0
      %1062 = vmatprep.subr.mxu0 0.0
      %1063 = vmatpush2.msra.mxu0 0.0
      %1064 = vmatprep.subr.mxu0 0.0
      %1065 = vmatpush2.msra.mxu0 0.0
      %1066 = vmatprep.subr.mxu0 0.0
      %1067 = vmatpush2.msra.mxu0 0.0
      %1068 = vmatprep.mubr.f32.mxu0 0.0
      %1069 = vmatmul.mubr.f32.gmra.mxu0 %v999
      %v1070 = vpop.f32.mrf.mxu0
      %v1071 = vadd.f32 0.0, %v1070
      %v1072 = vpop.f32.mrf.mxu0
      %v1073 = vadd.f32 0.0, %v1072
      %1074 = vmatprep.mubr.f32.mxu0 0.0
      %1075 = vmatmul.mubr.f32.gmra.mxu0 %v1002
      %v1076 = vpop.f32.mrf.mxu0
      %v1077 = vadd.f32 0.0, %v1076
      %v1078 = vpop.f32.mrf.mxu0
      %v1079 = vadd.f32 0.0, %v1078
      %1080 = vdwg.mxu0
      %1081 = vmatprep.subr.mxu0 0.0
      %1082 = vmatpush1.msra.mxu0 0.0
      %1083 = vmatprep.subr.mxu0 0.0
      %1084 = vmatpush1.msra.mxu0 0.0
      %1085 = vmatprep.subr.mxu0 0.0
      %1086 = vmatpush1.msra.mxu0 0.0
      %1087 = vmatprep.subr.mxu0 0.0
      %1088 = vmatpush1.msra.mxu0 0.0
      %1089 = vmatprep.subr.mxu0 0.0
      %1090 = vmatpush1.msra.mxu0 0.0
      %1091 = vmatprep.subr.mxu0 0.0
      %1092 = vmatpush1.msra.mxu0 0.0
      %1093 = vmatprep.subr.mxu0 0.0
      %1094 = vmatpush1.msra.mxu0 0.0
      %1095 = vmatprep.subr.mxu0 0.0
      %1096 = vmatpush1.msra.mxu0 0.0
      %1097 = vmatprep.subr.mxu0 0.0
      %1098 = vmatpush1.msra.mxu0 0.0
      %1099 = vmatprep.subr.mxu0 0.0
      %1100 = vmatpush1.msra.mxu0 0.0
      %1101 = vmatprep.subr.mxu0 0.0
      %1102 = vmatpush1.msra.mxu0 0.0
      %1103 = vmatprep.subr.mxu0 0.0
      %1104 = vmatpush1.msra.mxu0 0.0
      %1105 = vmatprep.subr.mxu0 0.0
      %1106 = vmatpush1.msra.mxu0 0.0
      %1107 = vmatprep.subr.mxu0 0.0
      %1108 = vmatpush1.msra.mxu0 0.0
      %1109 = vmatprep.subr.mxu0 0.0
      %1110 = vmatpush1.msra.mxu0 0.0
      %1111 = vmatprep.subr.mxu0 %v988
      %1112 = vmatpush1.msra.mxu0 %v987
      %1113 = vmatprep.subr.mxu0 0.0
      %1114 = vmatpush2.msra.mxu0 0.0
      %1115 = vmatprep.subr.mxu0 0.0
      %1116 = vmatpush2.msra.mxu0 0.0
      %1117 = vmatprep.subr.mxu0 0.0
      %1118 = vmatpush2.msra.mxu0 0.0
      %1119 = vmatprep.subr.mxu0 0.0
      %1120 = vmatpush2.msra.mxu0 0.0
      %1121 = vmatprep.subr.mxu0 0.0
      %1122 = vmatpush2.msra.mxu0 0.0
      %1123 = vmatprep.subr.mxu0 0.0
      %1124 = vmatpush2.msra.mxu0 0.0
      %1125 = vmatprep.subr.mxu0 0.0
      %1126 = vmatpush2.msra.mxu0 0.0
      %1127 = vmatprep.subr.mxu0 0.0
      %1128 = vmatpush2.msra.mxu0 0.0
      %1129 = vmatprep.subr.mxu0 0.0
      %1130 = vmatpush2.msra.mxu0 0.0
      %1131 = vmatprep.subr.mxu0 0.0
      %1132 = vmatpush2.msra.mxu0 0.0
      %1133 = vmatprep.subr.mxu0 0.0
      %1134 = vmatpush2.msra.mxu0 0.0
      %1135 = vmatprep.subr.mxu0 0.0
      %1136 = vmatpush2.msra.mxu0 0.0
      %1137 = vmatprep.subr.mxu0 0.0
      %1138 = vmatpush2.msra.mxu0 0.0
      %1139 = vmatprep.subr.mxu0 0.0
      %1140 = vmatpush2.msra.mxu0 0.0
      %1141 = vmatprep.subr.mxu0 0.0
      %1142 = vmatpush2.msra.mxu0 0.0
      %1143 = vmatprep.subr.mxu0 0.0
      %1144 = vmatpush2.msra.mxu0 0.0
      %1145 = vmatprep.mubr.f32.mxu0 0.0
      %1146 = vmatmul.mubr.f32.gmra.mxu0 %v999
      %v1147 = vpop.f32.mrf.mxu0
      %v1148 = vadd.f32 0.0, %v1147
      %v1149 = vpop.f32.mrf.mxu0
      %v1150 = vadd.f32 0.0, %v1149
      %1151 = vmatprep.mubr.f32.mxu0 0.0
      %1152 = vmatmul.mubr.f32.gmra.mxu0 %v1002
      %v1153 = vpop.f32.mrf.mxu0
      %v1154 = vadd.f32 0.0, %v1153
      %v1155 = vpop.f32.mrf.mxu0
      %v1156 = vadd.f32 0.0, %v1155
      %1157 = vdwg.mxu0
      %1158 = vmatprep.subr.mxu0 0.0
      %1159 = vmatpush1.msra.mxu0 0.0
      %1160 = vmatprep.subr.mxu0 0.0
      %1161 = vmatpush1.msra.mxu0 0.0
      %1162 = vmatprep.subr.mxu0 0.0
      %1163 = vmatpush1.msra.mxu0 0.0
      %1164 = vmatprep.subr.mxu0 0.0
      %1165 = vmatpush1.msra.mxu0 0.0
      %1166 = vmatprep.subr.mxu0 0.0
      %1167 = vmatpush1.msra.mxu0 0.0
      %1168 = vmatprep.subr.mxu0 0.0
      %1169 = vmatpush1.msra.mxu0 0.0
      %1170 = vmatprep.subr.mxu0 0.0
      %1171 = vmatpush1.msra.mxu0 0.0
      %1172 = vmatprep.subr.mxu0 0.0
      %1173 = vmatpush1.msra.mxu0 0.0
      %1174 = vmatprep.subr.mxu0 0.0
      %1175 = vmatpush1.msra.mxu0 0.0
      %1176 = vmatprep.subr.mxu0 0.0
      %1177 = vmatpush1.msra.mxu0 0.0
      %1178 = vmatprep.subr.mxu0 0.0
      %1179 = vmatpush1.msra.mxu0 0.0
      %1180 = vmatprep.subr.mxu0 0.0
      %1181 = vmatpush1.msra.mxu0 0.0
      %1182 = vmatprep.subr.mxu0 0.0
      %1183 = vmatpush1.msra.mxu0 0.0
      %1184 = vmatprep.subr.mxu0 0.0
      %1185 = vmatpush1.msra.mxu0 0.0
      %1186 = vmatprep.subr.mxu0 0.0
      %1187 = vmatpush1.msra.mxu0 0.0
      %1188 = vmatprep.subr.mxu0 %v990
      %1189 = vmatpush1.msra.mxu0 %v989
      %1190 = vmatprep.subr.mxu0 0.0
      %1191 = vmatpush2.msra.mxu0 0.0
      %1192 = vmatprep.subr.mxu0 0.0
      %1193 = vmatpush2.msra.mxu0 0.0
      %1194 = vmatprep.subr.mxu0 0.0
      %1195 = vmatpush2.msra.mxu0 0.0
      %1196 = vmatprep.subr.mxu0 0.0
      %1197 = vmatpush2.msra.mxu0 0.0
      %1198 = vmatprep.subr.mxu0 0.0
      %1199 = vmatpush2.msra.mxu0 0.0
      %1200 = vmatprep.subr.mxu0 0.0
      %1201 = vmatpush2.msra.mxu0 0.0
      %1202 = vmatprep.subr.mxu0 0.0
      %1203 = vmatpush2.msra.mxu0 0.0
      %1204 = vmatprep.subr.mxu0 0.0
      %1205 = vmatpush2.msra.mxu0 0.0
      %1206 = vmatprep.subr.mxu0 0.0
      %1207 = vmatpush2.msra.mxu0 0.0
      %1208 = vmatprep.subr.mxu0 0.0
      %1209 = vmatpush2.msra.mxu0 0.0
      %1210 = vmatprep.subr.mxu0 0.0
      %1211 = vmatpush2.msra.mxu0 0.0
      %1212 = vmatprep.subr.mxu0 0.0
      %1213 = vmatpush2.msra.mxu0 0.0
      %1214 = vmatprep.subr.mxu0 0.0
      %1215 = vmatpush2.msra.mxu0 0.0
      %1216 = vmatprep.subr.mxu0 0.0
      %1217 = vmatpush2.msra.mxu0 0.0
      %1218 = vmatprep.subr.mxu0 0.0
      %1219 = vmatpush2.msra.mxu0 0.0
      %1220 = vmatprep.subr.mxu0 0.0
      %1221 = vmatpush2.msra.mxu0 0.0
      %1222 = vmatprep.mubr.f32.mxu0 0.0
      %1223 = vmatmul.mubr.f32.gmra.mxu0 %v999
      %v1224 = vpop.f32.mrf.mxu0
      %v1225 = vadd.f32 0.0, %v1224
      %v1226 = vpop.f32.mrf.mxu0
      %v1227 = vadd.f32 0.0, %v1226
      %1228 = vmatprep.mubr.f32.mxu0 0.0
      %1229 = vmatmul.mubr.f32.gmra.mxu0 %v1002
      %v1230 = vpop.f32.mrf.mxu0
      %v1231 = vadd.f32 0.0, %v1230
      %v1232 = vpop.f32.mrf.mxu0
      %v1233 = vadd.f32 0.0, %v1232
      %1234 = vdwg.mxu0
      %1235 = vmatprep.subr.mxu0 0.0
      %1236 = vmatpush1.msra.mxu0 0.0
      %1237 = vmatprep.subr.mxu0 0.0
      %1238 = vmatpush1.msra.mxu0 0.0
      %1239 = vmatprep.subr.mxu0 0.0
      %1240 = vmatpush1.msra.mxu0 0.0
      %1241 = vmatprep.subr.mxu0 0.0
      %1242 = vmatpush1.msra.mxu0 0.0
      %1243 = vmatprep.subr.mxu0 0.0
      %1244 = vmatpush1.msra.mxu0 0.0
      %1245 = vmatprep.subr.mxu0 0.0
      %1246 = vmatpush1.msra.mxu0 0.0
      %1247 = vmatprep.subr.mxu0 0.0
      %1248 = vmatpush1.msra.mxu0 0.0
      %1249 = vmatprep.subr.mxu0 0.0
      %1250 = vmatpush1.msra.mxu0 0.0
      %1251 = vmatprep.subr.mxu0 0.0
      %1252 = vmatpush1.msra.mxu0 0.0
      %1253 = vmatprep.subr.mxu0 0.0
      %1254 = vmatpush1.msra.mxu0 0.0
      %1255 = vmatprep.subr.mxu0 0.0
      %1256 = vmatpush1.msra.mxu0 0.0
      %1257 = vmatprep.subr.mxu0 0.0
      %1258 = vmatpush1.msra.mxu0 0.0
      %1259 = vmatprep.subr.mxu0 0.0
      %1260 = vmatpush1.msra.mxu0 0.0
      %1261 = vmatprep.subr.mxu0 0.0
      %1262 = vmatpush1.msra.mxu0 0.0
      %1263 = vmatprep.subr.mxu0 0.0
      %1264 = vmatpush1.msra.mxu0 0.0
      %1265 = vmatprep.subr.mxu0 0.0
      %1266 = vmatpush1.msra.mxu0 %v983
      %1267 = vmatprep.subr.mxu0 0.0
      %1268 = vmatpush2.msra.mxu0 0.0
      %1269 = vmatprep.subr.mxu0 0.0
      %1270 = vmatpush2.msra.mxu0 0.0
      %1271 = vmatprep.subr.mxu0 0.0
      %1272 = vmatpush2.msra.mxu0 0.0
      %1273 = vmatprep.subr.mxu0 0.0
      %1274 = vmatpush2.msra.mxu0 0.0
      %1275 = vmatprep.subr.mxu0 0.0
      %1276 = vmatpush2.msra.mxu0 0.0
      %1277 = vmatprep.subr.mxu0 0.0
      %1278 = vmatpush2.msra.mxu0 0.0
      %1279 = vmatprep.subr.mxu0 0.0
      %1280 = vmatpush2.msra.mxu0 0.0
      %1281 = vmatprep.subr.mxu0 0.0
      %1282 = vmatpush2.msra.mxu0 0.0
      %1283 = vmatprep.subr.mxu0 0.0
      %1284 = vmatpush2.msra.mxu0 0.0
      %1285 = vmatprep.subr.mxu0 0.0
      %1286 = vmatpush2.msra.mxu0 0.0
      %1287 = vmatprep.subr.mxu0 0.0
      %1288 = vmatpush2.msra.mxu0 0.0
      %1289 = vmatprep.subr.mxu0 0.0
      %1290 = vmatpush2.msra.mxu0 0.0
      %1291 = vmatprep.subr.mxu0 0.0
      %1292 = vmatpush2.msra.mxu0 0.0
      %1293 = vmatprep.subr.mxu0 0.0
      %1294 = vmatpush2.msra.mxu0 0.0
      %1295 = vmatprep.subr.mxu0 0.0
      %1296 = vmatpush2.msra.mxu0 0.0
      %1297 = vmatprep.subr.mxu0 0.0
      %1298 = vmatpush2.msra.mxu0 0.0
      %1299 = vmatprep.mubr.f32.mxu0 0.0
      %1300 = vmatmul.mubr.f32.gmra.mxu0 %v999
      %v1301 = vpop.f32.mrf.mxu0
      %v1302 = vadd.f32 0.0, %v1301
      %v1303 = vpop.f32.mrf.mxu0
      %1304 = vmatprep.mubr.f32.mxu0 0.0
      %1305 = vmatmul.mubr.f32.gmra.mxu0 %v1002
      %v1306 = vpop.f32.mrf.mxu0
      %v1307 = vadd.f32 0.0, %v1306
      %v1308 = vpop.f32.mrf.mxu0
      %1309 = vdwg.mxu0
      %v1310 = vadd.f32 %v728, %v1071
      %v1311 = vadd.f32 %v730, %v1073
      %v1312 = vadd.f32 %v805, %v1148
      %v1313 = vadd.f32 %v807, %v1150
      %v1314 = vadd.f32 %v882, %v1225
      %v1315 = vadd.f32 %v884, %v1227
      %v1316 = vadd.f32 %v959, %v1302
      %v1317 = vadd.f32 %v734, %v1077
      %v1318 = vadd.f32 %v736, %v1079
      %v1319 = vadd.f32 %v811, %v1154
      %v1320 = vadd.f32 %v813, %v1156
      %v1321 = vadd.f32 %v888, %v1231
      %v1322 = vadd.f32 %v890, %v1233
      %v1323 = vadd.f32 %v964, %v1307
      %s1324 = scalar_lea.vmem %s1, 48
      %v1325 = vld [vmem:[%s1324] sm:$0xff]
      %v1326 = vld [vmem:[%s1324 + $0x8] sm:$0xff]
      %1327 = vrot.lane.b32.xlu0 %v297, 99
      %v1328 = vpop.permute.xlu0 %1327
      %1329 = vrot.lane.b32.xlu0 %v298, 99
      %v1330 = vpop.permute.xlu0 %1329
      %1331 = vrot.lane.b32.xlu0 %v299, 99
      %v1332 = vpop.permute.xlu0 %1331
      %1333 = vrot.lane.b32.xlu0 %v300, 99
      %v1334 = vpop.permute.xlu0 %1333
      %1335 = vrot.lane.b32.xlu0 %v301, 99
      %v1336 = vpop.permute.xlu0 %1335
      %1337 = vrot.lane.b32.xlu0 %v302, 99
      %v1338 = vpop.permute.xlu0 %1337
      %1339 = vrot.lane.b32.xlu0 %v303, 99
      %v1340 = vpop.permute.xlu0 %1339
      %vm1341 = vcmask 809984
      %v1342 = vsel %vm1341, %v1328, %v1330
      %v1343 = vsel %vm1341, %v1330, %v1332
      %v1344 = vsel %vm1341, %v1332, %v1334
      %v1345 = vsel %vm1341, %v1334, %v1336
      %v1346 = vsel %vm1341, %v1336, %v1338
      %v1347 = vsel %vm1341, %v1338, %v1340
      %v1356 = vsel %vm342, %v1325, 0
      %v1359 = vsel %vm342, %v1326, 0
      %1361 = vmatprep.subr.mxu0 0.0
      %1362 = vmatpush1.msra.mxu0 0.0
      %1363 = vmatprep.subr.mxu0 0.0
      %1364 = vmatpush1.msra.mxu0 0.0
      %1365 = vmatprep.subr.mxu0 0.0
      %1366 = vmatpush1.msra.mxu0 0.0
      %1367 = vmatprep.subr.mxu0 0.0
      %1368 = vmatpush1.msra.mxu0 0.0
      %1369 = vmatprep.subr.mxu0 0.0
      %1370 = vmatpush1.msra.mxu0 0.0
      %1371 = vmatprep.subr.mxu0 0.0
      %1372 = vmatpush1.msra.mxu0 0.0
      %1373 = vmatprep.subr.mxu0 0.0
      %1374 = vmatpush1.msra.mxu0 0.0
      %1375 = vmatprep.subr.mxu0 0.0
      %1376 = vmatpush1.msra.mxu0 0.0
      %1377 = vmatprep.subr.mxu0 0.0
      %1378 = vmatpush1.msra.mxu0 0.0
      %1379 = vmatprep.subr.mxu0 0.0
      %1380 = vmatpush1.msra.mxu0 0.0
      %1381 = vmatprep.subr.mxu0 0.0
      %1382 = vmatpush1.msra.mxu0 0.0
      %1383 = vmatprep.subr.mxu0 0.0
      %1384 = vmatpush1.msra.mxu0 0.0
      %1385 = vmatprep.subr.mxu0 0.0
      %1386 = vmatpush1.msra.mxu0 0.0
      %1387 = vmatprep.subr.mxu0 0.0
      %1388 = vmatpush1.msra.mxu0 0.0
      %1389 = vmatprep.subr.mxu0 0.0
      %1390 = vmatpush1.msra.mxu0 0.0
      %1391 = vmatprep.subr.mxu0 %v1343
      %1392 = vmatpush1.msra.mxu0 %v1342
      %1393 = vmatprep.subr.mxu0 0.0
      %1394 = vmatpush2.msra.mxu0 0.0
      %1395 = vmatprep.subr.mxu0 0.0
      %1396 = vmatpush2.msra.mxu0 0.0
      %1397 = vmatprep.subr.mxu0 0.0
      %1398 = vmatpush2.msra.mxu0 0.0
      %1399 = vmatprep.subr.mxu0 0.0
      %1400 = vmatpush2.msra.mxu0 0.0
      %1401 = vmatprep.subr.mxu0 0.0
      %1402 = vmatpush2.msra.mxu0 0.0
      %1403 = vmatprep.subr.mxu0 0.0
      %1404 = vmatpush2.msra.mxu0 0.0
      %1405 = vmatprep.subr.mxu0 0.0
      %1406 = vmatpush2.msra.mxu0 0.0
      %1407 = vmatprep.subr.mxu0 0.0
      %1408 = vmatpush2.msra.mxu0 0.0
      %1409 = vmatprep.subr.mxu0 0.0
      %1410 = vmatpush2.msra.mxu0 0.0
      %1411 = vmatprep.subr.mxu0 0.0
      %1412 = vmatpush2.msra.mxu0 0.0
      %1413 = vmatprep.subr.mxu0 0.0
      %1414 = vmatpush2.msra.mxu0 0.0
      %1415 = vmatprep.subr.mxu0 0.0
      %1416 = vmatpush2.msra.mxu0 0.0
      %1417 = vmatprep.subr.mxu0 0.0
      %1418 = vmatpush2.msra.mxu0 0.0
      %1419 = vmatprep.subr.mxu0 0.0
      %1420 = vmatpush2.msra.mxu0 0.0
      %1421 = vmatprep.subr.mxu0 0.0
      %1422 = vmatpush2.msra.mxu0 0.0
      %1423 = vmatprep.subr.mxu0 0.0
      %1424 = vmatpush2.msra.mxu0 0.0
      %1425 = vmatprep.mubr.f32.mxu0 0.0
      %1426 = vmatmul.mubr.f32.gmra.mxu0 %v1356
      %v1427 = vpop.f32.mrf.mxu0
      %v1428 = vadd.f32 0.0, %v1427
      %v1429 = vpop.f32.mrf.mxu0
      %v1430 = vadd.f32 0.0, %v1429
      %1431 = vmatprep.mubr.f32.mxu0 0.0
      %1432 = vmatmul.mubr.f32.gmra.mxu0 %v1359
      %v1433 = vpop.f32.mrf.mxu0
      %v1434 = vadd.f32 0.0, %v1433
      %v1435 = vpop.f32.mrf.mxu0
      %v1436 = vadd.f32 0.0, %v1435
      %1437 = vdwg.mxu0
      %1438 = vmatprep.subr.mxu0 0.0
      %1439 = vmatpush1.msra.mxu0 0.0
      %1440 = vmatprep.subr.mxu0 0.0
      %1441 = vmatpush1.msra.mxu0 0.0
      %1442 = vmatprep.subr.mxu0 0.0
      %1443 = vmatpush1.msra.mxu0 0.0
      %1444 = vmatprep.subr.mxu0 0.0
      %1445 = vmatpush1.msra.mxu0 0.0
      %1446 = vmatprep.subr.mxu0 0.0
      %1447 = vmatpush1.msra.mxu0 0.0
      %1448 = vmatprep.subr.mxu0 0.0
      %1449 = vmatpush1.msra.mxu0 0.0
      %1450 = vmatprep.subr.mxu0 0.0
      %1451 = vmatpush1.msra.mxu0 0.0
      %1452 = vmatprep.subr.mxu0 0.0
      %1453 = vmatpush1.msra.mxu0 0.0
      %1454 = vmatprep.subr.mxu0 0.0
      %1455 = vmatpush1.msra.mxu0 0.0
      %1456 = vmatprep.subr.mxu0 0.0
      %1457 = vmatpush1.msra.mxu0 0.0
      %1458 = vmatprep.subr.mxu0 0.0
      %1459 = vmatpush1.msra.mxu0 0.0
      %1460 = vmatprep.subr.mxu0 0.0
      %1461 = vmatpush1.msra.mxu0 0.0
      %1462 = vmatprep.subr.mxu0 0.0
      %1463 = vmatpush1.msra.mxu0 0.0
      %1464 = vmatprep.subr.mxu0 0.0
      %1465 = vmatpush1.msra.mxu0 0.0
      %1466 = vmatprep.subr.mxu0 0.0
      %1467 = vmatpush1.msra.mxu0 0.0
      %1468 = vmatprep.subr.mxu0 %v1345
      %1469 = vmatpush1.msra.mxu0 %v1344
      %1470 = vmatprep.subr.mxu0 0.0
      %1471 = vmatpush2.msra.mxu0 0.0
      %1472 = vmatprep.subr.mxu0 0.0
      %1473 = vmatpush2.msra.mxu0 0.0
      %1474 = vmatprep.subr.mxu0 0.0
      %1475 = vmatpush2.msra.mxu0 0.0
      %1476 = vmatprep.subr.mxu0 0.0
      %1477 = vmatpush2.msra.mxu0 0.0
      %1478 = vmatprep.subr.mxu0 0.0
      %1479 = vmatpush2.msra.mxu0 0.0
      %1480 = vmatprep.subr.mxu0 0.0
      %1481 = vmatpush2.msra.mxu0 0.0
      %1482 = vmatprep.subr.mxu0 0.0
      %1483 = vmatpush2.msra.mxu0 0.0
      %1484 = vmatprep.subr.mxu0 0.0
      %1485 = vmatpush2.msra.mxu0 0.0
      %1486 = vmatprep.subr.mxu0 0.0
      %1487 = vmatpush2.msra.mxu0 0.0
      %1488 = vmatprep.subr.mxu0 0.0
      %1489 = vmatpush2.msra.mxu0 0.0
      %1490 = vmatprep.subr.mxu0 0.0
      %1491 = vmatpush2.msra.mxu0 0.0
      %1492 = vmatprep.subr.mxu0 0.0
      %1493 = vmatpush2.msra.mxu0 0.0
      %1494 = vmatprep.subr.mxu0 0.0
      %1495 = vmatpush2.msra.mxu0 0.0
      %1496 = vmatprep.subr.mxu0 0.0
      %1497 = vmatpush2.msra.mxu0 0.0
      %1498 = vmatprep.subr.mxu0 0.0
      %1499 = vmatpush2.msra.mxu0 0.0
      %1500 = vmatprep.subr.mxu0 0.0
      %1501 = vmatpush2.msra.mxu0 0.0
      %1502 = vmatprep.mubr.f32.mxu0 0.0
      %1503 = vmatmul.mubr.f32.gmra.mxu0 %v1356
      %v1504 = vpop.f32.mrf.mxu0
      %v1505 = vadd.f32 0.0, %v1504
      %v1506 = vpop.f32.mrf.mxu0
      %v1507 = vadd.f32 0.0, %v1506
      %1508 = vmatprep.mubr.f32.mxu0 0.0
      %1509 = vmatmul.mubr.f32.gmra.mxu0 %v1359
      %v1510 = vpop.f32.mrf.mxu0
      %v1511 = vadd.f32 0.0, %v1510
      %v1512 = vpop.f32.mrf.mxu0
      %v1513 = vadd.f32 0.0, %v1512
      %1514 = vdwg.mxu0
      %1515 = vmatprep.subr.mxu0 0.0
      %1516 = vmatpush1.msra.mxu0 0.0
      %1517 = vmatprep.subr.mxu0 0.0
      %1518 = vmatpush1.msra.mxu0 0.0
      %1519 = vmatprep.subr.mxu0 0.0
      %1520 = vmatpush1.msra.mxu0 0.0
      %1521 = vmatprep.subr.mxu0 0.0
      %1522 = vmatpush1.msra.mxu0 0.0
      %1523 = vmatprep.subr.mxu0 0.0
      %1524 = vmatpush1.msra.mxu0 0.0
      %1525 = vmatprep.subr.mxu0 0.0
      %1526 = vmatpush1.msra.mxu0 0.0
      %1527 = vmatprep.subr.mxu0 0.0
      %1528 = vmatpush1.msra.mxu0 0.0
      %1529 = vmatprep.subr.mxu0 0.0
      %1530 = vmatpush1.msra.mxu0 0.0
      %1531 = vmatprep.subr.mxu0 0.0
      %1532 = vmatpush1.msra.mxu0 0.0
      %1533 = vmatprep.subr.mxu0 0.0
      %1534 = vmatpush1.msra.mxu0 0.0
      %1535 = vmatprep.subr.mxu0 0.0
      %1536 = vmatpush1.msra.mxu0 0.0
      %1537 = vmatprep.subr.mxu0 0.0
      %1538 = vmatpush1.msra.mxu0 0.0
      %1539 = vmatprep.subr.mxu0 0.0
      %1540 = vmatpush1.msra.mxu0 0.0
      %1541 = vmatprep.subr.mxu0 0.0
      %1542 = vmatpush1.msra.mxu0 0.0
      %1543 = vmatprep.subr.mxu0 0.0
      %1544 = vmatpush1.msra.mxu0 0.0
      %1545 = vmatprep.subr.mxu0 %v1347
      %1546 = vmatpush1.msra.mxu0 %v1346
      %1547 = vmatprep.subr.mxu0 0.0
      %1548 = vmatpush2.msra.mxu0 0.0
      %1549 = vmatprep.subr.mxu0 0.0
      %1550 = vmatpush2.msra.mxu0 0.0
      %1551 = vmatprep.subr.mxu0 0.0
      %1552 = vmatpush2.msra.mxu0 0.0
      %1553 = vmatprep.subr.mxu0 0.0
      %1554 = vmatpush2.msra.mxu0 0.0
      %1555 = vmatprep.subr.mxu0 0.0
      %1556 = vmatpush2.msra.mxu0 0.0
      %1557 = vmatprep.subr.mxu0 0.0
      %1558 = vmatpush2.msra.mxu0 0.0
      %1559 = vmatprep.subr.mxu0 0.0
      %1560 = vmatpush2.msra.mxu0 0.0
      %1561 = vmatprep.subr.mxu0 0.0
      %1562 = vmatpush2.msra.mxu0 0.0
      %1563 = vmatprep.subr.mxu0 0.0
      %1564 = vmatpush2.msra.mxu0 0.0
      %1565 = vmatprep.subr.mxu0 0.0
      %1566 = vmatpush2.msra.mxu0 0.0
      %1567 = vmatprep.subr.mxu0 0.0
      %1568 = vmatpush2.msra.mxu0 0.0
      %1569 = vmatprep.subr.mxu0 0.0
      %1570 = vmatpush2.msra.mxu0 0.0
      %1571 = vmatprep.subr.mxu0 0.0
      %1572 = vmatpush2.msra.mxu0 0.0
      %1573 = vmatprep.subr.mxu0 0.0
      %1574 = vmatpush2.msra.mxu0 0.0
      %1575 = vmatprep.subr.mxu0 0.0
      %1576 = vmatpush2.msra.mxu0 0.0
      %1577 = vmatprep.subr.mxu0 0.0
      %1578 = vmatpush2.msra.mxu0 0.0
      %1579 = vmatprep.mubr.f32.mxu0 0.0
      %1580 = vmatmul.mubr.f32.gmra.mxu0 %v1356
      %v1581 = vpop.f32.mrf.mxu0
      %v1582 = vadd.f32 0.0, %v1581
      %v1583 = vpop.f32.mrf.mxu0
      %v1584 = vadd.f32 0.0, %v1583
      %1585 = vmatprep.mubr.f32.mxu0 0.0
      %1586 = vmatmul.mubr.f32.gmra.mxu0 %v1359
      %v1587 = vpop.f32.mrf.mxu0
      %v1588 = vadd.f32 0.0, %v1587
      %v1589 = vpop.f32.mrf.mxu0
      %v1590 = vadd.f32 0.0, %v1589
      %1591 = vdwg.mxu0
      %1592 = vmatprep.subr.mxu0 0.0
      %1593 = vmatpush1.msra.mxu0 0.0
      %1594 = vmatprep.subr.mxu0 0.0
      %1595 = vmatpush1.msra.mxu0 0.0
      %1596 = vmatprep.subr.mxu0 0.0
      %1597 = vmatpush1.msra.mxu0 0.0
      %1598 = vmatprep.subr.mxu0 0.0
      %1599 = vmatpush1.msra.mxu0 0.0
      %1600 = vmatprep.subr.mxu0 0.0
      %1601 = vmatpush1.msra.mxu0 0.0
      %1602 = vmatprep.subr.mxu0 0.0
      %1603 = vmatpush1.msra.mxu0 0.0
      %1604 = vmatprep.subr.mxu0 0.0
      %1605 = vmatpush1.msra.mxu0 0.0
      %1606 = vmatprep.subr.mxu0 0.0
      %1607 = vmatpush1.msra.mxu0 0.0
      %1608 = vmatprep.subr.mxu0 0.0
      %1609 = vmatpush1.msra.mxu0 0.0
      %1610 = vmatprep.subr.mxu0 0.0
      %1611 = vmatpush1.msra.mxu0 0.0
      %1612 = vmatprep.subr.mxu0 0.0
      %1613 = vmatpush1.msra.mxu0 0.0
      %1614 = vmatprep.subr.mxu0 0.0
      %1615 = vmatpush1.msra.mxu0 0.0
      %1616 = vmatprep.subr.mxu0 0.0
      %1617 = vmatpush1.msra.mxu0 0.0
      %1618 = vmatprep.subr.mxu0 0.0
      %1619 = vmatpush1.msra.mxu0 0.0
      %1620 = vmatprep.subr.mxu0 0.0
      %1621 = vmatpush1.msra.mxu0 0.0
      %1622 = vmatprep.subr.mxu0 0.0
      %1623 = vmatpush1.msra.mxu0 %v1340
      %1624 = vmatprep.subr.mxu0 0.0
      %1625 = vmatpush2.msra.mxu0 0.0
      %1626 = vmatprep.subr.mxu0 0.0
      %1627 = vmatpush2.msra.mxu0 0.0
      %1628 = vmatprep.subr.mxu0 0.0
      %1629 = vmatpush2.msra.mxu0 0.0
      %1630 = vmatprep.subr.mxu0 0.0
      %1631 = vmatpush2.msra.mxu0 0.0
      %1632 = vmatprep.subr.mxu0 0.0
      %1633 = vmatpush2.msra.mxu0 0.0
      %1634 = vmatprep.subr.mxu0 0.0
      %1635 = vmatpush2.msra.mxu0 0.0
      %1636 = vmatprep.subr.mxu0 0.0
      %1637 = vmatpush2.msra.mxu0 0.0
      %1638 = vmatprep.subr.mxu0 0.0
      %1639 = vmatpush2.msra.mxu0 0.0
      %1640 = vmatprep.subr.mxu0 0.0
      %1641 = vmatpush2.msra.mxu0 0.0
      %1642 = vmatprep.subr.mxu0 0.0
      %1643 = vmatpush2.msra.mxu0 0.0
      %1644 = vmatprep.subr.mxu0 0.0
      %1645 = vmatpush2.msra.mxu0 0.0
      %1646 = vmatprep.subr.mxu0 0.0
      %1647 = vmatpush2.msra.mxu0 0.0
      %1648 = vmatprep.subr.mxu0 0.0
      %1649 = vmatpush2.msra.mxu0 0.0
      %1650 = vmatprep.subr.mxu0 0.0
      %1651 = vmatpush2.msra.mxu0 0.0
      %1652 = vmatprep.subr.mxu0 0.0
      %1653 = vmatpush2.msra.mxu0 0.0
      %1654 = vmatprep.subr.mxu0 0.0
      %1655 = vmatpush2.msra.mxu0 0.0
      %1656 = vmatprep.mubr.f32.mxu0 0.0
      %1657 = vmatmul.mubr.f32.gmra.mxu0 %v1356
      %v1658 = vpop.f32.mrf.mxu0
      %v1659 = vadd.f32 0.0, %v1658
      %v1660 = vpop.f32.mrf.mxu0
      %1661 = vmatprep.mubr.f32.mxu0 0.0
      %1662 = vmatmul.mubr.f32.gmra.mxu0 %v1359
      %v1663 = vpop.f32.mrf.mxu0
      %v1664 = vadd.f32 0.0, %v1663
      %v1665 = vpop.f32.mrf.mxu0
      %1666 = vdwg.mxu0
      %v1667 = vadd.f32 %v1310, %v1428
      %v1668 = vadd.f32 %v1311, %v1430
      %v1669 = vadd.f32 %v1312, %v1505
      %v1670 = vadd.f32 %v1313, %v1507
      %v1671 = vadd.f32 %v1314, %v1582
      %v1672 = vadd.f32 %v1315, %v1584
      %v1673 = vadd.f32 %v1316, %v1659
      %v1674 = vadd.f32 %v1317, %v1434
      %v1675 = vadd.f32 %v1318, %v1436
      %v1676 = vadd.f32 %v1319, %v1511
      %v1677 = vadd.f32 %v1320, %v1513
      %v1678 = vadd.f32 %v1321, %v1588
      %v1679 = vadd.f32 %v1322, %v1590
      %v1680 = vadd.f32 %v1323, %v1664
      %s1681 = scalar_lea.vmem %s1, 64
      %v1682 = vld [vmem:[%s1681] sm:$0xff]
      %v1683 = vld [vmem:[%s1681 + $0x8] sm:$0xff]
      %1684 = vrot.lane.b32.xlu0 %v297, 98
      %v1685 = vpop.permute.xlu0 %1684
      %1686 = vrot.lane.b32.xlu0 %v298, 98
      %v1687 = vpop.permute.xlu0 %1686
      %1688 = vrot.lane.b32.xlu0 %v299, 98
      %v1689 = vpop.permute.xlu0 %1688
      %1690 = vrot.lane.b32.xlu0 %v300, 98
      %v1691 = vpop.permute.xlu0 %1690
      %1692 = vrot.lane.b32.xlu0 %v301, 98
      %v1693 = vpop.permute.xlu0 %1692
      %1694 = vrot.lane.b32.xlu0 %v302, 98
      %v1695 = vpop.permute.xlu0 %1694
      %1696 = vrot.lane.b32.xlu0 %v303, 98
      %v1697 = vpop.permute.xlu0 %1696
      %vm1698 = vcmask 801792
      %v1699 = vsel %vm1698, %v1685, %v1687
      %v1700 = vsel %vm1698, %v1687, %v1689
      %v1701 = vsel %vm1698, %v1689, %v1691
      %v1702 = vsel %vm1698, %v1691, %v1693
      %v1703 = vsel %vm1698, %v1693, %v1695
      %v1704 = vsel %vm1698, %v1695, %v1697
      %v1713 = vsel %vm342, %v1682, 0
      %v1716 = vsel %vm342, %v1683, 0
      %1718 = vmatprep.subr.mxu0 0.0
      %1719 = vmatpush1.msra.mxu0 0.0
      %1720 = vmatprep.subr.mxu0 0.0
      %1721 = vmatpush1.msra.mxu0 0.0
      %1722 = vmatprep.subr.mxu0 0.0
      %1723 = vmatpush1.msra.mxu0 0.0
      %1724 = vmatprep.subr.mxu0 0.0
      %1725 = vmatpush1.msra.mxu0 0.0
      %1726 = vmatprep.subr.mxu0 0.0
      %1727 = vmatpush1.msra.mxu0 0.0
      %1728 = vmatprep.subr.mxu0 0.0
      %1729 = vmatpush1.msra.mxu0 0.0
      %1730 = vmatprep.subr.mxu0 0.0
      %1731 = vmatpush1.msra.mxu0 0.0
      %1732 = vmatprep.subr.mxu0 0.0
      %1733 = vmatpush1.msra.mxu0 0.0
      %1734 = vmatprep.subr.mxu0 0.0
      %1735 = vmatpush1.msra.mxu0 0.0
      %1736 = vmatprep.subr.mxu0 0.0
      %1737 = vmatpush1.msra.mxu0 0.0
      %1738 = vmatprep.subr.mxu0 0.0
      %1739 = vmatpush1.msra.mxu0 0.0
      %1740 = vmatprep.subr.mxu0 0.0
      %1741 = vmatpush1.msra.mxu0 0.0
      %1742 = vmatprep.subr.mxu0 0.0
      %1743 = vmatpush1.msra.mxu0 0.0
      %1744 = vmatprep.subr.mxu0 0.0
      %1745 = vmatpush1.msra.mxu0 0.0
      %1746 = vmatprep.subr.mxu0 0.0
      %1747 = vmatpush1.msra.mxu0 0.0
      %1748 = vmatprep.subr.mxu0 %v1700
      %1749 = vmatpush1.msra.mxu0 %v1699
      %1750 = vmatprep.subr.mxu0 0.0
      %1751 = vmatpush2.msra.mxu0 0.0
      %1752 = vmatprep.subr.mxu0 0.0
      %1753 = vmatpush2.msra.mxu0 0.0
      %1754 = vmatprep.subr.mxu0 0.0
      %1755 = vmatpush2.msra.mxu0 0.0
      %1756 = vmatprep.subr.mxu0 0.0
      %1757 = vmatpush2.msra.mxu0 0.0
      %1758 = vmatprep.subr.mxu0 0.0
      %1759 = vmatpush2.msra.mxu0 0.0
      %1760 = vmatprep.subr.mxu0 0.0
      %1761 = vmatpush2.msra.mxu0 0.0
      %1762 = vmatprep.subr.mxu0 0.0
      %1763 = vmatpush2.msra.mxu0 0.0
      %1764 = vmatprep.subr.mxu0 0.0
      %1765 = vmatpush2.msra.mxu0 0.0
      %1766 = vmatprep.subr.mxu0 0.0
      %1767 = vmatpush2.msra.mxu0 0.0
      %1768 = vmatprep.subr.mxu0 0.0
      %1769 = vmatpush2.msra.mxu0 0.0
      %1770 = vmatprep.subr.mxu0 0.0
      %1771 = vmatpush2.msra.mxu0 0.0
      %1772 = vmatprep.subr.mxu0 0.0
      %1773 = vmatpush2.msra.mxu0 0.0
      %1774 = vmatprep.subr.mxu0 0.0
      %1775 = vmatpush2.msra.mxu0 0.0
      %1776 = vmatprep.subr.mxu0 0.0
      %1777 = vmatpush2.msra.mxu0 0.0
      %1778 = vmatprep.subr.mxu0 0.0
      %1779 = vmatpush2.msra.mxu0 0.0
      %1780 = vmatprep.subr.mxu0 0.0
      %1781 = vmatpush2.msra.mxu0 0.0
      %1782 = vmatprep.mubr.f32.mxu0 0.0
      %1783 = vmatmul.mubr.f32.gmra.mxu0 %v1713
      %v1784 = vpop.f32.mrf.mxu0
      %v1785 = vadd.f32 0.0, %v1784
      %v1786 = vpop.f32.mrf.mxu0
      %v1787 = vadd.f32 0.0, %v1786
      %1788 = vmatprep.mubr.f32.mxu0 0.0
      %1789 = vmatmul.mubr.f32.gmra.mxu0 %v1716
      %v1790 = vpop.f32.mrf.mxu0
      %v1791 = vadd.f32 0.0, %v1790
      %v1792 = vpop.f32.mrf.mxu0
      %v1793 = vadd.f32 0.0, %v1792
      %1794 = vdwg.mxu0
      %1795 = vmatprep.subr.mxu0 0.0
      %1796 = vmatpush1.msra.mxu0 0.0
      %1797 = vmatprep.subr.mxu0 0.0
      %1798 = vmatpush1.msra.mxu0 0.0
      %1799 = vmatprep.subr.mxu0 0.0
      %1800 = vmatpush1.msra.mxu0 0.0
      %1801 = vmatprep.subr.mxu0 0.0
      %1802 = vmatpush1.msra.mxu0 0.0
      %1803 = vmatprep.subr.mxu0 0.0
      %1804 = vmatpush1.msra.mxu0 0.0
      %1805 = vmatprep.subr.mxu0 0.0
      %1806 = vmatpush1.msra.mxu0 0.0
      %1807 = vmatprep.subr.mxu0 0.0
      %1808 = vmatpush1.msra.mxu0 0.0
      %1809 = vmatprep.subr.mxu0 0.0
      %1810 = vmatpush1.msra.mxu0 0.0
      %1811 = vmatprep.subr.mxu0 0.0
      %1812 = vmatpush1.msra.mxu0 0.0
      %1813 = vmatprep.subr.mxu0 0.0
      %1814 = vmatpush1.msra.mxu0 0.0
      %1815 = vmatprep.subr.mxu0 0.0
      %1816 = vmatpush1.msra.mxu0 0.0
      %1817 = vmatprep.subr.mxu0 0.0
      %1818 = vmatpush1.msra.mxu0 0.0
      %1819 = vmatprep.subr.mxu0 0.0
      %1820 = vmatpush1.msra.mxu0 0.0
      %1821 = vmatprep.subr.mxu0 0.0
      %1822 = vmatpush1.msra.mxu0 0.0
      %1823 = vmatprep.subr.mxu0 0.0
      %1824 = vmatpush1.msra.mxu0 0.0
      %1825 = vmatprep.subr.mxu0 %v1702
      %1826 = vmatpush1.msra.mxu0 %v1701
      %1827 = vmatprep.subr.mxu0 0.0
      %1828 = vmatpush2.msra.mxu0 0.0
      %1829 = vmatprep.subr.mxu0 0.0
      %1830 = vmatpush2.msra.mxu0 0.0
      %1831 = vmatprep.subr.mxu0 0.0
      %1832 = vmatpush2.msra.mxu0 0.0
      %1833 = vmatprep.subr.mxu0 0.0
      %1834 = vmatpush2.msra.mxu0 0.0
      %1835 = vmatprep.subr.mxu0 0.0
      %1836 = vmatpush2.msra.mxu0 0.0
      %1837 = vmatprep.subr.mxu0 0.0
      %1838 = vmatpush2.msra.mxu0 0.0
      %1839 = vmatprep.subr.mxu0 0.0
      %1840 = vmatpush2.msra.mxu0 0.0
      %1841 = vmatprep.subr.mxu0 0.0
      %1842 = vmatpush2.msra.mxu0 0.0
      %1843 = vmatprep.subr.mxu0 0.0
      %1844 = vmatpush2.msra.mxu0 0.0
      %1845 = vmatprep.subr.mxu0 0.0
      %1846 = vmatpush2.msra.mxu0 0.0
      %1847 = vmatprep.subr.mxu0 0.0
      %1848 = vmatpush2.msra.mxu0 0.0
      %1849 = vmatprep.subr.mxu0 0.0
      %1850 = vmatpush2.msra.mxu0 0.0
      %1851 = vmatprep.subr.mxu0 0.0
      %1852 = vmatpush2.msra.mxu0 0.0
      %1853 = vmatprep.subr.mxu0 0.0
      %1854 = vmatpush2.msra.mxu0 0.0
      %1855 = vmatprep.subr.mxu0 0.0
      %1856 = vmatpush2.msra.mxu0 0.0
      %1857 = vmatprep.subr.mxu0 0.0
      %1858 = vmatpush2.msra.mxu0 0.0
      %1859 = vmatprep.mubr.f32.mxu0 0.0
      %1860 = vmatmul.mubr.f32.gmra.mxu0 %v1713
      %v1861 = vpop.f32.mrf.mxu0
      %v1862 = vadd.f32 0.0, %v1861
      %v1863 = vpop.f32.mrf.mxu0
      %v1864 = vadd.f32 0.0, %v1863
      %1865 = vmatprep.mubr.f32.mxu0 0.0
      %1866 = vmatmul.mubr.f32.gmra.mxu0 %v1716
      %v1867 = vpop.f32.mrf.mxu0
      %v1868 = vadd.f32 0.0, %v1867
      %v1869 = vpop.f32.mrf.mxu0
      %v1870 = vadd.f32 0.0, %v1869
      %1871 = vdwg.mxu0
      %1872 = vmatprep.subr.mxu0 0.0
      %1873 = vmatpush1.msra.mxu0 0.0
      %1874 = vmatprep.subr.mxu0 0.0
      %1875 = vmatpush1.msra.mxu0 0.0
      %1876 = vmatprep.subr.mxu0 0.0
      %1877 = vmatpush1.msra.mxu0 0.0
      %1878 = vmatprep.subr.mxu0 0.0
      %1879 = vmatpush1.msra.mxu0 0.0
      %1880 = vmatprep.subr.mxu0 0.0
      %1881 = vmatpush1.msra.mxu0 0.0
      %1882 = vmatprep.subr.mxu0 0.0
      %1883 = vmatpush1.msra.mxu0 0.0
      %1884 = vmatprep.subr.mxu0 0.0
      %1885 = vmatpush1.msra.mxu0 0.0
      %1886 = vmatprep.subr.mxu0 0.0
      %1887 = vmatpush1.msra.mxu0 0.0
      %1888 = vmatprep.subr.mxu0 0.0
      %1889 = vmatpush1.msra.mxu0 0.0
      %1890 = vmatprep.subr.mxu0 0.0
      %1891 = vmatpush1.msra.mxu0 0.0
      %1892 = vmatprep.subr.mxu0 0.0
      %1893 = vmatpush1.msra.mxu0 0.0
      %1894 = vmatprep.subr.mxu0 0.0
      %1895 = vmatpush1.msra.mxu0 0.0
      %1896 = vmatprep.subr.mxu0 0.0
      %1897 = vmatpush1.msra.mxu0 0.0
      %1898 = vmatprep.subr.mxu0 0.0
      %1899 = vmatpush1.msra.mxu0 0.0
      %1900 = vmatprep.subr.mxu0 0.0
      %1901 = vmatpush1.msra.mxu0 0.0
      %1902 = vmatprep.subr.mxu0 %v1704
      %1903 = vmatpush1.msra.mxu0 %v1703
      %1904 = vmatprep.subr.mxu0 0.0
      %1905 = vmatpush2.msra.mxu0 0.0
      %1906 = vmatprep.subr.mxu0 0.0
      %1907 = vmatpush2.msra.mxu0 0.0
      %1908 = vmatprep.subr.mxu0 0.0
      %1909 = vmatpush2.msra.mxu0 0.0
      %1910 = vmatprep.subr.mxu0 0.0
      %1911 = vmatpush2.msra.mxu0 0.0
      %1912 = vmatprep.subr.mxu0 0.0
      %1913 = vmatpush2.msra.mxu0 0.0
      %1914 = vmatprep.subr.mxu0 0.0
      %1915 = vmatpush2.msra.mxu0 0.0
      %1916 = vmatprep.subr.mxu0 0.0
      %1917 = vmatpush2.msra.mxu0 0.0
      %1918 = vmatprep.subr.mxu0 0.0
      %1919 = vmatpush2.msra.mxu0 0.0
      %1920 = vmatprep.subr.mxu0 0.0
      %1921 = vmatpush2.msra.mxu0 0.0
      %1922 = vmatprep.subr.mxu0 0.0
      %1923 = vmatpush2.msra.mxu0 0.0
      %1924 = vmatprep.subr.mxu0 0.0
      %1925 = vmatpush2.msra.mxu0 0.0
      %1926 = vmatprep.subr.mxu0 0.0
      %1927 = vmatpush2.msra.mxu0 0.0
      %1928 = vmatprep.subr.mxu0 0.0
      %1929 = vmatpush2.msra.mxu0 0.0
      %1930 = vmatprep.subr.mxu0 0.0
      %1931 = vmatpush2.msra.mxu0 0.0
      %1932 = vmatprep.subr.mxu0 0.0
      %1933 = vmatpush2.msra.mxu0 0.0
      %1934 = vmatprep.subr.mxu0 0.0
      %1935 = vmatpush2.msra.mxu0 0.0
      %1936 = vmatprep.mubr.f32.mxu0 0.0
      %1937 = vmatmul.mubr.f32.gmra.mxu0 %v1713
      %v1938 = vpop.f32.mrf.mxu0
      %v1939 = vadd.f32 0.0, %v1938
      %v1940 = vpop.f32.mrf.mxu0
      %v1941 = vadd.f32 0.0, %v1940
      %1942 = vmatprep.mubr.f32.mxu0 0.0
      %1943 = vmatmul.mubr.f32.gmra.mxu0 %v1716
      %v1944 = vpop.f32.mrf.mxu0
      %v1945 = vadd.f32 0.0, %v1944
      %v1946 = vpop.f32.mrf.mxu0
      %v1947 = vadd.f32 0.0, %v1946
      %1948 = vdwg.mxu0
      %1949 = vmatprep.subr.mxu0 0.0
      %1950 = vmatpush1.msra.mxu0 0.0
      %1951 = vmatprep.subr.mxu0 0.0
      %1952 = vmatpush1.msra.mxu0 0.0
      %1953 = vmatprep.subr.mxu0 0.0
      %1954 = vmatpush1.msra.mxu0 0.0
      %1955 = vmatprep.subr.mxu0 0.0
      %1956 = vmatpush1.msra.mxu0 0.0
      %1957 = vmatprep.subr.mxu0 0.0
      %1958 = vmatpush1.msra.mxu0 0.0
      %1959 = vmatprep.subr.mxu0 0.0
      %1960 = vmatpush1.msra.mxu0 0.0
      %1961 = vmatprep.subr.mxu0 0.0
      %1962 = vmatpush1.msra.mxu0 0.0
      %1963 = vmatprep.subr.mxu0 0.0
      %1964 = vmatpush1.msra.mxu0 0.0
      %1965 = vmatprep.subr.mxu0 0.0
      %1966 = vmatpush1.msra.mxu0 0.0
      %1967 = vmatprep.subr.mxu0 0.0
      %1968 = vmatpush1.msra.mxu0 0.0
      %1969 = vmatprep.subr.mxu0 0.0
      %1970 = vmatpush1.msra.mxu0 0.0
      %1971 = vmatprep.subr.mxu0 0.0
      %1972 = vmatpush1.msra.mxu0 0.0
      %1973 = vmatprep.subr.mxu0 0.0
      %1974 = vmatpush1.msra.mxu0 0.0
      %1975 = vmatprep.subr.mxu0 0.0
      %1976 = vmatpush1.msra.mxu0 0.0
      %1977 = vmatprep.subr.mxu0 0.0
      %1978 = vmatpush1.msra.mxu0 0.0
      %1979 = vmatprep.subr.mxu0 0.0
      %1980 = vmatpush1.msra.mxu0 %v1697
      %1981 = vmatprep.subr.mxu0 0.0
      %1982 = vmatpush2.msra.mxu0 0.0
      %1983 = vmatprep.subr.mxu0 0.0
      %1984 = vmatpush2.msra.mxu0 0.0
      %1985 = vmatprep.subr.mxu0 0.0
      %1986 = vmatpush2.msra.mxu0 0.0
      %1987 = vmatprep.subr.mxu0 0.0
      %1988 = vmatpush2.msra.mxu0 0.0
      %1989 = vmatprep.subr.mxu0 0.0
      %1990 = vmatpush2.msra.mxu0 0.0
      %1991 = vmatprep.subr.mxu0 0.0
      %1992 = vmatpush2.msra.mxu0 0.0
      %1993 = vmatprep.subr.mxu0 0.0
      %1994 = vmatpush2.msra.mxu0 0.0
      %1995 = vmatprep.subr.mxu0 0.0
      %1996 = vmatpush2.msra.mxu0 0.0
      %1997 = vmatprep.subr.mxu0 0.0
      %1998 = vmatpush2.msra.mxu0 0.0
      %1999 = vmatprep.subr.mxu0 0.0
      %2000 = vmatpush2.msra.mxu0 0.0
      %2001 = vmatprep.subr.mxu0 0.0
      %2002 = vmatpush2.msra.mxu0 0.0
      %2003 = vmatprep.subr.mxu0 0.0
      %2004 = vmatpush2.msra.mxu0 0.0
      %2005 = vmatprep.subr.mxu0 0.0
      %2006 = vmatpush2.msra.mxu0 0.0
      %2007 = vmatprep.subr.mxu0 0.0
      %2008 = vmatpush2.msra.mxu0 0.0
      %2009 = vmatprep.subr.mxu0 0.0
      %2010 = vmatpush2.msra.mxu0 0.0
      %2011 = vmatprep.subr.mxu0 0.0
      %2012 = vmatpush2.msra.mxu0 0.0
      %2013 = vmatprep.mubr.f32.mxu0 0.0
      %2014 = vmatmul.mubr.f32.gmra.mxu0 %v1713
      %v2015 = vpop.f32.mrf.mxu0
      %v2016 = vadd.f32 0.0, %v2015
      %v2017 = vpop.f32.mrf.mxu0
      %2018 = vmatprep.mubr.f32.mxu0 0.0
      %2019 = vmatmul.mubr.f32.gmra.mxu0 %v1716
      %v2020 = vpop.f32.mrf.mxu0
      %v2021 = vadd.f32 0.0, %v2020
      %v2022 = vpop.f32.mrf.mxu0
      %2023 = vdwg.mxu0
      %v2024 = vadd.f32 %v1667, %v1785
      %v2025 = vadd.f32 %v1668, %v1787
      %v2026 = vadd.f32 %v1669, %v1862
      %v2027 = vadd.f32 %v1670, %v1864
      %v2028 = vadd.f32 %v1671, %v1939
      %v2029 = vadd.f32 %v1672, %v1941
      %v2030 = vadd.f32 %v1673, %v2016
      %v2031 = vadd.f32 %v1674, %v1791
      %v2032 = vadd.f32 %v1675, %v1793
      %v2033 = vadd.f32 %v1676, %v1868
      %v2034 = vadd.f32 %v1677, %v1870
      %v2035 = vadd.f32 %v1678, %v1945
      %v2036 = vadd.f32 %v1679, %v1947
      %v2037 = vadd.f32 %v1680, %v2021
      %s2038 = scalar_lea.vmem %s1, 80
      %v2039 = vld [vmem:[%s2038] sm:$0xff]
      %v2040 = vld [vmem:[%s2038 + $0x8] sm:$0xff]
      %2041 = vrot.lane.b32.xlu0 %v297, 97
      %v2042 = vpop.permute.xlu0 %2041
      %2043 = vrot.lane.b32.xlu0 %v298, 97
      %v2044 = vpop.permute.xlu0 %2043
      %2045 = vrot.lane.b32.xlu0 %v299, 97
      %v2046 = vpop.permute.xlu0 %2045
      %2047 = vrot.lane.b32.xlu0 %v300, 97
      %v2048 = vpop.permute.xlu0 %2047
      %2049 = vrot.lane.b32.xlu0 %v301, 97
      %v2050 = vpop.permute.xlu0 %2049
      %2051 = vrot.lane.b32.xlu0 %v302, 97
      %v2052 = vpop.permute.xlu0 %2051
      %2053 = vrot.lane.b32.xlu0 %v303, 97
      %v2054 = vpop.permute.xlu0 %2053
      %vm2055 = vcmask 793600
      %v2056 = vsel %vm2055, %v2042, %v2044
      %v2057 = vsel %vm2055, %v2044, %v2046
      %v2058 = vsel %vm2055, %v2046, %v2048
      %v2059 = vsel %vm2055, %v2048, %v2050
      %v2060 = vsel %vm2055, %v2050, %v2052
      %v2061 = vsel %vm2055, %v2052, %v2054
      %v2070 = vsel %vm342, %v2039, 0
      %v2073 = vsel %vm342, %v2040, 0
      %2075 = vmatprep.subr.mxu0 0.0
      %2076 = vmatpush1.msra.mxu0 0.0
      %2077 = vmatprep.subr.mxu0 0.0
      %2078 = vmatpush1.msra.mxu0 0.0
      %2079 = vmatprep.subr.mxu0 0.0
      %2080 = vmatpush1.msra.mxu0 0.0
      %2081 = vmatprep.subr.mxu0 0.0
      %2082 = vmatpush1.msra.mxu0 0.0
      %2083 = vmatprep.subr.mxu0 0.0
      %2084 = vmatpush1.msra.mxu0 0.0
      %2085 = vmatprep.subr.mxu0 0.0
      %2086 = vmatpush1.msra.mxu0 0.0
      %2087 = vmatprep.subr.mxu0 0.0
      %2088 = vmatpush1.msra.mxu0 0.0
      %2089 = vmatprep.subr.mxu0 0.0
      %2090 = vmatpush1.msra.mxu0 0.0
      %2091 = vmatprep.subr.mxu0 0.0
      %2092 = vmatpush1.msra.mxu0 0.0
      %2093 = vmatprep.subr.mxu0 0.0
      %2094 = vmatpush1.msra.mxu0 0.0
      %2095 = vmatprep.subr.mxu0 0.0
      %2096 = vmatpush1.msra.mxu0 0.0
      %2097 = vmatprep.subr.mxu0 0.0
      %2098 = vmatpush1.msra.mxu0 0.0
      %2099 = vmatprep.subr.mxu0 0.0
      %2100 = vmatpush1.msra.mxu0 0.0
      %2101 = vmatprep.subr.mxu0 0.0
      %2102 = vmatpush1.msra.mxu0 0.0
      %2103 = vmatprep.subr.mxu0 0.0
      %2104 = vmatpush1.msra.mxu0 0.0
      %2105 = vmatprep.subr.mxu0 %v2057
      %2106 = vmatpush1.msra.mxu0 %v2056
      %2107 = vmatprep.subr.mxu0 0.0
      %2108 = vmatpush2.msra.mxu0 0.0
      %2109 = vmatprep.subr.mxu0 0.0
      %2110 = vmatpush2.msra.mxu0 0.0
      %2111 = vmatprep.subr.mxu0 0.0
      %2112 = vmatpush2.msra.mxu0 0.0
      %2113 = vmatprep.subr.mxu0 0.0
      %2114 = vmatpush2.msra.mxu0 0.0
      %2115 = vmatprep.subr.mxu0 0.0
      %2116 = vmatpush2.msra.mxu0 0.0
      %2117 = vmatprep.subr.mxu0 0.0
      %2118 = vmatpush2.msra.mxu0 0.0
      %2119 = vmatprep.subr.mxu0 0.0
      %2120 = vmatpush2.msra.mxu0 0.0
      %2121 = vmatprep.subr.mxu0 0.0
      %2122 = vmatpush2.msra.mxu0 0.0
      %2123 = vmatprep.subr.mxu0 0.0
      %2124 = vmatpush2.msra.mxu0 0.0
      %2125 = vmatprep.subr.mxu0 0.0
      %2126 = vmatpush2.msra.mxu0 0.0
      %2127 = vmatprep.subr.mxu0 0.0
      %2128 = vmatpush2.msra.mxu0 0.0
      %2129 = vmatprep.subr.mxu0 0.0
      %2130 = vmatpush2.msra.mxu0 0.0
      %2131 = vmatprep.subr.mxu0 0.0
      %2132 = vmatpush2.msra.mxu0 0.0
      %2133 = vmatprep.subr.mxu0 0.0
      %2134 = vmatpush2.msra.mxu0 0.0
      %2135 = vmatprep.subr.mxu0 0.0
      %2136 = vmatpush2.msra.mxu0 0.0
      %2137 = vmatprep.subr.mxu0 0.0
      %2138 = vmatpush2.msra.mxu0 0.0
      %2139 = vmatprep.mubr.f32.mxu0 0.0
      %2140 = vmatmul.mubr.f32.gmra.mxu0 %v2070
      %v2141 = vpop.f32.mrf.mxu0
      %v2142 = vadd.f32 0.0, %v2141
      %v2143 = vpop.f32.mrf.mxu0
      %v2144 = vadd.f32 0.0, %v2143
      %2145 = vmatprep.mubr.f32.mxu0 0.0
      %2146 = vmatmul.mubr.f32.gmra.mxu0 %v2073
      %v2147 = vpop.f32.mrf.mxu0
      %v2148 = vadd.f32 0.0, %v2147
      %v2149 = vpop.f32.mrf.mxu0
      %v2150 = vadd.f32 0.0, %v2149
      %2151 = vdwg.mxu0
      %2152 = vmatprep.subr.mxu0 0.0
      %2153 = vmatpush1.msra.mxu0 0.0
      %2154 = vmatprep.subr.mxu0 0.0
      %2155 = vmatpush1.msra.mxu0 0.0
      %2156 = vmatprep.subr.mxu0 0.0
      %2157 = vmatpush1.msra.mxu0 0.0
      %2158 = vmatprep.subr.mxu0 0.0
      %2159 = vmatpush1.msra.mxu0 0.0
      %2160 = vmatprep.subr.mxu0 0.0
      %2161 = vmatpush1.msra.mxu0 0.0
      %2162 = vmatprep.subr.mxu0 0.0
      %2163 = vmatpush1.msra.mxu0 0.0
      %2164 = vmatprep.subr.mxu0 0.0
      %2165 = vmatpush1.msra.mxu0 0.0
      %2166 = vmatprep.subr.mxu0 0.0
      %2167 = vmatpush1.msra.mxu0 0.0
      %2168 = vmatprep.subr.mxu0 0.0
      %2169 = vmatpush1.msra.mxu0 0.0
      %2170 = vmatprep.subr.mxu0 0.0
      %2171 = vmatpush1.msra.mxu0 0.0
      %2172 = vmatprep.subr.mxu0 0.0
      %2173 = vmatpush1.msra.mxu0 0.0
      %2174 = vmatprep.subr.mxu0 0.0
      %2175 = vmatpush1.msra.mxu0 0.0
      %2176 = vmatprep.subr.mxu0 0.0
      %2177 = vmatpush1.msra.mxu0 0.0
      %2178 = vmatprep.subr.mxu0 0.0
      %2179 = vmatpush1.msra.mxu0 0.0
      %2180 = vmatprep.subr.mxu0 0.0
      %2181 = vmatpush1.msra.mxu0 0.0
      %2182 = vmatprep.subr.mxu0 %v2059
      %2183 = vmatpush1.msra.mxu0 %v2058
      %2184 = vmatprep.subr.mxu0 0.0
      %2185 = vmatpush2.msra.mxu0 0.0
      %2186 = vmatprep.subr.mxu0 0.0
      %2187 = vmatpush2.msra.mxu0 0.0
      %2188 = vmatprep.subr.mxu0 0.0
      %2189 = vmatpush2.msra.mxu0 0.0
      %2190 = vmatprep.subr.mxu0 0.0
      %2191 = vmatpush2.msra.mxu0 0.0
      %2192 = vmatprep.subr.mxu0 0.0
      %2193 = vmatpush2.msra.mxu0 0.0
      %2194 = vmatprep.subr.mxu0 0.0
      %2195 = vmatpush2.msra.mxu0 0.0
      %2196 = vmatprep.subr.mxu0 0.0
      %2197 = vmatpush2.msra.mxu0 0.0
      %2198 = vmatprep.subr.mxu0 0.0
      %2199 = vmatpush2.msra.mxu0 0.0
      %2200 = vmatprep.subr.mxu0 0.0
      %2201 = vmatpush2.msra.mxu0 0.0
      %2202 = vmatprep.subr.mxu0 0.0
      %2203 = vmatpush2.msra.mxu0 0.0
      %2204 = vmatprep.subr.mxu0 0.0
      %2205 = vmatpush2.msra.mxu0 0.0
      %2206 = vmatprep.subr.mxu0 0.0
      %2207 = vmatpush2.msra.mxu0 0.0
      %2208 = vmatprep.subr.mxu0 0.0
      %2209 = vmatpush2.msra.mxu0 0.0
      %2210 = vmatprep.subr.mxu0 0.0
      %2211 = vmatpush2.msra.mxu0 0.0
      %2212 = vmatprep.subr.mxu0 0.0
      %2213 = vmatpush2.msra.mxu0 0.0
      %2214 = vmatprep.subr.mxu0 0.0
      %2215 = vmatpush2.msra.mxu0 0.0
      %2216 = vmatprep.mubr.f32.mxu0 0.0
      %2217 = vmatmul.mubr.f32.gmra.mxu0 %v2070
      %v2218 = vpop.f32.mrf.mxu0
      %v2219 = vadd.f32 0.0, %v2218
      %v2220 = vpop.f32.mrf.mxu0
      %v2221 = vadd.f32 0.0, %v2220
      %2222 = vmatprep.mubr.f32.mxu0 0.0
      %2223 = vmatmul.mubr.f32.gmra.mxu0 %v2073
      %v2224 = vpop.f32.mrf.mxu0
      %v2225 = vadd.f32 0.0, %v2224
      %v2226 = vpop.f32.mrf.mxu0
      %v2227 = vadd.f32 0.0, %v2226
      %2228 = vdwg.mxu0
      %2229 = vmatprep.subr.mxu0 0.0
      %2230 = vmatpush1.msra.mxu0 0.0
      %2231 = vmatprep.subr.mxu0 0.0
      %2232 = vmatpush1.msra.mxu0 0.0
      %2233 = vmatprep.subr.mxu0 0.0
      %2234 = vmatpush1.msra.mxu0 0.0
      %2235 = vmatprep.subr.mxu0 0.0
      %2236 = vmatpush1.msra.mxu0 0.0
      %2237 = vmatprep.subr.mxu0 0.0
      %2238 = vmatpush1.msra.mxu0 0.0
      %2239 = vmatprep.subr.mxu0 0.0
      %2240 = vmatpush1.msra.mxu0 0.0
      %2241 = vmatprep.subr.mxu0 0.0
      %2242 = vmatpush1.msra.mxu0 0.0
      %2243 = vmatprep.subr.mxu0 0.0
      %2244 = vmatpush1.msra.mxu0 0.0
      %2245 = vmatprep.subr.mxu0 0.0
      %2246 = vmatpush1.msra.mxu0 0.0
      %2247 = vmatprep.subr.mxu0 0.0
      %2248 = vmatpush1.msra.mxu0 0.0
      %2249 = vmatprep.subr.mxu0 0.0
      %2250 = vmatpush1.msra.mxu0 0.0
      %2251 = vmatprep.subr.mxu0 0.0
      %2252 = vmatpush1.msra.mxu0 0.0
      %2253 = vmatprep.subr.mxu0 0.0
      %2254 = vmatpush1.msra.mxu0 0.0
      %2255 = vmatprep.subr.mxu0 0.0
      %2256 = vmatpush1.msra.mxu0 0.0
      %2257 = vmatprep.subr.mxu0 0.0
      %2258 = vmatpush1.msra.mxu0 0.0
      %2259 = vmatprep.subr.mxu0 %v2061
      %2260 = vmatpush1.msra.mxu0 %v2060
      %2261 = vmatprep.subr.mxu0 0.0
      %2262 = vmatpush2.msra.mxu0 0.0
      %2263 = vmatprep.subr.mxu0 0.0
      %2264 = vmatpush2.msra.mxu0 0.0
      %2265 = vmatprep.subr.mxu0 0.0
      %2266 = vmatpush2.msra.mxu0 0.0
      %2267 = vmatprep.subr.mxu0 0.0
      %2268 = vmatpush2.msra.mxu0 0.0
      %2269 = vmatprep.subr.mxu0 0.0
      %2270 = vmatpush2.msra.mxu0 0.0
      %2271 = vmatprep.subr.mxu0 0.0
      %2272 = vmatpush2.msra.mxu0 0.0
      %2273 = vmatprep.subr.mxu0 0.0
      %2274 = vmatpush2.msra.mxu0 0.0
      %2275 = vmatprep.subr.mxu0 0.0
      %2276 = vmatpush2.msra.mxu0 0.0
      %2277 = vmatprep.subr.mxu0 0.0
      %2278 = vmatpush2.msra.mxu0 0.0
      %2279 = vmatprep.subr.mxu0 0.0
      %2280 = vmatpush2.msra.mxu0 0.0
      %2281 = vmatprep.subr.mxu0 0.0
      %2282 = vmatpush2.msra.mxu0 0.0
      %2283 = vmatprep.subr.mxu0 0.0
      %2284 = vmatpush2.msra.mxu0 0.0
      %2285 = vmatprep.subr.mxu0 0.0
      %2286 = vmatpush2.msra.mxu0 0.0
      %2287 = vmatprep.subr.mxu0 0.0
      %2288 = vmatpush2.msra.mxu0 0.0
      %2289 = vmatprep.subr.mxu0 0.0
      %2290 = vmatpush2.msra.mxu0 0.0
      %2291 = vmatprep.subr.mxu0 0.0
      %2292 = vmatpush2.msra.mxu0 0.0
      %2293 = vmatprep.mubr.f32.mxu0 0.0
      %2294 = vmatmul.mubr.f32.gmra.mxu0 %v2070
      %v2295 = vpop.f32.mrf.mxu0
      %v2296 = vadd.f32 0.0, %v2295
      %v2297 = vpop.f32.mrf.mxu0
      %v2298 = vadd.f32 0.0, %v2297
      %2299 = vmatprep.mubr.f32.mxu0 0.0
      %2300 = vmatmul.mubr.f32.gmra.mxu0 %v2073
      %v2301 = vpop.f32.mrf.mxu0
      %v2302 = vadd.f32 0.0, %v2301
      %v2303 = vpop.f32.mrf.mxu0
      %v2304 = vadd.f32 0.0, %v2303
      %2305 = vdwg.mxu0
      %2306 = vmatprep.subr.mxu0 0.0
      %2307 = vmatpush1.msra.mxu0 0.0
      %2308 = vmatprep.subr.mxu0 0.0
      %2309 = vmatpush1.msra.mxu0 0.0
      %2310 = vmatprep.subr.mxu0 0.0
      %2311 = vmatpush1.msra.mxu0 0.0
      %2312 = vmatprep.subr.mxu0 0.0
      %2313 = vmatpush1.msra.mxu0 0.0
      %2314 = vmatprep.subr.mxu0 0.0
      %2315 = vmatpush1.msra.mxu0 0.0
      %2316 = vmatprep.subr.mxu0 0.0
      %2317 = vmatpush1.msra.mxu0 0.0
      %2318 = vmatprep.subr.mxu0 0.0
      %2319 = vmatpush1.msra.mxu0 0.0
      %2320 = vmatprep.subr.mxu0 0.0
      %2321 = vmatpush1.msra.mxu0 0.0
      %2322 = vmatprep.subr.mxu0 0.0
      %2323 = vmatpush1.msra.mxu0 0.0
      %2324 = vmatprep.subr.mxu0 0.0
      %2325 = vmatpush1.msra.mxu0 0.0
      %2326 = vmatprep.subr.mxu0 0.0
      %2327 = vmatpush1.msra.mxu0 0.0
      %2328 = vmatprep.subr.mxu0 0.0
      %2329 = vmatpush1.msra.mxu0 0.0
      %2330 = vmatprep.subr.mxu0 0.0
      %2331 = vmatpush1.msra.mxu0 0.0
      %2332 = vmatprep.subr.mxu0 0.0
      %2333 = vmatpush1.msra.mxu0 0.0
      %2334 = vmatprep.subr.mxu0 0.0
      %2335 = vmatpush1.msra.mxu0 0.0
      %2336 = vmatprep.subr.mxu0 0.0
      %2337 = vmatpush1.msra.mxu0 %v2054
      %2338 = vmatprep.subr.mxu0 0.0
      %2339 = vmatpush2.msra.mxu0 0.0
      %2340 = vmatprep.subr.mxu0 0.0
      %2341 = vmatpush2.msra.mxu0 0.0
      %2342 = vmatprep.subr.mxu0 0.0
      %2343 = vmatpush2.msra.mxu0 0.0
      %2344 = vmatprep.subr.mxu0 0.0
      %2345 = vmatpush2.msra.mxu0 0.0
      %2346 = vmatprep.subr.mxu0 0.0
      %2347 = vmatpush2.msra.mxu0 0.0
      %2348 = vmatprep.subr.mxu0 0.0
      %2349 = vmatpush2.msra.mxu0 0.0
      %2350 = vmatprep.subr.mxu0 0.0
      %2351 = vmatpush2.msra.mxu0 0.0
      %2352 = vmatprep.subr.mxu0 0.0
      %2353 = vmatpush2.msra.mxu0 0.0
      %2354 = vmatprep.subr.mxu0 0.0
      %2355 = vmatpush2.msra.mxu0 0.0
      %2356 = vmatprep.subr.mxu0 0.0
      %2357 = vmatpush2.msra.mxu0 0.0
      %2358 = vmatprep.subr.mxu0 0.0
      %2359 = vmatpush2.msra.mxu0 0.0
      %2360 = vmatprep.subr.mxu0 0.0
      %2361 = vmatpush2.msra.mxu0 0.0
      %2362 = vmatprep.subr.mxu0 0.0
      %2363 = vmatpush2.msra.mxu0 0.0
      %2364 = vmatprep.subr.mxu0 0.0
      %2365 = vmatpush2.msra.mxu0 0.0
      %2366 = vmatprep.subr.mxu0 0.0
      %2367 = vmatpush2.msra.mxu0 0.0
      %2368 = vmatprep.subr.mxu0 0.0
      %2369 = vmatpush2.msra.mxu0 0.0
      %2370 = vmatprep.mubr.f32.mxu0 0.0
      %2371 = vmatmul.mubr.f32.gmra.mxu0 %v2070
      %v2372 = vpop.f32.mrf.mxu0
      %v2373 = vadd.f32 0.0, %v2372
      %v2374 = vpop.f32.mrf.mxu0
      %2375 = vmatprep.mubr.f32.mxu0 0.0
      %2376 = vmatmul.mubr.f32.gmra.mxu0 %v2073
      %v2377 = vpop.f32.mrf.mxu0
      %v2378 = vadd.f32 0.0, %v2377
      %v2379 = vpop.f32.mrf.mxu0
      %2380 = vdwg.mxu0
      %v2381 = vadd.f32 %v2024, %v2142
      %v2382 = vadd.f32 %v2025, %v2144
      %v2383 = vadd.f32 %v2026, %v2219
      %v2384 = vadd.f32 %v2027, %v2221
      %v2385 = vadd.f32 %v2028, %v2296
      %v2386 = vadd.f32 %v2029, %v2298
      %v2387 = vadd.f32 %v2030, %v2373
      %v2388 = vadd.f32 %v2031, %v2148
      %v2389 = vadd.f32 %v2032, %v2150
      %v2390 = vadd.f32 %v2033, %v2225
      %v2391 = vadd.f32 %v2034, %v2227
      %v2392 = vadd.f32 %v2035, %v2302
      %v2393 = vadd.f32 %v2036, %v2304
      %v2394 = vadd.f32 %v2037, %v2378
      %s2395 = scalar_lea.vmem %s1, 96
      %v2396 = vld [vmem:[%s2395] sm:$0xff]
      %v2397 = vld [vmem:[%s2395 + $0x8] sm:$0xff]
      %2398 = vrot.lane.b32.xlu0 %v297, 70
      %v2399 = vpop.permute.xlu0 %2398
      %2400 = vrot.lane.b32.xlu0 %v298, 70
      %v2401 = vpop.permute.xlu0 %2400
      %2402 = vrot.lane.b32.xlu0 %v299, 70
      %v2403 = vpop.permute.xlu0 %2402
      %2404 = vrot.lane.b32.xlu0 %v300, 70
      %v2405 = vpop.permute.xlu0 %2404
      %2406 = vrot.lane.b32.xlu0 %v301, 70
      %v2407 = vpop.permute.xlu0 %2406
      %2408 = vrot.lane.b32.xlu0 %v302, 70
      %v2409 = vpop.permute.xlu0 %2408
      %2410 = vrot.lane.b32.xlu0 %v303, 70
      %v2411 = vpop.permute.xlu0 %2410
      %vm2412 = vcmask 572416
      %v2413 = vsel %vm2412, %v2399, %v2401
      %v2414 = vsel %vm2412, %v2401, %v2403
      %v2415 = vsel %vm2412, %v2403, %v2405
      %v2416 = vsel %vm2412, %v2405, %v2407
      %v2417 = vsel %vm2412, %v2407, %v2409
      %v2418 = vsel %vm2412, %v2409, %v2411
      %v2427 = vsel %vm342, %v2396, 0
      %v2430 = vsel %vm342, %v2397, 0
      %2432 = vmatprep.subr.mxu0 0.0
      %2433 = vmatpush1.msra.mxu0 0.0
      %2434 = vmatprep.subr.mxu0 0.0
      %2435 = vmatpush1.msra.mxu0 0.0
      %2436 = vmatprep.subr.mxu0 0.0
      %2437 = vmatpush1.msra.mxu0 0.0
      %2438 = vmatprep.subr.mxu0 0.0
      %2439 = vmatpush1.msra.mxu0 0.0
      %2440 = vmatprep.subr.mxu0 0.0
      %2441 = vmatpush1.msra.mxu0 0.0
      %2442 = vmatprep.subr.mxu0 0.0
      %2443 = vmatpush1.msra.mxu0 0.0
      %2444 = vmatprep.subr.mxu0 0.0
      %2445 = vmatpush1.msra.mxu0 0.0
      %2446 = vmatprep.subr.mxu0 0.0
      %2447 = vmatpush1.msra.mxu0 0.0
      %2448 = vmatprep.subr.mxu0 0.0
      %2449 = vmatpush1.msra.mxu0 0.0
      %2450 = vmatprep.subr.mxu0 0.0
      %2451 = vmatpush1.msra.mxu0 0.0
      %2452 = vmatprep.subr.mxu0 0.0
      %2453 = vmatpush1.msra.mxu0 0.0
      %2454 = vmatprep.subr.mxu0 0.0
      %2455 = vmatpush1.msra.mxu0 0.0
      %2456 = vmatprep.subr.mxu0 0.0
      %2457 = vmatpush1.msra.mxu0 0.0
      %2458 = vmatprep.subr.mxu0 0.0
      %2459 = vmatpush1.msra.mxu0 0.0
      %2460 = vmatprep.subr.mxu0 0.0
      %2461 = vmatpush1.msra.mxu0 0.0
      %2462 = vmatprep.subr.mxu0 %v2414
      %2463 = vmatpush1.msra.mxu0 %v2413
      %2464 = vmatprep.subr.mxu0 0.0
      %2465 = vmatpush2.msra.mxu0 0.0
      %2466 = vmatprep.subr.mxu0 0.0
      %2467 = vmatpush2.msra.mxu0 0.0
      %2468 = vmatprep.subr.mxu0 0.0
      %2469 = vmatpush2.msra.mxu0 0.0
      %2470 = vmatprep.subr.mxu0 0.0
      %2471 = vmatpush2.msra.mxu0 0.0
      %2472 = vmatprep.subr.mxu0 0.0
      %2473 = vmatpush2.msra.mxu0 0.0
      %2474 = vmatprep.subr.mxu0 0.0
      %2475 = vmatpush2.msra.mxu0 0.0
      %2476 = vmatprep.subr.mxu0 0.0
      %2477 = vmatpush2.msra.mxu0 0.0
      %2478 = vmatprep.subr.mxu0 0.0
      %2479 = vmatpush2.msra.mxu0 0.0
      %2480 = vmatprep.subr.mxu0 0.0
      %2481 = vmatpush2.msra.mxu0 0.0
      %2482 = vmatprep.subr.mxu0 0.0
      %2483 = vmatpush2.msra.mxu0 0.0
      %2484 = vmatprep.subr.mxu0 0.0
      %2485 = vmatpush2.msra.mxu0 0.0
      %2486 = vmatprep.subr.mxu0 0.0
      %2487 = vmatpush2.msra.mxu0 0.0
      %2488 = vmatprep.subr.mxu0 0.0
      %2489 = vmatpush2.msra.mxu0 0.0
      %2490 = vmatprep.subr.mxu0 0.0
      %2491 = vmatpush2.msra.mxu0 0.0
      %2492 = vmatprep.subr.mxu0 0.0
      %2493 = vmatpush2.msra.mxu0 0.0
      %2494 = vmatprep.subr.mxu0 0.0
      %2495 = vmatpush2.msra.mxu0 0.0
      %2496 = vmatprep.mubr.f32.mxu0 0.0
      %2497 = vmatmul.mubr.f32.gmra.mxu0 %v2427
      %v2498 = vpop.f32.mrf.mxu0
      %v2499 = vadd.f32 0.0, %v2498
      %v2500 = vpop.f32.mrf.mxu0
      %v2501 = vadd.f32 0.0, %v2500
      %2502 = vmatprep.mubr.f32.mxu0 0.0
      %2503 = vmatmul.mubr.f32.gmra.mxu0 %v2430
      %v2504 = vpop.f32.mrf.mxu0
      %v2505 = vadd.f32 0.0, %v2504
      %v2506 = vpop.f32.mrf.mxu0
      %v2507 = vadd.f32 0.0, %v2506
      %2508 = vdwg.mxu0
      %2509 = vmatprep.subr.mxu0 0.0
      %2510 = vmatpush1.msra.mxu0 0.0
      %2511 = vmatprep.subr.mxu0 0.0
      %2512 = vmatpush1.msra.mxu0 0.0
      %2513 = vmatprep.subr.mxu0 0.0
      %2514 = vmatpush1.msra.mxu0 0.0
      %2515 = vmatprep.subr.mxu0 0.0
      %2516 = vmatpush1.msra.mxu0 0.0
      %2517 = vmatprep.subr.mxu0 0.0
      %2518 = vmatpush1.msra.mxu0 0.0
      %2519 = vmatprep.subr.mxu0 0.0
      %2520 = vmatpush1.msra.mxu0 0.0
      %2521 = vmatprep.subr.mxu0 0.0
      %2522 = vmatpush1.msra.mxu0 0.0
      %2523 = vmatprep.subr.mxu0 0.0
      %2524 = vmatpush1.msra.mxu0 0.0
      %2525 = vmatprep.subr.mxu0 0.0
      %2526 = vmatpush1.msra.mxu0 0.0
      %2527 = vmatprep.subr.mxu0 0.0
      %2528 = vmatpush1.msra.mxu0 0.0
      %2529 = vmatprep.subr.mxu0 0.0
      %2530 = vmatpush1.msra.mxu0 0.0
      %2531 = vmatprep.subr.mxu0 0.0
      %2532 = vmatpush1.msra.mxu0 0.0
      %2533 = vmatprep.subr.mxu0 0.0
      %2534 = vmatpush1.msra.mxu0 0.0
      %2535 = vmatprep.subr.mxu0 0.0
      %2536 = vmatpush1.msra.mxu0 0.0
      %2537 = vmatprep.subr.mxu0 0.0
      %2538 = vmatpush1.msra.mxu0 0.0
      %2539 = vmatprep.subr.mxu0 %v2416
      %2540 = vmatpush1.msra.mxu0 %v2415
      %2541 = vmatprep.subr.mxu0 0.0
      %2542 = vmatpush2.msra.mxu0 0.0
      %2543 = vmatprep.subr.mxu0 0.0
      %2544 = vmatpush2.msra.mxu0 0.0
      %2545 = vmatprep.subr.mxu0 0.0
      %2546 = vmatpush2.msra.mxu0 0.0
      %2547 = vmatprep.subr.mxu0 0.0
      %2548 = vmatpush2.msra.mxu0 0.0
      %2549 = vmatprep.subr.mxu0 0.0
      %2550 = vmatpush2.msra.mxu0 0.0
      %2551 = vmatprep.subr.mxu0 0.0
      %2552 = vmatpush2.msra.mxu0 0.0
      %2553 = vmatprep.subr.mxu0 0.0
      %2554 = vmatpush2.msra.mxu0 0.0
      %2555 = vmatprep.subr.mxu0 0.0
      %2556 = vmatpush2.msra.mxu0 0.0
      %2557 = vmatprep.subr.mxu0 0.0
      %2558 = vmatpush2.msra.mxu0 0.0
      %2559 = vmatprep.subr.mxu0 0.0
      %2560 = vmatpush2.msra.mxu0 0.0
      %2561 = vmatprep.subr.mxu0 0.0
      %2562 = vmatpush2.msra.mxu0 0.0
      %2563 = vmatprep.subr.mxu0 0.0
      %2564 = vmatpush2.msra.mxu0 0.0
      %2565 = vmatprep.subr.mxu0 0.0
      %2566 = vmatpush2.msra.mxu0 0.0
      %2567 = vmatprep.subr.mxu0 0.0
      %2568 = vmatpush2.msra.mxu0 0.0
      %2569 = vmatprep.subr.mxu0 0.0
      %2570 = vmatpush2.msra.mxu0 0.0
      %2571 = vmatprep.subr.mxu0 0.0
      %2572 = vmatpush2.msra.mxu0 0.0
      %2573 = vmatprep.mubr.f32.mxu0 0.0
      %2574 = vmatmul.mubr.f32.gmra.mxu0 %v2427
      %v2575 = vpop.f32.mrf.mxu0
      %v2576 = vadd.f32 0.0, %v2575
      %v2577 = vpop.f32.mrf.mxu0
      %v2578 = vadd.f32 0.0, %v2577
      %2579 = vmatprep.mubr.f32.mxu0 0.0
      %2580 = vmatmul.mubr.f32.gmra.mxu0 %v2430
      %v2581 = vpop.f32.mrf.mxu0
      %v2582 = vadd.f32 0.0, %v2581
      %v2583 = vpop.f32.mrf.mxu0
      %v2584 = vadd.f32 0.0, %v2583
      %2585 = vdwg.mxu0
      %2586 = vmatprep.subr.mxu0 0.0
      %2587 = vmatpush1.msra.mxu0 0.0
      %2588 = vmatprep.subr.mxu0 0.0
      %2589 = vmatpush1.msra.mxu0 0.0
      %2590 = vmatprep.subr.mxu0 0.0
      %2591 = vmatpush1.msra.mxu0 0.0
      %2592 = vmatprep.subr.mxu0 0.0
      %2593 = vmatpush1.msra.mxu0 0.0
      %2594 = vmatprep.subr.mxu0 0.0
      %2595 = vmatpush1.msra.mxu0 0.0
      %2596 = vmatprep.subr.mxu0 0.0
      %2597 = vmatpush1.msra.mxu0 0.0
      %2598 = vmatprep.subr.mxu0 0.0
      %2599 = vmatpush1.msra.mxu0 0.0
      %2600 = vmatprep.subr.mxu0 0.0
      %2601 = vmatpush1.msra.mxu0 0.0
      %2602 = vmatprep.subr.mxu0 0.0
      %2603 = vmatpush1.msra.mxu0 0.0
      %2604 = vmatprep.subr.mxu0 0.0
      %2605 = vmatpush1.msra.mxu0 0.0
      %2606 = vmatprep.subr.mxu0 0.0
      %2607 = vmatpush1.msra.mxu0 0.0
      %2608 = vmatprep.subr.mxu0 0.0
      %2609 = vmatpush1.msra.mxu0 0.0
      %2610 = vmatprep.subr.mxu0 0.0
      %2611 = vmatpush1.msra.mxu0 0.0
      %2612 = vmatprep.subr.mxu0 0.0
      %2613 = vmatpush1.msra.mxu0 0.0
      %2614 = vmatprep.subr.mxu0 0.0
      %2615 = vmatpush1.msra.mxu0 0.0
      %2616 = vmatprep.subr.mxu0 %v2418
      %2617 = vmatpush1.msra.mxu0 %v2417
      %2618 = vmatprep.subr.mxu0 0.0
      %2619 = vmatpush2.msra.mxu0 0.0
      %2620 = vmatprep.subr.mxu0 0.0
      %2621 = vmatpush2.msra.mxu0 0.0
      %2622 = vmatprep.subr.mxu0 0.0
      %2623 = vmatpush2.msra.mxu0 0.0
      %2624 = vmatprep.subr.mxu0 0.0
      %2625 = vmatpush2.msra.mxu0 0.0
      %2626 = vmatprep.subr.mxu0 0.0
      %2627 = vmatpush2.msra.mxu0 0.0
      %2628 = vmatprep.subr.mxu0 0.0
      %2629 = vmatpush2.msra.mxu0 0.0
      %2630 = vmatprep.subr.mxu0 0.0
      %2631 = vmatpush2.msra.mxu0 0.0
      %2632 = vmatprep.subr.mxu0 0.0
      %2633 = vmatpush2.msra.mxu0 0.0
      %2634 = vmatprep.subr.mxu0 0.0
      %2635 = vmatpush2.msra.mxu0 0.0
      %2636 = vmatprep.subr.mxu0 0.0
      %2637 = vmatpush2.msra.mxu0 0.0
      %2638 = vmatprep.subr.mxu0 0.0
      %2639 = vmatpush2.msra.mxu0 0.0
      %2640 = vmatprep.subr.mxu0 0.0
      %2641 = vmatpush2.msra.mxu0 0.0
      %2642 = vmatprep.subr.mxu0 0.0
      %2643 = vmatpush2.msra.mxu0 0.0
      %2644 = vmatprep.subr.mxu0 0.0
      %2645 = vmatpush2.msra.mxu0 0.0
      %2646 = vmatprep.subr.mxu0 0.0
      %2647 = vmatpush2.msra.mxu0 0.0
      %2648 = vmatprep.subr.mxu0 0.0
      %2649 = vmatpush2.msra.mxu0 0.0
      %2650 = vmatprep.mubr.f32.mxu0 0.0
      %2651 = vmatmul.mubr.f32.gmra.mxu0 %v2427
      %v2652 = vpop.f32.mrf.mxu0
      %v2653 = vadd.f32 0.0, %v2652
      %v2654 = vpop.f32.mrf.mxu0
      %v2655 = vadd.f32 0.0, %v2654
      %2656 = vmatprep.mubr.f32.mxu0 0.0
      %2657 = vmatmul.mubr.f32.gmra.mxu0 %v2430
      %v2658 = vpop.f32.mrf.mxu0
      %v2659 = vadd.f32 0.0, %v2658
      %v2660 = vpop.f32.mrf.mxu0
      %v2661 = vadd.f32 0.0, %v2660
      %2662 = vdwg.mxu0
      %2663 = vmatprep.subr.mxu0 0.0
      %2664 = vmatpush1.msra.mxu0 0.0
      %2665 = vmatprep.subr.mxu0 0.0
      %2666 = vmatpush1.msra.mxu0 0.0
      %2667 = vmatprep.subr.mxu0 0.0
      %2668 = vmatpush1.msra.mxu0 0.0
      %2669 = vmatprep.subr.mxu0 0.0
      %2670 = vmatpush1.msra.mxu0 0.0
      %2671 = vmatprep.subr.mxu0 0.0
      %2672 = vmatpush1.msra.mxu0 0.0
      %2673 = vmatprep.subr.mxu0 0.0
      %2674 = vmatpush1.msra.mxu0 0.0
      %2675 = vmatprep.subr.mxu0 0.0
      %2676 = vmatpush1.msra.mxu0 0.0
      %2677 = vmatprep.subr.mxu0 0.0
      %2678 = vmatpush1.msra.mxu0 0.0
      %2679 = vmatprep.subr.mxu0 0.0
      %2680 = vmatpush1.msra.mxu0 0.0
      %2681 = vmatprep.subr.mxu0 0.0
      %2682 = vmatpush1.msra.mxu0 0.0
      %2683 = vmatprep.subr.mxu0 0.0
      %2684 = vmatpush1.msra.mxu0 0.0
      %2685 = vmatprep.subr.mxu0 0.0
      %2686 = vmatpush1.msra.mxu0 0.0
      %2687 = vmatprep.subr.mxu0 0.0
      %2688 = vmatpush1.msra.mxu0 0.0
      %2689 = vmatprep.subr.mxu0 0.0
      %2690 = vmatpush1.msra.mxu0 0.0
      %2691 = vmatprep.subr.mxu0 0.0
      %2692 = vmatpush1.msra.mxu0 0.0
      %2693 = vmatprep.subr.mxu0 0.0
      %2694 = vmatpush1.msra.mxu0 %v2411
      %2695 = vmatprep.subr.mxu0 0.0
      %2696 = vmatpush2.msra.mxu0 0.0
      %2697 = vmatprep.subr.mxu0 0.0
      %2698 = vmatpush2.msra.mxu0 0.0
      %2699 = vmatprep.subr.mxu0 0.0
      %2700 = vmatpush2.msra.mxu0 0.0
      %2701 = vmatprep.subr.mxu0 0.0
      %2702 = vmatpush2.msra.mxu0 0.0
      %2703 = vmatprep.subr.mxu0 0.0
      %2704 = vmatpush2.msra.mxu0 0.0
      %2705 = vmatprep.subr.mxu0 0.0
      %2706 = vmatpush2.msra.mxu0 0.0
      %2707 = vmatprep.subr.mxu0 0.0
      %2708 = vmatpush2.msra.mxu0 0.0
      %2709 = vmatprep.subr.mxu0 0.0
      %2710 = vmatpush2.msra.mxu0 0.0
      %2711 = vmatprep.subr.mxu0 0.0
      %2712 = vmatpush2.msra.mxu0 0.0
      %2713 = vmatprep.subr.mxu0 0.0
      %2714 = vmatpush2.msra.mxu0 0.0
      %2715 = vmatprep.subr.mxu0 0.0
      %2716 = vmatpush2.msra.mxu0 0.0
      %2717 = vmatprep.subr.mxu0 0.0
      %2718 = vmatpush2.msra.mxu0 0.0
      %2719 = vmatprep.subr.mxu0 0.0
      %2720 = vmatpush2.msra.mxu0 0.0
      %2721 = vmatprep.subr.mxu0 0.0
      %2722 = vmatpush2.msra.mxu0 0.0
      %2723 = vmatprep.subr.mxu0 0.0
      %2724 = vmatpush2.msra.mxu0 0.0
      %2725 = vmatprep.subr.mxu0 0.0
      %2726 = vmatpush2.msra.mxu0 0.0
      %2727 = vmatprep.mubr.f32.mxu0 0.0
      %2728 = vmatmul.mubr.f32.gmra.mxu0 %v2427
      %v2729 = vpop.f32.mrf.mxu0
      %v2730 = vadd.f32 0.0, %v2729
      %v2731 = vpop.f32.mrf.mxu0
      %2732 = vmatprep.mubr.f32.mxu0 0.0
      %2733 = vmatmul.mubr.f32.gmra.mxu0 %v2430
      %v2734 = vpop.f32.mrf.mxu0
      %v2735 = vadd.f32 0.0, %v2734
      %v2736 = vpop.f32.mrf.mxu0
      %2737 = vdwg.mxu0
      %v2738 = vadd.f32 %v2381, %v2499
      %v2739 = vadd.f32 %v2382, %v2501
      %v2740 = vadd.f32 %v2383, %v2576
      %v2741 = vadd.f32 %v2384, %v2578
      %v2742 = vadd.f32 %v2385, %v2653
      %v2743 = vadd.f32 %v2386, %v2655
      %v2744 = vadd.f32 %v2387, %v2730
      %v2745 = vadd.f32 %v2388, %v2505
      %v2746 = vadd.f32 %v2389, %v2507
      %v2747 = vadd.f32 %v2390, %v2582
      %v2748 = vadd.f32 %v2391, %v2584
      %v2749 = vadd.f32 %v2392, %v2659
      %v2750 = vadd.f32 %v2393, %v2661
      %v2751 = vadd.f32 %v2394, %v2735
      %s2752 = scalar_lea.vmem %s1, 112
      %v2753 = vld [vmem:[%s2752] sm:$0xff]
      %v2754 = vld [vmem:[%s2752 + $0x8] sm:$0xff]
      %2755 = vrot.lane.b32.xlu0 %v297, 69
      %v2756 = vpop.permute.xlu0 %2755
      %2757 = vrot.lane.b32.xlu0 %v298, 69
      %v2758 = vpop.permute.xlu0 %2757
      %2759 = vrot.lane.b32.xlu0 %v299, 69
      %v2760 = vpop.permute.xlu0 %2759
      %2761 = vrot.lane.b32.xlu0 %v300, 69
      %v2762 = vpop.permute.xlu0 %2761
      %2763 = vrot.lane.b32.xlu0 %v301, 69
      %v2764 = vpop.permute.xlu0 %2763
      %2765 = vrot.lane.b32.xlu0 %v302, 69
      %v2766 = vpop.permute.xlu0 %2765
      %2767 = vrot.lane.b32.xlu0 %v303, 69
      %v2768 = vpop.permute.xlu0 %2767
      %vm2769 = vcmask 564224
      %v2770 = vsel %vm2769, %v2756, %v2758
      %v2771 = vsel %vm2769, %v2758, %v2760
      %v2772 = vsel %vm2769, %v2760, %v2762
      %v2773 = vsel %vm2769, %v2762, %v2764
      %v2774 = vsel %vm2769, %v2764, %v2766
      %v2775 = vsel %vm2769, %v2766, %v2768
      %v2784 = vsel %vm342, %v2753, 0
      %v2787 = vsel %vm342, %v2754, 0
      %2789 = vmatprep.subr.mxu0 0.0
      %2790 = vmatpush1.msra.mxu0 0.0
      %2791 = vmatprep.subr.mxu0 0.0
      %2792 = vmatpush1.msra.mxu0 0.0
      %2793 = vmatprep.subr.mxu0 0.0
      %2794 = vmatpush1.msra.mxu0 0.0
      %2795 = vmatprep.subr.mxu0 0.0
      %2796 = vmatpush1.msra.mxu0 0.0
      %2797 = vmatprep.subr.mxu0 0.0
      %2798 = vmatpush1.msra.mxu0 0.0
      %2799 = vmatprep.subr.mxu0 0.0
      %2800 = vmatpush1.msra.mxu0 0.0
      %2801 = vmatprep.subr.mxu0 0.0
      %2802 = vmatpush1.msra.mxu0 0.0
      %2803 = vmatprep.subr.mxu0 0.0
      %2804 = vmatpush1.msra.mxu0 0.0
      %2805 = vmatprep.subr.mxu0 0.0
      %2806 = vmatpush1.msra.mxu0 0.0
      %2807 = vmatprep.subr.mxu0 0.0
      %2808 = vmatpush1.msra.mxu0 0.0
      %2809 = vmatprep.subr.mxu0 0.0
      %2810 = vmatpush1.msra.mxu0 0.0
      %2811 = vmatprep.subr.mxu0 0.0
      %2812 = vmatpush1.msra.mxu0 0.0
      %2813 = vmatprep.subr.mxu0 0.0
      %2814 = vmatpush1.msra.mxu0 0.0
      %2815 = vmatprep.subr.mxu0 0.0
      %2816 = vmatpush1.msra.mxu0 0.0
      %2817 = vmatprep.subr.mxu0 0.0
      %2818 = vmatpush1.msra.mxu0 0.0
      %2819 = vmatprep.subr.mxu0 %v2771
      %2820 = vmatpush1.msra.mxu0 %v2770
      %2821 = vmatprep.subr.mxu0 0.0
      %2822 = vmatpush2.msra.mxu0 0.0
      %2823 = vmatprep.subr.mxu0 0.0
      %2824 = vmatpush2.msra.mxu0 0.0
      %2825 = vmatprep.subr.mxu0 0.0
      %2826 = vmatpush2.msra.mxu0 0.0
      %2827 = vmatprep.subr.mxu0 0.0
      %2828 = vmatpush2.msra.mxu0 0.0
      %2829 = vmatprep.subr.mxu0 0.0
      %2830 = vmatpush2.msra.mxu0 0.0
      %2831 = vmatprep.subr.mxu0 0.0
      %2832 = vmatpush2.msra.mxu0 0.0
      %2833 = vmatprep.subr.mxu0 0.0
      %2834 = vmatpush2.msra.mxu0 0.0
      %2835 = vmatprep.subr.mxu0 0.0
      %2836 = vmatpush2.msra.mxu0 0.0
      %2837 = vmatprep.subr.mxu0 0.0
      %2838 = vmatpush2.msra.mxu0 0.0
      %2839 = vmatprep.subr.mxu0 0.0
      %2840 = vmatpush2.msra.mxu0 0.0
      %2841 = vmatprep.subr.mxu0 0.0
      %2842 = vmatpush2.msra.mxu0 0.0
      %2843 = vmatprep.subr.mxu0 0.0
      %2844 = vmatpush2.msra.mxu0 0.0
      %2845 = vmatprep.subr.mxu0 0.0
      %2846 = vmatpush2.msra.mxu0 0.0
      %2847 = vmatprep.subr.mxu0 0.0
      %2848 = vmatpush2.msra.mxu0 0.0
      %2849 = vmatprep.subr.mxu0 0.0
      %2850 = vmatpush2.msra.mxu0 0.0
      %2851 = vmatprep.subr.mxu0 0.0
      %2852 = vmatpush2.msra.mxu0 0.0
      %2853 = vmatprep.mubr.f32.mxu0 0.0
      %2854 = vmatmul.mubr.f32.gmra.mxu0 %v2784
      %v2855 = vpop.f32.mrf.mxu0
      %v2856 = vadd.f32 0.0, %v2855
      %v2857 = vpop.f32.mrf.mxu0
      %v2858 = vadd.f32 0.0, %v2857
      %2859 = vmatprep.mubr.f32.mxu0 0.0
      %2860 = vmatmul.mubr.f32.gmra.mxu0 %v2787
      %v2861 = vpop.f32.mrf.mxu0
      %v2862 = vadd.f32 0.0, %v2861
      %v2863 = vpop.f32.mrf.mxu0
      %v2864 = vadd.f32 0.0, %v2863
      %2865 = vdwg.mxu0
      %2866 = vmatprep.subr.mxu0 0.0
      %2867 = vmatpush1.msra.mxu0 0.0
      %2868 = vmatprep.subr.mxu0 0.0
      %2869 = vmatpush1.msra.mxu0 0.0
      %2870 = vmatprep.subr.mxu0 0.0
      %2871 = vmatpush1.msra.mxu0 0.0
      %2872 = vmatprep.subr.mxu0 0.0
      %2873 = vmatpush1.msra.mxu0 0.0
      %2874 = vmatprep.subr.mxu0 0.0
      %2875 = vmatpush1.msra.mxu0 0.0
      %2876 = vmatprep.subr.mxu0 0.0
      %2877 = vmatpush1.msra.mxu0 0.0
      %2878 = vmatprep.subr.mxu0 0.0
      %2879 = vmatpush1.msra.mxu0 0.0
      %2880 = vmatprep.subr.mxu0 0.0
      %2881 = vmatpush1.msra.mxu0 0.0
      %2882 = vmatprep.subr.mxu0 0.0
      %2883 = vmatpush1.msra.mxu0 0.0
      %2884 = vmatprep.subr.mxu0 0.0
      %2885 = vmatpush1.msra.mxu0 0.0
      %2886 = vmatprep.subr.mxu0 0.0
      %2887 = vmatpush1.msra.mxu0 0.0
      %2888 = vmatprep.subr.mxu0 0.0
      %2889 = vmatpush1.msra.mxu0 0.0
      %2890 = vmatprep.subr.mxu0 0.0
      %2891 = vmatpush1.msra.mxu0 0.0
      %2892 = vmatprep.subr.mxu0 0.0
      %2893 = vmatpush1.msra.mxu0 0.0
      %2894 = vmatprep.subr.mxu0 0.0
      %2895 = vmatpush1.msra.mxu0 0.0
      %2896 = vmatprep.subr.mxu0 %v2773
      %2897 = vmatpush1.msra.mxu0 %v2772
      %2898 = vmatprep.subr.mxu0 0.0
      %2899 = vmatpush2.msra.mxu0 0.0
      %2900 = vmatprep.subr.mxu0 0.0
      %2901 = vmatpush2.msra.mxu0 0.0
      %2902 = vmatprep.subr.mxu0 0.0
      %2903 = vmatpush2.msra.mxu0 0.0
      %2904 = vmatprep.subr.mxu0 0.0
      %2905 = vmatpush2.msra.mxu0 0.0
      %2906 = vmatprep.subr.mxu0 0.0
      %2907 = vmatpush2.msra.mxu0 0.0
      %2908 = vmatprep.subr.mxu0 0.0
      %2909 = vmatpush2.msra.mxu0 0.0
      %2910 = vmatprep.subr.mxu0 0.0
      %2911 = vmatpush2.msra.mxu0 0.0
      %2912 = vmatprep.subr.mxu0 0.0
      %2913 = vmatpush2.msra.mxu0 0.0
      %2914 = vmatprep.subr.mxu0 0.0
      %2915 = vmatpush2.msra.mxu0 0.0
      %2916 = vmatprep.subr.mxu0 0.0
      %2917 = vmatpush2.msra.mxu0 0.0
      %2918 = vmatprep.subr.mxu0 0.0
      %2919 = vmatpush2.msra.mxu0 0.0
      %2920 = vmatprep.subr.mxu0 0.0
      %2921 = vmatpush2.msra.mxu0 0.0
      %2922 = vmatprep.subr.mxu0 0.0
      %2923 = vmatpush2.msra.mxu0 0.0
      %2924 = vmatprep.subr.mxu0 0.0
      %2925 = vmatpush2.msra.mxu0 0.0
      %2926 = vmatprep.subr.mxu0 0.0
      %2927 = vmatpush2.msra.mxu0 0.0
      %2928 = vmatprep.subr.mxu0 0.0
      %2929 = vmatpush2.msra.mxu0 0.0
      %2930 = vmatprep.mubr.f32.mxu0 0.0
      %2931 = vmatmul.mubr.f32.gmra.mxu0 %v2784
      %v2932 = vpop.f32.mrf.mxu0
      %v2933 = vadd.f32 0.0, %v2932
      %v2934 = vpop.f32.mrf.mxu0
      %v2935 = vadd.f32 0.0, %v2934
      %2936 = vmatprep.mubr.f32.mxu0 0.0
      %2937 = vmatmul.mubr.f32.gmra.mxu0 %v2787
      %v2938 = vpop.f32.mrf.mxu0
      %v2939 = vadd.f32 0.0, %v2938
      %v2940 = vpop.f32.mrf.mxu0
      %v2941 = vadd.f32 0.0, %v2940
      %2942 = vdwg.mxu0
      %2943 = vmatprep.subr.mxu0 0.0
      %2944 = vmatpush1.msra.mxu0 0.0
      %2945 = vmatprep.subr.mxu0 0.0
      %2946 = vmatpush1.msra.mxu0 0.0
      %2947 = vmatprep.subr.mxu0 0.0
      %2948 = vmatpush1.msra.mxu0 0.0
      %2949 = vmatprep.subr.mxu0 0.0
      %2950 = vmatpush1.msra.mxu0 0.0
      %2951 = vmatprep.subr.mxu0 0.0
      %2952 = vmatpush1.msra.mxu0 0.0
      %2953 = vmatprep.subr.mxu0 0.0
      %2954 = vmatpush1.msra.mxu0 0.0
      %2955 = vmatprep.subr.mxu0 0.0
      %2956 = vmatpush1.msra.mxu0 0.0
      %2957 = vmatprep.subr.mxu0 0.0
      %2958 = vmatpush1.msra.mxu0 0.0
      %2959 = vmatprep.subr.mxu0 0.0
      %2960 = vmatpush1.msra.mxu0 0.0
      %2961 = vmatprep.subr.mxu0 0.0
      %2962 = vmatpush1.msra.mxu0 0.0
      %2963 = vmatprep.subr.mxu0 0.0
      %2964 = vmatpush1.msra.mxu0 0.0
      %2965 = vmatprep.subr.mxu0 0.0
      %2966 = vmatpush1.msra.mxu0 0.0
      %2967 = vmatprep.subr.mxu0 0.0
      %2968 = vmatpush1.msra.mxu0 0.0
      %2969 = vmatprep.subr.mxu0 0.0
      %2970 = vmatpush1.msra.mxu0 0.0
      %2971 = vmatprep.subr.mxu0 0.0
      %2972 = vmatpush1.msra.mxu0 0.0
      %2973 = vmatprep.subr.mxu0 %v2775
      %2974 = vmatpush1.msra.mxu0 %v2774
      %2975 = vmatprep.subr.mxu0 0.0
      %2976 = vmatpush2.msra.mxu0 0.0
      %2977 = vmatprep.subr.mxu0 0.0
      %2978 = vmatpush2.msra.mxu0 0.0
      %2979 = vmatprep.subr.mxu0 0.0
      %2980 = vmatpush2.msra.mxu0 0.0
      %2981 = vmatprep.subr.mxu0 0.0
      %2982 = vmatpush2.msra.mxu0 0.0
      %2983 = vmatprep.subr.mxu0 0.0
      %2984 = vmatpush2.msra.mxu0 0.0
      %2985 = vmatprep.subr.mxu0 0.0
      %2986 = vmatpush2.msra.mxu0 0.0
      %2987 = vmatprep.subr.mxu0 0.0
      %2988 = vmatpush2.msra.mxu0 0.0
      %2989 = vmatprep.subr.mxu0 0.0
      %2990 = vmatpush2.msra.mxu0 0.0
      %2991 = vmatprep.subr.mxu0 0.0
      %2992 = vmatpush2.msra.mxu0 0.0
      %2993 = vmatprep.subr.mxu0 0.0
      %2994 = vmatpush2.msra.mxu0 0.0
      %2995 = vmatprep.subr.mxu0 0.0
      %2996 = vmatpush2.msra.mxu0 0.0
      %2997 = vmatprep.subr.mxu0 0.0
      %2998 = vmatpush2.msra.mxu0 0.0
      %2999 = vmatprep.subr.mxu0 0.0
      %3000 = vmatpush2.msra.mxu0 0.0
      %3001 = vmatprep.subr.mxu0 0.0
      %3002 = vmatpush2.msra.mxu0 0.0
      %3003 = vmatprep.subr.mxu0 0.0
      %3004 = vmatpush2.msra.mxu0 0.0
      %3005 = vmatprep.subr.mxu0 0.0
      %3006 = vmatpush2.msra.mxu0 0.0
      %3007 = vmatprep.mubr.f32.mxu0 0.0
      %3008 = vmatmul.mubr.f32.gmra.mxu0 %v2784
      %v3009 = vpop.f32.mrf.mxu0
      %v3010 = vadd.f32 0.0, %v3009
      %v3011 = vpop.f32.mrf.mxu0
      %v3012 = vadd.f32 0.0, %v3011
      %3013 = vmatprep.mubr.f32.mxu0 0.0
      %3014 = vmatmul.mubr.f32.gmra.mxu0 %v2787
      %v3015 = vpop.f32.mrf.mxu0
      %v3016 = vadd.f32 0.0, %v3015
      %v3017 = vpop.f32.mrf.mxu0
      %v3018 = vadd.f32 0.0, %v3017
      %3019 = vdwg.mxu0
      %3020 = vmatprep.subr.mxu0 0.0
      %3021 = vmatpush1.msra.mxu0 0.0
      %3022 = vmatprep.subr.mxu0 0.0
      %3023 = vmatpush1.msra.mxu0 0.0
      %3024 = vmatprep.subr.mxu0 0.0
      %3025 = vmatpush1.msra.mxu0 0.0
      %3026 = vmatprep.subr.mxu0 0.0
      %3027 = vmatpush1.msra.mxu0 0.0
      %3028 = vmatprep.subr.mxu0 0.0
      %3029 = vmatpush1.msra.mxu0 0.0
      %3030 = vmatprep.subr.mxu0 0.0
      %3031 = vmatpush1.msra.mxu0 0.0
      %3032 = vmatprep.subr.mxu0 0.0
      %3033 = vmatpush1.msra.mxu0 0.0
      %3034 = vmatprep.subr.mxu0 0.0
      %3035 = vmatpush1.msra.mxu0 0.0
      %3036 = vmatprep.subr.mxu0 0.0
      %3037 = vmatpush1.msra.mxu0 0.0
      %3038 = vmatprep.subr.mxu0 0.0
      %3039 = vmatpush1.msra.mxu0 0.0
      %3040 = vmatprep.subr.mxu0 0.0
      %3041 = vmatpush1.msra.mxu0 0.0
      %3042 = vmatprep.subr.mxu0 0.0
      %3043 = vmatpush1.msra.mxu0 0.0
      %3044 = vmatprep.subr.mxu0 0.0
      %3045 = vmatpush1.msra.mxu0 0.0
      %3046 = vmatprep.subr.mxu0 0.0
      %3047 = vmatpush1.msra.mxu0 0.0
      %3048 = vmatprep.subr.mxu0 0.0
      %3049 = vmatpush1.msra.mxu0 0.0
      %3050 = vmatprep.subr.mxu0 0.0
      %3051 = vmatpush1.msra.mxu0 %v2768
      %3052 = vmatprep.subr.mxu0 0.0
      %3053 = vmatpush2.msra.mxu0 0.0
      %3054 = vmatprep.subr.mxu0 0.0
      %3055 = vmatpush2.msra.mxu0 0.0
      %3056 = vmatprep.subr.mxu0 0.0
      %3057 = vmatpush2.msra.mxu0 0.0
      %3058 = vmatprep.subr.mxu0 0.0
      %3059 = vmatpush2.msra.mxu0 0.0
      %3060 = vmatprep.subr.mxu0 0.0
      %3061 = vmatpush2.msra.mxu0 0.0
      %3062 = vmatprep.subr.mxu0 0.0
      %3063 = vmatpush2.msra.mxu0 0.0
      %3064 = vmatprep.subr.mxu0 0.0
      %3065 = vmatpush2.msra.mxu0 0.0
      %3066 = vmatprep.subr.mxu0 0.0
      %3067 = vmatpush2.msra.mxu0 0.0
      %3068 = vmatprep.subr.mxu0 0.0
      %3069 = vmatpush2.msra.mxu0 0.0
      %3070 = vmatprep.subr.mxu0 0.0
      %3071 = vmatpush2.msra.mxu0 0.0
      %3072 = vmatprep.subr.mxu0 0.0
      %3073 = vmatpush2.msra.mxu0 0.0
      %3074 = vmatprep.subr.mxu0 0.0
      %3075 = vmatpush2.msra.mxu0 0.0
      %3076 = vmatprep.subr.mxu0 0.0
      %3077 = vmatpush2.msra.mxu0 0.0
      %3078 = vmatprep.subr.mxu0 0.0
      %3079 = vmatpush2.msra.mxu0 0.0
      %3080 = vmatprep.subr.mxu0 0.0
      %3081 = vmatpush2.msra.mxu0 0.0
      %3082 = vmatprep.subr.mxu0 0.0
      %3083 = vmatpush2.msra.mxu0 0.0
      %3084 = vmatprep.mubr.f32.mxu0 0.0
      %3085 = vmatmul.mubr.f32.gmra.mxu0 %v2784
      %v3086 = vpop.f32.mrf.mxu0
      %v3087 = vadd.f32 0.0, %v3086
      %v3088 = vpop.f32.mrf.mxu0
      %3089 = vmatprep.mubr.f32.mxu0 0.0
      %3090 = vmatmul.mubr.f32.gmra.mxu0 %v2787
      %v3091 = vpop.f32.mrf.mxu0
      %v3092 = vadd.f32 0.0, %v3091
      %v3093 = vpop.f32.mrf.mxu0
      %3094 = vdwg.mxu0
      %v3095 = vadd.f32 %v2738, %v2856
      %v3096 = vadd.f32 %v2739, %v2858
      %v3097 = vadd.f32 %v2740, %v2933
      %v3098 = vadd.f32 %v2741, %v2935
      %v3099 = vadd.f32 %v2742, %v3010
      %v3100 = vadd.f32 %v2743, %v3012
      %v3101 = vadd.f32 %v2744, %v3087
      %v3102 = vadd.f32 %v2745, %v2862
      %v3103 = vadd.f32 %v2746, %v2864
      %v3104 = vadd.f32 %v2747, %v2939
      %v3105 = vadd.f32 %v2748, %v2941
      %v3106 = vadd.f32 %v2749, %v3016
      %v3107 = vadd.f32 %v2750, %v3018
      %v3108 = vadd.f32 %v2751, %v3092
      %s3109 = scalar_lea.vmem %s1, 128
      %v3110 = vld [vmem:[%s3109] sm:$0xff]
      %v3111 = vld [vmem:[%s3109 + $0x8] sm:$0xff]
      %3112 = vrot.lane.b32.xlu0 %v297, 68
      %v3113 = vpop.permute.xlu0 %3112
      %3114 = vrot.lane.b32.xlu0 %v298, 68
      %v3115 = vpop.permute.xlu0 %3114
      %3116 = vrot.lane.b32.xlu0 %v299, 68
      %v3117 = vpop.permute.xlu0 %3116
      %3118 = vrot.lane.b32.xlu0 %v300, 68
      %v3119 = vpop.permute.xlu0 %3118
      %3120 = vrot.lane.b32.xlu0 %v301, 68
      %v3121 = vpop.permute.xlu0 %3120
      %3122 = vrot.lane.b32.xlu0 %v302, 68
      %v3123 = vpop.permute.xlu0 %3122
      %3124 = vrot.lane.b32.xlu0 %v303, 68
      %v3125 = vpop.permute.xlu0 %3124
      %vm3126 = vcmask 556032
      %v3127 = vsel %vm3126, %v3113, %v3115
      %v3128 = vsel %vm3126, %v3115, %v3117
      %v3129 = vsel %vm3126, %v3117, %v3119
      %v3130 = vsel %vm3126, %v3119, %v3121
      %v3131 = vsel %vm3126, %v3121, %v3123
      %v3132 = vsel %vm3126, %v3123, %v3125
      %v3141 = vsel %vm342, %v3110, 0
      %v3144 = vsel %vm342, %v3111, 0
      %3146 = vmatprep.subr.mxu0 0.0
      %3147 = vmatpush1.msra.mxu0 0.0
      %3148 = vmatprep.subr.mxu0 0.0
      %3149 = vmatpush1.msra.mxu0 0.0
      %3150 = vmatprep.subr.mxu0 0.0
      %3151 = vmatpush1.msra.mxu0 0.0
      %3152 = vmatprep.subr.mxu0 0.0
      %3153 = vmatpush1.msra.mxu0 0.0
      %3154 = vmatprep.subr.mxu0 0.0
      %3155 = vmatpush1.msra.mxu0 0.0
      %3156 = vmatprep.subr.mxu0 0.0
      %3157 = vmatpush1.msra.mxu0 0.0
      %3158 = vmatprep.subr.mxu0 0.0
      %3159 = vmatpush1.msra.mxu0 0.0
      %3160 = vmatprep.subr.mxu0 0.0
      %3161 = vmatpush1.msra.mxu0 0.0
      %3162 = vmatprep.subr.mxu0 0.0
      %3163 = vmatpush1.msra.mxu0 0.0
      %3164 = vmatprep.subr.mxu0 0.0
      %3165 = vmatpush1.msra.mxu0 0.0
      %3166 = vmatprep.subr.mxu0 0.0
      %3167 = vmatpush1.msra.mxu0 0.0
      %3168 = vmatprep.subr.mxu0 0.0
      %3169 = vmatpush1.msra.mxu0 0.0
      %3170 = vmatprep.subr.mxu0 0.0
      %3171 = vmatpush1.msra.mxu0 0.0
      %3172 = vmatprep.subr.mxu0 0.0
      %3173 = vmatpush1.msra.mxu0 0.0
      %3174 = vmatprep.subr.mxu0 0.0
      %3175 = vmatpush1.msra.mxu0 0.0
      %3176 = vmatprep.subr.mxu0 %v3128
      %3177 = vmatpush1.msra.mxu0 %v3127
      %3178 = vmatprep.subr.mxu0 0.0
      %3179 = vmatpush2.msra.mxu0 0.0
      %3180 = vmatprep.subr.mxu0 0.0
      %3181 = vmatpush2.msra.mxu0 0.0
      %3182 = vmatprep.subr.mxu0 0.0
      %3183 = vmatpush2.msra.mxu0 0.0
      %3184 = vmatprep.subr.mxu0 0.0
      %3185 = vmatpush2.msra.mxu0 0.0
      %3186 = vmatprep.subr.mxu0 0.0
      %3187 = vmatpush2.msra.mxu0 0.0
      %3188 = vmatprep.subr.mxu0 0.0
      %3189 = vmatpush2.msra.mxu0 0.0
      %3190 = vmatprep.subr.mxu0 0.0
      %3191 = vmatpush2.msra.mxu0 0.0
      %3192 = vmatprep.subr.mxu0 0.0
      %3193 = vmatpush2.msra.mxu0 0.0
      %3194 = vmatprep.subr.mxu0 0.0
      %3195 = vmatpush2.msra.mxu0 0.0
      %3196 = vmatprep.subr.mxu0 0.0
      %3197 = vmatpush2.msra.mxu0 0.0
      %3198 = vmatprep.subr.mxu0 0.0
      %3199 = vmatpush2.msra.mxu0 0.0
      %3200 = vmatprep.subr.mxu0 0.0
      %3201 = vmatpush2.msra.mxu0 0.0
      %3202 = vmatprep.subr.mxu0 0.0
      %3203 = vmatpush2.msra.mxu0 0.0
      %3204 = vmatprep.subr.mxu0 0.0
      %3205 = vmatpush2.msra.mxu0 0.0
      %3206 = vmatprep.subr.mxu0 0.0
      %3207 = vmatpush2.msra.mxu0 0.0
      %3208 = vmatprep.subr.mxu0 0.0
      %3209 = vmatpush2.msra.mxu0 0.0
      %3210 = vmatprep.mubr.f32.mxu0 0.0
      %3211 = vmatmul.mubr.f32.gmra.mxu0 %v3141
      %v3212 = vpop.f32.mrf.mxu0
      %v3213 = vadd.f32 0.0, %v3212
      %v3214 = vpop.f32.mrf.mxu0
      %v3215 = vadd.f32 0.0, %v3214
      %3216 = vmatprep.mubr.f32.mxu0 0.0
      %3217 = vmatmul.mubr.f32.gmra.mxu0 %v3144
      %v3218 = vpop.f32.mrf.mxu0
      %v3219 = vadd.f32 0.0, %v3218
      %v3220 = vpop.f32.mrf.mxu0
      %v3221 = vadd.f32 0.0, %v3220
      %3222 = vdwg.mxu0
      %3223 = vmatprep.subr.mxu0 0.0
      %3224 = vmatpush1.msra.mxu0 0.0
      %3225 = vmatprep.subr.mxu0 0.0
      %3226 = vmatpush1.msra.mxu0 0.0
      %3227 = vmatprep.subr.mxu0 0.0
      %3228 = vmatpush1.msra.mxu0 0.0
      %3229 = vmatprep.subr.mxu0 0.0
      %3230 = vmatpush1.msra.mxu0 0.0
      %3231 = vmatprep.subr.mxu0 0.0
      %3232 = vmatpush1.msra.mxu0 0.0
      %3233 = vmatprep.subr.mxu0 0.0
      %3234 = vmatpush1.msra.mxu0 0.0
      %3235 = vmatprep.subr.mxu0 0.0
      %3236 = vmatpush1.msra.mxu0 0.0
      %3237 = vmatprep.subr.mxu0 0.0
      %3238 = vmatpush1.msra.mxu0 0.0
      %3239 = vmatprep.subr.mxu0 0.0
      %3240 = vmatpush1.msra.mxu0 0.0
      %3241 = vmatprep.subr.mxu0 0.0
      %3242 = vmatpush1.msra.mxu0 0.0
      %3243 = vmatprep.subr.mxu0 0.0
      %3244 = vmatpush1.msra.mxu0 0.0
      %3245 = vmatprep.subr.mxu0 0.0
      %3246 = vmatpush1.msra.mxu0 0.0
      %3247 = vmatprep.subr.mxu0 0.0
      %3248 = vmatpush1.msra.mxu0 0.0
      %3249 = vmatprep.subr.mxu0 0.0
      %3250 = vmatpush1.msra.mxu0 0.0
      %3251 = vmatprep.subr.mxu0 0.0
      %3252 = vmatpush1.msra.mxu0 0.0
      %3253 = vmatprep.subr.mxu0 %v3130
      %3254 = vmatpush1.msra.mxu0 %v3129
      %3255 = vmatprep.subr.mxu0 0.0
      %3256 = vmatpush2.msra.mxu0 0.0
      %3257 = vmatprep.subr.mxu0 0.0
      %3258 = vmatpush2.msra.mxu0 0.0
      %3259 = vmatprep.subr.mxu0 0.0
      %3260 = vmatpush2.msra.mxu0 0.0
      %3261 = vmatprep.subr.mxu0 0.0
      %3262 = vmatpush2.msra.mxu0 0.0
      %3263 = vmatprep.subr.mxu0 0.0
      %3264 = vmatpush2.msra.mxu0 0.0
      %3265 = vmatprep.subr.mxu0 0.0
      %3266 = vmatpush2.msra.mxu0 0.0
      %3267 = vmatprep.subr.mxu0 0.0
      %3268 = vmatpush2.msra.mxu0 0.0
      %3269 = vmatprep.subr.mxu0 0.0
      %3270 = vmatpush2.msra.mxu0 0.0
      %3271 = vmatprep.subr.mxu0 0.0
      %3272 = vmatpush2.msra.mxu0 0.0
      %3273 = vmatprep.subr.mxu0 0.0
      %3274 = vmatpush2.msra.mxu0 0.0
      %3275 = vmatprep.subr.mxu0 0.0
      %3276 = vmatpush2.msra.mxu0 0.0
      %3277 = vmatprep.subr.mxu0 0.0
      %3278 = vmatpush2.msra.mxu0 0.0
      %3279 = vmatprep.subr.mxu0 0.0
      %3280 = vmatpush2.msra.mxu0 0.0
      %3281 = vmatprep.subr.mxu0 0.0
      %3282 = vmatpush2.msra.mxu0 0.0
      %3283 = vmatprep.subr.mxu0 0.0
      %3284 = vmatpush2.msra.mxu0 0.0
      %3285 = vmatprep.subr.mxu0 0.0
      %3286 = vmatpush2.msra.mxu0 0.0
      %3287 = vmatprep.mubr.f32.mxu0 0.0
      %3288 = vmatmul.mubr.f32.gmra.mxu0 %v3141
      %v3289 = vpop.f32.mrf.mxu0
      %v3290 = vadd.f32 0.0, %v3289
      %v3291 = vpop.f32.mrf.mxu0
      %v3292 = vadd.f32 0.0, %v3291
      %3293 = vmatprep.mubr.f32.mxu0 0.0
      %3294 = vmatmul.mubr.f32.gmra.mxu0 %v3144
      %v3295 = vpop.f32.mrf.mxu0
      %v3296 = vadd.f32 0.0, %v3295
      %v3297 = vpop.f32.mrf.mxu0
      %v3298 = vadd.f32 0.0, %v3297
      %3299 = vdwg.mxu0
      %3300 = vmatprep.subr.mxu0 0.0
      %3301 = vmatpush1.msra.mxu0 0.0
      %3302 = vmatprep.subr.mxu0 0.0
      %3303 = vmatpush1.msra.mxu0 0.0
      %3304 = vmatprep.subr.mxu0 0.0
      %3305 = vmatpush1.msra.mxu0 0.0
      %3306 = vmatprep.subr.mxu0 0.0
      %3307 = vmatpush1.msra.mxu0 0.0
      %3308 = vmatprep.subr.mxu0 0.0
      %3309 = vmatpush1.msra.mxu0 0.0
      %3310 = vmatprep.subr.mxu0 0.0
      %3311 = vmatpush1.msra.mxu0 0.0
      %3312 = vmatprep.subr.mxu0 0.0
      %3313 = vmatpush1.msra.mxu0 0.0
      %3314 = vmatprep.subr.mxu0 0.0
      %3315 = vmatpush1.msra.mxu0 0.0
      %3316 = vmatprep.subr.mxu0 0.0
      %3317 = vmatpush1.msra.mxu0 0.0
      %3318 = vmatprep.subr.mxu0 0.0
      %3319 = vmatpush1.msra.mxu0 0.0
      %3320 = vmatprep.subr.mxu0 0.0
      %3321 = vmatpush1.msra.mxu0 0.0
      %3322 = vmatprep.subr.mxu0 0.0
      %3323 = vmatpush1.msra.mxu0 0.0
      %3324 = vmatprep.subr.mxu0 0.0
      %3325 = vmatpush1.msra.mxu0 0.0
      %3326 = vmatprep.subr.mxu0 0.0
      %3327 = vmatpush1.msra.mxu0 0.0
      %3328 = vmatprep.subr.mxu0 0.0
      %3329 = vmatpush1.msra.mxu0 0.0
      %3330 = vmatprep.subr.mxu0 %v3132
      %3331 = vmatpush1.msra.mxu0 %v3131
      %3332 = vmatprep.subr.mxu0 0.0
      %3333 = vmatpush2.msra.mxu0 0.0
      %3334 = vmatprep.subr.mxu0 0.0
      %3335 = vmatpush2.msra.mxu0 0.0
      %3336 = vmatprep.subr.mxu0 0.0
      %3337 = vmatpush2.msra.mxu0 0.0
      %3338 = vmatprep.subr.mxu0 0.0
      %3339 = vmatpush2.msra.mxu0 0.0
      %3340 = vmatprep.subr.mxu0 0.0
      %3341 = vmatpush2.msra.mxu0 0.0
      %3342 = vmatprep.subr.mxu0 0.0
      %3343 = vmatpush2.msra.mxu0 0.0
      %3344 = vmatprep.subr.mxu0 0.0
      %3345 = vmatpush2.msra.mxu0 0.0
      %3346 = vmatprep.subr.mxu0 0.0
      %3347 = vmatpush2.msra.mxu0 0.0
      %3348 = vmatprep.subr.mxu0 0.0
      %3349 = vmatpush2.msra.mxu0 0.0
      %3350 = vmatprep.subr.mxu0 0.0
      %3351 = vmatpush2.msra.mxu0 0.0
      %3352 = vmatprep.subr.mxu0 0.0
      %3353 = vmatpush2.msra.mxu0 0.0
      %3354 = vmatprep.subr.mxu0 0.0
      %3355 = vmatpush2.msra.mxu0 0.0
      %3356 = vmatprep.subr.mxu0 0.0
      %3357 = vmatpush2.msra.mxu0 0.0
      %3358 = vmatprep.subr.mxu0 0.0
      %3359 = vmatpush2.msra.mxu0 0.0
      %3360 = vmatprep.subr.mxu0 0.0
      %3361 = vmatpush2.msra.mxu0 0.0
      %3362 = vmatprep.subr.mxu0 0.0
      %3363 = vmatpush2.msra.mxu0 0.0
      %3364 = vmatprep.mubr.f32.mxu0 0.0
      %3365 = vmatmul.mubr.f32.gmra.mxu0 %v3141
      %v3366 = vpop.f32.mrf.mxu0
      %v3367 = vadd.f32 0.0, %v3366
      %v3368 = vpop.f32.mrf.mxu0
      %v3369 = vadd.f32 0.0, %v3368
      %3370 = vmatprep.mubr.f32.mxu0 0.0
      %3371 = vmatmul.mubr.f32.gmra.mxu0 %v3144
      %v3372 = vpop.f32.mrf.mxu0
      %v3373 = vadd.f32 0.0, %v3372
      %v3374 = vpop.f32.mrf.mxu0
      %v3375 = vadd.f32 0.0, %v3374
      %3376 = vdwg.mxu0
      %3377 = vmatprep.subr.mxu0 0.0
      %3378 = vmatpush1.msra.mxu0 0.0
      %3379 = vmatprep.subr.mxu0 0.0
      %3380 = vmatpush1.msra.mxu0 0.0
      %3381 = vmatprep.subr.mxu0 0.0
      %3382 = vmatpush1.msra.mxu0 0.0
      %3383 = vmatprep.subr.mxu0 0.0
      %3384 = vmatpush1.msra.mxu0 0.0
      %3385 = vmatprep.subr.mxu0 0.0
      %3386 = vmatpush1.msra.mxu0 0.0
      %3387 = vmatprep.subr.mxu0 0.0
      %3388 = vmatpush1.msra.mxu0 0.0
      %3389 = vmatprep.subr.mxu0 0.0
      %3390 = vmatpush1.msra.mxu0 0.0
      %3391 = vmatprep.subr.mxu0 0.0
      %3392 = vmatpush1.msra.mxu0 0.0
      %3393 = vmatprep.subr.mxu0 0.0
      %3394 = vmatpush1.msra.mxu0 0.0
      %3395 = vmatprep.subr.mxu0 0.0
      %3396 = vmatpush1.msra.mxu0 0.0
      %3397 = vmatprep.subr.mxu0 0.0
      %3398 = vmatpush1.msra.mxu0 0.0
      %3399 = vmatprep.subr.mxu0 0.0
      %3400 = vmatpush1.msra.mxu0 0.0
      %3401 = vmatprep.subr.mxu0 0.0
      %3402 = vmatpush1.msra.mxu0 0.0
      %3403 = vmatprep.subr.mxu0 0.0
      %3404 = vmatpush1.msra.mxu0 0.0
      %3405 = vmatprep.subr.mxu0 0.0
      %3406 = vmatpush1.msra.mxu0 0.0
      %3407 = vmatprep.subr.mxu0 0.0
      %3408 = vmatpush1.msra.mxu0 %v3125
      %3409 = vmatprep.subr.mxu0 0.0
      %3410 = vmatpush2.msra.mxu0 0.0
      %3411 = vmatprep.subr.mxu0 0.0
      %3412 = vmatpush2.msra.mxu0 0.0
      %3413 = vmatprep.subr.mxu0 0.0
      %3414 = vmatpush2.msra.mxu0 0.0
      %3415 = vmatprep.subr.mxu0 0.0
      %3416 = vmatpush2.msra.mxu0 0.0
      %3417 = vmatprep.subr.mxu0 0.0
      %3418 = vmatpush2.msra.mxu0 0.0
      %3419 = vmatprep.subr.mxu0 0.0
      %3420 = vmatpush2.msra.mxu0 0.0
      %3421 = vmatprep.subr.mxu0 0.0
      %3422 = vmatpush2.msra.mxu0 0.0
      %3423 = vmatprep.subr.mxu0 0.0
      %3424 = vmatpush2.msra.mxu0 0.0
      %3425 = vmatprep.subr.mxu0 0.0
      %3426 = vmatpush2.msra.mxu0 0.0
      %3427 = vmatprep.subr.mxu0 0.0
      %3428 = vmatpush2.msra.mxu0 0.0
      %3429 = vmatprep.subr.mxu0 0.0
      %3430 = vmatpush2.msra.mxu0 0.0
      %3431 = vmatprep.subr.mxu0 0.0
      %3432 = vmatpush2.msra.mxu0 0.0
      %3433 = vmatprep.subr.mxu0 0.0
      %3434 = vmatpush2.msra.mxu0 0.0
      %3435 = vmatprep.subr.mxu0 0.0
      %3436 = vmatpush2.msra.mxu0 0.0
      %3437 = vmatprep.subr.mxu0 0.0
      %3438 = vmatpush2.msra.mxu0 0.0
      %3439 = vmatprep.subr.mxu0 0.0
      %3440 = vmatpush2.msra.mxu0 0.0
      %3441 = vmatprep.mubr.f32.mxu0 0.0
      %3442 = vmatmul.mubr.f32.gmra.mxu0 %v3141
      %v3443 = vpop.f32.mrf.mxu0
      %v3444 = vadd.f32 0.0, %v3443
      %v3445 = vpop.f32.mrf.mxu0
      %3446 = vmatprep.mubr.f32.mxu0 0.0
      %3447 = vmatmul.mubr.f32.gmra.mxu0 %v3144
      %v3448 = vpop.f32.mrf.mxu0
      %v3449 = vadd.f32 0.0, %v3448
      %v3450 = vpop.f32.mrf.mxu0
      %3451 = vdwg.mxu0
      %v3452 = vadd.f32 %v3095, %v3213
      %v3453 = vadd.f32 %v3096, %v3215
      %v3454 = vadd.f32 %v3097, %v3290
      %v3455 = vadd.f32 %v3098, %v3292
      %v3456 = vadd.f32 %v3099, %v3367
      %v3457 = vadd.f32 %v3100, %v3369
      %v3458 = vadd.f32 %v3101, %v3444
      %v3459 = vadd.f32 %v3102, %v3219
      %v3460 = vadd.f32 %v3103, %v3221
      %v3461 = vadd.f32 %v3104, %v3296
      %v3462 = vadd.f32 %v3105, %v3298
      %v3463 = vadd.f32 %v3106, %v3373
      %v3464 = vadd.f32 %v3107, %v3375
      %v3465 = vadd.f32 %v3108, %v3449
      %v3466 = vld [vmem:[%s2] sm:$0xff]
      %v3467 = vld [vmem:[%s2 + $0x8] sm:$0xff]
      %3469 = vset.pattern.permute.xlu0 0
      %3470 = vperm.xlu0 %3469, %v3466
      %v3471 = vpop.permute.xlu0 %3470
      %3474 = vset.pattern.permute.xlu0 0
      %3475 = vperm.xlu0 %3474, %v3467
      %v3476 = vpop.permute.xlu0 %3475
      %v3478 = vadd.f32 %v3452, %v3471
      %v3479 = vadd.f32 %v3453, %v3471
      %v3480 = vadd.f32 %v3454, %v3471
      %v3481 = vadd.f32 %v3455, %v3471
      %v3482 = vadd.f32 %v3456, %v3471
      %v3483 = vadd.f32 %v3457, %v3471
      %v3484 = vadd.f32 %v3458, %v3471
      %v3485 = vadd.f32 %v3459, %v3476
      %v3486 = vadd.f32 %v3460, %v3476
      %v3487 = vadd.f32 %v3461, %v3476
      %v3488 = vadd.f32 %v3462, %v3476
      %v3489 = vadd.f32 %v3463, %v3476
      %v3490 = vadd.f32 %v3464, %v3476
      %v3491 = vadd.f32 %v3465, %v3476
      %v3492 = vlaneseq
      %v3493 = vand.u32 %v3492, 127
      %v3494 = vadd.s32 %v3493, 128
      %v3495 = vadd.s32 %v3493, 256
      %v3496 = vadd.s32 %v3493, 384
      %v3497 = vadd.s32 %v3493, 512
      %v3498 = vadd.s32 %v3493, 640
      %v3499 = vadd.s32 %v3493, 768
      %vm3500 = vcmp.lt.s32.totalorder %v3493, 0
      %v3501 = vsub.s32 0, %v3493
      %v3502 = vsel %vm3500, %v3501, %v3493
      %v3503 = vmul.u32.u64.compose %v3502, 2369637129
      %v3504 = vextract.low.u32 %v3503
      %v3505 = vextract.high.u32 %v3503
      %v3506 = vshrl.u32 %v3505, 4
      %v3507 = vmul.u32 %v3506, 29
      %v3508 = vsub.s32 %v3502, %v3507
      %v3509 = vsub.s32 0, %v3508
      %v3510 = vsel %vm3500, %v3509, %v3508
      %vm3511 = vcmp.lt.s32.totalorder %v3494, 0
      %v3512 = vsub.s32 0, %v3494
      %v3513 = vsel %vm3511, %v3512, %v3494
      %v3514 = vmul.u32.u64.compose %v3513, 2369637129
      %v3515 = vextract.low.u32 %v3514
      %v3516 = vextract.high.u32 %v3514
      %v3517 = vshrl.u32 %v3516, 4
      %v3518 = vmul.u32 %v3517, 29
      %v3519 = vsub.s32 %v3513, %v3518
      %v3520 = vsub.s32 0, %v3519
      %v3521 = vsel %vm3511, %v3520, %v3519
      %vm3522 = vcmp.lt.s32.totalorder %v3495, 0
      %v3523 = vsub.s32 0, %v3495
      %v3524 = vsel %vm3522, %v3523, %v3495
      %v3525 = vmul.u32.u64.compose %v3524, 2369637129
      %v3526 = vextract.low.u32 %v3525
      %v3527 = vextract.high.u32 %v3525
      %v3528 = vshrl.u32 %v3527, 4
      %v3529 = vmul.u32 %v3528, 29
      %v3530 = vsub.s32 %v3524, %v3529
      %v3531 = vsub.s32 0, %v3530
      %v3532 = vsel %vm3522, %v3531, %v3530
      %vm3533 = vcmp.lt.s32.totalorder %v3496, 0
      %v3534 = vsub.s32 0, %v3496
      %v3535 = vsel %vm3533, %v3534, %v3496
      %v3536 = vmul.u32.u64.compose %v3535, 2369637129
      %v3537 = vextract.low.u32 %v3536
      %v3538 = vextract.high.u32 %v3536
      %v3539 = vshrl.u32 %v3538, 4
      %v3540 = vmul.u32 %v3539, 29
      %v3541 = vsub.s32 %v3535, %v3540
      %v3542 = vsub.s32 0, %v3541
      %v3543 = vsel %vm3533, %v3542, %v3541
      %vm3544 = vcmp.lt.s32.totalorder %v3497, 0
      %v3545 = vsub.s32 0, %v3497
      %v3546 = vsel %vm3544, %v3545, %v3497
      %v3547 = vmul.u32.u64.compose %v3546, 2369637129
      %v3548 = vextract.low.u32 %v3547
      %v3549 = vextract.high.u32 %v3547
      %v3550 = vshrl.u32 %v3549, 4
      %v3551 = vmul.u32 %v3550, 29
      %v3552 = vsub.s32 %v3546, %v3551
      %v3553 = vsub.s32 0, %v3552
      %v3554 = vsel %vm3544, %v3553, %v3552
      %vm3555 = vcmp.lt.s32.totalorder %v3498, 0
      %v3556 = vsub.s32 0, %v3498
      %v3557 = vsel %vm3555, %v3556, %v3498
      %v3558 = vmul.u32.u64.compose %v3557, 2369637129
      %v3559 = vextract.low.u32 %v3558
      %v3560 = vextract.high.u32 %v3558
      %v3561 = vshrl.u32 %v3560, 4
      %v3562 = vmul.u32 %v3561, 29
      %v3563 = vsub.s32 %v3557, %v3562
      %v3564 = vsub.s32 0, %v3563
      %v3565 = vsel %vm3555, %v3564, %v3563
      %vm3566 = vcmp.lt.s32.totalorder %v3499, 0
      %v3567 = vsub.s32 0, %v3499
      %v3568 = vsel %vm3566, %v3567, %v3499
      %v3569 = vmul.u32.u64.compose %v3568, 2369637129
      %v3570 = vextract.low.u32 %v3569
      %v3571 = vextract.high.u32 %v3569
      %v3572 = vshrl.u32 %v3571, 4
      %v3573 = vmul.u32 %v3572, 29
      %v3574 = vsub.s32 %v3568, %v3573
      %v3575 = vsub.s32 0, %v3574
      %v3576 = vsel %vm3566, %v3575, %v3574
      %vm3577 = vcmp.ne.s32.totalorder %v3510, 0
      %vm3578 = vcmp.ne.s32.totalorder %v3521, 0
      %vm3579 = vcmp.ne.s32.totalorder %v3532, 0
      %vm3580 = vcmp.ne.s32.totalorder %v3543, 0
      %vm3581 = vcmp.ne.s32.totalorder %v3554, 0
      %vm3582 = vcmp.ne.s32.totalorder %v3565, 0
      %vm3583 = vcmp.ne.s32.totalorder %v3576, 0
      %vm3584 = vcmp.lt.s32.totalorder %v3510, 0
      %vm3585 = vcmp.lt.s32.totalorder %v3521, 0
      %vm3586 = vcmp.lt.s32.totalorder %v3532, 0
      %vm3587 = vcmp.lt.s32.totalorder %v3543, 0
      %vm3588 = vcmp.lt.s32.totalorder %v3554, 0
      %vm3589 = vcmp.lt.s32.totalorder %v3565, 0
      %vm3590 = vcmp.lt.s32.totalorder %v3576, 0
      %vm3591 = vmand %vm3584, %vm3577
      %vm3592 = vmand %vm3585, %vm3578
      %vm3593 = vmand %vm3586, %vm3579
      %vm3594 = vmand %vm3587, %vm3580
      %vm3595 = vmand %vm3588, %vm3581
      %vm3596 = vmand %vm3589, %vm3582
      %vm3597 = vmand %vm3590, %vm3583
      %v3598 = vadd.s32 %v3510, 29
      %v3599 = vadd.s32 %v3521, 29
      %v3600 = vadd.s32 %v3532, 29
      %v3601 = vadd.s32 %v3543, 29
      %v3602 = vadd.s32 %v3554, 29
      %v3603 = vadd.s32 %v3565, 29
      %v3604 = vadd.s32 %v3576, 29
      %v3605 = vsel %vm3591, %v3598, %v3510
      %v3606 = vsel %vm3592, %v3599, %v3521
      %v3607 = vsel %vm3593, %v3600, %v3532
      %v3608 = vsel %vm3594, %v3601, %v3543
      %v3609 = vsel %vm3595, %v3602, %v3554
      %v3610 = vsel %vm3596, %v3603, %v3565
      %v3611 = vsel %vm3597, %v3604, %v3576
      %vm3612 = vcmp.lt.s32.totalorder %v3605, 27
      %vm3613 = vcmp.lt.s32.totalorder %v3606, 27
      %vm3614 = vcmp.lt.s32.totalorder %v3607, 27
      %vm3615 = vcmp.lt.s32.totalorder %v3608, 27
      %vm3616 = vcmp.lt.s32.totalorder %v3609, 27
      %vm3617 = vcmp.lt.s32.totalorder %v3610, 27
      %vm3618 = vcmp.lt.s32.totalorder %v3611, 27
      %v3619 = vsel %vm3612, 1, 0
      %v3620 = vsel %vm3613, 1, 0
      %v3621 = vsel %vm3614, 1, 0
      %v3622 = vsel %vm3615, 1, 0
      %v3623 = vsel %vm3616, 1, 0
      %v3624 = vsel %vm3617, 1, 0
      %v3625 = vsel %vm3618, 1, 0
      %vm3626 = vcmp.eq.s32.totalorder %v3619, 1
      %vm3627 = vcmp.eq.s32.totalorder %v3620, 1
      %vm3628 = vcmp.eq.s32.totalorder %v3621, 1
      %vm3629 = vcmp.eq.s32.totalorder %v3622, 1
      %vm3630 = vcmp.eq.s32.totalorder %v3623, 1
      %vm3631 = vcmp.eq.s32.totalorder %v3624, 1
      %vm3632 = vcmp.eq.s32.totalorder %v3625, 1
      %v3633 = vsel %vm3626, %v3478, 0.0
      %v3634 = vsel %vm3627, %v3479, 0.0
      %v3635 = vsel %vm3628, %v3480, 0.0
      %v3636 = vsel %vm3629, %v3481, 0.0
      %v3637 = vsel %vm3630, %v3482, 0.0
      %v3638 = vsel %vm3631, %v3483, 0.0
      %v3639 = vsel %vm3632, %v3484, 0.0
      %v3640 = vsel %vm3626, %v3485, 0.0
      %v3641 = vsel %vm3627, %v3486, 0.0
      %v3642 = vsel %vm3628, %v3487, 0.0
      %v3643 = vsel %vm3629, %v3488, 0.0
      %v3644 = vsel %vm3630, %v3489, 0.0
      %v3645 = vsel %vm3631, %v3490, 0.0
      %v3646 = vsel %vm3632, %v3491, 0.0
      %3661 = vrot.lane.b32.xlu0 %v3633, 30
      %v3662 = vpop.permute.xlu0 %3661
      %3663 = vrot.lane.b32.xlu0 %v3634, 30
      %v3664 = vpop.permute.xlu0 %3663
      %3665 = vrot.lane.b32.xlu0 %v3635, 30
      %v3666 = vpop.permute.xlu0 %3665
      %3667 = vrot.lane.b32.xlu0 %v3636, 30
      %v3668 = vpop.permute.xlu0 %3667
      %3669 = vrot.lane.b32.xlu0 %v3637, 30
      %v3670 = vpop.permute.xlu0 %3669
      %3671 = vrot.lane.b32.xlu0 %v3638, 30
      %v3672 = vpop.permute.xlu0 %3671
      %3673 = vrot.lane.b32.xlu0 %v3639, 30
      %v3674 = vpop.permute.xlu0 %3673
      %3675 = vrot.lane.b32.xlu0 %v3640, 30
      %v3676 = vpop.permute.xlu0 %3675
      %3677 = vrot.lane.b32.xlu0 %v3641, 30
      %v3678 = vpop.permute.xlu0 %3677
      %3679 = vrot.lane.b32.xlu0 %v3642, 30
      %v3680 = vpop.permute.xlu0 %3679
      %3681 = vrot.lane.b32.xlu0 %v3643, 30
      %v3682 = vpop.permute.xlu0 %3681
      %3683 = vrot.lane.b32.xlu0 %v3644, 30
      %v3684 = vpop.permute.xlu0 %3683
      %3685 = vrot.lane.b32.xlu0 %v3645, 30
      %v3686 = vpop.permute.xlu0 %3685
      %3687 = vrot.lane.b32.xlu0 %v3646, 30
      %v3688 = vpop.permute.xlu0 %3687
      %vm3689 = vcmask 244736
      %v3690 = vsel %vm3689, %v3662, %v3664
      %v3691 = vsel %vm3689, %v3664, %v3666
      %v3692 = vsel %vm3689, %v3666, %v3668
      %v3693 = vsel %vm3689, %v3668, %v3670
      %v3694 = vsel %vm3689, %v3670, %v3672
      %v3695 = vsel %vm3689, %v3672, %v3674
      %v3696 = vsel %vm3689, %v3676, %v3678
      %v3697 = vsel %vm3689, %v3678, %v3680
      %v3698 = vsel %vm3689, %v3680, %v3682
      %v3699 = vsel %vm3689, %v3682, %v3684
      %v3700 = vsel %vm3689, %v3684, %v3686
      %v3701 = vsel %vm3689, %v3686, %v3688
      %vm3716 = vcmask 1047792
      %3717 = vst.msk [vmem:[#allocation2] sm:$0xff] %vm3716, %v3662
      %3718 = vst [vmem:[#allocation2 + $0x8] sm:$0xff] %v3690
      %3719 = vst [vmem:[#allocation2 + $0x10] sm:$0xff] %v3691
      %3720 = vst [vmem:[#allocation2 + $0x18] sm:$0xff] %v3692
      %3721 = vst [vmem:[#allocation2 + $0x20] sm:$0xff] %v3693
      %3722 = vst [vmem:[#allocation2 + $0x28] sm:$0xff] %v3694
      %vm3723 = vcmask 367616
      %3724 = vst.msk [vmem:[#allocation2 + $0x30] sm:$0xff] %vm3723, %v3695
      %3725 = vst.msk [vmem:[#allocation2 + $0x38] sm:$0xff] %vm3716, %v3676
      %3726 = vst [vmem:[#allocation2 + $0x40] sm:$0xff] %v3696
      %3727 = vst [vmem:[#allocation2 + $0x48] sm:$0xff] %v3697
      %3728 = vst [vmem:[#allocation2 + $0x50] sm:$0xff] %v3698
      %3729 = vst [vmem:[#allocation2 + $0x58] sm:$0xff] %v3699
      %3730 = vst [vmem:[#allocation2 + $0x60] sm:$0xff] %v3700
      %3731 = vst.msk [vmem:[#allocation2 + $0x68] sm:$0xff] %vm3723, %v3701
      %v3732 = vlaneseq
      %v3733 = vshrl.u32 %v3732, 7
      %v3734 = vadd.s32 %v3733, 8
      %v3735 = vadd.s32 %v3733, 16
      %v3736 = vadd.s32 %v3733, 24
      %v3737 = vmul.u32 %v3493, 3
      %vm3738 = vcmp.eq.s32.totalorder %v3733, %v3737
      %vm3739 = vcmp.eq.s32.totalorder %v3734, %v3737
      %vm3740 = vcmp.eq.s32.totalorder %v3735, %v3737
      %vm3741 = vcmp.eq.s32.totalorder %v3736, %v3737
      %v3742 = vsel %vm3738, 0.11111111, 0.0
      %v3743 = vsel %vm3739, 0.11111111, 0.0
      %v3744 = vsel %vm3740, 0.11111111, 0.0
      %v3745 = vsel %vm3741, 0.11111111, 0.0
      %v3746 = vld [vmem:[#allocation2] sm:$0xff]
      %v3747 = vld [vmem:[#allocation2 + $0x38] sm:$0xff]
      %3750 = vrot.lane.b32.xlu0 %v3746, 99
      %v3751 = vpop.permute.xlu0 %3750
      %3752 = vrot.lane.b32.xlu0 %v3747, 99
      %v3753 = vpop.permute.xlu0 %3752
      %v3756 = vadd.f32 %v3746, %v3751
      %v3757 = vadd.f32 %v3747, %v3753
      %3758 = vrot.lane.b32.xlu0 %v3746, 70
      %v3759 = vpop.permute.xlu0 %3758
      %3760 = vrot.lane.b32.xlu0 %v3747, 70
      %v3761 = vpop.permute.xlu0 %3760
      %v3764 = vadd.f32 %v3756, %v3759
      %v3765 = vadd.f32 %v3757, %v3761
      %3768 = vrot.lane.b32.xlu0 %v3764, 127
      %v3769 = vpop.permute.xlu0 %3768
      %3770 = vrot.lane.b32.xlu0 %v3765, 127
      %v3771 = vpop.permute.xlu0 %3770
      %v3774 = vadd.f32 %v3764, %v3769
      %v3775 = vadd.f32 %v3765, %v3771
      %3776 = vrot.lane.b32.xlu0 %v3764, 126
      %v3777 = vpop.permute.xlu0 %3776
      %3778 = vrot.lane.b32.xlu0 %v3765, 126
      %v3779 = vpop.permute.xlu0 %3778
      %v3782 = vadd.f32 %v3774, %v3777
      %v3783 = vadd.f32 %v3775, %v3779
      %vm3784 = vcmask 220160
      %v3786 = vsel %vm3784, %v3782, 0
      %v3789 = vsel %vm3784, %v3783, 0
      %vm3791 = vcmask 1042432
      %v3793 = vsel %vm3791, %v3745, 0
      %3795 = vmatprep.subr.mxu0 0.0
      %3796 = vmatpush1.msra.mxu0 0.0
      %3797 = vmatprep.subr.mxu0 0.0
      %3798 = vmatpush1.msra.mxu0 0.0
      %3799 = vmatprep.subr.mxu0 0.0
      %3800 = vmatpush1.msra.mxu0 0.0
      %3801 = vmatprep.subr.mxu0 0.0
      %3802 = vmatpush1.msra.mxu0 0.0
      %3803 = vmatprep.subr.mxu0 0.0
      %3804 = vmatpush1.msra.mxu0 0.0
      %3805 = vmatprep.subr.mxu0 0.0
      %3806 = vmatpush1.msra.mxu0 0.0
      %3807 = vmatprep.subr.mxu0 0.0
      %3808 = vmatpush1.msra.mxu0 0.0
      %3809 = vmatprep.subr.mxu0 0.0
      %3810 = vmatpush1.msra.mxu0 0.0
      %3811 = vmatprep.subr.mxu0 0.0
      %3812 = vmatpush1.msra.mxu0 0.0
      %3813 = vmatprep.subr.mxu0 0.0
      %3814 = vmatpush1.msra.mxu0 0.0
      %3815 = vmatprep.subr.mxu0 0.0
      %3816 = vmatpush1.msra.mxu0 0.0
      %3817 = vmatprep.subr.mxu0 0.0
      %3818 = vmatpush1.msra.mxu0 0.0
      %3819 = vmatprep.subr.mxu0 0.0
      %3820 = vmatpush1.msra.mxu0 %v3793
      %3821 = vmatprep.subr.mxu0 0.0
      %3822 = vmatpush1.msra.mxu0 %v3744
      %3823 = vmatprep.subr.mxu0 0.0
      %3824 = vmatpush1.msra.mxu0 %v3743
      %3825 = vmatprep.subr.mxu0 0.0
      %3826 = vmatpush1.msra.mxu0 %v3742
      %3827 = vmatprep.subr.mxu0 0.0
      %3828 = vmatpush2.msra.mxu0 0.0
      %3829 = vmatprep.subr.mxu0 0.0
      %3830 = vmatpush2.msra.mxu0 0.0
      %3831 = vmatprep.subr.mxu0 0.0
      %3832 = vmatpush2.msra.mxu0 0.0
      %3833 = vmatprep.subr.mxu0 0.0
      %3834 = vmatpush2.msra.mxu0 0.0
      %3835 = vmatprep.subr.mxu0 0.0
      %3836 = vmatpush2.msra.mxu0 0.0
      %3837 = vmatprep.subr.mxu0 0.0
      %3838 = vmatpush2.msra.mxu0 0.0
      %3839 = vmatprep.subr.mxu0 0.0
      %3840 = vmatpush2.msra.mxu0 0.0
      %3841 = vmatprep.subr.mxu0 0.0
      %3842 = vmatpush2.msra.mxu0 0.0
      %3843 = vmatprep.subr.mxu0 0.0
      %3844 = vmatpush2.msra.mxu0 0.0
      %3845 = vmatprep.subr.mxu0 0.0
      %3846 = vmatpush2.msra.mxu0 0.0
      %3847 = vmatprep.subr.mxu0 0.0
      %3848 = vmatpush2.msra.mxu0 0.0
      %3849 = vmatprep.subr.mxu0 0.0
      %3850 = vmatpush2.msra.mxu0 0.0
      %3851 = vmatprep.subr.mxu0 0.0
      %3852 = vmatpush2.msra.mxu0 0.0
      %3853 = vmatprep.subr.mxu0 0.0
      %3854 = vmatpush2.msra.mxu0 0.0
      %3855 = vmatprep.subr.mxu0 0.0
      %3856 = vmatpush2.msra.mxu0 0.0
      %3857 = vmatprep.subr.mxu0 0.0
      %3858 = vmatpush2.msra.mxu0 0.0
      %3859 = vmatprep.mubr.f32.mxu0 0.0
      %3860 = vmatmul.mubr.f32.gmra.mxu0 %v3786
      %v3861 = vpop.f32.mrf.mxu0
      %v3862 = vadd.f32 0.0, %v3861
      %v3863 = vpop.f32.mrf.mxu0
      %3864 = vmatprep.mubr.f32.mxu0 0.0
      %3865 = vmatmul.mubr.f32.gmra.mxu0 %v3789
      %v3866 = vpop.f32.mrf.mxu0
      %v3867 = vadd.f32 0.0, %v3866
      %v3868 = vpop.f32.mrf.mxu0
      %3869 = vdwg.mxu0
      %v3870 = vmax.f32 %v3862, 0.0
      %v3871 = vmax.f32 %v3867, 0.0
      %3874 = vrot.lane.b32.xlu0 %v3870, 12
      %v3875 = vpop.permute.xlu0 %3874
      %3876 = vrot.lane.b32.xlu0 %v3871, 12
      %v3877 = vpop.permute.xlu0 %3876
      %vm3880 = vcmask 171104
      %3881 = vst.msk [vmem:[#allocation3] sm:$0xff] %vm3880, %v3875
      %3882 = vst.msk [vmem:[#allocation3 + $0x8] sm:$0xff] %vm3880, %v3877
      %v3883 = vld [vmem:[#allocation2] sm:$0xff]
      %v3884 = vld [vmem:[#allocation2 + $0x38] sm:$0xff]
      %v3885 = vld [vmem:[#allocation2 + $0x8] sm:$0xff]
      %v3886 = vld [vmem:[#allocation2 + $0x40] sm:$0xff]
      %3891 = vrot.lane.b32.xlu0 %v3883, 99
      %v3892 = vpop.permute.xlu0 %3891
      %3893 = vrot.lane.b32.xlu0 %v3885, 99
      %v3894 = vpop.permute.xlu0 %3893
      %3895 = vrot.lane.b32.xlu0 %v3884, 99
      %v3896 = vpop.permute.xlu0 %3895
      %3897 = vrot.lane.b32.xlu0 %v3886, 99
      %v3898 = vpop.permute.xlu0 %3897
      %v3899 = vsel %vm1341, %v3892, %v3894
      %v3900 = vsel %vm1341, %v3896, %v3898
      %v3903 = vadd.f32 %v3883, %v3899
      %v3904 = vadd.f32 %v3884, %v3900
      %3905 = vrot.lane.b32.xlu0 %v3885, 70
      %v3906 = vpop.permute.xlu0 %3905
      %3907 = vrot.lane.b32.xlu0 %v3886, 70
      %v3908 = vpop.permute.xlu0 %3907
      %v3911 = vadd.f32 %v3903, %v3906
      %v3912 = vadd.f32 %v3904, %v3908
      %3915 = vrot.lane.b32.xlu0 %v3911, 127
      %v3916 = vpop.permute.xlu0 %3915
      %3917 = vrot.lane.b32.xlu0 %v3912, 127
      %v3918 = vpop.permute.xlu0 %3917
      %v3921 = vadd.f32 %v3911, %v3916
      %v3922 = vadd.f32 %v3912, %v3918
      %3923 = vrot.lane.b32.xlu0 %v3911, 126
      %v3924 = vpop.permute.xlu0 %3923
      %3925 = vrot.lane.b32.xlu0 %v3912, 126
      %v3926 = vpop.permute.xlu0 %3925
      %v3929 = vadd.f32 %v3921, %v3924
      %v3930 = vadd.f32 %v3922, %v3926
      %3933 = vrot.lane.b32.xlu0 %v3929, 41
      %v3934 = vpop.permute.xlu0 %3933
      %3935 = vrot.lane.b32.xlu0 %v3930, 41
      %v3936 = vpop.permute.xlu0 %3935
      %v3937 = vsel %vm3784, %v3934, 0
      %v3939 = vsel %vm3784, %v3936, 0
      %3941 = vmatprep.subr.mxu0 0.0
      %3942 = vmatpush1.msra.mxu0 0.0
      %3943 = vmatprep.subr.mxu0 0.0
      %3944 = vmatpush1.msra.mxu0 0.0
      %3945 = vmatprep.subr.mxu0 0.0
      %3946 = vmatpush1.msra.mxu0 0.0
      %3947 = vmatprep.subr.mxu0 0.0
      %3948 = vmatpush1.msra.mxu0 0.0
      %3949 = vmatprep.subr.mxu0 0.0
      %3950 = vmatpush1.msra.mxu0 0.0
      %3951 = vmatprep.subr.mxu0 0.0
      %3952 = vmatpush1.msra.mxu0 0.0
      %3953 = vmatprep.subr.mxu0 0.0
      %3954 = vmatpush1.msra.mxu0 0.0
      %3955 = vmatprep.subr.mxu0 0.0
      %3956 = vmatpush1.msra.mxu0 0.0
      %3957 = vmatprep.subr.mxu0 0.0
      %3958 = vmatpush1.msra.mxu0 0.0
      %3959 = vmatprep.subr.mxu0 0.0
      %3960 = vmatpush1.msra.mxu0 0.0
      %3961 = vmatprep.subr.mxu0 0.0
      %3962 = vmatpush1.msra.mxu0 0.0
      %3963 = vmatprep.subr.mxu0 0.0
      %3964 = vmatpush1.msra.mxu0 0.0
      %3965 = vmatprep.subr.mxu0 0.0
      %3966 = vmatpush1.msra.mxu0 %v3793
      %3967 = vmatprep.subr.mxu0 0.0
      %3968 = vmatpush1.msra.mxu0 %v3744
      %3969 = vmatprep.subr.mxu0 0.0
      %3970 = vmatpush1.msra.mxu0 %v3743
      %3971 = vmatprep.subr.mxu0 0.0
      %3972 = vmatpush1.msra.mxu0 %v3742
      %3973 = vmatprep.subr.mxu0 0.0
      %3974 = vmatpush2.msra.mxu0 0.0
      %3975 = vmatprep.subr.mxu0 0.0
      %3976 = vmatpush2.msra.mxu0 0.0
      %3977 = vmatprep.subr.mxu0 0.0
      %3978 = vmatpush2.msra.mxu0 0.0
      %3979 = vmatprep.subr.mxu0 0.0
      %3980 = vmatpush2.msra.mxu0 0.0
      %3981 = vmatprep.subr.mxu0 0.0
      %3982 = vmatpush2.msra.mxu0 0.0
      %3983 = vmatprep.subr.mxu0 0.0
      %3984 = vmatpush2.msra.mxu0 0.0
      %3985 = vmatprep.subr.mxu0 0.0
      %3986 = vmatpush2.msra.mxu0 0.0
      %3987 = vmatprep.subr.mxu0 0.0
      %3988 = vmatpush2.msra.mxu0 0.0
      %3989 = vmatprep.subr.mxu0 0.0
      %3990 = vmatpush2.msra.mxu0 0.0
      %3991 = vmatprep.subr.mxu0 0.0
      %3992 = vmatpush2.msra.mxu0 0.0
      %3993 = vmatprep.subr.mxu0 0.0
      %3994 = vmatpush2.msra.mxu0 0.0
      %3995 = vmatprep.subr.mxu0 0.0
      %3996 = vmatpush2.msra.mxu0 0.0
      %3997 = vmatprep.subr.mxu0 0.0
      %3998 = vmatpush2.msra.mxu0 0.0
      %3999 = vmatprep.subr.mxu0 0.0
      %4000 = vmatpush2.msra.mxu0 0.0
      %4001 = vmatprep.subr.mxu0 0.0
      %4002 = vmatpush2.msra.mxu0 0.0
      %4003 = vmatprep.subr.mxu0 0.0
      %4004 = vmatpush2.msra.mxu0 0.0
      %4005 = vmatprep.mubr.f32.mxu0 0.0
      %4006 = vmatmul.mubr.f32.gmra.mxu0 %v3937
      %v4007 = vpop.f32.mrf.mxu0
      %v4008 = vadd.f32 0.0, %v4007
      %v4009 = vpop.f32.mrf.mxu0
      %4010 = vmatprep.mubr.f32.mxu0 0.0
      %4011 = vmatmul.mubr.f32.gmra.mxu0 %v3939
      %v4012 = vpop.f32.mrf.mxu0
      %v4013 = vadd.f32 0.0, %v4012
      %v4014 = vpop.f32.mrf.mxu0
      %4015 = vdwg.mxu0
      %v4016 = vmax.f32 %v4008, 0.0
      %v4017 = vmax.f32 %v4013, 0.0
      %4020 = vrot.lane.b32.xlu0 %v4016, 23
      %v4021 = vpop.permute.xlu0 %4020
      %4022 = vrot.lane.b32.xlu0 %v4017, 23
      %v4023 = vpop.permute.xlu0 %4022
      %vm4026 = vcmask 261304
      %4027 = vst.msk [vmem:[#allocation3] sm:$0xff] %vm4026, %v4021
      %4028 = vst.msk [vmem:[#allocation3 + $0x8] sm:$0xff] %vm4026, %v4023
      %v4029 = vld [vmem:[#allocation2 + $0x8] sm:$0xff]
      %v4030 = vld [vmem:[#allocation2 + $0x40] sm:$0xff]
      %v4031 = vld [vmem:[#allocation2 + $0x10] sm:$0xff]
      %v4032 = vld [vmem:[#allocation2 + $0x48] sm:$0xff]
      %4035 = vrot.lane.b32.xlu0 %v4029, 99
      %v4036 = vpop.permute.xlu0 %4035
      %4037 = vrot.lane.b32.xlu0 %v4030, 99
      %v4038 = vpop.permute.xlu0 %4037
      %v4041 = vadd.f32 %v4029, %v4036
      %v4042 = vadd.f32 %v4030, %v4038
      %4045 = vrot.lane.b32.xlu0 %v4029, 70
      %v4046 = vpop.permute.xlu0 %4045
      %4047 = vrot.lane.b32.xlu0 %v4031, 70
      %v4048 = vpop.permute.xlu0 %4047
      %4049 = vrot.lane.b32.xlu0 %v4030, 70
      %v4050 = vpop.permute.xlu0 %4049
      %4051 = vrot.lane.b32.xlu0 %v4032, 70
      %v4052 = vpop.permute.xlu0 %4051
      %v4053 = vsel %vm2412, %v4046, %v4048
      %v4054 = vsel %vm2412, %v4050, %v4052
      %v4057 = vadd.f32 %v4041, %v4053
      %v4058 = vadd.f32 %v4042, %v4054
      %4061 = vrot.lane.b32.xlu0 %v4057, 127
      %v4062 = vpop.permute.xlu0 %4061
      %4063 = vrot.lane.b32.xlu0 %v4058, 127
      %v4064 = vpop.permute.xlu0 %4063
      %v4067 = vadd.f32 %v4057, %v4062
      %v4068 = vadd.f32 %v4058, %v4064
      %4069 = vrot.lane.b32.xlu0 %v4057, 126
      %v4070 = vpop.permute.xlu0 %4069
      %4071 = vrot.lane.b32.xlu0 %v4058, 126
      %v4072 = vpop.permute.xlu0 %4071
      %v4075 = vadd.f32 %v4067, %v4070
      %v4076 = vadd.f32 %v4068, %v4072
      %4079 = vrot.lane.b32.xlu0 %v4075, 82
      %v4080 = vpop.permute.xlu0 %4079
      %4081 = vrot.lane.b32.xlu0 %v4076, 82
      %v4082 = vpop.permute.xlu0 %4081
      %v4083 = vsel %vm3784, %v4080, 0
      %v4085 = vsel %vm3784, %v4082, 0
      %4087 = vmatprep.subr.mxu0 0.0
      %4088 = vmatpush1.msra.mxu0 0.0
      %4089 = vmatprep.subr.mxu0 0.0
      %4090 = vmatpush1.msra.mxu0 0.0
      %4091 = vmatprep.subr.mxu0 0.0
      %4092 = vmatpush1.msra.mxu0 0.0
      %4093 = vmatprep.subr.mxu0 0.0
      %4094 = vmatpush1.msra.mxu0 0.0
      %4095 = vmatprep.subr.mxu0 0.0
      %4096 = vmatpush1.msra.mxu0 0.0
      %4097 = vmatprep.subr.mxu0 0.0
      %4098 = vmatpush1.msra.mxu0 0.0
      %4099 = vmatprep.subr.mxu0 0.0
      %4100 = vmatpush1.msra.mxu0 0.0
      %4101 = vmatprep.subr.mxu0 0.0
      %4102 = vmatpush1.msra.mxu0 0.0
      %4103 = vmatprep.subr.mxu0 0.0
      %4104 = vmatpush1.msra.mxu0 0.0
      %4105 = vmatprep.subr.mxu0 0.0
      %4106 = vmatpush1.msra.mxu0 0.0
      %4107 = vmatprep.subr.mxu0 0.0
      %4108 = vmatpush1.msra.mxu0 0.0
      %4109 = vmatprep.subr.mxu0 0.0
      %4110 = vmatpush1.msra.mxu0 0.0
      %4111 = vmatprep.subr.mxu0 0.0
      %4112 = vmatpush1.msra.mxu0 %v3793
      %4113 = vmatprep.subr.mxu0 0.0
      %4114 = vmatpush1.msra.mxu0 %v3744
      %4115 = vmatprep.subr.mxu0 0.0
      %4116 = vmatpush1.msra.mxu0 %v3743
      %4117 = vmatprep.subr.mxu0 0.0
      %4118 = vmatpush1.msra.mxu0 %v3742
      %4119 = vmatprep.subr.mxu0 0.0
      %4120 = vmatpush2.msra.mxu0 0.0
      %4121 = vmatprep.subr.mxu0 0.0
      %4122 = vmatpush2.msra.mxu0 0.0
      %4123 = vmatprep.subr.mxu0 0.0
      %4124 = vmatpush2.msra.mxu0 0.0
      %4125 = vmatprep.subr.mxu0 0.0
      %4126 = vmatpush2.msra.mxu0 0.0
      %4127 = vmatprep.subr.mxu0 0.0
      %4128 = vmatpush2.msra.mxu0 0.0
      %4129 = vmatprep.subr.mxu0 0.0
      %4130 = vmatpush2.msra.mxu0 0.0
      %4131 = vmatprep.subr.mxu0 0.0
      %4132 = vmatpush2.msra.mxu0 0.0
      %4133 = vmatprep.subr.mxu0 0.0
      %4134 = vmatpush2.msra.mxu0 0.0
      %4135 = vmatprep.subr.mxu0 0.0
      %4136 = vmatpush2.msra.mxu0 0.0
      %4137 = vmatprep.subr.mxu0 0.0
      %4138 = vmatpush2.msra.mxu0 0.0
      %4139 = vmatprep.subr.mxu0 0.0
      %4140 = vmatpush2.msra.mxu0 0.0
      %4141 = vmatprep.subr.mxu0 0.0
      %4142 = vmatpush2.msra.mxu0 0.0
      %4143 = vmatprep.subr.mxu0 0.0
      %4144 = vmatpush2.msra.mxu0 0.0
      %4145 = vmatprep.subr.mxu0 0.0
      %4146 = vmatpush2.msra.mxu0 0.0
      %4147 = vmatprep.subr.mxu0 0.0
      %4148 = vmatpush2.msra.mxu0 0.0
      %4149 = vmatprep.subr.mxu0 0.0
      %4150 = vmatpush2.msra.mxu0 0.0
      %4151 = vmatprep.mubr.f32.mxu0 0.0
      %4152 = vmatmul.mubr.f32.gmra.mxu0 %v4083
      %v4153 = vpop.f32.mrf.mxu0
      %v4154 = vadd.f32 0.0, %v4153
      %v4155 = vpop.f32.mrf.mxu0
      %4156 = vmatprep.mubr.f32.mxu0 0.0
      %4157 = vmatmul.mubr.f32.gmra.mxu0 %v4085
      %v4158 = vpop.f32.mrf.mxu0
      %v4159 = vadd.f32 0.0, %v4158
      %v4160 = vpop.f32.mrf.mxu0
      %4161 = vdwg.mxu0
      %v4162 = vmax.f32 %v4154, 0.0
      %v4163 = vmax.f32 %v4159, 0.0
      %4166 = vrot.lane.b32.xlu0 %v4162, 34
      %v4167 = vpop.permute.xlu0 %4166
      %4168 = vrot.lane.b32.xlu0 %v4163, 34
      %v4169 = vpop.permute.xlu0 %4168
      %vm4172 = vcmask 351504
      %4173 = vst.msk [vmem:[#allocation3] sm:$0xff] %vm4172, %v4167
      %4174 = vst.msk [vmem:[#allocation3 + $0x8] sm:$0xff] %vm4172, %v4169
      %v4175 = vld [vmem:[#allocation2 + $0x10] sm:$0xff]
      %v4176 = vld [vmem:[#allocation2 + $0x48] sm:$0xff]
      %4179 = vrot.lane.b32.xlu0 %v4175, 99
      %v4180 = vpop.permute.xlu0 %4179
      %4181 = vrot.lane.b32.xlu0 %v4176, 99
      %v4182 = vpop.permute.xlu0 %4181
      %v4185 = vadd.f32 %v4175, %v4180
      %v4186 = vadd.f32 %v4176, %v4182
      %4187 = vrot.lane.b32.xlu0 %v4175, 70
      %v4188 = vpop.permute.xlu0 %4187
      %4189 = vrot.lane.b32.xlu0 %v4176, 70
      %v4190 = vpop.permute.xlu0 %4189
      %v4193 = vadd.f32 %v4185, %v4188
      %v4194 = vadd.f32 %v4186, %v4190
      %4197 = vrot.lane.b32.xlu0 %v4193, 127
      %v4198 = vpop.permute.xlu0 %4197
      %4199 = vrot.lane.b32.xlu0 %v4194, 127
      %v4200 = vpop.permute.xlu0 %4199
      %v4203 = vadd.f32 %v4193, %v4198
      %v4204 = vadd.f32 %v4194, %v4200
      %4205 = vrot.lane.b32.xlu0 %v4193, 126
      %v4206 = vpop.permute.xlu0 %4205
      %4207 = vrot.lane.b32.xlu0 %v4194, 126
      %v4208 = vpop.permute.xlu0 %4207
      %v4211 = vadd.f32 %v4203, %v4206
      %v4212 = vadd.f32 %v4204, %v4208
      %4215 = vrot.lane.b32.xlu0 %v4211, 123
      %v4216 = vpop.permute.xlu0 %4215
      %4217 = vrot.lane.b32.xlu0 %v4212, 123
      %v4218 = vpop.permute.xlu0 %4217
      %v4219 = vsel %vm3784, %v4216, 0
      %v4221 = vsel %vm3784, %v4218, 0
      %4223 = vmatprep.subr.mxu0 0.0
      %4224 = vmatpush1.msra.mxu0 0.0
      %4225 = vmatprep.subr.mxu0 0.0
      %4226 = vmatpush1.msra.mxu0 0.0
      %4227 = vmatprep.subr.mxu0 0.0
      %4228 = vmatpush1.msra.mxu0 0.0
      %4229 = vmatprep.subr.mxu0 0.0
      %4230 = vmatpush1.msra.mxu0 0.0
      %4231 = vmatprep.subr.mxu0 0.0
      %4232 = vmatpush1.msra.mxu0 0.0
      %4233 = vmatprep.subr.mxu0 0.0
      %4234 = vmatpush1.msra.mxu0 0.0
      %4235 = vmatprep.subr.mxu0 0.0
      %4236 = vmatpush1.msra.mxu0 0.0
      %4237 = vmatprep.subr.mxu0 0.0
      %4238 = vmatpush1.msra.mxu0 0.0
      %4239 = vmatprep.subr.mxu0 0.0
      %4240 = vmatpush1.msra.mxu0 0.0
      %4241 = vmatprep.subr.mxu0 0.0
      %4242 = vmatpush1.msra.mxu0 0.0
      %4243 = vmatprep.subr.mxu0 0.0
      %4244 = vmatpush1.msra.mxu0 0.0
      %4245 = vmatprep.subr.mxu0 0.0
      %4246 = vmatpush1.msra.mxu0 0.0
      %4247 = vmatprep.subr.mxu0 0.0
      %4248 = vmatpush1.msra.mxu0 %v3793
      %4249 = vmatprep.subr.mxu0 0.0
      %4250 = vmatpush1.msra.mxu0 %v3744
      %4251 = vmatprep.subr.mxu0 0.0
      %4252 = vmatpush1.msra.mxu0 %v3743
      %4253 = vmatprep.subr.mxu0 0.0
      %4254 = vmatpush1.msra.mxu0 %v3742
      %4255 = vmatprep.subr.mxu0 0.0
      %4256 = vmatpush2.msra.mxu0 0.0
      %4257 = vmatprep.subr.mxu0 0.0
      %4258 = vmatpush2.msra.mxu0 0.0
      %4259 = vmatprep.subr.mxu0 0.0
      %4260 = vmatpush2.msra.mxu0 0.0
      %4261 = vmatprep.subr.mxu0 0.0
      %4262 = vmatpush2.msra.mxu0 0.0
      %4263 = vmatprep.subr.mxu0 0.0
      %4264 = vmatpush2.msra.mxu0 0.0
      %4265 = vmatprep.subr.mxu0 0.0
      %4266 = vmatpush2.msra.mxu0 0.0
      %4267 = vmatprep.subr.mxu0 0.0
      %4268 = vmatpush2.msra.mxu0 0.0
      %4269 = vmatprep.subr.mxu0 0.0
      %4270 = vmatpush2.msra.mxu0 0.0
      %4271 = vmatprep.subr.mxu0 0.0
      %4272 = vmatpush2.msra.mxu0 0.0
      %4273 = vmatprep.subr.mxu0 0.0
      %4274 = vmatpush2.msra.mxu0 0.0
      %4275 = vmatprep.subr.mxu0 0.0
      %4276 = vmatpush2.msra.mxu0 0.0
      %4277 = vmatprep.subr.mxu0 0.0
      %4278 = vmatpush2.msra.mxu0 0.0
      %4279 = vmatprep.subr.mxu0 0.0
      %4280 = vmatpush2.msra.mxu0 0.0
      %4281 = vmatprep.subr.mxu0 0.0
      %4282 = vmatpush2.msra.mxu0 0.0
      %4283 = vmatprep.subr.mxu0 0.0
      %4284 = vmatpush2.msra.mxu0 0.0
      %4285 = vmatprep.subr.mxu0 0.0
      %4286 = vmatpush2.msra.mxu0 0.0
      %4287 = vmatprep.mubr.f32.mxu0 0.0
      %4288 = vmatmul.mubr.f32.gmra.mxu0 %v4219
      %v4289 = vpop.f32.mrf.mxu0
      %v4290 = vadd.f32 0.0, %v4289
      %v4291 = vpop.f32.mrf.mxu0
      %4292 = vmatprep.mubr.f32.mxu0 0.0
      %4293 = vmatmul.mubr.f32.gmra.mxu0 %v4221
      %v4294 = vpop.f32.mrf.mxu0
      %v4295 = vadd.f32 0.0, %v4294
      %v4296 = vpop.f32.mrf.mxu0
      %4297 = vdwg.mxu0
      %v4298 = vmax.f32 %v4290, 0.0
      %v4299 = vmax.f32 %v4295, 0.0
      %4302 = vrot.lane.b32.xlu0 %v4298, 45
      %v4303 = vpop.permute.xlu0 %4302
      %4304 = vrot.lane.b32.xlu0 %v4299, 45
      %v4305 = vpop.permute.xlu0 %4304
      %vm4308 = vcmask 441704
      %4309 = vst.msk [vmem:[#allocation3] sm:$0xff] %vm4308, %v4303
      %4310 = vst.msk [vmem:[#allocation3 + $0x8] sm:$0xff] %vm4308, %v4305
      %v4311 = vld [vmem:[#allocation2 + $0x10] sm:$0xff]
      %v4312 = vld [vmem:[#allocation2 + $0x48] sm:$0xff]
      %v4313 = vld [vmem:[#allocation2 + $0x18] sm:$0xff]
      %v4314 = vld [vmem:[#allocation2 + $0x50] sm:$0xff]
      %4319 = vrot.lane.b32.xlu0 %v4311, 99
      %v4320 = vpop.permute.xlu0 %4319
      %4321 = vrot.lane.b32.xlu0 %v4313, 99
      %v4322 = vpop.permute.xlu0 %4321
      %4323 = vrot.lane.b32.xlu0 %v4312, 99
      %v4324 = vpop.permute.xlu0 %4323
      %4325 = vrot.lane.b32.xlu0 %v4314, 99
      %v4326 = vpop.permute.xlu0 %4325
      %v4327 = vsel %vm1341, %v4320, %v4322
      %v4328 = vsel %vm1341, %v4324, %v4326
      %v4331 = vadd.f32 %v4311, %v4327
      %v4332 = vadd.f32 %v4312, %v4328
      %4333 = vrot.lane.b32.xlu0 %v4313, 70
      %v4334 = vpop.permute.xlu0 %4333
      %4335 = vrot.lane.b32.xlu0 %v4314, 70
      %v4336 = vpop.permute.xlu0 %4335
      %v4339 = vadd.f32 %v4331, %v4334
      %v4340 = vadd.f32 %v4332, %v4336
      %4343 = vrot.lane.b32.xlu0 %v4339, 127
      %v4344 = vpop.permute.xlu0 %4343
      %4345 = vrot.lane.b32.xlu0 %v4340, 127
      %v4346 = vpop.permute.xlu0 %4345
      %v4349 = vadd.f32 %v4339, %v4344
      %v4350 = vadd.f32 %v4340, %v4346
      %4351 = vrot.lane.b32.xlu0 %v4339, 126
      %v4352 = vpop.permute.xlu0 %4351
      %4353 = vrot.lane.b32.xlu0 %v4340, 126
      %v4354 = vpop.permute.xlu0 %4353
      %v4357 = vadd.f32 %v4349, %v4352
      %v4358 = vadd.f32 %v4350, %v4354
      %4361 = vrot.lane.b32.xlu0 %v4357, 36
      %v4362 = vpop.permute.xlu0 %4361
      %4363 = vrot.lane.b32.xlu0 %v4358, 36
      %v4364 = vpop.permute.xlu0 %4363
      %v4365 = vsel %vm3784, %v4362, 0
      %v4367 = vsel %vm3784, %v4364, 0
      %4369 = vmatprep.subr.mxu0 0.0
      %4370 = vmatpush1.msra.mxu0 0.0
      %4371 = vmatprep.subr.mxu0 0.0
      %4372 = vmatpush1.msra.mxu0 0.0
      %4373 = vmatprep.subr.mxu0 0.0
      %4374 = vmatpush1.msra.mxu0 0.0
      %4375 = vmatprep.subr.mxu0 0.0
      %4376 = vmatpush1.msra.mxu0 0.0
      %4377 = vmatprep.subr.mxu0 0.0
      %4378 = vmatpush1.msra.mxu0 0.0
      %4379 = vmatprep.subr.mxu0 0.0
      %4380 = vmatpush1.msra.mxu0 0.0
      %4381 = vmatprep.subr.mxu0 0.0
      %4382 = vmatpush1.msra.mxu0 0.0
      %4383 = vmatprep.subr.mxu0 0.0
      %4384 = vmatpush1.msra.mxu0 0.0
      %4385 = vmatprep.subr.mxu0 0.0
      %4386 = vmatpush1.msra.mxu0 0.0
      %4387 = vmatprep.subr.mxu0 0.0
      %4388 = vmatpush1.msra.mxu0 0.0
      %4389 = vmatprep.subr.mxu0 0.0
      %4390 = vmatpush1.msra.mxu0 0.0
      %4391 = vmatprep.subr.mxu0 0.0
      %4392 = vmatpush1.msra.mxu0 0.0
      %4393 = vmatprep.subr.mxu0 0.0
      %4394 = vmatpush1.msra.mxu0 %v3793
      %4395 = vmatprep.subr.mxu0 0.0
      %4396 = vmatpush1.msra.mxu0 %v3744
      %4397 = vmatprep.subr.mxu0 0.0
      %4398 = vmatpush1.msra.mxu0 %v3743
      %4399 = vmatprep.subr.mxu0 0.0
      %4400 = vmatpush1.msra.mxu0 %v3742
      %4401 = vmatprep.subr.mxu0 0.0
      %4402 = vmatpush2.msra.mxu0 0.0
      %4403 = vmatprep.subr.mxu0 0.0
      %4404 = vmatpush2.msra.mxu0 0.0
      %4405 = vmatprep.subr.mxu0 0.0
      %4406 = vmatpush2.msra.mxu0 0.0
      %4407 = vmatprep.subr.mxu0 0.0
      %4408 = vmatpush2.msra.mxu0 0.0
      %4409 = vmatprep.subr.mxu0 0.0
      %4410 = vmatpush2.msra.mxu0 0.0
      %4411 = vmatprep.subr.mxu0 0.0
      %4412 = vmatpush2.msra.mxu0 0.0
      %4413 = vmatprep.subr.mxu0 0.0
      %4414 = vmatpush2.msra.mxu0 0.0
      %4415 = vmatprep.subr.mxu0 0.0
      %4416 = vmatpush2.msra.mxu0 0.0
      %4417 = vmatprep.subr.mxu0 0.0
      %4418 = vmatpush2.msra.mxu0 0.0
      %4419 = vmatprep.subr.mxu0 0.0
      %4420 = vmatpush2.msra.mxu0 0.0
      %4421 = vmatprep.subr.mxu0 0.0
      %4422 = vmatpush2.msra.mxu0 0.0
      %4423 = vmatprep.subr.mxu0 0.0
      %4424 = vmatpush2.msra.mxu0 0.0
      %4425 = vmatprep.subr.mxu0 0.0
      %4426 = vmatpush2.msra.mxu0 0.0
      %4427 = vmatprep.subr.mxu0 0.0
      %4428 = vmatpush2.msra.mxu0 0.0
      %4429 = vmatprep.subr.mxu0 0.0
      %4430 = vmatpush2.msra.mxu0 0.0
      %4431 = vmatprep.subr.mxu0 0.0
      %4432 = vmatpush2.msra.mxu0 0.0
      %4433 = vmatprep.mubr.f32.mxu0 0.0
      %4434 = vmatmul.mubr.f32.gmra.mxu0 %v4365
      %v4435 = vpop.f32.mrf.mxu0
      %v4436 = vadd.f32 0.0, %v4435
      %v4437 = vpop.f32.mrf.mxu0
      %4438 = vmatprep.mubr.f32.mxu0 0.0
      %4439 = vmatmul.mubr.f32.gmra.mxu0 %v4367
      %v4440 = vpop.f32.mrf.mxu0
      %v4441 = vadd.f32 0.0, %v4440
      %v4442 = vpop.f32.mrf.mxu0
      %4443 = vdwg.mxu0
      %v4444 = vmax.f32 %v4436, 0.0
      %v4445 = vmax.f32 %v4441, 0.0
      %4448 = vrot.lane.b32.xlu0 %v4444, 56
      %v4449 = vpop.permute.xlu0 %4448
      %4450 = vrot.lane.b32.xlu0 %v4445, 56
      %v4451 = vpop.permute.xlu0 %4450
      %vm4454 = vcmask 531904
      %4455 = vst.msk [vmem:[#allocation3] sm:$0xff] %vm4454, %v4449
      %4456 = vst.msk [vmem:[#allocation3 + $0x8] sm:$0xff] %vm4454, %v4451
      %v4457 = vld [vmem:[#allocation2 + $0x18] sm:$0xff]
      %v4458 = vld [vmem:[#allocation2 + $0x50] sm:$0xff]
      %v4459 = vld [vmem:[#allocation2 + $0x20] sm:$0xff]
      %v4460 = vld [vmem:[#allocation2 + $0x58] sm:$0xff]
      %4463 = vrot.lane.b32.xlu0 %v4457, 99
      %v4464 = vpop.permute.xlu0 %4463
      %4465 = vrot.lane.b32.xlu0 %v4458, 99
      %v4466 = vpop.permute.xlu0 %4465
      %v4469 = vadd.f32 %v4457, %v4464
      %v4470 = vadd.f32 %v4458, %v4466
      %4473 = vrot.lane.b32.xlu0 %v4457, 70
      %v4474 = vpop.permute.xlu0 %4473
      %4475 = vrot.lane.b32.xlu0 %v4459, 70
      %v4476 = vpop.permute.xlu0 %4475
      %4477 = vrot.lane.b32.xlu0 %v4458, 70
      %v4478 = vpop.permute.xlu0 %4477
      %4479 = vrot.lane.b32.xlu0 %v4460, 70
      %v4480 = vpop.permute.xlu0 %4479
      %v4481 = vsel %vm2412, %v4474, %v4476
      %v4482 = vsel %vm2412, %v4478, %v4480
      %v4485 = vadd.f32 %v4469, %v4481
      %v4486 = vadd.f32 %v4470, %v4482
      %4489 = vrot.lane.b32.xlu0 %v4485, 127
      %v4490 = vpop.permute.xlu0 %4489
      %4491 = vrot.lane.b32.xlu0 %v4486, 127
      %v4492 = vpop.permute.xlu0 %4491
      %v4495 = vadd.f32 %v4485, %v4490
      %v4496 = vadd.f32 %v4486, %v4492
      %4497 = vrot.lane.b32.xlu0 %v4485, 126
      %v4498 = vpop.permute.xlu0 %4497
      %4499 = vrot.lane.b32.xlu0 %v4486, 126
      %v4500 = vpop.permute.xlu0 %4499
      %v4503 = vadd.f32 %v4495, %v4498
      %v4504 = vadd.f32 %v4496, %v4500
      %4507 = vrot.lane.b32.xlu0 %v4503, 77
      %v4508 = vpop.permute.xlu0 %4507
      %4509 = vrot.lane.b32.xlu0 %v4504, 77
      %v4510 = vpop.permute.xlu0 %4509
      %v4511 = vsel %vm3784, %v4508, 0
      %v4513 = vsel %vm3784, %v4510, 0
      %4515 = vmatprep.subr.mxu0 0.0
      %4516 = vmatpush1.msra.mxu0 0.0
      %4517 = vmatprep.subr.mxu0 0.0
      %4518 = vmatpush1.msra.mxu0 0.0
      %4519 = vmatprep.subr.mxu0 0.0
      %4520 = vmatpush1.msra.mxu0 0.0
      %4521 = vmatprep.subr.mxu0 0.0
      %4522 = vmatpush1.msra.mxu0 0.0
      %4523 = vmatprep.subr.mxu0 0.0
      %4524 = vmatpush1.msra.mxu0 0.0
      %4525 = vmatprep.subr.mxu0 0.0
      %4526 = vmatpush1.msra.mxu0 0.0
      %4527 = vmatprep.subr.mxu0 0.0
      %4528 = vmatpush1.msra.mxu0 0.0
      %4529 = vmatprep.subr.mxu0 0.0
      %4530 = vmatpush1.msra.mxu0 0.0
      %4531 = vmatprep.subr.mxu0 0.0
      %4532 = vmatpush1.msra.mxu0 0.0
      %4533 = vmatprep.subr.mxu0 0.0
      %4534 = vmatpush1.msra.mxu0 0.0
      %4535 = vmatprep.subr.mxu0 0.0
      %4536 = vmatpush1.msra.mxu0 0.0
      %4537 = vmatprep.subr.mxu0 0.0
      %4538 = vmatpush1.msra.mxu0 0.0
      %4539 = vmatprep.subr.mxu0 0.0
      %4540 = vmatpush1.msra.mxu0 %v3793
      %4541 = vmatprep.subr.mxu0 0.0
      %4542 = vmatpush1.msra.mxu0 %v3744
      %4543 = vmatprep.subr.mxu0 0.0
      %4544 = vmatpush1.msra.mxu0 %v3743
      %4545 = vmatprep.subr.mxu0 0.0
      %4546 = vmatpush1.msra.mxu0 %v3742
      %4547 = vmatprep.subr.mxu0 0.0
      %4548 = vmatpush2.msra.mxu0 0.0
      %4549 = vmatprep.subr.mxu0 0.0
      %4550 = vmatpush2.msra.mxu0 0.0
      %4551 = vmatprep.subr.mxu0 0.0
      %4552 = vmatpush2.msra.mxu0 0.0
      %4553 = vmatprep.subr.mxu0 0.0
      %4554 = vmatpush2.msra.mxu0 0.0
      %4555 = vmatprep.subr.mxu0 0.0
      %4556 = vmatpush2.msra.mxu0 0.0
      %4557 = vmatprep.subr.mxu0 0.0
      %4558 = vmatpush2.msra.mxu0 0.0
      %4559 = vmatprep.subr.mxu0 0.0
      %4560 = vmatpush2.msra.mxu0 0.0
      %4561 = vmatprep.subr.mxu0 0.0
      %4562 = vmatpush2.msra.mxu0 0.0
      %4563 = vmatprep.subr.mxu0 0.0
      %4564 = vmatpush2.msra.mxu0 0.0
      %4565 = vmatprep.subr.mxu0 0.0
      %4566 = vmatpush2.msra.mxu0 0.0
      %4567 = vmatprep.subr.mxu0 0.0
      %4568 = vmatpush2.msra.mxu0 0.0
      %4569 = vmatprep.subr.mxu0 0.0
      %4570 = vmatpush2.msra.mxu0 0.0
      %4571 = vmatprep.subr.mxu0 0.0
      %4572 = vmatpush2.msra.mxu0 0.0
      %4573 = vmatprep.subr.mxu0 0.0
      %4574 = vmatpush2.msra.mxu0 0.0
      %4575 = vmatprep.subr.mxu0 0.0
      %4576 = vmatpush2.msra.mxu0 0.0
      %4577 = vmatprep.subr.mxu0 0.0
      %4578 = vmatpush2.msra.mxu0 0.0
      %4579 = vmatprep.mubr.f32.mxu0 0.0
      %4580 = vmatmul.mubr.f32.gmra.mxu0 %v4511
      %v4581 = vpop.f32.mrf.mxu0
      %v4582 = vadd.f32 0.0, %v4581
      %v4583 = vpop.f32.mrf.mxu0
      %4584 = vmatprep.mubr.f32.mxu0 0.0
      %4585 = vmatmul.mubr.f32.gmra.mxu0 %v4513
      %v4586 = vpop.f32.mrf.mxu0
      %v4587 = vadd.f32 0.0, %v4586
      %v4588 = vpop.f32.mrf.mxu0
      %4589 = vdwg.mxu0
      %v4590 = vmax.f32 %v4582, 0.0
      %v4591 = vmax.f32 %v4587, 0.0
      %4594 = vrot.lane.b32.xlu0 %v4590, 67
      %v4595 = vpop.permute.xlu0 %4594
      %4596 = vrot.lane.b32.xlu0 %v4591, 67
      %v4597 = vpop.permute.xlu0 %4596
      %vm4600 = vcmask 622104
      %4601 = vst.msk [vmem:[#allocation3] sm:$0xff] %vm4600, %v4595
      %4602 = vst.msk [vmem:[#allocation3 + $0x8] sm:$0xff] %vm4600, %v4597
      %v4603 = vld [vmem:[#allocation2 + $0x20] sm:$0xff]
      %v4604 = vld [vmem:[#allocation2 + $0x58] sm:$0xff]
      %4607 = vrot.lane.b32.xlu0 %v4603, 99
      %v4608 = vpop.permute.xlu0 %4607
      %4609 = vrot.lane.b32.xlu0 %v4604, 99
      %v4610 = vpop.permute.xlu0 %4609
      %v4613 = vadd.f32 %v4603, %v4608
      %v4614 = vadd.f32 %v4604, %v4610
      %4615 = vrot.lane.b32.xlu0 %v4603, 70
      %v4616 = vpop.permute.xlu0 %4615
      %4617 = vrot.lane.b32.xlu0 %v4604, 70
      %v4618 = vpop.permute.xlu0 %4617
      %v4621 = vadd.f32 %v4613, %v4616
      %v4622 = vadd.f32 %v4614, %v4618
      %4625 = vrot.lane.b32.xlu0 %v4621, 127
      %v4626 = vpop.permute.xlu0 %4625
      %4627 = vrot.lane.b32.xlu0 %v4622, 127
      %v4628 = vpop.permute.xlu0 %4627
      %v4631 = vadd.f32 %v4621, %v4626
      %v4632 = vadd.f32 %v4622, %v4628
      %4633 = vrot.lane.b32.xlu0 %v4621, 126
      %v4634 = vpop.permute.xlu0 %4633
      %4635 = vrot.lane.b32.xlu0 %v4622, 126
      %v4636 = vpop.permute.xlu0 %4635
      %v4639 = vadd.f32 %v4631, %v4634
      %v4640 = vadd.f32 %v4632, %v4636
      %4643 = vrot.lane.b32.xlu0 %v4639, 118
      %v4644 = vpop.permute.xlu0 %4643
      %4645 = vrot.lane.b32.xlu0 %v4640, 118
      %v4646 = vpop.permute.xlu0 %4645
      %v4647 = vsel %vm3784, %v4644, 0
      %v4649 = vsel %vm3784, %v4646, 0
      %4651 = vmatprep.subr.mxu0 0.0
      %4652 = vmatpush1.msra.mxu0 0.0
      %4653 = vmatprep.subr.mxu0 0.0
      %4654 = vmatpush1.msra.mxu0 0.0
      %4655 = vmatprep.subr.mxu0 0.0
      %4656 = vmatpush1.msra.mxu0 0.0
      %4657 = vmatprep.subr.mxu0 0.0
      %4658 = vmatpush1.msra.mxu0 0.0
      %4659 = vmatprep.subr.mxu0 0.0
      %4660 = vmatpush1.msra.mxu0 0.0
      %4661 = vmatprep.subr.mxu0 0.0
      %4662 = vmatpush1.msra.mxu0 0.0
      %4663 = vmatprep.subr.mxu0 0.0
      %4664 = vmatpush1.msra.mxu0 0.0
      %4665 = vmatprep.subr.mxu0 0.0
      %4666 = vmatpush1.msra.mxu0 0.0
      %4667 = vmatprep.subr.mxu0 0.0
      %4668 = vmatpush1.msra.mxu0 0.0
      %4669 = vmatprep.subr.mxu0 0.0
      %4670 = vmatpush1.msra.mxu0 0.0
      %4671 = vmatprep.subr.mxu0 0.0
      %4672 = vmatpush1.msra.mxu0 0.0
      %4673 = vmatprep.subr.mxu0 0.0
      %4674 = vmatpush1.msra.mxu0 0.0
      %4675 = vmatprep.subr.mxu0 0.0
      %4676 = vmatpush1.msra.mxu0 %v3793
      %4677 = vmatprep.subr.mxu0 0.0
      %4678 = vmatpush1.msra.mxu0 %v3744
      %4679 = vmatprep.subr.mxu0 0.0
      %4680 = vmatpush1.msra.mxu0 %v3743
      %4681 = vmatprep.subr.mxu0 0.0
      %4682 = vmatpush1.msra.mxu0 %v3742
      %4683 = vmatprep.subr.mxu0 0.0
      %4684 = vmatpush2.msra.mxu0 0.0
      %4685 = vmatprep.subr.mxu0 0.0
      %4686 = vmatpush2.msra.mxu0 0.0
      %4687 = vmatprep.subr.mxu0 0.0
      %4688 = vmatpush2.msra.mxu0 0.0
      %4689 = vmatprep.subr.mxu0 0.0
      %4690 = vmatpush2.msra.mxu0 0.0
      %4691 = vmatprep.subr.mxu0 0.0
      %4692 = vmatpush2.msra.mxu0 0.0
      %4693 = vmatprep.subr.mxu0 0.0
      %4694 = vmatpush2.msra.mxu0 0.0
      %4695 = vmatprep.subr.mxu0 0.0
      %4696 = vmatpush2.msra.mxu0 0.0
      %4697 = vmatprep.subr.mxu0 0.0
      %4698 = vmatpush2.msra.mxu0 0.0
      %4699 = vmatprep.subr.mxu0 0.0
      %4700 = vmatpush2.msra.mxu0 0.0
      %4701 = vmatprep.subr.mxu0 0.0
      %4702 = vmatpush2.msra.mxu0 0.0
      %4703 = vmatprep.subr.mxu0 0.0
      %4704 = vmatpush2.msra.mxu0 0.0
      %4705 = vmatprep.subr.mxu0 0.0
      %4706 = vmatpush2.msra.mxu0 0.0
      %4707 = vmatprep.subr.mxu0 0.0
      %4708 = vmatpush2.msra.mxu0 0.0
      %4709 = vmatprep.subr.mxu0 0.0
      %4710 = vmatpush2.msra.mxu0 0.0
      %4711 = vmatprep.subr.mxu0 0.0
      %4712 = vmatpush2.msra.mxu0 0.0
      %4713 = vmatprep.subr.mxu0 0.0
      %4714 = vmatpush2.msra.mxu0 0.0
      %4715 = vmatprep.mubr.f32.mxu0 0.0
      %4716 = vmatmul.mubr.f32.gmra.mxu0 %v4647
      %v4717 = vpop.f32.mrf.mxu0
      %v4718 = vadd.f32 0.0, %v4717
      %v4719 = vpop.f32.mrf.mxu0
      %4720 = vmatprep.mubr.f32.mxu0 0.0
      %4721 = vmatmul.mubr.f32.gmra.mxu0 %v4649
      %v4722 = vpop.f32.mrf.mxu0
      %v4723 = vadd.f32 0.0, %v4722
      %v4724 = vpop.f32.mrf.mxu0
      %4725 = vdwg.mxu0
      %v4726 = vmax.f32 %v4718, 0.0
      %v4727 = vmax.f32 %v4723, 0.0
      %4730 = vrot.lane.b32.xlu0 %v4726, 78
      %v4731 = vpop.permute.xlu0 %4730
      %4732 = vrot.lane.b32.xlu0 %v4727, 78
      %v4733 = vpop.permute.xlu0 %4732
      %vm4736 = vcmask 712304
      %4737 = vst.msk [vmem:[#allocation3] sm:$0xff] %vm4736, %v4731
      %4738 = vst.msk [vmem:[#allocation3 + $0x8] sm:$0xff] %vm4736, %v4733
      %v4739 = vld [vmem:[#allocation2 + $0x20] sm:$0xff]
      %v4740 = vld [vmem:[#allocation2 + $0x58] sm:$0xff]
      %v4741 = vld [vmem:[#allocation2 + $0x28] sm:$0xff]
      %v4742 = vld [vmem:[#allocation2 + $0x60] sm:$0xff]
      %4747 = vrot.lane.b32.xlu0 %v4739, 99
      %v4748 = vpop.permute.xlu0 %4747
      %4749 = vrot.lane.b32.xlu0 %v4741, 99
      %v4750 = vpop.permute.xlu0 %4749
      %4751 = vrot.lane.b32.xlu0 %v4740, 99
      %v4752 = vpop.permute.xlu0 %4751
      %4753 = vrot.lane.b32.xlu0 %v4742, 99
      %v4754 = vpop.permute.xlu0 %4753
      %v4755 = vsel %vm1341, %v4748, %v4750
      %v4756 = vsel %vm1341, %v4752, %v4754
      %v4759 = vadd.f32 %v4739, %v4755
      %v4760 = vadd.f32 %v4740, %v4756
      %4761 = vrot.lane.b32.xlu0 %v4741, 70
      %v4762 = vpop.permute.xlu0 %4761
      %4763 = vrot.lane.b32.xlu0 %v4742, 70
      %v4764 = vpop.permute.xlu0 %4763
      %v4767 = vadd.f32 %v4759, %v4762
      %v4768 = vadd.f32 %v4760, %v4764
      %4771 = vrot.lane.b32.xlu0 %v4767, 127
      %v4772 = vpop.permute.xlu0 %4771
      %4773 = vrot.lane.b32.xlu0 %v4768, 127
      %v4774 = vpop.permute.xlu0 %4773
      %v4777 = vadd.f32 %v4767, %v4772
      %v4778 = vadd.f32 %v4768, %v4774
      %4779 = vrot.lane.b32.xlu0 %v4767, 126
      %v4780 = vpop.permute.xlu0 %4779
      %4781 = vrot.lane.b32.xlu0 %v4768, 126
      %v4782 = vpop.permute.xlu0 %4781
      %v4785 = vadd.f32 %v4777, %v4780
      %v4786 = vadd.f32 %v4778, %v4782
      %4789 = vrot.lane.b32.xlu0 %v4785, 31
      %v4790 = vpop.permute.xlu0 %4789
      %4791 = vrot.lane.b32.xlu0 %v4786, 31
      %v4792 = vpop.permute.xlu0 %4791
      %v4793 = vsel %vm3784, %v4790, 0
      %v4795 = vsel %vm3784, %v4792, 0
      %4797 = vmatprep.subr.mxu0 0.0
      %4798 = vmatpush1.msra.mxu0 0.0
      %4799 = vmatprep.subr.mxu0 0.0
      %4800 = vmatpush1.msra.mxu0 0.0
      %4801 = vmatprep.subr.mxu0 0.0
      %4802 = vmatpush1.msra.mxu0 0.0
      %4803 = vmatprep.subr.mxu0 0.0
      %4804 = vmatpush1.msra.mxu0 0.0
      %4805 = vmatprep.subr.mxu0 0.0
      %4806 = vmatpush1.msra.mxu0 0.0
      %4807 = vmatprep.subr.mxu0 0.0
      %4808 = vmatpush1.msra.mxu0 0.0
      %4809 = vmatprep.subr.mxu0 0.0
      %4810 = vmatpush1.msra.mxu0 0.0
      %4811 = vmatprep.subr.mxu0 0.0
      %4812 = vmatpush1.msra.mxu0 0.0
      %4813 = vmatprep.subr.mxu0 0.0
      %4814 = vmatpush1.msra.mxu0 0.0
      %4815 = vmatprep.subr.mxu0 0.0
      %4816 = vmatpush1.msra.mxu0 0.0
      %4817 = vmatprep.subr.mxu0 0.0
      %4818 = vmatpush1.msra.mxu0 0.0
      %4819 = vmatprep.subr.mxu0 0.0
      %4820 = vmatpush1.msra.mxu0 0.0
      %4821 = vmatprep.subr.mxu0 0.0
      %4822 = vmatpush1.msra.mxu0 %v3793
      %4823 = vmatprep.subr.mxu0 0.0
      %4824 = vmatpush1.msra.mxu0 %v3744
      %4825 = vmatprep.subr.mxu0 0.0
      %4826 = vmatpush1.msra.mxu0 %v3743
      %4827 = vmatprep.subr.mxu0 0.0
      %4828 = vmatpush1.msra.mxu0 %v3742
      %4829 = vmatprep.subr.mxu0 0.0
      %4830 = vmatpush2.msra.mxu0 0.0
      %4831 = vmatprep.subr.mxu0 0.0
      %4832 = vmatpush2.msra.mxu0 0.0
      %4833 = vmatprep.subr.mxu0 0.0
      %4834 = vmatpush2.msra.mxu0 0.0
      %4835 = vmatprep.subr.mxu0 0.0
      %4836 = vmatpush2.msra.mxu0 0.0
      %4837 = vmatprep.subr.mxu0 0.0
      %4838 = vmatpush2.msra.mxu0 0.0
      %4839 = vmatprep.subr.mxu0 0.0
      %4840 = vmatpush2.msra.mxu0 0.0
      %4841 = vmatprep.subr.mxu0 0.0
      %4842 = vmatpush2.msra.mxu0 0.0
      %4843 = vmatprep.subr.mxu0 0.0
      %4844 = vmatpush2.msra.mxu0 0.0
      %4845 = vmatprep.subr.mxu0 0.0
      %4846 = vmatpush2.msra.mxu0 0.0
      %4847 = vmatprep.subr.mxu0 0.0
      %4848 = vmatpush2.msra.mxu0 0.0
      %4849 = vmatprep.subr.mxu0 0.0
      %4850 = vmatpush2.msra.mxu0 0.0
      %4851 = vmatprep.subr.mxu0 0.0
      %4852 = vmatpush2.msra.mxu0 0.0
      %4853 = vmatprep.subr.mxu0 0.0
      %4854 = vmatpush2.msra.mxu0 0.0
      %4855 = vmatprep.subr.mxu0 0.0
      %4856 = vmatpush2.msra.mxu0 0.0
      %4857 = vmatprep.subr.mxu0 0.0
      %4858 = vmatpush2.msra.mxu0 0.0
      %4859 = vmatprep.subr.mxu0 0.0
      %4860 = vmatpush2.msra.mxu0 0.0
      %4861 = vmatprep.mubr.f32.mxu0 0.0
      %4862 = vmatmul.mubr.f32.gmra.mxu0 %v4793
      %v4863 = vpop.f32.mrf.mxu0
      %v4864 = vadd.f32 0.0, %v4863
      %v4865 = vpop.f32.mrf.mxu0
      %4866 = vmatprep.mubr.f32.mxu0 0.0
      %4867 = vmatmul.mubr.f32.gmra.mxu0 %v4795
      %v4868 = vpop.f32.mrf.mxu0
      %v4869 = vadd.f32 0.0, %v4868
      %v4870 = vpop.f32.mrf.mxu0
      %4871 = vdwg.mxu0
      %v4872 = vmax.f32 %v4864, 0.0
      %v4873 = vmax.f32 %v4869, 0.0
      %4876 = vrot.lane.b32.xlu0 %v4872, 89
      %v4877 = vpop.permute.xlu0 %4876
      %4878 = vrot.lane.b32.xlu0 %v4873, 89
      %v4879 = vpop.permute.xlu0 %4878
      %vm4882 = vcmask 802504
      %4883 = vst.msk [vmem:[#allocation3] sm:$0xff] %vm4882, %v4877
      %4884 = vst.msk [vmem:[#allocation3 + $0x8] sm:$0xff] %vm4882, %v4879
      %v4885 = vld [vmem:[#allocation2 + $0x28] sm:$0xff]
      %v4886 = vld [vmem:[#allocation2 + $0x60] sm:$0xff]
      %v4887 = vld [vmem:[#allocation2 + $0x30] sm:$0xff]
      %v4888 = vld [vmem:[#allocation2 + $0x68] sm:$0xff]
      %4891 = vrot.lane.b32.xlu0 %v4885, 99
      %v4892 = vpop.permute.xlu0 %4891
      %4893 = vrot.lane.b32.xlu0 %v4886, 99
      %v4894 = vpop.permute.xlu0 %4893
      %v4897 = vadd.f32 %v4885, %v4892
      %v4898 = vadd.f32 %v4886, %v4894
      %4901 = vrot.lane.b32.xlu0 %v4885, 70
      %v4902 = vpop.permute.xlu0 %4901
      %4903 = vrot.lane.b32.xlu0 %v4887, 70
      %v4904 = vpop.permute.xlu0 %4903
      %4905 = vrot.lane.b32.xlu0 %v4886, 70
      %v4906 = vpop.permute.xlu0 %4905
      %4907 = vrot.lane.b32.xlu0 %v4888, 70
      %v4908 = vpop.permute.xlu0 %4907
      %v4909 = vsel %vm2412, %v4902, %v4904
      %v4910 = vsel %vm2412, %v4906, %v4908
      %v4913 = vadd.f32 %v4897, %v4909
      %v4914 = vadd.f32 %v4898, %v4910
      %4917 = vrot.lane.b32.xlu0 %v4913, 127
      %v4918 = vpop.permute.xlu0 %4917
      %4919 = vrot.lane.b32.xlu0 %v4914, 127
      %v4920 = vpop.permute.xlu0 %4919
      %v4923 = vadd.f32 %v4913, %v4918
      %v4924 = vadd.f32 %v4914, %v4920
      %4925 = vrot.lane.b32.xlu0 %v4913, 126
      %v4926 = vpop.permute.xlu0 %4925
      %4927 = vrot.lane.b32.xlu0 %v4914, 126
      %v4928 = vpop.permute.xlu0 %4927
      %v4931 = vadd.f32 %v4923, %v4926
      %v4932 = vadd.f32 %v4924, %v4928
      %4935 = vrot.lane.b32.xlu0 %v4931, 72
      %v4936 = vpop.permute.xlu0 %4935
      %4937 = vrot.lane.b32.xlu0 %v4932, 72
      %v4938 = vpop.permute.xlu0 %4937
      %v4939 = vsel %vm3784, %v4936, 0
      %v4941 = vsel %vm3784, %v4938, 0
      %4943 = vmatprep.subr.mxu0 0.0
      %4944 = vmatpush1.msra.mxu0 0.0
      %4945 = vmatprep.subr.mxu0 0.0
      %4946 = vmatpush1.msra.mxu0 0.0
      %4947 = vmatprep.subr.mxu0 0.0
      %4948 = vmatpush1.msra.mxu0 0.0
      %4949 = vmatprep.subr.mxu0 0.0
      %4950 = vmatpush1.msra.mxu0 0.0
      %4951 = vmatprep.subr.mxu0 0.0
      %4952 = vmatpush1.msra.mxu0 0.0
      %4953 = vmatprep.subr.mxu0 0.0
      %4954 = vmatpush1.msra.mxu0 0.0
      %4955 = vmatprep.subr.mxu0 0.0
      %4956 = vmatpush1.msra.mxu0 0.0
      %4957 = vmatprep.subr.mxu0 0.0
      %4958 = vmatpush1.msra.mxu0 0.0
      %4959 = vmatprep.subr.mxu0 0.0
      %4960 = vmatpush1.msra.mxu0 0.0
      %4961 = vmatprep.subr.mxu0 0.0
      %4962 = vmatpush1.msra.mxu0 0.0
      %4963 = vmatprep.subr.mxu0 0.0
      %4964 = vmatpush1.msra.mxu0 0.0
      %4965 = vmatprep.subr.mxu0 0.0
      %4966 = vmatpush1.msra.mxu0 0.0
      %4967 = vmatprep.subr.mxu0 0.0
      %4968 = vmatpush1.msra.mxu0 %v3793
      %4969 = vmatprep.subr.mxu0 0.0
      %4970 = vmatpush1.msra.mxu0 %v3744
      %4971 = vmatprep.subr.mxu0 0.0
      %4972 = vmatpush1.msra.mxu0 %v3743
      %4973 = vmatprep.subr.mxu0 0.0
      %4974 = vmatpush1.msra.mxu0 %v3742
      %4975 = vmatprep.subr.mxu0 0.0
      %4976 = vmatpush2.msra.mxu0 0.0
      %4977 = vmatprep.subr.mxu0 0.0
      %4978 = vmatpush2.msra.mxu0 0.0
      %4979 = vmatprep.subr.mxu0 0.0
      %4980 = vmatpush2.msra.mxu0 0.0
      %4981 = vmatprep.subr.mxu0 0.0
      %4982 = vmatpush2.msra.mxu0 0.0
      %4983 = vmatprep.subr.mxu0 0.0
      %4984 = vmatpush2.msra.mxu0 0.0
      %4985 = vmatprep.subr.mxu0 0.0
      %4986 = vmatpush2.msra.mxu0 0.0
      %4987 = vmatprep.subr.mxu0 0.0
      %4988 = vmatpush2.msra.mxu0 0.0
      %4989 = vmatprep.subr.mxu0 0.0
      %4990 = vmatpush2.msra.mxu0 0.0
      %4991 = vmatprep.subr.mxu0 0.0
      %4992 = vmatpush2.msra.mxu0 0.0
      %4993 = vmatprep.subr.mxu0 0.0
      %4994 = vmatpush2.msra.mxu0 0.0
      %4995 = vmatprep.subr.mxu0 0.0
      %4996 = vmatpush2.msra.mxu0 0.0
      %4997 = vmatprep.subr.mxu0 0.0
      %4998 = vmatpush2.msra.mxu0 0.0
      %4999 = vmatprep.subr.mxu0 0.0
      %5000 = vmatpush2.msra.mxu0 0.0
      %5001 = vmatprep.subr.mxu0 0.0
      %5002 = vmatpush2.msra.mxu0 0.0
      %5003 = vmatprep.subr.mxu0 0.0
      %5004 = vmatpush2.msra.mxu0 0.0
      %5005 = vmatprep.subr.mxu0 0.0
      %5006 = vmatpush2.msra.mxu0 0.0
      %5007 = vmatprep.mubr.f32.mxu0 0.0
      %5008 = vmatmul.mubr.f32.gmra.mxu0 %v4939
      %v5009 = vpop.f32.mrf.mxu0
      %v5010 = vadd.f32 0.0, %v5009
      %v5011 = vpop.f32.mrf.mxu0
      %5012 = vmatprep.mubr.f32.mxu0 0.0
      %5013 = vmatmul.mubr.f32.gmra.mxu0 %v4941
      %v5014 = vpop.f32.mrf.mxu0
      %v5015 = vadd.f32 0.0, %v5014
      %v5016 = vpop.f32.mrf.mxu0
      %5017 = vdwg.mxu0
      %v5018 = vmax.f32 %v5010, 0.0
      %v5019 = vmax.f32 %v5015, 0.0
      %5022 = vrot.lane.b32.xlu0 %v5018, 100
      %v5023 = vpop.permute.xlu0 %5022
      %5024 = vrot.lane.b32.xlu0 %v5019, 100
      %v5025 = vpop.permute.xlu0 %5024
      %vm5028 = vcmask 892704
      %5029 = vst.msk [vmem:[#allocation3] sm:$0xff] %vm5028, %v5023
      %5030 = vst.msk [vmem:[#allocation3 + $0x8] sm:$0xff] %vm5028, %v5025
      %vm5031 = vcmask 990208
      %5032 = vst.msk [vmem:[#allocation4] sm:$0xff] %vm5031, -inf
      %5033 = vst.msk [vmem:[#allocation4 + $0x8] sm:$0xff] %vm5031, -inf
      %5034 = vst.msk [vmem:[#allocation4 + $0x10] sm:$0xff] %vm5031, -inf
      %5035 = vst.msk [vmem:[#allocation4 + $0x18] sm:$0xff] %vm5031, -inf
      %5036 = vst.msk [vmem:[#allocation5] sm:$0xff] %vm3784, 0.0
      %5037 = vst.msk [vmem:[#allocation5 + $0x8] sm:$0xff] %vm3784, 0.0
      %5038 = vst.msk [vmem:[#allocation5 + $0x10] sm:$0xff] %vm3784, 0.0
      %5039 = vst.msk [vmem:[#allocation5 + $0x18] sm:$0xff] %vm3784, 0.0
      %v5040 = vld [vmem:[%s3] sm:$0xff]
      %v5041 = vld [vmem:[%s3 + $0x8] sm:$0xff]
      %v5042 = vld [vmem:[%s3 + $0x10] sm:$0xff]
      %v5043 = vld [vmem:[%s3 + $0x18] sm:$0xff]
      %v5044 = vld [vmem:[#allocation3] sm:$0xff]
      %v5045 = vld [vmem:[#allocation3 + $0x8] sm:$0xff]
      %s5046 = scalar_lea.vmem %s3, 32
      %v5047 = vld [vmem:[%s5046] sm:$0xff]
      %v5048 = vld [vmem:[%s5046 + $0x8] sm:$0xff]
      %v5049 = vld [vmem:[%s5046 + $0x10] sm:$0xff]
      %v5050 = vld [vmem:[%s5046 + $0x18] sm:$0xff]
      %5053 = vrot.lane.b32.xlu0 %v5044, 127
      %v5054 = vpop.permute.xlu0 %5053
      %5055 = vrot.lane.b32.xlu0 %v5045, 127
      %v5056 = vpop.permute.xlu0 %5055
      %vm5059 = vcmask 130048
      %v5061 = vsel %vm5059, %v5047, 0
      %v5064 = vsel %vm5059, %v5048, 0
      %v5067 = vsel %vm5059, %v5049, 0
      %v5070 = vsel %vm5059, %v5050, 0
      %5072 = vmatprep.subr.mxu0 0.0
      %5073 = vmatpush1.msra.mxu0 0.0
      %5074 = vmatprep.subr.mxu0 0.0
      %5075 = vmatpush1.msra.mxu0 0.0
      %5076 = vmatprep.subr.mxu0 0.0
      %5077 = vmatpush1.msra.mxu0 0.0
      %5078 = vmatprep.subr.mxu0 0.0
      %5079 = vmatpush1.msra.mxu0 0.0
      %5080 = vmatprep.subr.mxu0 0.0
      %5081 = vmatpush1.msra.mxu0 0.0
      %5082 = vmatprep.subr.mxu0 0.0
      %5083 = vmatpush1.msra.mxu0 0.0
      %5084 = vmatprep.subr.mxu0 0.0
      %5085 = vmatpush1.msra.mxu0 0.0
      %5086 = vmatprep.subr.mxu0 0.0
      %5087 = vmatpush1.msra.mxu0 0.0
      %5088 = vmatprep.subr.mxu0 0.0
      %5089 = vmatpush1.msra.mxu0 0.0
      %5090 = vmatprep.subr.mxu0 0.0
      %5091 = vmatpush1.msra.mxu0 0.0
      %5092 = vmatprep.subr.mxu0 0.0
      %5093 = vmatpush1.msra.mxu0 0.0
      %5094 = vmatprep.subr.mxu0 0.0
      %5095 = vmatpush1.msra.mxu0 0.0
      %5096 = vmatprep.subr.mxu0 0.0
      %5097 = vmatpush1.msra.mxu0 0.0
      %5098 = vmatprep.subr.mxu0 0.0
      %5099 = vmatpush1.msra.mxu0 0.0
      %5100 = vmatprep.subr.mxu0 0.0
      %5101 = vmatpush1.msra.mxu0 %v5056
      %5102 = vmatprep.subr.mxu0 0.0
      %5103 = vmatpush1.msra.mxu0 %v5054
      %5104 = vmatprep.subr.mxu0 0.0
      %5105 = vmatpush2.msra.mxu0 0.0
      %5106 = vmatprep.subr.mxu0 0.0
      %5107 = vmatpush2.msra.mxu0 0.0
      %5108 = vmatprep.subr.mxu0 0.0
      %5109 = vmatpush2.msra.mxu0 0.0
      %5110 = vmatprep.subr.mxu0 0.0
      %5111 = vmatpush2.msra.mxu0 0.0
      %5112 = vmatprep.subr.mxu0 0.0
      %5113 = vmatpush2.msra.mxu0 0.0
      %5114 = vmatprep.subr.mxu0 0.0
      %5115 = vmatpush2.msra.mxu0 0.0
      %5116 = vmatprep.subr.mxu0 0.0
      %5117 = vmatpush2.msra.mxu0 0.0
      %5118 = vmatprep.subr.mxu0 0.0
      %5119 = vmatpush2.msra.mxu0 0.0
      %5120 = vmatprep.subr.mxu0 0.0
      %5121 = vmatpush2.msra.mxu0 0.0
      %5122 = vmatprep.subr.mxu0 0.0
      %5123 = vmatpush2.msra.mxu0 0.0
      %5124 = vmatprep.subr.mxu0 0.0
      %5125 = vmatpush2.msra.mxu0 0.0
      %5126 = vmatprep.subr.mxu0 0.0
      %5127 = vmatpush2.msra.mxu0 0.0
      %5128 = vmatprep.subr.mxu0 0.0
      %5129 = vmatpush2.msra.mxu0 0.0
      %5130 = vmatprep.subr.mxu0 0.0
      %5131 = vmatpush2.msra.mxu0 0.0
      %5132 = vmatprep.subr.mxu0 0.0
      %5133 = vmatpush2.msra.mxu0 0.0
      %5134 = vmatprep.subr.mxu0 0.0
      %5135 = vmatpush2.msra.mxu0 0.0
      %5136 = vmatprep.mubr.f32.mxu0 0.0
      %5137 = vmatmul.mubr.f32.gmra.mxu0 %v5061
      %v5138 = vpop.f32.mrf.mxu0
      %v5139 = vadd.f32 0.0, %v5138
      %v5140 = vpop.f32.mrf.mxu0
      %5141 = vmatprep.mubr.f32.mxu0 0.0
      %5142 = vmatmul.mubr.f32.gmra.mxu0 %v5064
      %v5143 = vpop.f32.mrf.mxu0
      %v5144 = vadd.f32 0.0, %v5143
      %v5145 = vpop.f32.mrf.mxu0
      %5146 = vmatprep.mubr.f32.mxu0 0.0
      %5147 = vmatmul.mubr.f32.gmra.mxu0 %v5067
      %v5148 = vpop.f32.mrf.mxu0
      %v5149 = vadd.f32 0.0, %v5148
      %v5150 = vpop.f32.mrf.mxu0
      %5151 = vmatprep.mubr.f32.mxu0 0.0
      %5152 = vmatmul.mubr.f32.gmra.mxu0 %v5070
      %v5153 = vpop.f32.mrf.mxu0
      %v5154 = vadd.f32 0.0, %v5153
      %v5155 = vpop.f32.mrf.mxu0
      %5156 = vdwg.mxu0
      %v5158 = vsel %vm5059, %v5040, 0
      %v5161 = vsel %vm5059, %v5041, 0
      %v5164 = vsel %vm5059, %v5042, 0
      %v5167 = vsel %vm5059, %v5043, 0
      %5169 = vmatprep.subr.mxu0 0.0
      %5170 = vmatpush1.msra.mxu0 0.0
      %5171 = vmatprep.subr.mxu0 0.0
      %5172 = vmatpush1.msra.mxu0 0.0
      %5173 = vmatprep.subr.mxu0 0.0
      %5174 = vmatpush1.msra.mxu0 0.0
      %5175 = vmatprep.subr.mxu0 0.0
      %5176 = vmatpush1.msra.mxu0 0.0
      %5177 = vmatprep.subr.mxu0 0.0
      %5178 = vmatpush1.msra.mxu0 0.0
      %5179 = vmatprep.subr.mxu0 0.0
      %5180 = vmatpush1.msra.mxu0 0.0
      %5181 = vmatprep.subr.mxu0 0.0
      %5182 = vmatpush1.msra.mxu0 0.0
      %5183 = vmatprep.subr.mxu0 0.0
      %5184 = vmatpush1.msra.mxu0 0.0
      %5185 = vmatprep.subr.mxu0 0.0
      %5186 = vmatpush1.msra.mxu0 0.0
      %5187 = vmatprep.subr.mxu0 0.0
      %5188 = vmatpush1.msra.mxu0 0.0
      %5189 = vmatprep.subr.mxu0 0.0
      %5190 = vmatpush1.msra.mxu0 0.0
      %5191 = vmatprep.subr.mxu0 0.0
      %5192 = vmatpush1.msra.mxu0 0.0
      %5193 = vmatprep.subr.mxu0 0.0
      %5194 = vmatpush1.msra.mxu0 0.0
      %5195 = vmatprep.subr.mxu0 0.0
      %5196 = vmatpush1.msra.mxu0 0.0
      %5197 = vmatprep.subr.mxu0 0.0
      %5198 = vmatpush1.msra.mxu0 %v5045
      %5199 = vmatprep.subr.mxu0 0.0
      %5200 = vmatpush1.msra.mxu0 %v5044
      %5201 = vmatprep.subr.mxu0 0.0
      %5202 = vmatpush2.msra.mxu0 0.0
      %5203 = vmatprep.subr.mxu0 0.0
      %5204 = vmatpush2.msra.mxu0 0.0
      %5205 = vmatprep.subr.mxu0 0.0
      %5206 = vmatpush2.msra.mxu0 0.0
      %5207 = vmatprep.subr.mxu0 0.0
      %5208 = vmatpush2.msra.mxu0 0.0
      %5209 = vmatprep.subr.mxu0 0.0
      %5210 = vmatpush2.msra.mxu0 0.0
      %5211 = vmatprep.subr.mxu0 0.0
      %5212 = vmatpush2.msra.mxu0 0.0
      %5213 = vmatprep.subr.mxu0 0.0
      %5214 = vmatpush2.msra.mxu0 0.0
      %5215 = vmatprep.subr.mxu0 0.0
      %5216 = vmatpush2.msra.mxu0 0.0
      %5217 = vmatprep.subr.mxu0 0.0
      %5218 = vmatpush2.msra.mxu0 0.0
      %5219 = vmatprep.subr.mxu0 0.0
      %5220 = vmatpush2.msra.mxu0 0.0
      %5221 = vmatprep.subr.mxu0 0.0
      %5222 = vmatpush2.msra.mxu0 0.0
      %5223 = vmatprep.subr.mxu0 0.0
      %5224 = vmatpush2.msra.mxu0 0.0
      %5225 = vmatprep.subr.mxu0 0.0
      %5226 = vmatpush2.msra.mxu0 0.0
      %5227 = vmatprep.subr.mxu0 0.0
      %5228 = vmatpush2.msra.mxu0 0.0
      %5229 = vmatprep.subr.mxu0 0.0
      %5230 = vmatpush2.msra.mxu0 0.0
      %5231 = vmatprep.subr.mxu0 0.0
      %5232 = vmatpush2.msra.mxu0 0.0
      %5233 = vmatprep.mubr.f32.mxu0 0.0
      %5234 = vmatmul.mubr.f32.gmra.mxu0 %v5158
      %v5235 = vpop.f32.mrf.mxu0
      %v5236 = vadd.f32 %v5139, %v5235
      %v5237 = vpop.f32.mrf.mxu0
      %5238 = vmatprep.mubr.f32.mxu0 0.0
      %5239 = vmatmul.mubr.f32.gmra.mxu0 %v5161
      %v5240 = vpop.f32.mrf.mxu0
      %v5241 = vadd.f32 %v5144, %v5240
      %v5242 = vpop.f32.mrf.mxu0
      %5243 = vmatprep.mubr.f32.mxu0 0.0
      %5244 = vmatmul.mubr.f32.gmra.mxu0 %v5164
      %v5245 = vpop.f32.mrf.mxu0
      %v5246 = vadd.f32 %v5149, %v5245
      %v5247 = vpop.f32.mrf.mxu0
      %5248 = vmatprep.mubr.f32.mxu0 0.0
      %5249 = vmatmul.mubr.f32.gmra.mxu0 %v5167
      %v5250 = vpop.f32.mrf.mxu0
      %v5251 = vadd.f32 %v5154, %v5250
      %v5252 = vpop.f32.mrf.mxu0
      %5253 = vdwg.mxu0
      %s5254 = scalar_lea.vmem %s3, 64
      %v5255 = vld [vmem:[%s5254] sm:$0xff]
      %v5256 = vld [vmem:[%s5254 + $0x8] sm:$0xff]
      %v5257 = vld [vmem:[%s5254 + $0x10] sm:$0xff]
      %v5258 = vld [vmem:[%s5254 + $0x18] sm:$0xff]
      %5259 = vrot.lane.b32.xlu0 %v5044, 126
      %v5260 = vpop.permute.xlu0 %5259
      %5261 = vrot.lane.b32.xlu0 %v5045, 126
      %v5262 = vpop.permute.xlu0 %5261
      %v5266 = vsel %vm5059, %v5255, 0
      %v5269 = vsel %vm5059, %v5256, 0
      %v5272 = vsel %vm5059, %v5257, 0
      %v5275 = vsel %vm5059, %v5258, 0
      %5277 = vmatprep.subr.mxu0 0.0
      %5278 = vmatpush1.msra.mxu0 0.0
      %5279 = vmatprep.subr.mxu0 0.0
      %5280 = vmatpush1.msra.mxu0 0.0
      %5281 = vmatprep.subr.mxu0 0.0
      %5282 = vmatpush1.msra.mxu0 0.0
      %5283 = vmatprep.subr.mxu0 0.0
      %5284 = vmatpush1.msra.mxu0 0.0
      %5285 = vmatprep.subr.mxu0 0.0
      %5286 = vmatpush1.msra.mxu0 0.0
      %5287 = vmatprep.subr.mxu0 0.0
      %5288 = vmatpush1.msra.mxu0 0.0
      %5289 = vmatprep.subr.mxu0 0.0
      %5290 = vmatpush1.msra.mxu0 0.0
      %5291 = vmatprep.subr.mxu0 0.0
      %5292 = vmatpush1.msra.mxu0 0.0
      %5293 = vmatprep.subr.mxu0 0.0
      %5294 = vmatpush1.msra.mxu0 0.0
      %5295 = vmatprep.subr.mxu0 0.0
      %5296 = vmatpush1.msra.mxu0 0.0
      %5297 = vmatprep.subr.mxu0 0.0
      %5298 = vmatpush1.msra.mxu0 0.0
      %5299 = vmatprep.subr.mxu0 0.0
      %5300 = vmatpush1.msra.mxu0 0.0
      %5301 = vmatprep.subr.mxu0 0.0
      %5302 = vmatpush1.msra.mxu0 0.0
      %5303 = vmatprep.subr.mxu0 0.0
      %5304 = vmatpush1.msra.mxu0 0.0
      %5305 = vmatprep.subr.mxu0 0.0
      %5306 = vmatpush1.msra.mxu0 %v5262
      %5307 = vmatprep.subr.mxu0 0.0
      %5308 = vmatpush1.msra.mxu0 %v5260
      %5309 = vmatprep.subr.mxu0 0.0
      %5310 = vmatpush2.msra.mxu0 0.0
      %5311 = vmatprep.subr.mxu0 0.0
      %5312 = vmatpush2.msra.mxu0 0.0
      %5313 = vmatprep.subr.mxu0 0.0
      %5314 = vmatpush2.msra.mxu0 0.0
      %5315 = vmatprep.subr.mxu0 0.0
      %5316 = vmatpush2.msra.mxu0 0.0
      %5317 = vmatprep.subr.mxu0 0.0
      %5318 = vmatpush2.msra.mxu0 0.0
      %5319 = vmatprep.subr.mxu0 0.0
      %5320 = vmatpush2.msra.mxu0 0.0
      %5321 = vmatprep.subr.mxu0 0.0
      %5322 = vmatpush2.msra.mxu0 0.0
      %5323 = vmatprep.subr.mxu0 0.0
      %5324 = vmatpush2.msra.mxu0 0.0
      %5325 = vmatprep.subr.mxu0 0.0
      %5326 = vmatpush2.msra.mxu0 0.0
      %5327 = vmatprep.subr.mxu0 0.0
      %5328 = vmatpush2.msra.mxu0 0.0
      %5329 = vmatprep.subr.mxu0 0.0
      %5330 = vmatpush2.msra.mxu0 0.0
      %5331 = vmatprep.subr.mxu0 0.0
      %5332 = vmatpush2.msra.mxu0 0.0
      %5333 = vmatprep.subr.mxu0 0.0
      %5334 = vmatpush2.msra.mxu0 0.0
      %5335 = vmatprep.subr.mxu0 0.0
      %5336 = vmatpush2.msra.mxu0 0.0
      %5337 = vmatprep.subr.mxu0 0.0
      %5338 = vmatpush2.msra.mxu0 0.0
      %5339 = vmatprep.subr.mxu0 0.0
      %5340 = vmatpush2.msra.mxu0 0.0
      %5341 = vmatprep.mubr.f32.mxu0 0.0
      %5342 = vmatmul.mubr.f32.gmra.mxu0 %v5266
      %v5343 = vpop.f32.mrf.mxu0
      %v5344 = vadd.f32 0.0, %v5343
      %v5345 = vpop.f32.mrf.mxu0
      %5346 = vmatprep.mubr.f32.mxu0 0.0
      %5347 = vmatmul.mubr.f32.gmra.mxu0 %v5269
      %v5348 = vpop.f32.mrf.mxu0
      %v5349 = vadd.f32 0.0, %v5348
      %v5350 = vpop.f32.mrf.mxu0
      %5351 = vmatprep.mubr.f32.mxu0 0.0
      %5352 = vmatmul.mubr.f32.gmra.mxu0 %v5272
      %v5353 = vpop.f32.mrf.mxu0
      %v5354 = vadd.f32 0.0, %v5353
      %v5355 = vpop.f32.mrf.mxu0
      %5356 = vmatprep.mubr.f32.mxu0 0.0
      %5357 = vmatmul.mubr.f32.gmra.mxu0 %v5275
      %v5358 = vpop.f32.mrf.mxu0
      %v5359 = vadd.f32 0.0, %v5358
      %v5360 = vpop.f32.mrf.mxu0
      %5361 = vdwg.mxu0
      %v5362 = vadd.f32 %v5236, %v5344
      %v5363 = vadd.f32 %v5241, %v5349
      %v5364 = vadd.f32 %v5246, %v5354
      %v5365 = vadd.f32 %v5251, %v5359
      %s5366 = scalar_lea.vmem %s3, 96
      %v5367 = vld [vmem:[%s5366] sm:$0xff]
      %v5368 = vld [vmem:[%s5366 + $0x8] sm:$0xff]
      %v5369 = vld [vmem:[%s5366 + $0x10] sm:$0xff]
      %v5370 = vld [vmem:[%s5366 + $0x18] sm:$0xff]
      %5371 = vrot.lane.b32.xlu0 %v5044, 117
      %v5372 = vpop.permute.xlu0 %5371
      %5373 = vrot.lane.b32.xlu0 %v5045, 117
      %v5374 = vpop.permute.xlu0 %5373
      %v5378 = vsel %vm5059, %v5367, 0
      %v5381 = vsel %vm5059, %v5368, 0
      %v5384 = vsel %vm5059, %v5369, 0
      %v5387 = vsel %vm5059, %v5370, 0
      %5389 = vmatprep.subr.mxu0 0.0
      %5390 = vmatpush1.msra.mxu0 0.0
      %5391 = vmatprep.subr.mxu0 0.0
      %5392 = vmatpush1.msra.mxu0 0.0
      %5393 = vmatprep.subr.mxu0 0.0
      %5394 = vmatpush1.msra.mxu0 0.0
      %5395 = vmatprep.subr.mxu0 0.0
      %5396 = vmatpush1.msra.mxu0 0.0
      %5397 = vmatprep.subr.mxu0 0.0
      %5398 = vmatpush1.msra.mxu0 0.0
      %5399 = vmatprep.subr.mxu0 0.0
      %5400 = vmatpush1.msra.mxu0 0.0
      %5401 = vmatprep.subr.mxu0 0.0
      %5402 = vmatpush1.msra.mxu0 0.0
      %5403 = vmatprep.subr.mxu0 0.0
      %5404 = vmatpush1.msra.mxu0 0.0
      %5405 = vmatprep.subr.mxu0 0.0
      %5406 = vmatpush1.msra.mxu0 0.0
      %5407 = vmatprep.subr.mxu0 0.0
      %5408 = vmatpush1.msra.mxu0 0.0
      %5409 = vmatprep.subr.mxu0 0.0
      %5410 = vmatpush1.msra.mxu0 0.0
      %5411 = vmatprep.subr.mxu0 0.0
      %5412 = vmatpush1.msra.mxu0 0.0
      %5413 = vmatprep.subr.mxu0 0.0
      %5414 = vmatpush1.msra.mxu0 0.0
      %5415 = vmatprep.subr.mxu0 0.0
      %5416 = vmatpush1.msra.mxu0 0.0
      %5417 = vmatprep.subr.mxu0 0.0
      %5418 = vmatpush1.msra.mxu0 %v5374
      %5419 = vmatprep.subr.mxu0 0.0
      %5420 = vmatpush1.msra.mxu0 %v5372
      %5421 = vmatprep.subr.mxu0 0.0
      %5422 = vmatpush2.msra.mxu0 0.0
      %5423 = vmatprep.subr.mxu0 0.0
      %5424 = vmatpush2.msra.mxu0 0.0
      %5425 = vmatprep.subr.mxu0 0.0
      %5426 = vmatpush2.msra.mxu0 0.0
      %5427 = vmatprep.subr.mxu0 0.0
      %5428 = vmatpush2.msra.mxu0 0.0
      %5429 = vmatprep.subr.mxu0 0.0
      %5430 = vmatpush2.msra.mxu0 0.0
      %5431 = vmatprep.subr.mxu0 0.0
      %5432 = vmatpush2.msra.mxu0 0.0
      %5433 = vmatprep.subr.mxu0 0.0
      %5434 = vmatpush2.msra.mxu0 0.0
      %5435 = vmatprep.subr.mxu0 0.0
      %5436 = vmatpush2.msra.mxu0 0.0
      %5437 = vmatprep.subr.mxu0 0.0
      %5438 = vmatpush2.msra.mxu0 0.0
      %5439 = vmatprep.subr.mxu0 0.0
      %5440 = vmatpush2.msra.mxu0 0.0
      %5441 = vmatprep.subr.mxu0 0.0
      %5442 = vmatpush2.msra.mxu0 0.0
      %5443 = vmatprep.subr.mxu0 0.0
      %5444 = vmatpush2.msra.mxu0 0.0
      %5445 = vmatprep.subr.mxu0 0.0
      %5446 = vmatpush2.msra.mxu0 0.0
      %5447 = vmatprep.subr.mxu0 0.0
      %5448 = vmatpush2.msra.mxu0 0.0
      %5449 = vmatprep.subr.mxu0 0.0
      %5450 = vmatpush2.msra.mxu0 0.0
      %5451 = vmatprep.subr.mxu0 0.0
      %5452 = vmatpush2.msra.mxu0 0.0
      %5453 = vmatprep.mubr.f32.mxu0 0.0
      %5454 = vmatmul.mubr.f32.gmra.mxu0 %v5378
      %v5455 = vpop.f32.mrf.mxu0
      %v5456 = vadd.f32 0.0, %v5455
      %v5457 = vpop.f32.mrf.mxu0
      %5458 = vmatprep.mubr.f32.mxu0 0.0
      %5459 = vmatmul.mubr.f32.gmra.mxu0 %v5381
      %v5460 = vpop.f32.mrf.mxu0
      %v5461 = vadd.f32 0.0, %v5460
      %v5462 = vpop.f32.mrf.mxu0
      %5463 = vmatprep.mubr.f32.mxu0 0.0
      %5464 = vmatmul.mubr.f32.gmra.mxu0 %v5384
      %v5465 = vpop.f32.mrf.mxu0
      %v5466 = vadd.f32 0.0, %v5465
      %v5467 = vpop.f32.mrf.mxu0
      %5468 = vmatprep.mubr.f32.mxu0 0.0
      %5469 = vmatmul.mubr.f32.gmra.mxu0 %v5387
      %v5470 = vpop.f32.mrf.mxu0
      %v5471 = vadd.f32 0.0, %v5470
      %v5472 = vpop.f32.mrf.mxu0
      %5473 = vdwg.mxu0
      %v5474 = vadd.f32 %v5362, %v5456
      %v5475 = vadd.f32 %v5363, %v5461
      %v5476 = vadd.f32 %v5364, %v5466
      %v5477 = vadd.f32 %v5365, %v5471
      %s5478 = scalar_lea.vmem %s3, 128
      %v5479 = vld [vmem:[%s5478] sm:$0xff]
      %v5480 = vld [vmem:[%s5478 + $0x8] sm:$0xff]
      %v5481 = vld [vmem:[%s5478 + $0x10] sm:$0xff]
      %v5482 = vld [vmem:[%s5478 + $0x18] sm:$0xff]
      %5483 = vrot.lane.b32.xlu0 %v5044, 116
      %v5484 = vpop.permute.xlu0 %5483
      %5485 = vrot.lane.b32.xlu0 %v5045, 116
      %v5486 = vpop.permute.xlu0 %5485
      %v5490 = vsel %vm5059, %v5479, 0
      %v5493 = vsel %vm5059, %v5480, 0
      %v5496 = vsel %vm5059, %v5481, 0
      %v5499 = vsel %vm5059, %v5482, 0
      %5501 = vmatprep.subr.mxu0 0.0
      %5502 = vmatpush1.msra.mxu0 0.0
      %5503 = vmatprep.subr.mxu0 0.0
      %5504 = vmatpush1.msra.mxu0 0.0
      %5505 = vmatprep.subr.mxu0 0.0
      %5506 = vmatpush1.msra.mxu0 0.0
      %5507 = vmatprep.subr.mxu0 0.0
      %5508 = vmatpush1.msra.mxu0 0.0
      %5509 = vmatprep.subr.mxu0 0.0
      %5510 = vmatpush1.msra.mxu0 0.0
      %5511 = vmatprep.subr.mxu0 0.0
      %5512 = vmatpush1.msra.mxu0 0.0
      %5513 = vmatprep.subr.mxu0 0.0
      %5514 = vmatpush1.msra.mxu0 0.0
      %5515 = vmatprep.subr.mxu0 0.0
      %5516 = vmatpush1.msra.mxu0 0.0
      %5517 = vmatprep.subr.mxu0 0.0
      %5518 = vmatpush1.msra.mxu0 0.0
      %5519 = vmatprep.subr.mxu0 0.0
      %5520 = vmatpush1.msra.mxu0 0.0
      %5521 = vmatprep.subr.mxu0 0.0
      %5522 = vmatpush1.msra.mxu0 0.0
      %5523 = vmatprep.subr.mxu0 0.0
      %5524 = vmatpush1.msra.mxu0 0.0
      %5525 = vmatprep.subr.mxu0 0.0
      %5526 = vmatpush1.msra.mxu0 0.0
      %5527 = vmatprep.subr.mxu0 0.0
      %5528 = vmatpush1.msra.mxu0 0.0
      %5529 = vmatprep.subr.mxu0 0.0
      %5530 = vmatpush1.msra.mxu0 %v5486
      %5531 = vmatprep.subr.mxu0 0.0
      %5532 = vmatpush1.msra.mxu0 %v5484
      %5533 = vmatprep.subr.mxu0 0.0
      %5534 = vmatpush2.msra.mxu0 0.0
      %5535 = vmatprep.subr.mxu0 0.0
      %5536 = vmatpush2.msra.mxu0 0.0
      %5537 = vmatprep.subr.mxu0 0.0
      %5538 = vmatpush2.msra.mxu0 0.0
      %5539 = vmatprep.subr.mxu0 0.0
      %5540 = vmatpush2.msra.mxu0 0.0
      %5541 = vmatprep.subr.mxu0 0.0
      %5542 = vmatpush2.msra.mxu0 0.0
      %5543 = vmatprep.subr.mxu0 0.0
      %5544 = vmatpush2.msra.mxu0 0.0
      %5545 = vmatprep.subr.mxu0 0.0
      %5546 = vmatpush2.msra.mxu0 0.0
      %5547 = vmatprep.subr.mxu0 0.0
      %5548 = vmatpush2.msra.mxu0 0.0
      %5549 = vmatprep.subr.mxu0 0.0
      %5550 = vmatpush2.msra.mxu0 0.0
      %5551 = vmatprep.subr.mxu0 0.0
      %5552 = vmatpush2.msra.mxu0 0.0
      %5553 = vmatprep.subr.mxu0 0.0
      %5554 = vmatpush2.msra.mxu0 0.0
      %5555 = vmatprep.subr.mxu0 0.0
      %5556 = vmatpush2.msra.mxu0 0.0
      %5557 = vmatprep.subr.mxu0 0.0
      %5558 = vmatpush2.msra.mxu0 0.0
      %5559 = vmatprep.subr.mxu0 0.0
      %5560 = vmatpush2.msra.mxu0 0.0
      %5561 = vmatprep.subr.mxu0 0.0
      %5562 = vmatpush2.msra.mxu0 0.0
      %5563 = vmatprep.subr.mxu0 0.0
      %5564 = vmatpush2.msra.mxu0 0.0
      %5565 = vmatprep.mubr.f32.mxu0 0.0
      %5566 = vmatmul.mubr.f32.gmra.mxu0 %v5490
      %v5567 = vpop.f32.mrf.mxu0
      %v5568 = vadd.f32 0.0, %v5567
      %v5569 = vpop.f32.mrf.mxu0
      %5570 = vmatprep.mubr.f32.mxu0 0.0
      %5571 = vmatmul.mubr.f32.gmra.mxu0 %v5493
      %v5572 = vpop.f32.mrf.mxu0
      %v5573 = vadd.f32 0.0, %v5572
      %v5574 = vpop.f32.mrf.mxu0
      %5575 = vmatprep.mubr.f32.mxu0 0.0
      %5576 = vmatmul.mubr.f32.gmra.mxu0 %v5496
      %v5577 = vpop.f32.mrf.mxu0
      %v5578 = vadd.f32 0.0, %v5577
      %v5579 = vpop.f32.mrf.mxu0
      %5580 = vmatprep.mubr.f32.mxu0 0.0
      %5581 = vmatmul.mubr.f32.gmra.mxu0 %v5499
      %v5582 = vpop.f32.mrf.mxu0
      %v5583 = vadd.f32 0.0, %v5582
      %v5584 = vpop.f32.mrf.mxu0
      %5585 = vdwg.mxu0
      %v5586 = vadd.f32 %v5474, %v5568
      %v5587 = vadd.f32 %v5475, %v5573
      %v5588 = vadd.f32 %v5476, %v5578
      %v5589 = vadd.f32 %v5477, %v5583
      %s5590 = scalar_lea.vmem %s3, 160
      %v5591 = vld [vmem:[%s5590] sm:$0xff]
      %v5592 = vld [vmem:[%s5590 + $0x8] sm:$0xff]
      %v5593 = vld [vmem:[%s5590 + $0x10] sm:$0xff]
      %v5594 = vld [vmem:[%s5590 + $0x18] sm:$0xff]
      %5595 = vrot.lane.b32.xlu0 %v5044, 115
      %v5596 = vpop.permute.xlu0 %5595
      %5597 = vrot.lane.b32.xlu0 %v5045, 115
      %v5598 = vpop.permute.xlu0 %5597
      %v5602 = vsel %vm5059, %v5591, 0
      %v5605 = vsel %vm5059, %v5592, 0
      %v5608 = vsel %vm5059, %v5593, 0
      %v5611 = vsel %vm5059, %v5594, 0
      %5613 = vmatprep.subr.mxu0 0.0
      %5614 = vmatpush1.msra.mxu0 0.0
      %5615 = vmatprep.subr.mxu0 0.0
      %5616 = vmatpush1.msra.mxu0 0.0
      %5617 = vmatprep.subr.mxu0 0.0
      %5618 = vmatpush1.msra.mxu0 0.0
      %5619 = vmatprep.subr.mxu0 0.0
      %5620 = vmatpush1.msra.mxu0 0.0
      %5621 = vmatprep.subr.mxu0 0.0
      %5622 = vmatpush1.msra.mxu0 0.0
      %5623 = vmatprep.subr.mxu0 0.0
      %5624 = vmatpush1.msra.mxu0 0.0
      %5625 = vmatprep.subr.mxu0 0.0
      %5626 = vmatpush1.msra.mxu0 0.0
      %5627 = vmatprep.subr.mxu0 0.0
      %5628 = vmatpush1.msra.mxu0 0.0
      %5629 = vmatprep.subr.mxu0 0.0
      %5630 = vmatpush1.msra.mxu0 0.0
      %5631 = vmatprep.subr.mxu0 0.0
      %5632 = vmatpush1.msra.mxu0 0.0
      %5633 = vmatprep.subr.mxu0 0.0
      %5634 = vmatpush1.msra.mxu0 0.0
      %5635 = vmatprep.subr.mxu0 0.0
      %5636 = vmatpush1.msra.mxu0 0.0
      %5637 = vmatprep.subr.mxu0 0.0
      %5638 = vmatpush1.msra.mxu0 0.0
      %5639 = vmatprep.subr.mxu0 0.0
      %5640 = vmatpush1.msra.mxu0 0.0
      %5641 = vmatprep.subr.mxu0 0.0
      %5642 = vmatpush1.msra.mxu0 %v5598
      %5643 = vmatprep.subr.mxu0 0.0
      %5644 = vmatpush1.msra.mxu0 %v5596
      %5645 = vmatprep.subr.mxu0 0.0
      %5646 = vmatpush2.msra.mxu0 0.0
      %5647 = vmatprep.subr.mxu0 0.0
      %5648 = vmatpush2.msra.mxu0 0.0
      %5649 = vmatprep.subr.mxu0 0.0
      %5650 = vmatpush2.msra.mxu0 0.0
      %5651 = vmatprep.subr.mxu0 0.0
      %5652 = vmatpush2.msra.mxu0 0.0
      %5653 = vmatprep.subr.mxu0 0.0
      %5654 = vmatpush2.msra.mxu0 0.0
      %5655 = vmatprep.subr.mxu0 0.0
      %5656 = vmatpush2.msra.mxu0 0.0
      %5657 = vmatprep.subr.mxu0 0.0
      %5658 = vmatpush2.msra.mxu0 0.0
      %5659 = vmatprep.subr.mxu0 0.0
      %5660 = vmatpush2.msra.mxu0 0.0
      %5661 = vmatprep.subr.mxu0 0.0
      %5662 = vmatpush2.msra.mxu0 0.0
      %5663 = vmatprep.subr.mxu0 0.0
      %5664 = vmatpush2.msra.mxu0 0.0
      %5665 = vmatprep.subr.mxu0 0.0
      %5666 = vmatpush2.msra.mxu0 0.0
      %5667 = vmatprep.subr.mxu0 0.0
      %5668 = vmatpush2.msra.mxu0 0.0
      %5669 = vmatprep.subr.mxu0 0.0
      %5670 = vmatpush2.msra.mxu0 0.0
      %5671 = vmatprep.subr.mxu0 0.0
      %5672 = vmatpush2.msra.mxu0 0.0
      %5673 = vmatprep.subr.mxu0 0.0
      %5674 = vmatpush2.msra.mxu0 0.0
      %5675 = vmatprep.subr.mxu0 0.0
      %5676 = vmatpush2.msra.mxu0 0.0
      %5677 = vmatprep.mubr.f32.mxu0 0.0
      %5678 = vmatmul.mubr.f32.gmra.mxu0 %v5602
      %v5679 = vpop.f32.mrf.mxu0
      %v5680 = vadd.f32 0.0, %v5679
      %v5681 = vpop.f32.mrf.mxu0
      %5682 = vmatprep.mubr.f32.mxu0 0.0
      %5683 = vmatmul.mubr.f32.gmra.mxu0 %v5605
      %v5684 = vpop.f32.mrf.mxu0
      %v5685 = vadd.f32 0.0, %v5684
      %v5686 = vpop.f32.mrf.mxu0
      %5687 = vmatprep.mubr.f32.mxu0 0.0
      %5688 = vmatmul.mubr.f32.gmra.mxu0 %v5608
      %v5689 = vpop.f32.mrf.mxu0
      %v5690 = vadd.f32 0.0, %v5689
      %v5691 = vpop.f32.mrf.mxu0
      %5692 = vmatprep.mubr.f32.mxu0 0.0
      %5693 = vmatmul.mubr.f32.gmra.mxu0 %v5611
      %v5694 = vpop.f32.mrf.mxu0
      %v5695 = vadd.f32 0.0, %v5694
      %v5696 = vpop.f32.mrf.mxu0
      %5697 = vdwg.mxu0
      %v5698 = vadd.f32 %v5586, %v5680
      %v5699 = vadd.f32 %v5587, %v5685
      %v5700 = vadd.f32 %v5588, %v5690
      %v5701 = vadd.f32 %v5589, %v5695
      %s5702 = scalar_lea.vmem %s3, 192
      %v5703 = vld [vmem:[%s5702] sm:$0xff]
      %v5704 = vld [vmem:[%s5702 + $0x8] sm:$0xff]
      %v5705 = vld [vmem:[%s5702 + $0x10] sm:$0xff]
      %v5706 = vld [vmem:[%s5702 + $0x18] sm:$0xff]
      %5707 = vrot.lane.b32.xlu0 %v5044, 106
      %v5708 = vpop.permute.xlu0 %5707
      %5709 = vrot.lane.b32.xlu0 %v5045, 106
      %v5710 = vpop.permute.xlu0 %5709
      %v5714 = vsel %vm5059, %v5703, 0
      %v5717 = vsel %vm5059, %v5704, 0
      %v5720 = vsel %vm5059, %v5705, 0
      %v5723 = vsel %vm5059, %v5706, 0
      %5725 = vmatprep.subr.mxu0 0.0
      %5726 = vmatpush1.msra.mxu0 0.0
      %5727 = vmatprep.subr.mxu0 0.0
      %5728 = vmatpush1.msra.mxu0 0.0
      %5729 = vmatprep.subr.mxu0 0.0
      %5730 = vmatpush1.msra.mxu0 0.0
      %5731 = vmatprep.subr.mxu0 0.0
      %5732 = vmatpush1.msra.mxu0 0.0
      %5733 = vmatprep.subr.mxu0 0.0
      %5734 = vmatpush1.msra.mxu0 0.0
      %5735 = vmatprep.subr.mxu0 0.0
      %5736 = vmatpush1.msra.mxu0 0.0
      %5737 = vmatprep.subr.mxu0 0.0
      %5738 = vmatpush1.msra.mxu0 0.0
      %5739 = vmatprep.subr.mxu0 0.0
      %5740 = vmatpush1.msra.mxu0 0.0
      %5741 = vmatprep.subr.mxu0 0.0
      %5742 = vmatpush1.msra.mxu0 0.0
      %5743 = vmatprep.subr.mxu0 0.0
      %5744 = vmatpush1.msra.mxu0 0.0
      %5745 = vmatprep.subr.mxu0 0.0
      %5746 = vmatpush1.msra.mxu0 0.0
      %5747 = vmatprep.subr.mxu0 0.0
      %5748 = vmatpush1.msra.mxu0 0.0
      %5749 = vmatprep.subr.mxu0 0.0
      %5750 = vmatpush1.msra.mxu0 0.0
      %5751 = vmatprep.subr.mxu0 0.0
      %5752 = vmatpush1.msra.mxu0 0.0
      %5753 = vmatprep.subr.mxu0 0.0
      %5754 = vmatpush1.msra.mxu0 %v5710
      %5755 = vmatprep.subr.mxu0 0.0
      %5756 = vmatpush1.msra.mxu0 %v5708
      %5757 = vmatprep.subr.mxu0 0.0
      %5758 = vmatpush2.msra.mxu0 0.0
      %5759 = vmatprep.subr.mxu0 0.0
      %5760 = vmatpush2.msra.mxu0 0.0
      %5761 = vmatprep.subr.mxu0 0.0
      %5762 = vmatpush2.msra.mxu0 0.0
      %5763 = vmatprep.subr.mxu0 0.0
      %5764 = vmatpush2.msra.mxu0 0.0
      %5765 = vmatprep.subr.mxu0 0.0
      %5766 = vmatpush2.msra.mxu0 0.0
      %5767 = vmatprep.subr.mxu0 0.0
      %5768 = vmatpush2.msra.mxu0 0.0
      %5769 = vmatprep.subr.mxu0 0.0
      %5770 = vmatpush2.msra.mxu0 0.0
      %5771 = vmatprep.subr.mxu0 0.0
      %5772 = vmatpush2.msra.mxu0 0.0
      %5773 = vmatprep.subr.mxu0 0.0
      %5774 = vmatpush2.msra.mxu0 0.0
      %5775 = vmatprep.subr.mxu0 0.0
      %5776 = vmatpush2.msra.mxu0 0.0
      %5777 = vmatprep.subr.mxu0 0.0
      %5778 = vmatpush2.msra.mxu0 0.0
      %5779 = vmatprep.subr.mxu0 0.0
      %5780 = vmatpush2.msra.mxu0 0.0
      %5781 = vmatprep.subr.mxu0 0.0
      %5782 = vmatpush2.msra.mxu0 0.0
      %5783 = vmatprep.subr.mxu0 0.0
      %5784 = vmatpush2.msra.mxu0 0.0
      %5785 = vmatprep.subr.mxu0 0.0
      %5786 = vmatpush2.msra.mxu0 0.0
      %5787 = vmatprep.subr.mxu0 0.0
      %5788 = vmatpush2.msra.mxu0 0.0
      %5789 = vmatprep.mubr.f32.mxu0 0.0
      %5790 = vmatmul.mubr.f32.gmra.mxu0 %v5714
      %v5791 = vpop.f32.mrf.mxu0
      %v5792 = vadd.f32 0.0, %v5791
      %v5793 = vpop.f32.mrf.mxu0
      %5794 = vmatprep.mubr.f32.mxu0 0.0
      %5795 = vmatmul.mubr.f32.gmra.mxu0 %v5717
      %v5796 = vpop.f32.mrf.mxu0
      %v5797 = vadd.f32 0.0, %v5796
      %v5798 = vpop.f32.mrf.mxu0
      %5799 = vmatprep.mubr.f32.mxu0 0.0
      %5800 = vmatmul.mubr.f32.gmra.mxu0 %v5720
      %v5801 = vpop.f32.mrf.mxu0
      %v5802 = vadd.f32 0.0, %v5801
      %v5803 = vpop.f32.mrf.mxu0
      %5804 = vmatprep.mubr.f32.mxu0 0.0
      %5805 = vmatmul.mubr.f32.gmra.mxu0 %v5723
      %v5806 = vpop.f32.mrf.mxu0
      %v5807 = vadd.f32 0.0, %v5806
      %v5808 = vpop.f32.mrf.mxu0
      %5809 = vdwg.mxu0
      %v5810 = vadd.f32 %v5698, %v5792
      %v5811 = vadd.f32 %v5699, %v5797
      %v5812 = vadd.f32 %v5700, %v5802
      %v5813 = vadd.f32 %v5701, %v5807
      %s5814 = scalar_lea.vmem %s3, 224
      %v5815 = vld [vmem:[%s5814] sm:$0xff]
      %v5816 = vld [vmem:[%s5814 + $0x8] sm:$0xff]
      %v5817 = vld [vmem:[%s5814 + $0x10] sm:$0xff]
      %v5818 = vld [vmem:[%s5814 + $0x18] sm:$0xff]
      %5819 = vrot.lane.b32.xlu0 %v5044, 105
      %v5820 = vpop.permute.xlu0 %5819
      %5821 = vrot.lane.b32.xlu0 %v5045, 105
      %v5822 = vpop.permute.xlu0 %5821
      %v5826 = vsel %vm5059, %v5815, 0
      %v5829 = vsel %vm5059, %v5816, 0
      %v5832 = vsel %vm5059, %v5817, 0
      %v5835 = vsel %vm5059, %v5818, 0
      %5837 = vmatprep.subr.mxu0 0.0
      %5838 = vmatpush1.msra.mxu0 0.0
      %5839 = vmatprep.subr.mxu0 0.0
      %5840 = vmatpush1.msra.mxu0 0.0
      %5841 = vmatprep.subr.mxu0 0.0
      %5842 = vmatpush1.msra.mxu0 0.0
      %5843 = vmatprep.subr.mxu0 0.0
      %5844 = vmatpush1.msra.mxu0 0.0
      %5845 = vmatprep.subr.mxu0 0.0
      %5846 = vmatpush1.msra.mxu0 0.0
      %5847 = vmatprep.subr.mxu0 0.0
      %5848 = vmatpush1.msra.mxu0 0.0
      %5849 = vmatprep.subr.mxu0 0.0
      %5850 = vmatpush1.msra.mxu0 0.0
      %5851 = vmatprep.subr.mxu0 0.0
      %5852 = vmatpush1.msra.mxu0 0.0
      %5853 = vmatprep.subr.mxu0 0.0
      %5854 = vmatpush1.msra.mxu0 0.0
      %5855 = vmatprep.subr.mxu0 0.0
      %5856 = vmatpush1.msra.mxu0 0.0
      %5857 = vmatprep.subr.mxu0 0.0
      %5858 = vmatpush1.msra.mxu0 0.0
      %5859 = vmatprep.subr.mxu0 0.0
      %5860 = vmatpush1.msra.mxu0 0.0
      %5861 = vmatprep.subr.mxu0 0.0
      %5862 = vmatpush1.msra.mxu0 0.0
      %5863 = vmatprep.subr.mxu0 0.0
      %5864 = vmatpush1.msra.mxu0 0.0
      %5865 = vmatprep.subr.mxu0 0.0
      %5866 = vmatpush1.msra.mxu0 %v5822
      %5867 = vmatprep.subr.mxu0 0.0
      %5868 = vmatpush1.msra.mxu0 %v5820
      %5869 = vmatprep.subr.mxu0 0.0
      %5870 = vmatpush2.msra.mxu0 0.0
      %5871 = vmatprep.subr.mxu0 0.0
      %5872 = vmatpush2.msra.mxu0 0.0
      %5873 = vmatprep.subr.mxu0 0.0
      %5874 = vmatpush2.msra.mxu0 0.0
      %5875 = vmatprep.subr.mxu0 0.0
      %5876 = vmatpush2.msra.mxu0 0.0
      %5877 = vmatprep.subr.mxu0 0.0
      %5878 = vmatpush2.msra.mxu0 0.0
      %5879 = vmatprep.subr.mxu0 0.0
      %5880 = vmatpush2.msra.mxu0 0.0
      %5881 = vmatprep.subr.mxu0 0.0
      %5882 = vmatpush2.msra.mxu0 0.0
      %5883 = vmatprep.subr.mxu0 0.0
      %5884 = vmatpush2.msra.mxu0 0.0
      %5885 = vmatprep.subr.mxu0 0.0
      %5886 = vmatpush2.msra.mxu0 0.0
      %5887 = vmatprep.subr.mxu0 0.0
      %5888 = vmatpush2.msra.mxu0 0.0
      %5889 = vmatprep.subr.mxu0 0.0
      %5890 = vmatpush2.msra.mxu0 0.0
      %5891 = vmatprep.subr.mxu0 0.0
      %5892 = vmatpush2.msra.mxu0 0.0
      %5893 = vmatprep.subr.mxu0 0.0
      %5894 = vmatpush2.msra.mxu0 0.0
      %5895 = vmatprep.subr.mxu0 0.0
      %5896 = vmatpush2.msra.mxu0 0.0
      %5897 = vmatprep.subr.mxu0 0.0
      %5898 = vmatpush2.msra.mxu0 0.0
      %5899 = vmatprep.subr.mxu0 0.0
      %5900 = vmatpush2.msra.mxu0 0.0
      %5901 = vmatprep.mubr.f32.mxu0 0.0
      %5902 = vmatmul.mubr.f32.gmra.mxu0 %v5826
      %v5903 = vpop.f32.mrf.mxu0
      %v5904 = vadd.f32 0.0, %v5903
      %v5905 = vpop.f32.mrf.mxu0
      %5906 = vmatprep.mubr.f32.mxu0 0.0
      %5907 = vmatmul.mubr.f32.gmra.mxu0 %v5829
      %v5908 = vpop.f32.mrf.mxu0
      %v5909 = vadd.f32 0.0, %v5908
      %v5910 = vpop.f32.mrf.mxu0
      %5911 = vmatprep.mubr.f32.mxu0 0.0
      %5912 = vmatmul.mubr.f32.gmra.mxu0 %v5832
      %v5913 = vpop.f32.mrf.mxu0
      %v5914 = vadd.f32 0.0, %v5913
      %v5915 = vpop.f32.mrf.mxu0
      %5916 = vmatprep.mubr.f32.mxu0 0.0
      %5917 = vmatmul.mubr.f32.gmra.mxu0 %v5835
      %v5918 = vpop.f32.mrf.mxu0
      %v5919 = vadd.f32 0.0, %v5918
      %v5920 = vpop.f32.mrf.mxu0
      %5921 = vdwg.mxu0
      %v5922 = vadd.f32 %v5810, %v5904
      %v5923 = vadd.f32 %v5811, %v5909
      %v5924 = vadd.f32 %v5812, %v5914
      %v5925 = vadd.f32 %v5813, %v5919
      %s5926 = scalar_lea.vmem %s3, 256
      %v5927 = vld [vmem:[%s5926] sm:$0xff]
      %v5928 = vld [vmem:[%s5926 + $0x8] sm:$0xff]
      %v5929 = vld [vmem:[%s5926 + $0x10] sm:$0xff]
      %v5930 = vld [vmem:[%s5926 + $0x18] sm:$0xff]
      %5931 = vrot.lane.b32.xlu0 %v5044, 104
      %v5932 = vpop.permute.xlu0 %5931
      %5933 = vrot.lane.b32.xlu0 %v5045, 104
      %v5934 = vpop.permute.xlu0 %5933
      %v5938 = vsel %vm5059, %v5927, 0
      %v5941 = vsel %vm5059, %v5928, 0
      %v5944 = vsel %vm5059, %v5929, 0
      %v5947 = vsel %vm5059, %v5930, 0
      %5949 = vmatprep.subr.mxu0 0.0
      %5950 = vmatpush1.msra.mxu0 0.0
      %5951 = vmatprep.subr.mxu0 0.0
      %5952 = vmatpush1.msra.mxu0 0.0
      %5953 = vmatprep.subr.mxu0 0.0
      %5954 = vmatpush1.msra.mxu0 0.0
      %5955 = vmatprep.subr.mxu0 0.0
      %5956 = vmatpush1.msra.mxu0 0.0
      %5957 = vmatprep.subr.mxu0 0.0
      %5958 = vmatpush1.msra.mxu0 0.0
      %5959 = vmatprep.subr.mxu0 0.0
      %5960 = vmatpush1.msra.mxu0 0.0
      %5961 = vmatprep.subr.mxu0 0.0
      %5962 = vmatpush1.msra.mxu0 0.0
      %5963 = vmatprep.subr.mxu0 0.0
      %5964 = vmatpush1.msra.mxu0 0.0
      %5965 = vmatprep.subr.mxu0 0.0
      %5966 = vmatpush1.msra.mxu0 0.0
      %5967 = vmatprep.subr.mxu0 0.0
      %5968 = vmatpush1.msra.mxu0 0.0
      %5969 = vmatprep.subr.mxu0 0.0
      %5970 = vmatpush1.msra.mxu0 0.0
      %5971 = vmatprep.subr.mxu0 0.0
      %5972 = vmatpush1.msra.mxu0 0.0
      %5973 = vmatprep.subr.mxu0 0.0
      %5974 = vmatpush1.msra.mxu0 0.0
      %5975 = vmatprep.subr.mxu0 0.0
      %5976 = vmatpush1.msra.mxu0 0.0
      %5977 = vmatprep.subr.mxu0 0.0
      %5978 = vmatpush1.msra.mxu0 %v5934
      %5979 = vmatprep.subr.mxu0 0.0
      %5980 = vmatpush1.msra.mxu0 %v5932
      %5981 = vmatprep.subr.mxu0 0.0
      %5982 = vmatpush2.msra.mxu0 0.0
      %5983 = vmatprep.subr.mxu0 0.0
      %5984 = vmatpush2.msra.mxu0 0.0
      %5985 = vmatprep.subr.mxu0 0.0
      %5986 = vmatpush2.msra.mxu0 0.0
      %5987 = vmatprep.subr.mxu0 0.0
      %5988 = vmatpush2.msra.mxu0 0.0
      %5989 = vmatprep.subr.mxu0 0.0
      %5990 = vmatpush2.msra.mxu0 0.0
      %5991 = vmatprep.subr.mxu0 0.0
      %5992 = vmatpush2.msra.mxu0 0.0
      %5993 = vmatprep.subr.mxu0 0.0
      %5994 = vmatpush2.msra.mxu0 0.0
      %5995 = vmatprep.subr.mxu0 0.0
      %5996 = vmatpush2.msra.mxu0 0.0
      %5997 = vmatprep.subr.mxu0 0.0
      %5998 = vmatpush2.msra.mxu0 0.0
      %5999 = vmatprep.subr.mxu0 0.0
      %6000 = vmatpush2.msra.mxu0 0.0
      %6001 = vmatprep.subr.mxu0 0.0
      %6002 = vmatpush2.msra.mxu0 0.0
      %6003 = vmatprep.subr.mxu0 0.0
      %6004 = vmatpush2.msra.mxu0 0.0
      %6005 = vmatprep.subr.mxu0 0.0
      %6006 = vmatpush2.msra.mxu0 0.0
      %6007 = vmatprep.subr.mxu0 0.0
      %6008 = vmatpush2.msra.mxu0 0.0
      %6009 = vmatprep.subr.mxu0 0.0
      %6010 = vmatpush2.msra.mxu0 0.0
      %6011 = vmatprep.subr.mxu0 0.0
      %6012 = vmatpush2.msra.mxu0 0.0
      %6013 = vmatprep.mubr.f32.mxu0 0.0
      %6014 = vmatmul.mubr.f32.gmra.mxu0 %v5938
      %v6015 = vpop.f32.mrf.mxu0
      %v6016 = vadd.f32 0.0, %v6015
      %v6017 = vpop.f32.mrf.mxu0
      %6018 = vmatprep.mubr.f32.mxu0 0.0
      %6019 = vmatmul.mubr.f32.gmra.mxu0 %v5941
      %v6020 = vpop.f32.mrf.mxu0
      %v6021 = vadd.f32 0.0, %v6020
      %v6022 = vpop.f32.mrf.mxu0
      %6023 = vmatprep.mubr.f32.mxu0 0.0
      %6024 = vmatmul.mubr.f32.gmra.mxu0 %v5944
      %v6025 = vpop.f32.mrf.mxu0
      %v6026 = vadd.f32 0.0, %v6025
      %v6027 = vpop.f32.mrf.mxu0
      %6028 = vmatprep.mubr.f32.mxu0 0.0
      %6029 = vmatmul.mubr.f32.gmra.mxu0 %v5947
      %v6030 = vpop.f32.mrf.mxu0
      %v6031 = vadd.f32 0.0, %v6030
      %v6032 = vpop.f32.mrf.mxu0
      %6033 = vdwg.mxu0
      %v6034 = vadd.f32 %v5922, %v6016
      %v6035 = vadd.f32 %v5923, %v6021
      %v6036 = vadd.f32 %v5924, %v6026
      %v6037 = vadd.f32 %v5925, %v6031
      %v6038 = vld [vmem:[%s4] sm:$0xff]
      %v6039 = vld [vmem:[%s4 + $0x8] sm:$0xff]
      %v6040 = vld [vmem:[%s4 + $0x10] sm:$0xff]
      %v6041 = vld [vmem:[%s4 + $0x18] sm:$0xff]
      %6043 = vset.pattern.permute.xlu0 0
      %6044 = vperm.xlu0 %6043, %v6038
      %v6045 = vpop.permute.xlu0 %6044
      %6048 = vset.pattern.permute.xlu0 0
      %6049 = vperm.xlu0 %6048, %v6039
      %v6050 = vpop.permute.xlu0 %6049
      %6053 = vset.pattern.permute.xlu0 0
      %6054 = vperm.xlu0 %6053, %v6040
      %v6055 = vpop.permute.xlu0 %6054
      %6058 = vset.pattern.permute.xlu0 0
      %6059 = vperm.xlu0 %6058, %v6041
      %v6060 = vpop.permute.xlu0 %6059
      %v6062 = vadd.f32 %v6034, %v6045
      %v6063 = vadd.f32 %v6035, %v6050
      %v6064 = vadd.f32 %v6036, %v6055
      %v6065 = vadd.f32 %v6037, %v6060
      %vm6066 = vcmp.lt.s32.totalorder %v3493, 0
      %v6067 = vsub.s32 0, %v3493
      %v6068 = vsel %vm6066, %v6067, %v3493
      %v6069 = vmul.u32.u64.compose %v6068, 3123612579
      %v6070 = vextract.low.u32 %v6069
      %v6071 = vextract.high.u32 %v6069
      %v6072 = vshrl.u32 %v6071, 3
      %v6073 = vmul.u32 %v6072, 11
      %v6074 = vsub.s32 %v6068, %v6073
      %v6075 = vsub.s32 0, %v6074
      %v6076 = vsel %vm6066, %v6075, %v6074
      %vm6077 = vcmp.ne.s32.totalorder %v6076, 0
      %vm6078 = vcmp.lt.s32.totalorder %v6076, 0
      %vm6079 = vmand %vm6078, %vm6077
      %v6080 = vadd.s32 %v6076, 11
      %v6081 = vsel %vm6079, %v6080, %v6076
      %vm6082 = vcmp.lt.s32.totalorder %v6081, 9
      %v6083 = vsel %vm6082, 1, 0
      %vm6084 = vcmp.eq.s32.totalorder %v6083, 1
      %v6085 = vsel %vm6084, %v6062, -inf
      %v6086 = vsel %vm6084, %v6063, -inf
      %v6087 = vsel %vm6084, %v6064, -inf
      %v6088 = vsel %vm6084, %v6065, -inf
      %6093 = vrot.lane.b32.xlu0 %v6085, 12
      %v6094 = vpop.permute.xlu0 %6093
      %6095 = vrot.lane.b32.xlu0 %v6086, 12
      %v6096 = vpop.permute.xlu0 %6095
      %6097 = vrot.lane.b32.xlu0 %v6087, 12
      %v6098 = vpop.permute.xlu0 %6097
      %6099 = vrot.lane.b32.xlu0 %v6088, 12
      %v6100 = vpop.permute.xlu0 %6099
      %vm6105 = vcmask 908384
      %6106 = vst.msk [vmem:[#allocation4] sm:$0xff] %vm6105, %v6094
      %6107 = vst.msk [vmem:[#allocation4 + $0x8] sm:$0xff] %vm6105, %v6096
      %6108 = vst.msk [vmem:[#allocation4 + $0x10] sm:$0xff] %vm6105, %v6098
      %6109 = vst.msk [vmem:[#allocation4 + $0x18] sm:$0xff] %vm6105, %v6100
      %v6110 = vsel %vm3738, 1.0, 0.0
      %v6111 = vsel %vm3739, 1.0, 0.0
      %v6112 = vld [vmem:[#allocation4] sm:$0xff]
      %v6113 = vld [vmem:[#allocation4 + $0x8] sm:$0xff]
      %v6114 = vld [vmem:[#allocation4 + $0x10] sm:$0xff]
      %v6115 = vld [vmem:[#allocation4 + $0x18] sm:$0xff]
      %6120 = vrot.lane.b32.xlu0 %v6112, 117
      %v6121 = vpop.permute.xlu0 %6120
      %6122 = vrot.lane.b32.xlu0 %v6113, 117
      %v6123 = vpop.permute.xlu0 %6122
      %6124 = vrot.lane.b32.xlu0 %v6114, 117
      %v6125 = vpop.permute.xlu0 %6124
      %6126 = vrot.lane.b32.xlu0 %v6115, 117
      %v6127 = vpop.permute.xlu0 %6126
      %v6132 = vmax.f32 %v6112, %v6121
      %v6133 = vmax.f32 %v6113, %v6123
      %v6134 = vmax.f32 %v6114, %v6125
      %v6135 = vmax.f32 %v6115, %v6127
      %6136 = vrot.lane.b32.xlu0 %v6112, 106
      %v6137 = vpop.permute.xlu0 %6136
      %6138 = vrot.lane.b32.xlu0 %v6113, 106
      %v6139 = vpop.permute.xlu0 %6138
      %6140 = vrot.lane.b32.xlu0 %v6114, 106
      %v6141 = vpop.permute.xlu0 %6140
      %6142 = vrot.lane.b32.xlu0 %v6115, 106
      %v6143 = vpop.permute.xlu0 %6142
      %v6148 = vmax.f32 %v6132, %v6137
      %v6149 = vmax.f32 %v6133, %v6139
      %v6150 = vmax.f32 %v6134, %v6141
      %v6151 = vmax.f32 %v6135, %v6143
      %6156 = vrot.lane.b32.xlu0 %v6148, 127
      %v6157 = vpop.permute.xlu0 %6156
      %6158 = vrot.lane.b32.xlu0 %v6149, 127
      %v6159 = vpop.permute.xlu0 %6158
      %6160 = vrot.lane.b32.xlu0 %v6150, 127
      %v6161 = vpop.permute.xlu0 %6160
      %6162 = vrot.lane.b32.xlu0 %v6151, 127
      %v6163 = vpop.permute.xlu0 %6162
      %v6168 = vmax.f32 %v6148, %v6157
      %v6169 = vmax.f32 %v6149, %v6159
      %v6170 = vmax.f32 %v6150, %v6161
      %v6171 = vmax.f32 %v6151, %v6163
      %6172 = vrot.lane.b32.xlu0 %v6148, 126
      %v6173 = vpop.permute.xlu0 %6172
      %6174 = vrot.lane.b32.xlu0 %v6149, 126
      %v6175 = vpop.permute.xlu0 %6174
      %6176 = vrot.lane.b32.xlu0 %v6150, 126
      %v6177 = vpop.permute.xlu0 %6176
      %6178 = vrot.lane.b32.xlu0 %v6151, 126
      %v6179 = vpop.permute.xlu0 %6178
      %v6184 = vmax.f32 %v6168, %v6173
      %v6185 = vmax.f32 %v6169, %v6175
      %v6186 = vmax.f32 %v6170, %v6177
      %v6187 = vmax.f32 %v6171, %v6179
      %vm6188 = vcmask 72704
      %v6190 = vsel %vm6188, %v6184, 0
      %v6193 = vsel %vm6188, %v6185, 0
      %v6196 = vsel %vm6188, %v6186, 0
      %v6199 = vsel %vm6188, %v6187, 0
      %vm6201 = vcmask 1040384
      %v6203 = vsel %vm6201, %v6111, 0
      %6205 = vmatprep.subr.mxu0 0.0
      %6206 = vmatpush1.msra.mxu0 0.0
      %6207 = vmatprep.subr.mxu0 0.0
      %6208 = vmatpush1.msra.mxu0 0.0
      %6209 = vmatprep.subr.mxu0 0.0
      %6210 = vmatpush1.msra.mxu0 0.0
      %6211 = vmatprep.subr.mxu0 0.0
      %6212 = vmatpush1.msra.mxu0 0.0
      %6213 = vmatprep.subr.mxu0 0.0
      %6214 = vmatpush1.msra.mxu0 0.0
      %6215 = vmatprep.subr.mxu0 0.0
      %6216 = vmatpush1.msra.mxu0 0.0
      %6217 = vmatprep.subr.mxu0 0.0
      %6218 = vmatpush1.msra.mxu0 0.0
      %6219 = vmatprep.subr.mxu0 0.0
      %6220 = vmatpush1.msra.mxu0 0.0
      %6221 = vmatprep.subr.mxu0 0.0
      %6222 = vmatpush1.msra.mxu0 0.0
      %6223 = vmatprep.subr.mxu0 0.0
      %6224 = vmatpush1.msra.mxu0 0.0
      %6225 = vmatprep.subr.mxu0 0.0
      %6226 = vmatpush1.msra.mxu0 0.0
      %6227 = vmatprep.subr.mxu0 0.0
      %6228 = vmatpush1.msra.mxu0 0.0
      %6229 = vmatprep.subr.mxu0 0.0
      %6230 = vmatpush1.msra.mxu0 0.0
      %6231 = vmatprep.subr.mxu0 0.0
      %6232 = vmatpush1.msra.mxu0 0.0
      %6233 = vmatprep.subr.mxu0 0.0
      %6234 = vmatpush1.msra.mxu0 %v6203
      %6235 = vmatprep.subr.mxu0 0.0
      %6236 = vmatpush1.msra.mxu0 %v6110
      %6237 = vmatprep.subr.mxu0 0.0
      %6238 = vmatpush2.msra.mxu0 0.0
      %6239 = vmatprep.subr.mxu0 0.0
      %6240 = vmatpush2.msra.mxu0 0.0
      %6241 = vmatprep.subr.mxu0 0.0
      %6242 = vmatpush2.msra.mxu0 0.0
      %6243 = vmatprep.subr.mxu0 0.0
      %6244 = vmatpush2.msra.mxu0 0.0
      %6245 = vmatprep.subr.mxu0 0.0
      %6246 = vmatpush2.msra.mxu0 0.0
      %6247 = vmatprep.subr.mxu0 0.0
      %6248 = vmatpush2.msra.mxu0 0.0
      %6249 = vmatprep.subr.mxu0 0.0
      %6250 = vmatpush2.msra.mxu0 0.0
      %6251 = vmatprep.subr.mxu0 0.0
      %6252 = vmatpush2.msra.mxu0 0.0
      %6253 = vmatprep.subr.mxu0 0.0
      %6254 = vmatpush2.msra.mxu0 0.0
      %6255 = vmatprep.subr.mxu0 0.0
      %6256 = vmatpush2.msra.mxu0 0.0
      %6257 = vmatprep.subr.mxu0 0.0
      %6258 = vmatpush2.msra.mxu0 0.0
      %6259 = vmatprep.subr.mxu0 0.0
      %6260 = vmatpush2.msra.mxu0 0.0
      %6261 = vmatprep.subr.mxu0 0.0
      %6262 = vmatpush2.msra.mxu0 0.0
      %6263 = vmatprep.subr.mxu0 0.0
      %6264 = vmatpush2.msra.mxu0 0.0
      %6265 = vmatprep.subr.mxu0 0.0
      %6266 = vmatpush2.msra.mxu0 0.0
      %6267 = vmatprep.subr.mxu0 0.0
      %6268 = vmatpush2.msra.mxu0 0.0
      %6269 = vmatprep.mubr.f32.mxu0 0.0
      %6270 = vmatmul.mubr.f32.gmra.mxu0 %v6190
      %v6271 = vpop.f32.mrf.mxu0
      %v6272 = vadd.f32 0.0, %v6271
      %v6273 = vpop.f32.mrf.mxu0
      %6274 = vmatprep.mubr.f32.mxu0 0.0
      %6275 = vmatmul.mubr.f32.gmra.mxu0 %v6193
      %v6276 = vpop.f32.mrf.mxu0
      %v6277 = vadd.f32 0.0, %v6276
      %v6278 = vpop.f32.mrf.mxu0
      %6279 = vmatprep.mubr.f32.mxu0 0.0
      %6280 = vmatmul.mubr.f32.gmra.mxu0 %v6196
      %v6281 = vpop.f32.mrf.mxu0
      %v6282 = vadd.f32 0.0, %v6281
      %v6283 = vpop.f32.mrf.mxu0
      %6284 = vmatprep.mubr.f32.mxu0 0.0
      %6285 = vmatmul.mubr.f32.gmra.mxu0 %v6199
      %v6286 = vpop.f32.mrf.mxu0
      %v6287 = vadd.f32 0.0, %v6286
      %v6288 = vpop.f32.mrf.mxu0
      %6289 = vdwg.mxu0
      %v6290 = vmax.f32 %v6272, 0.0
      %v6291 = vmax.f32 %v6277, 0.0
      %v6292 = vmax.f32 %v6282, 0.0
      %v6293 = vmax.f32 %v6287, 0.0
      %6298 = vrot.lane.b32.xlu0 %v6290, 6
      %v6299 = vpop.permute.xlu0 %6298
      %6300 = vrot.lane.b32.xlu0 %v6291, 6
      %v6301 = vpop.permute.xlu0 %6300
      %6302 = vrot.lane.b32.xlu0 %v6292, 6
      %v6303 = vpop.permute.xlu0 %6302
      %6304 = vrot.lane.b32.xlu0 %v6293, 6
      %v6305 = vpop.permute.xlu0 %6304
      %vm6310 = vcmask 72752
      %6311 = vst.msk [vmem:[#allocation5] sm:$0xff] %vm6310, %v6299
      %6312 = vst.msk [vmem:[#allocation5 + $0x8] sm:$0xff] %vm6310, %v6301
      %6313 = vst.msk [vmem:[#allocation5 + $0x10] sm:$0xff] %vm6310, %v6303
      %6314 = vst.msk [vmem:[#allocation5 + $0x18] sm:$0xff] %vm6310, %v6305
      %v6315 = vld [vmem:[#allocation4] sm:$0xff]
      %v6316 = vld [vmem:[#allocation4 + $0x8] sm:$0xff]
      %v6317 = vld [vmem:[#allocation4 + $0x10] sm:$0xff]
      %v6318 = vld [vmem:[#allocation4 + $0x18] sm:$0xff]
      %6323 = vrot.lane.b32.xlu0 %v6315, 117
      %v6324 = vpop.permute.xlu0 %6323
      %6325 = vrot.lane.b32.xlu0 %v6316, 117
      %v6326 = vpop.permute.xlu0 %6325
      %6327 = vrot.lane.b32.xlu0 %v6317, 117
      %v6328 = vpop.permute.xlu0 %6327
      %6329 = vrot.lane.b32.xlu0 %v6318, 117
      %v6330 = vpop.permute.xlu0 %6329
      %v6335 = vmax.f32 %v6315, %v6324
      %v6336 = vmax.f32 %v6316, %v6326
      %v6337 = vmax.f32 %v6317, %v6328
      %v6338 = vmax.f32 %v6318, %v6330
      %6339 = vrot.lane.b32.xlu0 %v6315, 106
      %v6340 = vpop.permute.xlu0 %6339
      %6341 = vrot.lane.b32.xlu0 %v6316, 106
      %v6342 = vpop.permute.xlu0 %6341
      %6343 = vrot.lane.b32.xlu0 %v6317, 106
      %v6344 = vpop.permute.xlu0 %6343
      %6345 = vrot.lane.b32.xlu0 %v6318, 106
      %v6346 = vpop.permute.xlu0 %6345
      %v6351 = vmax.f32 %v6335, %v6340
      %v6352 = vmax.f32 %v6336, %v6342
      %v6353 = vmax.f32 %v6337, %v6344
      %v6354 = vmax.f32 %v6338, %v6346
      %6359 = vrot.lane.b32.xlu0 %v6351, 127
      %v6360 = vpop.permute.xlu0 %6359
      %6361 = vrot.lane.b32.xlu0 %v6352, 127
      %v6362 = vpop.permute.xlu0 %6361
      %6363 = vrot.lane.b32.xlu0 %v6353, 127
      %v6364 = vpop.permute.xlu0 %6363
      %6365 = vrot.lane.b32.xlu0 %v6354, 127
      %v6366 = vpop.permute.xlu0 %6365
      %v6371 = vmax.f32 %v6351, %v6360
      %v6372 = vmax.f32 %v6352, %v6362
      %v6373 = vmax.f32 %v6353, %v6364
      %v6374 = vmax.f32 %v6354, %v6366
      %6375 = vrot.lane.b32.xlu0 %v6351, 126
      %v6376 = vpop.permute.xlu0 %6375
      %6377 = vrot.lane.b32.xlu0 %v6352, 126
      %v6378 = vpop.permute.xlu0 %6377
      %6379 = vrot.lane.b32.xlu0 %v6353, 126
      %v6380 = vpop.permute.xlu0 %6379
      %6381 = vrot.lane.b32.xlu0 %v6354, 126
      %v6382 = vpop.permute.xlu0 %6381
      %v6387 = vmax.f32 %v6371, %v6376
      %v6388 = vmax.f32 %v6372, %v6378
      %v6389 = vmax.f32 %v6373, %v6380
      %v6390 = vmax.f32 %v6374, %v6382
      %6395 = vrot.lane.b32.xlu0 %v6387, 95
      %v6396 = vpop.permute.xlu0 %6395
      %6397 = vrot.lane.b32.xlu0 %v6388, 95
      %v6398 = vpop.permute.xlu0 %6397
      %6399 = vrot.lane.b32.xlu0 %v6389, 95
      %v6400 = vpop.permute.xlu0 %6399
      %6401 = vrot.lane.b32.xlu0 %v6390, 95
      %v6402 = vpop.permute.xlu0 %6401
      %v6403 = vsel %vm6188, %v6396, 0
      %v6405 = vsel %vm6188, %v6398, 0
      %v6407 = vsel %vm6188, %v6400, 0
      %v6409 = vsel %vm6188, %v6402, 0
      %6411 = vmatprep.subr.mxu0 0.0
      %6412 = vmatpush1.msra.mxu0 0.0
      %6413 = vmatprep.subr.mxu0 0.0
      %6414 = vmatpush1.msra.mxu0 0.0
      %6415 = vmatprep.subr.mxu0 0.0
      %6416 = vmatpush1.msra.mxu0 0.0
      %6417 = vmatprep.subr.mxu0 0.0
      %6418 = vmatpush1.msra.mxu0 0.0
      %6419 = vmatprep.subr.mxu0 0.0
      %6420 = vmatpush1.msra.mxu0 0.0
      %6421 = vmatprep.subr.mxu0 0.0
      %6422 = vmatpush1.msra.mxu0 0.0
      %6423 = vmatprep.subr.mxu0 0.0
      %6424 = vmatpush1.msra.mxu0 0.0
      %6425 = vmatprep.subr.mxu0 0.0
      %6426 = vmatpush1.msra.mxu0 0.0
      %6427 = vmatprep.subr.mxu0 0.0
      %6428 = vmatpush1.msra.mxu0 0.0
      %6429 = vmatprep.subr.mxu0 0.0
      %6430 = vmatpush1.msra.mxu0 0.0
      %6431 = vmatprep.subr.mxu0 0.0
      %6432 = vmatpush1.msra.mxu0 0.0
      %6433 = vmatprep.subr.mxu0 0.0
      %6434 = vmatpush1.msra.mxu0 0.0
      %6435 = vmatprep.subr.mxu0 0.0
      %6436 = vmatpush1.msra.mxu0 0.0
      %6437 = vmatprep.subr.mxu0 0.0
      %6438 = vmatpush1.msra.mxu0 0.0
      %6439 = vmatprep.subr.mxu0 0.0
      %6440 = vmatpush1.msra.mxu0 %v6203
      %6441 = vmatprep.subr.mxu0 0.0
      %6442 = vmatpush1.msra.mxu0 %v6110
      %6443 = vmatprep.subr.mxu0 0.0
      %6444 = vmatpush2.msra.mxu0 0.0
      %6445 = vmatprep.subr.mxu0 0.0
      %6446 = vmatpush2.msra.mxu0 0.0
      %6447 = vmatprep.subr.mxu0 0.0
      %6448 = vmatpush2.msra.mxu0 0.0
      %6449 = vmatprep.subr.mxu0 0.0
      %6450 = vmatpush2.msra.mxu0 0.0
      %6451 = vmatprep.subr.mxu0 0.0
      %6452 = vmatpush2.msra.mxu0 0.0
      %6453 = vmatprep.subr.mxu0 0.0
      %6454 = vmatpush2.msra.mxu0 0.0
      %6455 = vmatprep.subr.mxu0 0.0
      %6456 = vmatpush2.msra.mxu0 0.0
      %6457 = vmatprep.subr.mxu0 0.0
      %6458 = vmatpush2.msra.mxu0 0.0
      %6459 = vmatprep.subr.mxu0 0.0
      %6460 = vmatpush2.msra.mxu0 0.0
      %6461 = vmatprep.subr.mxu0 0.0
      %6462 = vmatpush2.msra.mxu0 0.0
      %6463 = vmatprep.subr.mxu0 0.0
      %6464 = vmatpush2.msra.mxu0 0.0
      %6465 = vmatprep.subr.mxu0 0.0
      %6466 = vmatpush2.msra.mxu0 0.0
      %6467 = vmatprep.subr.mxu0 0.0
      %6468 = vmatpush2.msra.mxu0 0.0
      %6469 = vmatprep.subr.mxu0 0.0
      %6470 = vmatpush2.msra.mxu0 0.0
      %6471 = vmatprep.subr.mxu0 0.0
      %6472 = vmatpush2.msra.mxu0 0.0
      %6473 = vmatprep.subr.mxu0 0.0
      %6474 = vmatpush2.msra.mxu0 0.0
      %6475 = vmatprep.mubr.f32.mxu0 0.0
      %6476 = vmatmul.mubr.f32.gmra.mxu0 %v6403
      %v6477 = vpop.f32.mrf.mxu0
      %v6478 = vadd.f32 0.0, %v6477
      %v6479 = vpop.f32.mrf.mxu0
      %6480 = vmatprep.mubr.f32.mxu0 0.0
      %6481 = vmatmul.mubr.f32.gmra.mxu0 %v6405
      %v6482 = vpop.f32.mrf.mxu0
      %v6483 = vadd.f32 0.0, %v6482
      %v6484 = vpop.f32.mrf.mxu0
      %6485 = vmatprep.mubr.f32.mxu0 0.0
      %6486 = vmatmul.mubr.f32.gmra.mxu0 %v6407
      %v6487 = vpop.f32.mrf.mxu0
      %v6488 = vadd.f32 0.0, %v6487
      %v6489 = vpop.f32.mrf.mxu0
      %6490 = vmatprep.mubr.f32.mxu0 0.0
      %6491 = vmatmul.mubr.f32.gmra.mxu0 %v6409
      %v6492 = vpop.f32.mrf.mxu0
      %v6493 = vadd.f32 0.0, %v6492
      %v6494 = vpop.f32.mrf.mxu0
      %6495 = vdwg.mxu0
      %v6496 = vmax.f32 %v6478, 0.0
      %v6497 = vmax.f32 %v6483, 0.0
      %v6498 = vmax.f32 %v6488, 0.0
      %v6499 = vmax.f32 %v6493, 0.0
      %6504 = vrot.lane.b32.xlu0 %v6496, 11
      %v6505 = vpop.permute.xlu0 %6504
      %6506 = vrot.lane.b32.xlu0 %v6497, 11
      %v6507 = vpop.permute.xlu0 %6506
      %6508 = vrot.lane.b32.xlu0 %v6498, 11
      %v6509 = vpop.permute.xlu0 %6508
      %6510 = vrot.lane.b32.xlu0 %v6499, 11
      %v6511 = vpop.permute.xlu0 %6510
      %vm6516 = vcmask 113752
      %6517 = vst.msk [vmem:[#allocation5] sm:$0xff] %vm6516, %v6505
      %6518 = vst.msk [vmem:[#allocation5 + $0x8] sm:$0xff] %vm6516, %v6507
      %6519 = vst.msk [vmem:[#allocation5 + $0x10] sm:$0xff] %vm6516, %v6509
      %6520 = vst.msk [vmem:[#allocation5 + $0x18] sm:$0xff] %vm6516, %v6511
      %v6521 = vld [vmem:[#allocation4] sm:$0xff]
      %v6522 = vld [vmem:[#allocation4 + $0x8] sm:$0xff]
      %v6523 = vld [vmem:[#allocation4 + $0x10] sm:$0xff]
      %v6524 = vld [vmem:[#allocation4 + $0x18] sm:$0xff]
      %6529 = vrot.lane.b32.xlu0 %v6521, 117
      %v6530 = vpop.permute.xlu0 %6529
      %6531 = vrot.lane.b32.xlu0 %v6522, 117
      %v6532 = vpop.permute.xlu0 %6531
      %6533 = vrot.lane.b32.xlu0 %v6523, 117
      %v6534 = vpop.permute.xlu0 %6533
      %6535 = vrot.lane.b32.xlu0 %v6524, 117
      %v6536 = vpop.permute.xlu0 %6535
      %v6541 = vmax.f32 %v6521, %v6530
      %v6542 = vmax.f32 %v6522, %v6532
      %v6543 = vmax.f32 %v6523, %v6534
      %v6544 = vmax.f32 %v6524, %v6536
      %6545 = vrot.lane.b32.xlu0 %v6521, 106
      %v6546 = vpop.permute.xlu0 %6545
      %6547 = vrot.lane.b32.xlu0 %v6522, 106
      %v6548 = vpop.permute.xlu0 %6547
      %6549 = vrot.lane.b32.xlu0 %v6523, 106
      %v6550 = vpop.permute.xlu0 %6549
      %6551 = vrot.lane.b32.xlu0 %v6524, 106
      %v6552 = vpop.permute.xlu0 %6551
      %v6557 = vmax.f32 %v6541, %v6546
      %v6558 = vmax.f32 %v6542, %v6548
      %v6559 = vmax.f32 %v6543, %v6550
      %v6560 = vmax.f32 %v6544, %v6552
      %6565 = vrot.lane.b32.xlu0 %v6557, 127
      %v6566 = vpop.permute.xlu0 %6565
      %6567 = vrot.lane.b32.xlu0 %v6558, 127
      %v6568 = vpop.permute.xlu0 %6567
      %6569 = vrot.lane.b32.xlu0 %v6559, 127
      %v6570 = vpop.permute.xlu0 %6569
      %6571 = vrot.lane.b32.xlu0 %v6560, 127
      %v6572 = vpop.permute.xlu0 %6571
      %v6577 = vmax.f32 %v6557, %v6566
      %v6578 = vmax.f32 %v6558, %v6568
      %v6579 = vmax.f32 %v6559, %v6570
      %v6580 = vmax.f32 %v6560, %v6572
      %6581 = vrot.lane.b32.xlu0 %v6557, 126
      %v6582 = vpop.permute.xlu0 %6581
      %6583 = vrot.lane.b32.xlu0 %v6558, 126
      %v6584 = vpop.permute.xlu0 %6583
      %6585 = vrot.lane.b32.xlu0 %v6559, 126
      %v6586 = vpop.permute.xlu0 %6585
      %6587 = vrot.lane.b32.xlu0 %v6560, 126
      %v6588 = vpop.permute.xlu0 %6587
      %v6593 = vmax.f32 %v6577, %v6582
      %v6594 = vmax.f32 %v6578, %v6584
      %v6595 = vmax.f32 %v6579, %v6586
      %v6596 = vmax.f32 %v6580, %v6588
      %6601 = vrot.lane.b32.xlu0 %v6593, 62
      %v6602 = vpop.permute.xlu0 %6601
      %6603 = vrot.lane.b32.xlu0 %v6594, 62
      %v6604 = vpop.permute.xlu0 %6603
      %6605 = vrot.lane.b32.xlu0 %v6595, 62
      %v6606 = vpop.permute.xlu0 %6605
      %6607 = vrot.lane.b32.xlu0 %v6596, 62
      %v6608 = vpop.permute.xlu0 %6607
      %v6609 = vsel %vm6188, %v6602, 0
      %v6611 = vsel %vm6188, %v6604, 0
      %v6613 = vsel %vm6188, %v6606, 0
      %v6615 = vsel %vm6188, %v6608, 0
      %6617 = vmatprep.subr.mxu0 0.0
      %6618 = vmatpush1.msra.mxu0 0.0
      %6619 = vmatprep.subr.mxu0 0.0
      %6620 = vmatpush1.msra.mxu0 0.0
      %6621 = vmatprep.subr.mxu0 0.0
      %6622 = vmatpush1.msra.mxu0 0.0
      %6623 = vmatprep.subr.mxu0 0.0
      %6624 = vmatpush1.msra.mxu0 0.0
      %6625 = vmatprep.subr.mxu0 0.0
      %6626 = vmatpush1.msra.mxu0 0.0
      %6627 = vmatprep.subr.mxu0 0.0
      %6628 = vmatpush1.msra.mxu0 0.0
      %6629 = vmatprep.subr.mxu0 0.0
      %6630 = vmatpush1.msra.mxu0 0.0
      %6631 = vmatprep.subr.mxu0 0.0
      %6632 = vmatpush1.msra.mxu0 0.0
      %6633 = vmatprep.subr.mxu0 0.0
      %6634 = vmatpush1.msra.mxu0 0.0
      %6635 = vmatprep.subr.mxu0 0.0
      %6636 = vmatpush1.msra.mxu0 0.0
      %6637 = vmatprep.subr.mxu0 0.0
      %6638 = vmatpush1.msra.mxu0 0.0
      %6639 = vmatprep.subr.mxu0 0.0
      %6640 = vmatpush1.msra.mxu0 0.0
      %6641 = vmatprep.subr.mxu0 0.0
      %6642 = vmatpush1.msra.mxu0 0.0
      %6643 = vmatprep.subr.mxu0 0.0
      %6644 = vmatpush1.msra.mxu0 0.0
      %6645 = vmatprep.subr.mxu0 0.0
      %6646 = vmatpush1.msra.mxu0 %v6203
      %6647 = vmatprep.subr.mxu0 0.0
      %6648 = vmatpush1.msra.mxu0 %v6110
      %6649 = vmatprep.subr.mxu0 0.0
      %6650 = vmatpush2.msra.mxu0 0.0
      %6651 = vmatprep.subr.mxu0 0.0
      %6652 = vmatpush2.msra.mxu0 0.0
      %6653 = vmatprep.subr.mxu0 0.0
      %6654 = vmatpush2.msra.mxu0 0.0
      %6655 = vmatprep.subr.mxu0 0.0
      %6656 = vmatpush2.msra.mxu0 0.0
      %6657 = vmatprep.subr.mxu0 0.0
      %6658 = vmatpush2.msra.mxu0 0.0
      %6659 = vmatprep.subr.mxu0 0.0
      %6660 = vmatpush2.msra.mxu0 0.0
      %6661 = vmatprep.subr.mxu0 0.0
      %6662 = vmatpush2.msra.mxu0 0.0
      %6663 = vmatprep.subr.mxu0 0.0
      %6664 = vmatpush2.msra.mxu0 0.0
      %6665 = vmatprep.subr.mxu0 0.0
      %6666 = vmatpush2.msra.mxu0 0.0
      %6667 = vmatprep.subr.mxu0 0.0
      %6668 = vmatpush2.msra.mxu0 0.0
      %6669 = vmatprep.subr.mxu0 0.0
      %6670 = vmatpush2.msra.mxu0 0.0
      %6671 = vmatprep.subr.mxu0 0.0
      %6672 = vmatpush2.msra.mxu0 0.0
      %6673 = vmatprep.subr.mxu0 0.0
      %6674 = vmatpush2.msra.mxu0 0.0
      %6675 = vmatprep.subr.mxu0 0.0
      %6676 = vmatpush2.msra.mxu0 0.0
      %6677 = vmatprep.subr.mxu0 0.0
      %6678 = vmatpush2.msra.mxu0 0.0
      %6679 = vmatprep.subr.mxu0 0.0
      %6680 = vmatpush2.msra.mxu0 0.0
      %6681 = vmatprep.mubr.f32.mxu0 0.0
      %6682 = vmatmul.mubr.f32.gmra.mxu0 %v6609
      %v6683 = vpop.f32.mrf.mxu0
      %v6684 = vadd.f32 0.0, %v6683
      %v6685 = vpop.f32.mrf.mxu0
      %6686 = vmatprep.mubr.f32.mxu0 0.0
      %6687 = vmatmul.mubr.f32.gmra.mxu0 %v6611
      %v6688 = vpop.f32.mrf.mxu0
      %v6689 = vadd.f32 0.0, %v6688
      %v6690 = vpop.f32.mrf.mxu0
      %6691 = vmatprep.mubr.f32.mxu0 0.0
      %6692 = vmatmul.mubr.f32.gmra.mxu0 %v6613
      %v6693 = vpop.f32.mrf.mxu0
      %v6694 = vadd.f32 0.0, %v6693
      %v6695 = vpop.f32.mrf.mxu0
      %6696 = vmatprep.mubr.f32.mxu0 0.0
      %6697 = vmatmul.mubr.f32.gmra.mxu0 %v6615
      %v6698 = vpop.f32.mrf.mxu0
      %v6699 = vadd.f32 0.0, %v6698
      %v6700 = vpop.f32.mrf.mxu0
      %6701 = vdwg.mxu0
      %v6702 = vmax.f32 %v6684, 0.0
      %v6703 = vmax.f32 %v6689, 0.0
      %v6704 = vmax.f32 %v6694, 0.0
      %v6705 = vmax.f32 %v6699, 0.0
      %6710 = vrot.lane.b32.xlu0 %v6702, 16
      %v6711 = vpop.permute.xlu0 %6710
      %6712 = vrot.lane.b32.xlu0 %v6703, 16
      %v6713 = vpop.permute.xlu0 %6712
      %6714 = vrot.lane.b32.xlu0 %v6704, 16
      %v6715 = vpop.permute.xlu0 %6714
      %6716 = vrot.lane.b32.xlu0 %v6705, 16
      %v6717 = vpop.permute.xlu0 %6716
      %vm6722 = vcmask 154752
      %6723 = vst.msk [vmem:[#allocation5] sm:$0xff] %vm6722, %v6711
      %6724 = vst.msk [vmem:[#allocation5 + $0x8] sm:$0xff] %vm6722, %v6713
      %6725 = vst.msk [vmem:[#allocation5 + $0x10] sm:$0xff] %vm6722, %v6715
      %6726 = vst.msk [vmem:[#allocation5 + $0x18] sm:$0xff] %vm6722, %v6717
      %vm6727 = vcmask 203776
      %6728 = vst.msk [vmem:[#allocation6] sm:$0xff] %vm6727, -inf
      %v6729 = vld [vmem:[%s5] sm:$0xff]
      %v6730 = vld [vmem:[#allocation5] sm:$0xff]
      %v6731 = vld [vmem:[#allocation5 + $0x8] sm:$0xff]
      %v6732 = vld [vmem:[#allocation5 + $0x10] sm:$0xff]
      %v6733 = vld [vmem:[#allocation5 + $0x18] sm:$0xff]
      %s6734 = scalar_lea.vmem %s5, 8
      %v6735 = vld [vmem:[%s6734] sm:$0xff]
      %6740 = vrot.lane.b32.xlu0 %v6730, 127
      %v6741 = vpop.permute.xlu0 %6740
      %6742 = vrot.lane.b32.xlu0 %v6731, 127
      %v6743 = vpop.permute.xlu0 %6742
      %6744 = vrot.lane.b32.xlu0 %v6732, 127
      %v6745 = vpop.permute.xlu0 %6744
      %6746 = vrot.lane.b32.xlu0 %v6733, 127
      %v6747 = vpop.permute.xlu0 %6746
      %vm6752 = vcmask 261120
      %v6754 = vsel %vm6752, %v6735, 0
      %6756 = vmatprep.subr.mxu0 0.0
      %6757 = vmatpush1.msra.mxu0 0.0
      %6758 = vmatprep.subr.mxu0 0.0
      %6759 = vmatpush1.msra.mxu0 0.0
      %6760 = vmatprep.subr.mxu0 0.0
      %6761 = vmatpush1.msra.mxu0 0.0
      %6762 = vmatprep.subr.mxu0 0.0
      %6763 = vmatpush1.msra.mxu0 0.0
      %6764 = vmatprep.subr.mxu0 0.0
      %6765 = vmatpush1.msra.mxu0 0.0
      %6766 = vmatprep.subr.mxu0 0.0
      %6767 = vmatpush1.msra.mxu0 0.0
      %6768 = vmatprep.subr.mxu0 0.0
      %6769 = vmatpush1.msra.mxu0 0.0
      %6770 = vmatprep.subr.mxu0 0.0
      %6771 = vmatpush1.msra.mxu0 0.0
      %6772 = vmatprep.subr.mxu0 0.0
      %6773 = vmatpush1.msra.mxu0 0.0
      %6774 = vmatprep.subr.mxu0 0.0
      %6775 = vmatpush1.msra.mxu0 0.0
      %6776 = vmatprep.subr.mxu0 0.0
      %6777 = vmatpush1.msra.mxu0 0.0
      %6778 = vmatprep.subr.mxu0 0.0
      %6779 = vmatpush1.msra.mxu0 0.0
      %6780 = vmatprep.subr.mxu0 0.0
      %6781 = vmatpush1.msra.mxu0 %v6747
      %6782 = vmatprep.subr.mxu0 0.0
      %6783 = vmatpush1.msra.mxu0 %v6745
      %6784 = vmatprep.subr.mxu0 0.0
      %6785 = vmatpush1.msra.mxu0 %v6743
      %6786 = vmatprep.subr.mxu0 0.0
      %6787 = vmatpush1.msra.mxu0 %v6741
      %6788 = vmatprep.subr.mxu0 0.0
      %6789 = vmatpush2.msra.mxu0 0.0
      %6790 = vmatprep.subr.mxu0 0.0
      %6791 = vmatpush2.msra.mxu0 0.0
      %6792 = vmatprep.subr.mxu0 0.0
      %6793 = vmatpush2.msra.mxu0 0.0
      %6794 = vmatprep.subr.mxu0 0.0
      %6795 = vmatpush2.msra.mxu0 0.0
      %6796 = vmatprep.subr.mxu0 0.0
      %6797 = vmatpush2.msra.mxu0 0.0
      %6798 = vmatprep.subr.mxu0 0.0
      %6799 = vmatpush2.msra.mxu0 0.0
      %6800 = vmatprep.subr.mxu0 0.0
      %6801 = vmatpush2.msra.mxu0 0.0
      %6802 = vmatprep.subr.mxu0 0.0
      %6803 = vmatpush2.msra.mxu0 0.0
      %6804 = vmatprep.subr.mxu0 0.0
      %6805 = vmatpush2.msra.mxu0 0.0
      %6806 = vmatprep.subr.mxu0 0.0
      %6807 = vmatpush2.msra.mxu0 0.0
      %6808 = vmatprep.subr.mxu0 0.0
      %6809 = vmatpush2.msra.mxu0 0.0
      %6810 = vmatprep.subr.mxu0 0.0
      %6811 = vmatpush2.msra.mxu0 0.0
      %6812 = vmatprep.subr.mxu0 0.0
      %6813 = vmatpush2.msra.mxu0 0.0
      %6814 = vmatprep.subr.mxu0 0.0
      %6815 = vmatpush2.msra.mxu0 0.0
      %6816 = vmatprep.subr.mxu0 0.0
      %6817 = vmatpush2.msra.mxu0 0.0
      %6818 = vmatprep.subr.mxu0 0.0
      %6819 = vmatpush2.msra.mxu0 0.0
      %6820 = vmatprep.mubr.f32.mxu0 0.0
      %6821 = vmatmul.mubr.f32.gmra.mxu0 %v6754
      %v6822 = vpop.f32.mrf.mxu0
      %v6823 = vadd.f32 0.0, %v6822
      %v6824 = vpop.f32.mrf.mxu0
      %6825 = vdwg.mxu0
      %v6827 = vsel %vm6752, %v6729, 0
      %6829 = vmatprep.subr.mxu0 0.0
      %6830 = vmatpush1.msra.mxu0 0.0
      %6831 = vmatprep.subr.mxu0 0.0
      %6832 = vmatpush1.msra.mxu0 0.0
      %6833 = vmatprep.subr.mxu0 0.0
      %6834 = vmatpush1.msra.mxu0 0.0
      %6835 = vmatprep.subr.mxu0 0.0
      %6836 = vmatpush1.msra.mxu0 0.0
      %6837 = vmatprep.subr.mxu0 0.0
      %6838 = vmatpush1.msra.mxu0 0.0
      %6839 = vmatprep.subr.mxu0 0.0
      %6840 = vmatpush1.msra.mxu0 0.0
      %6841 = vmatprep.subr.mxu0 0.0
      %6842 = vmatpush1.msra.mxu0 0.0
      %6843 = vmatprep.subr.mxu0 0.0
      %6844 = vmatpush1.msra.mxu0 0.0
      %6845 = vmatprep.subr.mxu0 0.0
      %6846 = vmatpush1.msra.mxu0 0.0
      %6847 = vmatprep.subr.mxu0 0.0
      %6848 = vmatpush1.msra.mxu0 0.0
      %6849 = vmatprep.subr.mxu0 0.0
      %6850 = vmatpush1.msra.mxu0 0.0
      %6851 = vmatprep.subr.mxu0 0.0
      %6852 = vmatpush1.msra.mxu0 0.0
      %6853 = vmatprep.subr.mxu0 0.0
      %6854 = vmatpush1.msra.mxu0 %v6733
      %6855 = vmatprep.subr.mxu0 0.0
      %6856 = vmatpush1.msra.mxu0 %v6732
      %6857 = vmatprep.subr.mxu0 0.0
      %6858 = vmatpush1.msra.mxu0 %v6731
      %6859 = vmatprep.subr.mxu0 0.0
      %6860 = vmatpush1.msra.mxu0 %v6730
      %6861 = vmatprep.subr.mxu0 0.0
      %6862 = vmatpush2.msra.mxu0 0.0
      %6863 = vmatprep.subr.mxu0 0.0
      %6864 = vmatpush2.msra.mxu0 0.0
      %6865 = vmatprep.subr.mxu0 0.0
      %6866 = vmatpush2.msra.mxu0 0.0
      %6867 = vmatprep.subr.mxu0 0.0
      %6868 = vmatpush2.msra.mxu0 0.0
      %6869 = vmatprep.subr.mxu0 0.0
      %6870 = vmatpush2.msra.mxu0 0.0
      %6871 = vmatprep.subr.mxu0 0.0
      %6872 = vmatpush2.msra.mxu0 0.0
      %6873 = vmatprep.subr.mxu0 0.0
      %6874 = vmatpush2.msra.mxu0 0.0
      %6875 = vmatprep.subr.mxu0 0.0
      %6876 = vmatpush2.msra.mxu0 0.0
      %6877 = vmatprep.subr.mxu0 0.0
      %6878 = vmatpush2.msra.mxu0 0.0
      %6879 = vmatprep.subr.mxu0 0.0
      %6880 = vmatpush2.msra.mxu0 0.0
      %6881 = vmatprep.subr.mxu0 0.0
      %6882 = vmatpush2.msra.mxu0 0.0
      %6883 = vmatprep.subr.mxu0 0.0
      %6884 = vmatpush2.msra.mxu0 0.0
      %6885 = vmatprep.subr.mxu0 0.0
      %6886 = vmatpush2.msra.mxu0 0.0
      %6887 = vmatprep.subr.mxu0 0.0
      %6888 = vmatpush2.msra.mxu0 0.0
      %6889 = vmatprep.subr.mxu0 0.0
      %6890 = vmatpush2.msra.mxu0 0.0
      %6891 = vmatprep.subr.mxu0 0.0
      %6892 = vmatpush2.msra.mxu0 0.0
      %6893 = vmatprep.mubr.f32.mxu0 0.0
      %6894 = vmatmul.mubr.f32.gmra.mxu0 %v6827
      %v6895 = vpop.f32.mrf.mxu0
      %v6896 = vadd.f32 %v6823, %v6895
      %v6897 = vpop.f32.mrf.mxu0
      %6898 = vdwg.mxu0
      %s6899 = scalar_lea.vmem %s5, 16
      %v6900 = vld [vmem:[%s6899] sm:$0xff]
      %6901 = vrot.lane.b32.xlu0 %v6730, 126
      %v6902 = vpop.permute.xlu0 %6901
      %6903 = vrot.lane.b32.xlu0 %v6731, 126
      %v6904 = vpop.permute.xlu0 %6903
      %6905 = vrot.lane.b32.xlu0 %v6732, 126
      %v6906 = vpop.permute.xlu0 %6905
      %6907 = vrot.lane.b32.xlu0 %v6733, 126
      %v6908 = vpop.permute.xlu0 %6907
      %v6914 = vsel %vm6752, %v6900, 0
      %6916 = vmatprep.subr.mxu0 0.0
      %6917 = vmatpush1.msra.mxu0 0.0
      %6918 = vmatprep.subr.mxu0 0.0
      %6919 = vmatpush1.msra.mxu0 0.0
      %6920 = vmatprep.subr.mxu0 0.0
      %6921 = vmatpush1.msra.mxu0 0.0
      %6922 = vmatprep.subr.mxu0 0.0
      %6923 = vmatpush1.msra.mxu0 0.0
      %6924 = vmatprep.subr.mxu0 0.0
      %6925 = vmatpush1.msra.mxu0 0.0
      %6926 = vmatprep.subr.mxu0 0.0
      %6927 = vmatpush1.msra.mxu0 0.0
      %6928 = vmatprep.subr.mxu0 0.0
      %6929 = vmatpush1.msra.mxu0 0.0
      %6930 = vmatprep.subr.mxu0 0.0
      %6931 = vmatpush1.msra.mxu0 0.0
      %6932 = vmatprep.subr.mxu0 0.0
      %6933 = vmatpush1.msra.mxu0 0.0
      %6934 = vmatprep.subr.mxu0 0.0
      %6935 = vmatpush1.msra.mxu0 0.0
      %6936 = vmatprep.subr.mxu0 0.0
      %6937 = vmatpush1.msra.mxu0 0.0
      %6938 = vmatprep.subr.mxu0 0.0
      %6939 = vmatpush1.msra.mxu0 0.0
      %6940 = vmatprep.subr.mxu0 0.0
      %6941 = vmatpush1.msra.mxu0 %v6908
      %6942 = vmatprep.subr.mxu0 0.0
      %6943 = vmatpush1.msra.mxu0 %v6906
      %6944 = vmatprep.subr.mxu0 0.0
      %6945 = vmatpush1.msra.mxu0 %v6904
      %6946 = vmatprep.subr.mxu0 0.0
      %6947 = vmatpush1.msra.mxu0 %v6902
      %6948 = vmatprep.subr.mxu0 0.0
      %6949 = vmatpush2.msra.mxu0 0.0
      %6950 = vmatprep.subr.mxu0 0.0
      %6951 = vmatpush2.msra.mxu0 0.0
      %6952 = vmatprep.subr.mxu0 0.0
      %6953 = vmatpush2.msra.mxu0 0.0
      %6954 = vmatprep.subr.mxu0 0.0
      %6955 = vmatpush2.msra.mxu0 0.0
      %6956 = vmatprep.subr.mxu0 0.0
      %6957 = vmatpush2.msra.mxu0 0.0
      %6958 = vmatprep.subr.mxu0 0.0
      %6959 = vmatpush2.msra.mxu0 0.0
      %6960 = vmatprep.subr.mxu0 0.0
      %6961 = vmatpush2.msra.mxu0 0.0
      %6962 = vmatprep.subr.mxu0 0.0
      %6963 = vmatpush2.msra.mxu0 0.0
      %6964 = vmatprep.subr.mxu0 0.0
      %6965 = vmatpush2.msra.mxu0 0.0
      %6966 = vmatprep.subr.mxu0 0.0
      %6967 = vmatpush2.msra.mxu0 0.0
      %6968 = vmatprep.subr.mxu0 0.0
      %6969 = vmatpush2.msra.mxu0 0.0
      %6970 = vmatprep.subr.mxu0 0.0
      %6971 = vmatpush2.msra.mxu0 0.0
      %6972 = vmatprep.subr.mxu0 0.0
      %6973 = vmatpush2.msra.mxu0 0.0
      %6974 = vmatprep.subr.mxu0 0.0
      %6975 = vmatpush2.msra.mxu0 0.0
      %6976 = vmatprep.subr.mxu0 0.0
      %6977 = vmatpush2.msra.mxu0 0.0
      %6978 = vmatprep.subr.mxu0 0.0
      %6979 = vmatpush2.msra.mxu0 0.0
      %6980 = vmatprep.mubr.f32.mxu0 0.0
      %6981 = vmatmul.mubr.f32.gmra.mxu0 %v6914
      %v6982 = vpop.f32.mrf.mxu0
      %v6983 = vadd.f32 0.0, %v6982
      %v6984 = vpop.f32.mrf.mxu0
      %6985 = vdwg.mxu0
      %v6986 = vadd.f32 %v6896, %v6983
      %s6987 = scalar_lea.vmem %s5, 24
      %v6988 = vld [vmem:[%s6987] sm:$0xff]
      %6989 = vrot.lane.b32.xlu0 %v6730, 123
      %v6990 = vpop.permute.xlu0 %6989
      %6991 = vrot.lane.b32.xlu0 %v6731, 123
      %v6992 = vpop.permute.xlu0 %6991
      %6993 = vrot.lane.b32.xlu0 %v6732, 123
      %v6994 = vpop.permute.xlu0 %6993
      %6995 = vrot.lane.b32.xlu0 %v6733, 123
      %v6996 = vpop.permute.xlu0 %6995
      %v7002 = vsel %vm6752, %v6988, 0
      %7004 = vmatprep.subr.mxu0 0.0
      %7005 = vmatpush1.msra.mxu0 0.0
      %7006 = vmatprep.subr.mxu0 0.0
      %7007 = vmatpush1.msra.mxu0 0.0
      %7008 = vmatprep.subr.mxu0 0.0
      %7009 = vmatpush1.msra.mxu0 0.0
      %7010 = vmatprep.subr.mxu0 0.0
      %7011 = vmatpush1.msra.mxu0 0.0
      %7012 = vmatprep.subr.mxu0 0.0
      %7013 = vmatpush1.msra.mxu0 0.0
      %7014 = vmatprep.subr.mxu0 0.0
      %7015 = vmatpush1.msra.mxu0 0.0
      %7016 = vmatprep.subr.mxu0 0.0
      %7017 = vmatpush1.msra.mxu0 0.0
      %7018 = vmatprep.subr.mxu0 0.0
      %7019 = vmatpush1.msra.mxu0 0.0
      %7020 = vmatprep.subr.mxu0 0.0
      %7021 = vmatpush1.msra.mxu0 0.0
      %7022 = vmatprep.subr.mxu0 0.0
      %7023 = vmatpush1.msra.mxu0 0.0
      %7024 = vmatprep.subr.mxu0 0.0
      %7025 = vmatpush1.msra.mxu0 0.0
      %7026 = vmatprep.subr.mxu0 0.0
      %7027 = vmatpush1.msra.mxu0 0.0
      %7028 = vmatprep.subr.mxu0 0.0
      %7029 = vmatpush1.msra.mxu0 %v6996
      %7030 = vmatprep.subr.mxu0 0.0
      %7031 = vmatpush1.msra.mxu0 %v6994
      %7032 = vmatprep.subr.mxu0 0.0
      %7033 = vmatpush1.msra.mxu0 %v6992
      %7034 = vmatprep.subr.mxu0 0.0
      %7035 = vmatpush1.msra.mxu0 %v6990
      %7036 = vmatprep.subr.mxu0 0.0
      %7037 = vmatpush2.msra.mxu0 0.0
      %7038 = vmatprep.subr.mxu0 0.0
      %7039 = vmatpush2.msra.mxu0 0.0
      %7040 = vmatprep.subr.mxu0 0.0
      %7041 = vmatpush2.msra.mxu0 0.0
      %7042 = vmatprep.subr.mxu0 0.0
      %7043 = vmatpush2.msra.mxu0 0.0
      %7044 = vmatprep.subr.mxu0 0.0
      %7045 = vmatpush2.msra.mxu0 0.0
      %7046 = vmatprep.subr.mxu0 0.0
      %7047 = vmatpush2.msra.mxu0 0.0
      %7048 = vmatprep.subr.mxu0 0.0
      %7049 = vmatpush2.msra.mxu0 0.0
      %7050 = vmatprep.subr.mxu0 0.0
      %7051 = vmatpush2.msra.mxu0 0.0
      %7052 = vmatprep.subr.mxu0 0.0
      %7053 = vmatpush2.msra.mxu0 0.0
      %7054 = vmatprep.subr.mxu0 0.0
      %7055 = vmatpush2.msra.mxu0 0.0
      %7056 = vmatprep.subr.mxu0 0.0
      %7057 = vmatpush2.msra.mxu0 0.0
      %7058 = vmatprep.subr.mxu0 0.0
      %7059 = vmatpush2.msra.mxu0 0.0
      %7060 = vmatprep.subr.mxu0 0.0
      %7061 = vmatpush2.msra.mxu0 0.0
      %7062 = vmatprep.subr.mxu0 0.0
      %7063 = vmatpush2.msra.mxu0 0.0
      %7064 = vmatprep.subr.mxu0 0.0
      %7065 = vmatpush2.msra.mxu0 0.0
      %7066 = vmatprep.subr.mxu0 0.0
      %7067 = vmatpush2.msra.mxu0 0.0
      %7068 = vmatprep.mubr.f32.mxu0 0.0
      %7069 = vmatmul.mubr.f32.gmra.mxu0 %v7002
      %v7070 = vpop.f32.mrf.mxu0
      %v7071 = vadd.f32 0.0, %v7070
      %v7072 = vpop.f32.mrf.mxu0
      %7073 = vdwg.mxu0
      %v7074 = vadd.f32 %v6986, %v7071
      %s7075 = scalar_lea.vmem %s5, 32
      %v7076 = vld [vmem:[%s7075] sm:$0xff]
      %7077 = vrot.lane.b32.xlu0 %v6730, 122
      %v7078 = vpop.permute.xlu0 %7077
      %7079 = vrot.lane.b32.xlu0 %v6731, 122
      %v7080 = vpop.permute.xlu0 %7079
      %7081 = vrot.lane.b32.xlu0 %v6732, 122
      %v7082 = vpop.permute.xlu0 %7081
      %7083 = vrot.lane.b32.xlu0 %v6733, 122
      %v7084 = vpop.permute.xlu0 %7083
      %v7090 = vsel %vm6752, %v7076, 0
      %7092 = vmatprep.subr.mxu0 0.0
      %7093 = vmatpush1.msra.mxu0 0.0
      %7094 = vmatprep.subr.mxu0 0.0
      %7095 = vmatpush1.msra.mxu0 0.0
      %7096 = vmatprep.subr.mxu0 0.0
      %7097 = vmatpush1.msra.mxu0 0.0
      %7098 = vmatprep.subr.mxu0 0.0
      %7099 = vmatpush1.msra.mxu0 0.0
      %7100 = vmatprep.subr.mxu0 0.0
      %7101 = vmatpush1.msra.mxu0 0.0
      %7102 = vmatprep.subr.mxu0 0.0
      %7103 = vmatpush1.msra.mxu0 0.0
      %7104 = vmatprep.subr.mxu0 0.0
      %7105 = vmatpush1.msra.mxu0 0.0
      %7106 = vmatprep.subr.mxu0 0.0
      %7107 = vmatpush1.msra.mxu0 0.0
      %7108 = vmatprep.subr.mxu0 0.0
      %7109 = vmatpush1.msra.mxu0 0.0
      %7110 = vmatprep.subr.mxu0 0.0
      %7111 = vmatpush1.msra.mxu0 0.0
      %7112 = vmatprep.subr.mxu0 0.0
      %7113 = vmatpush1.msra.mxu0 0.0
      %7114 = vmatprep.subr.mxu0 0.0
      %7115 = vmatpush1.msra.mxu0 0.0
      %7116 = vmatprep.subr.mxu0 0.0
      %7117 = vmatpush1.msra.mxu0 %v7084
      %7118 = vmatprep.subr.mxu0 0.0
      %7119 = vmatpush1.msra.mxu0 %v7082
      %7120 = vmatprep.subr.mxu0 0.0
      %7121 = vmatpush1.msra.mxu0 %v7080
      %7122 = vmatprep.subr.mxu0 0.0
      %7123 = vmatpush1.msra.mxu0 %v7078
      %7124 = vmatprep.subr.mxu0 0.0
      %7125 = vmatpush2.msra.mxu0 0.0
      %7126 = vmatprep.subr.mxu0 0.0
      %7127 = vmatpush2.msra.mxu0 0.0
      %7128 = vmatprep.subr.mxu0 0.0
      %7129 = vmatpush2.msra.mxu0 0.0
      %7130 = vmatprep.subr.mxu0 0.0
      %7131 = vmatpush2.msra.mxu0 0.0
      %7132 = vmatprep.subr.mxu0 0.0
      %7133 = vmatpush2.msra.mxu0 0.0
      %7134 = vmatprep.subr.mxu0 0.0
      %7135 = vmatpush2.msra.mxu0 0.0
      %7136 = vmatprep.subr.mxu0 0.0
      %7137 = vmatpush2.msra.mxu0 0.0
      %7138 = vmatprep.subr.mxu0 0.0
      %7139 = vmatpush2.msra.mxu0 0.0
      %7140 = vmatprep.subr.mxu0 0.0
      %7141 = vmatpush2.msra.mxu0 0.0
      %7142 = vmatprep.subr.mxu0 0.0
      %7143 = vmatpush2.msra.mxu0 0.0
      %7144 = vmatprep.subr.mxu0 0.0
      %7145 = vmatpush2.msra.mxu0 0.0
      %7146 = vmatprep.subr.mxu0 0.0
      %7147 = vmatpush2.msra.mxu0 0.0
      %7148 = vmatprep.subr.mxu0 0.0
      %7149 = vmatpush2.msra.mxu0 0.0
      %7150 = vmatprep.subr.mxu0 0.0
      %7151 = vmatpush2.msra.mxu0 0.0
      %7152 = vmatprep.subr.mxu0 0.0
      %7153 = vmatpush2.msra.mxu0 0.0
      %7154 = vmatprep.subr.mxu0 0.0
      %7155 = vmatpush2.msra.mxu0 0.0
      %7156 = vmatprep.mubr.f32.mxu0 0.0
      %7157 = vmatmul.mubr.f32.gmra.mxu0 %v7090
      %v7158 = vpop.f32.mrf.mxu0
      %v7159 = vadd.f32 0.0, %v7158
      %v7160 = vpop.f32.mrf.mxu0
      %7161 = vdwg.mxu0
      %v7162 = vadd.f32 %v7074, %v7159
      %s7163 = scalar_lea.vmem %s5, 40
      %v7164 = vld [vmem:[%s7163] sm:$0xff]
      %7165 = vrot.lane.b32.xlu0 %v6730, 121
      %v7166 = vpop.permute.xlu0 %7165
      %7167 = vrot.lane.b32.xlu0 %v6731, 121
      %v7168 = vpop.permute.xlu0 %7167
      %7169 = vrot.lane.b32.xlu0 %v6732, 121
      %v7170 = vpop.permute.xlu0 %7169
      %7171 = vrot.lane.b32.xlu0 %v6733, 121
      %v7172 = vpop.permute.xlu0 %7171
      %v7178 = vsel %vm6752, %v7164, 0
      %7180 = vmatprep.subr.mxu0 0.0
      %7181 = vmatpush1.msra.mxu0 0.0
      %7182 = vmatprep.subr.mxu0 0.0
      %7183 = vmatpush1.msra.mxu0 0.0
      %7184 = vmatprep.subr.mxu0 0.0
      %7185 = vmatpush1.msra.mxu0 0.0
      %7186 = vmatprep.subr.mxu0 0.0
      %7187 = vmatpush1.msra.mxu0 0.0
      %7188 = vmatprep.subr.mxu0 0.0
      %7189 = vmatpush1.msra.mxu0 0.0
      %7190 = vmatprep.subr.mxu0 0.0
      %7191 = vmatpush1.msra.mxu0 0.0
      %7192 = vmatprep.subr.mxu0 0.0
      %7193 = vmatpush1.msra.mxu0 0.0
      %7194 = vmatprep.subr.mxu0 0.0
      %7195 = vmatpush1.msra.mxu0 0.0
      %7196 = vmatprep.subr.mxu0 0.0
      %7197 = vmatpush1.msra.mxu0 0.0
      %7198 = vmatprep.subr.mxu0 0.0
      %7199 = vmatpush1.msra.mxu0 0.0
      %7200 = vmatprep.subr.mxu0 0.0
      %7201 = vmatpush1.msra.mxu0 0.0
      %7202 = vmatprep.subr.mxu0 0.0
      %7203 = vmatpush1.msra.mxu0 0.0
      %7204 = vmatprep.subr.mxu0 0.0
      %7205 = vmatpush1.msra.mxu0 %v7172
      %7206 = vmatprep.subr.mxu0 0.0
      %7207 = vmatpush1.msra.mxu0 %v7170
      %7208 = vmatprep.subr.mxu0 0.0
      %7209 = vmatpush1.msra.mxu0 %v7168
      %7210 = vmatprep.subr.mxu0 0.0
      %7211 = vmatpush1.msra.mxu0 %v7166
      %7212 = vmatprep.subr.mxu0 0.0
      %7213 = vmatpush2.msra.mxu0 0.0
      %7214 = vmatprep.subr.mxu0 0.0
      %7215 = vmatpush2.msra.mxu0 0.0
      %7216 = vmatprep.subr.mxu0 0.0
      %7217 = vmatpush2.msra.mxu0 0.0
      %7218 = vmatprep.subr.mxu0 0.0
      %7219 = vmatpush2.msra.mxu0 0.0
      %7220 = vmatprep.subr.mxu0 0.0
      %7221 = vmatpush2.msra.mxu0 0.0
      %7222 = vmatprep.subr.mxu0 0.0
      %7223 = vmatpush2.msra.mxu0 0.0
      %7224 = vmatprep.subr.mxu0 0.0
      %7225 = vmatpush2.msra.mxu0 0.0
      %7226 = vmatprep.subr.mxu0 0.0
      %7227 = vmatpush2.msra.mxu0 0.0
      %7228 = vmatprep.subr.mxu0 0.0
      %7229 = vmatpush2.msra.mxu0 0.0
      %7230 = vmatprep.subr.mxu0 0.0
      %7231 = vmatpush2.msra.mxu0 0.0
      %7232 = vmatprep.subr.mxu0 0.0
      %7233 = vmatpush2.msra.mxu0 0.0
      %7234 = vmatprep.subr.mxu0 0.0
      %7235 = vmatpush2.msra.mxu0 0.0
      %7236 = vmatprep.subr.mxu0 0.0
      %7237 = vmatpush2.msra.mxu0 0.0
      %7238 = vmatprep.subr.mxu0 0.0
      %7239 = vmatpush2.msra.mxu0 0.0
      %7240 = vmatprep.subr.mxu0 0.0
      %7241 = vmatpush2.msra.mxu0 0.0
      %7242 = vmatprep.subr.mxu0 0.0
      %7243 = vmatpush2.msra.mxu0 0.0
      %7244 = vmatprep.mubr.f32.mxu0 0.0
      %7245 = vmatmul.mubr.f32.gmra.mxu0 %v7178
      %v7246 = vpop.f32.mrf.mxu0
      %v7247 = vadd.f32 0.0, %v7246
      %v7248 = vpop.f32.mrf.mxu0
      %7249 = vdwg.mxu0
      %v7250 = vadd.f32 %v7162, %v7247
      %s7251 = scalar_lea.vmem %s5, 48
      %v7252 = vld [vmem:[%s7251] sm:$0xff]
      %7253 = vrot.lane.b32.xlu0 %v6730, 118
      %v7254 = vpop.permute.xlu0 %7253
      %7255 = vrot.lane.b32.xlu0 %v6731, 118
      %v7256 = vpop.permute.xlu0 %7255
      %7257 = vrot.lane.b32.xlu0 %v6732, 118
      %v7258 = vpop.permute.xlu0 %7257
      %7259 = vrot.lane.b32.xlu0 %v6733, 118
      %v7260 = vpop.permute.xlu0 %7259
      %v7266 = vsel %vm6752, %v7252, 0
      %7268 = vmatprep.subr.mxu0 0.0
      %7269 = vmatpush1.msra.mxu0 0.0
      %7270 = vmatprep.subr.mxu0 0.0
      %7271 = vmatpush1.msra.mxu0 0.0
      %7272 = vmatprep.subr.mxu0 0.0
      %7273 = vmatpush1.msra.mxu0 0.0
      %7274 = vmatprep.subr.mxu0 0.0
      %7275 = vmatpush1.msra.mxu0 0.0
      %7276 = vmatprep.subr.mxu0 0.0
      %7277 = vmatpush1.msra.mxu0 0.0
      %7278 = vmatprep.subr.mxu0 0.0
      %7279 = vmatpush1.msra.mxu0 0.0
      %7280 = vmatprep.subr.mxu0 0.0
      %7281 = vmatpush1.msra.mxu0 0.0
      %7282 = vmatprep.subr.mxu0 0.0
      %7283 = vmatpush1.msra.mxu0 0.0
      %7284 = vmatprep.subr.mxu0 0.0
      %7285 = vmatpush1.msra.mxu0 0.0
      %7286 = vmatprep.subr.mxu0 0.0
      %7287 = vmatpush1.msra.mxu0 0.0
      %7288 = vmatprep.subr.mxu0 0.0
      %7289 = vmatpush1.msra.mxu0 0.0
      %7290 = vmatprep.subr.mxu0 0.0
      %7291 = vmatpush1.msra.mxu0 0.0
      %7292 = vmatprep.subr.mxu0 0.0
      %7293 = vmatpush1.msra.mxu0 %v7260
      %7294 = vmatprep.subr.mxu0 0.0
      %7295 = vmatpush1.msra.mxu0 %v7258
      %7296 = vmatprep.subr.mxu0 0.0
      %7297 = vmatpush1.msra.mxu0 %v7256
      %7298 = vmatprep.subr.mxu0 0.0
      %7299 = vmatpush1.msra.mxu0 %v7254
      %7300 = vmatprep.subr.mxu0 0.0
      %7301 = vmatpush2.msra.mxu0 0.0
      %7302 = vmatprep.subr.mxu0 0.0
      %7303 = vmatpush2.msra.mxu0 0.0
      %7304 = vmatprep.subr.mxu0 0.0
      %7305 = vmatpush2.msra.mxu0 0.0
      %7306 = vmatprep.subr.mxu0 0.0
      %7307 = vmatpush2.msra.mxu0 0.0
      %7308 = vmatprep.subr.mxu0 0.0
      %7309 = vmatpush2.msra.mxu0 0.0
      %7310 = vmatprep.subr.mxu0 0.0
      %7311 = vmatpush2.msra.mxu0 0.0
      %7312 = vmatprep.subr.mxu0 0.0
      %7313 = vmatpush2.msra.mxu0 0.0
      %7314 = vmatprep.subr.mxu0 0.0
      %7315 = vmatpush2.msra.mxu0 0.0
      %7316 = vmatprep.subr.mxu0 0.0
      %7317 = vmatpush2.msra.mxu0 0.0
      %7318 = vmatprep.subr.mxu0 0.0
      %7319 = vmatpush2.msra.mxu0 0.0
      %7320 = vmatprep.subr.mxu0 0.0
      %7321 = vmatpush2.msra.mxu0 0.0
      %7322 = vmatprep.subr.mxu0 0.0
      %7323 = vmatpush2.msra.mxu0 0.0
      %7324 = vmatprep.subr.mxu0 0.0
      %7325 = vmatpush2.msra.mxu0 0.0
      %7326 = vmatprep.subr.mxu0 0.0
      %7327 = vmatpush2.msra.mxu0 0.0
      %7328 = vmatprep.subr.mxu0 0.0
      %7329 = vmatpush2.msra.mxu0 0.0
      %7330 = vmatprep.subr.mxu0 0.0
      %7331 = vmatpush2.msra.mxu0 0.0
      %7332 = vmatprep.mubr.f32.mxu0 0.0
      %7333 = vmatmul.mubr.f32.gmra.mxu0 %v7266
      %v7334 = vpop.f32.mrf.mxu0
      %v7335 = vadd.f32 0.0, %v7334
      %v7336 = vpop.f32.mrf.mxu0
      %7337 = vdwg.mxu0
      %v7338 = vadd.f32 %v7250, %v7335
      %s7339 = scalar_lea.vmem %s5, 56
      %v7340 = vld [vmem:[%s7339] sm:$0xff]
      %7341 = vrot.lane.b32.xlu0 %v6730, 117
      %v7342 = vpop.permute.xlu0 %7341
      %7343 = vrot.lane.b32.xlu0 %v6731, 117
      %v7344 = vpop.permute.xlu0 %7343
      %7345 = vrot.lane.b32.xlu0 %v6732, 117
      %v7346 = vpop.permute.xlu0 %7345
      %7347 = vrot.lane.b32.xlu0 %v6733, 117
      %v7348 = vpop.permute.xlu0 %7347
      %v7354 = vsel %vm6752, %v7340, 0
      %7356 = vmatprep.subr.mxu0 0.0
      %7357 = vmatpush1.msra.mxu0 0.0
      %7358 = vmatprep.subr.mxu0 0.0
      %7359 = vmatpush1.msra.mxu0 0.0
      %7360 = vmatprep.subr.mxu0 0.0
      %7361 = vmatpush1.msra.mxu0 0.0
      %7362 = vmatprep.subr.mxu0 0.0
      %7363 = vmatpush1.msra.mxu0 0.0
      %7364 = vmatprep.subr.mxu0 0.0
      %7365 = vmatpush1.msra.mxu0 0.0
      %7366 = vmatprep.subr.mxu0 0.0
      %7367 = vmatpush1.msra.mxu0 0.0
      %7368 = vmatprep.subr.mxu0 0.0
      %7369 = vmatpush1.msra.mxu0 0.0
      %7370 = vmatprep.subr.mxu0 0.0
      %7371 = vmatpush1.msra.mxu0 0.0
      %7372 = vmatprep.subr.mxu0 0.0
      %7373 = vmatpush1.msra.mxu0 0.0
      %7374 = vmatprep.subr.mxu0 0.0
      %7375 = vmatpush1.msra.mxu0 0.0
      %7376 = vmatprep.subr.mxu0 0.0
      %7377 = vmatpush1.msra.mxu0 0.0
      %7378 = vmatprep.subr.mxu0 0.0
      %7379 = vmatpush1.msra.mxu0 0.0
      %7380 = vmatprep.subr.mxu0 0.0
      %7381 = vmatpush1.msra.mxu0 %v7348
      %7382 = vmatprep.subr.mxu0 0.0
      %7383 = vmatpush1.msra.mxu0 %v7346
      %7384 = vmatprep.subr.mxu0 0.0
      %7385 = vmatpush1.msra.mxu0 %v7344
      %7386 = vmatprep.subr.mxu0 0.0
      %7387 = vmatpush1.msra.mxu0 %v7342
      %7388 = vmatprep.subr.mxu0 0.0
      %7389 = vmatpush2.msra.mxu0 0.0
      %7390 = vmatprep.subr.mxu0 0.0
      %7391 = vmatpush2.msra.mxu0 0.0
      %7392 = vmatprep.subr.mxu0 0.0
      %7393 = vmatpush2.msra.mxu0 0.0
      %7394 = vmatprep.subr.mxu0 0.0
      %7395 = vmatpush2.msra.mxu0 0.0
      %7396 = vmatprep.subr.mxu0 0.0
      %7397 = vmatpush2.msra.mxu0 0.0
      %7398 = vmatprep.subr.mxu0 0.0
      %7399 = vmatpush2.msra.mxu0 0.0
      %7400 = vmatprep.subr.mxu0 0.0
      %7401 = vmatpush2.msra.mxu0 0.0
      %7402 = vmatprep.subr.mxu0 0.0
      %7403 = vmatpush2.msra.mxu0 0.0
      %7404 = vmatprep.subr.mxu0 0.0
      %7405 = vmatpush2.msra.mxu0 0.0
      %7406 = vmatprep.subr.mxu0 0.0
      %7407 = vmatpush2.msra.mxu0 0.0
      %7408 = vmatprep.subr.mxu0 0.0
      %7409 = vmatpush2.msra.mxu0 0.0
      %7410 = vmatprep.subr.mxu0 0.0
      %7411 = vmatpush2.msra.mxu0 0.0
      %7412 = vmatprep.subr.mxu0 0.0
      %7413 = vmatpush2.msra.mxu0 0.0
      %7414 = vmatprep.subr.mxu0 0.0
      %7415 = vmatpush2.msra.mxu0 0.0
      %7416 = vmatprep.subr.mxu0 0.0
      %7417 = vmatpush2.msra.mxu0 0.0
      %7418 = vmatprep.subr.mxu0 0.0
      %7419 = vmatpush2.msra.mxu0 0.0
      %7420 = vmatprep.mubr.f32.mxu0 0.0
      %7421 = vmatmul.mubr.f32.gmra.mxu0 %v7354
      %v7422 = vpop.f32.mrf.mxu0
      %v7423 = vadd.f32 0.0, %v7422
      %v7424 = vpop.f32.mrf.mxu0
      %7425 = vdwg.mxu0
      %v7426 = vadd.f32 %v7338, %v7423
      %s7427 = scalar_lea.vmem %s5, 64
      %v7428 = vld [vmem:[%s7427] sm:$0xff]
      %7429 = vrot.lane.b32.xlu0 %v6730, 116
      %v7430 = vpop.permute.xlu0 %7429
      %7431 = vrot.lane.b32.xlu0 %v6731, 116
      %v7432 = vpop.permute.xlu0 %7431
      %7433 = vrot.lane.b32.xlu0 %v6732, 116
      %v7434 = vpop.permute.xlu0 %7433
      %7435 = vrot.lane.b32.xlu0 %v6733, 116
      %v7436 = vpop.permute.xlu0 %7435
      %v7442 = vsel %vm6752, %v7428, 0
      %7444 = vmatprep.subr.mxu0 0.0
      %7445 = vmatpush1.msra.mxu0 0.0
      %7446 = vmatprep.subr.mxu0 0.0
      %7447 = vmatpush1.msra.mxu0 0.0
      %7448 = vmatprep.subr.mxu0 0.0
      %7449 = vmatpush1.msra.mxu0 0.0
      %7450 = vmatprep.subr.mxu0 0.0
      %7451 = vmatpush1.msra.mxu0 0.0
      %7452 = vmatprep.subr.mxu0 0.0
      %7453 = vmatpush1.msra.mxu0 0.0
      %7454 = vmatprep.subr.mxu0 0.0
      %7455 = vmatpush1.msra.mxu0 0.0
      %7456 = vmatprep.subr.mxu0 0.0
      %7457 = vmatpush1.msra.mxu0 0.0
      %7458 = vmatprep.subr.mxu0 0.0
      %7459 = vmatpush1.msra.mxu0 0.0
      %7460 = vmatprep.subr.mxu0 0.0
      %7461 = vmatpush1.msra.mxu0 0.0
      %7462 = vmatprep.subr.mxu0 0.0
      %7463 = vmatpush1.msra.mxu0 0.0
      %7464 = vmatprep.subr.mxu0 0.0
      %7465 = vmatpush1.msra.mxu0 0.0
      %7466 = vmatprep.subr.mxu0 0.0
      %7467 = vmatpush1.msra.mxu0 0.0
      %7468 = vmatprep.subr.mxu0 0.0
      %7469 = vmatpush1.msra.mxu0 %v7436
      %7470 = vmatprep.subr.mxu0 0.0
      %7471 = vmatpush1.msra.mxu0 %v7434
      %7472 = vmatprep.subr.mxu0 0.0
      %7473 = vmatpush1.msra.mxu0 %v7432
      %7474 = vmatprep.subr.mxu0 0.0
      %7475 = vmatpush1.msra.mxu0 %v7430
      %7476 = vmatprep.subr.mxu0 0.0
      %7477 = vmatpush2.msra.mxu0 0.0
      %7478 = vmatprep.subr.mxu0 0.0
      %7479 = vmatpush2.msra.mxu0 0.0
      %7480 = vmatprep.subr.mxu0 0.0
      %7481 = vmatpush2.msra.mxu0 0.0
      %7482 = vmatprep.subr.mxu0 0.0
      %7483 = vmatpush2.msra.mxu0 0.0
      %7484 = vmatprep.subr.mxu0 0.0
      %7485 = vmatpush2.msra.mxu0 0.0
      %7486 = vmatprep.subr.mxu0 0.0
      %7487 = vmatpush2.msra.mxu0 0.0
      %7488 = vmatprep.subr.mxu0 0.0
      %7489 = vmatpush2.msra.mxu0 0.0
      %7490 = vmatprep.subr.mxu0 0.0
      %7491 = vmatpush2.msra.mxu0 0.0
      %7492 = vmatprep.subr.mxu0 0.0
      %7493 = vmatpush2.msra.mxu0 0.0
      %7494 = vmatprep.subr.mxu0 0.0
      %7495 = vmatpush2.msra.mxu0 0.0
      %7496 = vmatprep.subr.mxu0 0.0
      %7497 = vmatpush2.msra.mxu0 0.0
      %7498 = vmatprep.subr.mxu0 0.0
      %7499 = vmatpush2.msra.mxu0 0.0
      %7500 = vmatprep.subr.mxu0 0.0
      %7501 = vmatpush2.msra.mxu0 0.0
      %7502 = vmatprep.subr.mxu0 0.0
      %7503 = vmatpush2.msra.mxu0 0.0
      %7504 = vmatprep.subr.mxu0 0.0
      %7505 = vmatpush2.msra.mxu0 0.0
      %7506 = vmatprep.subr.mxu0 0.0
      %7507 = vmatpush2.msra.mxu0 0.0
      %7508 = vmatprep.mubr.f32.mxu0 0.0
      %7509 = vmatmul.mubr.f32.gmra.mxu0 %v7442
      %v7510 = vpop.f32.mrf.mxu0
      %v7511 = vadd.f32 0.0, %v7510
      %v7512 = vpop.f32.mrf.mxu0
      %7513 = vdwg.mxu0
      %v7514 = vadd.f32 %v7426, %v7511
      %v7515 = vld [vmem:[%s6] sm:$0xff]
      %7517 = vset.pattern.permute.xlu0 0
      %7518 = vperm.xlu0 %7517, %v7515
      %v7519 = vpop.permute.xlu0 %7518
      %v7521 = vadd.f32 %v7514, %v7519
      %vm7522 = vcmp.lt.s32.totalorder %v3493, 0
      %v7523 = vsub.s32 0, %v3493
      %v7524 = vsel %vm7522, %v7523, %v3493
      %v7525 = vmul.u32.u64.compose %v7524, 3435973837
      %v7526 = vextract.low.u32 %v7525
      %v7527 = vextract.high.u32 %v7525
      %v7528 = vshrl.u32 %v7527, 2
      %v7529 = vmul.u32 %v7528, 5
      %v7530 = vsub.s32 %v7524, %v7529
      %v7531 = vsub.s32 0, %v7530
      %v7532 = vsel %vm7522, %v7531, %v7530
      %vm7533 = vcmp.ne.s32.totalorder %v7532, 0
      %vm7534 = vcmp.lt.s32.totalorder %v7532, 0
      %vm7535 = vmand %vm7534, %vm7533
      %v7536 = vadd.s32 %v7532, 5
      %v7537 = vsel %vm7535, %v7536, %v7532
      %vm7538 = vcmp.lt.s32.totalorder %v7537, 3
      %v7539 = vsel %vm7538, 1, 0
      %vm7540 = vcmp.eq.s32.totalorder %v7539, 1
      %v7541 = vsel %vm7540, %v7521, -inf
      %7543 = vrot.lane.b32.xlu0 %v7541, 6
      %v7544 = vpop.permute.xlu0 %7543
      %vm7546 = vcmask 171056
      %7547 = vst.msk [vmem:[#allocation6] sm:$0xff] %vm7546, %v7544
      %v7548 = vld [vmem:[#allocation6] sm:$0xff]
      %7550 = vrot.lane.b32.xlu0 %v7548, 123
      %v7551 = vpop.permute.xlu0 %7550
      %v7553 = vmax.f32 %v7548, %v7551
      %7554 = vrot.lane.b32.xlu0 %v7548, 118
      %v7555 = vpop.permute.xlu0 %7554
      %v7557 = vmax.f32 %v7553, %v7555
      %7559 = vrot.lane.b32.xlu0 %v7557, 127
      %v7560 = vpop.permute.xlu0 %7559
      %v7562 = vmax.f32 %v7557, %v7560
      %7563 = vrot.lane.b32.xlu0 %v7557, 126
      %v7564 = vpop.permute.xlu0 %7563
      %v7566 = vmax.f32 %v7562, %v7564
      %vm7567 = vcmask 23552
      %v7569 = vsel %vm7567, %v7566, 0
      %v7572 = vsel %vm3791, %v6110, 0
      %7574 = vmatprep.subr.mxu0 0.0
      %7575 = vmatpush1.msra.mxu0 0.0
      %7576 = vmatprep.subr.mxu0 0.0
      %7577 = vmatpush1.msra.mxu0 0.0
      %7578 = vmatprep.subr.mxu0 0.0
      %7579 = vmatpush1.msra.mxu0 0.0
      %7580 = vmatprep.subr.mxu0 0.0
      %7581 = vmatpush1.msra.mxu0 0.0
      %7582 = vmatprep.subr.mxu0 0.0
      %7583 = vmatpush1.msra.mxu0 0.0
      %7584 = vmatprep.subr.mxu0 0.0
      %7585 = vmatpush1.msra.mxu0 0.0
      %7586 = vmatprep.subr.mxu0 0.0
      %7587 = vmatpush1.msra.mxu0 0.0
      %7588 = vmatprep.subr.mxu0 0.0
      %7589 = vmatpush1.msra.mxu0 0.0
      %7590 = vmatprep.subr.mxu0 0.0
      %7591 = vmatpush1.msra.mxu0 0.0
      %7592 = vmatprep.subr.mxu0 0.0
      %7593 = vmatpush1.msra.mxu0 0.0
      %7594 = vmatprep.subr.mxu0 0.0
      %7595 = vmatpush1.msra.mxu0 0.0
      %7596 = vmatprep.subr.mxu0 0.0
      %7597 = vmatpush1.msra.mxu0 0.0
      %7598 = vmatprep.subr.mxu0 0.0
      %7599 = vmatpush1.msra.mxu0 0.0
      %7600 = vmatprep.subr.mxu0 0.0
      %7601 = vmatpush1.msra.mxu0 0.0
      %7602 = vmatprep.subr.mxu0 0.0
      %7603 = vmatpush1.msra.mxu0 0.0
      %7604 = vmatprep.subr.mxu0 0.0
      %7605 = vmatpush1.msra.mxu0 %v7572
      %7606 = vmatprep.subr.mxu0 0.0
      %7607 = vmatpush2.msra.mxu0 0.0
      %7608 = vmatprep.subr.mxu0 0.0
      %7609 = vmatpush2.msra.mxu0 0.0
      %7610 = vmatprep.subr.mxu0 0.0
      %7611 = vmatpush2.msra.mxu0 0.0
      %7612 = vmatprep.subr.mxu0 0.0
      %7613 = vmatpush2.msra.mxu0 0.0
      %7614 = vmatprep.subr.mxu0 0.0
      %7615 = vmatpush2.msra.mxu0 0.0
      %7616 = vmatprep.subr.mxu0 0.0
      %7617 = vmatpush2.msra.mxu0 0.0
      %7618 = vmatprep.subr.mxu0 0.0
      %7619 = vmatpush2.msra.mxu0 0.0
      %7620 = vmatprep.subr.mxu0 0.0
      %7621 = vmatpush2.msra.mxu0 0.0
      %7622 = vmatprep.subr.mxu0 0.0
      %7623 = vmatpush2.msra.mxu0 0.0
      %7624 = vmatprep.subr.mxu0 0.0
      %7625 = vmatpush2.msra.mxu0 0.0
      %7626 = vmatprep.subr.mxu0 0.0
      %7627 = vmatpush2.msra.mxu0 0.0
      %7628 = vmatprep.subr.mxu0 0.0
      %7629 = vmatpush2.msra.mxu0 0.0
      %7630 = vmatprep.subr.mxu0 0.0
      %7631 = vmatpush2.msra.mxu0 0.0
      %7632 = vmatprep.subr.mxu0 0.0
      %7633 = vmatpush2.msra.mxu0 0.0
      %7634 = vmatprep.subr.mxu0 0.0
      %7635 = vmatpush2.msra.mxu0 0.0
      %7636 = vmatprep.subr.mxu0 0.0
      %7637 = vmatpush2.msra.mxu0 0.0
      %7638 = vmatprep.mubr.f32.mxu0 0.0
      %7639 = vmatmul.mubr.f32.gmra.mxu0 %v7569
      %v7640 = vpop.f32.mrf.mxu0
      %v7641 = vadd.f32 0.0, %v7640
      %v7642 = vpop.f32.mrf.mxu0
      %7643 = vdwg.mxu0
      %v7644 = vmax.f32 %v7641, 0.0
      %vm7645 = vcmask 7168
      %7646 = vst.msk [vmem:[%s276] sm:$0xff] %vm7645, %v7644
      %p7647 = scmp.lt.s32.totalorder %s18, 1
      %s7648 = scalar_select %p7647, %s18, 1
      %s7649 = smul.addr %s7648, 8
      %s7650 = scalar_lea.vmem %s7, %s7649
      // Predicated region
      $region49: #{flower_net_2_forward.1} parent=47 // pred_check
        %p7651 = pneg %p188
      $region50: #{flower_net_2_forward.1} parent=47 // pred_check_branch
        %7653 = sbr.rel (%p7651) target = $region52
      $region51: #{flower_net_2_forward.1} parent=47 // pred_region
        _
      $region52: #{flower_net_2_forward.1} parent=47 // pred_fallthru
        _
    $region48: #{flower_net_2_forward.1} parent=5 // pred_fallthru
      _
    %p7654 = scmp.le.s32.totalorder 2, %s13
    // Predicated region
    $region53: #{flower_net_2_forward.1} parent=5 // pred_check
      %p7655 = pneg %p7654
    $region54: #{flower_net_2_forward.1} parent=5 // pred_check_branch
      %7657 = sbr.rel (%p7655) target = $region56
    $region55: #{flower_net_2_forward.1} parent=5 // pred_region
      %s7658 = ssub.s32 %s13, 2
      // Predicated region
      $region57: #{flower_net_2_forward.1} parent=55 // pred_check
        %p7659 = pneg %p194
      $region58: #{flower_net_2_forward.1} parent=55 // pred_check_branch
        %7661 = sbr.rel (%p7659) target = $region60
      $region59: #{flower_net_2_forward.1} parent=55 // pred_region
        %p7662 = scmp.lt.s32.totalorder %s19, 1
        %s7663 = scalar_select %p7662, %s19, 1
        %s7664 = smul.addr %s7663, 8
        %s7665 = scalar_lea.vmem %s7, %s7664
      $region60: #{flower_net_2_forward.1} parent=55 // pred_fallthru
        _
    $region56: #{flower_net_2_forward.1} parent=5 // pred_fallthru
      _
  $region6: #{flower_net_2_forward.1} parent=0 // loop_footer
    %s17 = sadd.s32 1, %s13
  $region7: #{flower_net_2_forward.1} parent=0 // loop_footer_branch
    %12 = sbr.rel target = $region3
  $region8: #{flower_net_2_forward.1} parent=0 // loop_exit
    _

</llo_original>
